<compile_context>
chip_gen: v6e
topology: v6e:2x2x1
jax: 0.10.0
libtpu: 0.0.40
codegen_flags: <defaults>
</compile_context>

<pallas_src>
import functools

import jax
import jax.numpy as jnp
from jax.experimental import pallas as pl
from jax.experimental.pallas import tpu as pltpu


# ----------------------------------------------------------------------------
# helpers
# ----------------------------------------------------------------------------
def _round_up(x, m):
    return (x + m - 1) // m * m


def _pad_axis(a, axis, size):
    if a.shape[axis] == size:
        return a
    pads = [(0, 0)] * a.ndim
    pads[axis] = (0, size - a.shape[axis])
    return jnp.pad(a, pads)


# ----------------------------------------------------------------------------
# Fused (GroupNorm + SiLU +) conv kernel: tap-loop of MXU matmuls in VMEM
# ----------------------------------------------------------------------------
def _conv_kernel(*refs, KH, KW, pad, H, W, fuse_gn, has_res, num_groups, cpg, eps,
                 inv_count):
    idx = 0
    x_ref = refs[idx]; idx += 1
    if fuse_gn:
        gamma_ref, beta_ref = refs[idx], refs[idx + 1]; idx += 2
    w_ref, b_ref = refs[idx], refs[idx + 1]; idx += 2
    if has_res:
        res_ref = refs[idx]; idx += 1
    o_ref = refs[idx]

    x = x_ref[0].astype(jnp.float32)                         # (Hp, Wp, Cin_p)
    Hp, Wp, Cin = x.shape
    Ho, Wo, Co = o_ref.shape[1], o_ref.shape[2], o_ref.shape[3]

    if fuse_gn:
        # GroupNorm statistics computed in-register in exact f32.  The spatial zero-pad
        # rows/cols and the zero-padded channels contribute exactly 0 to the sums, and
        # inv_count = 1 / (channels_per_group * H * W) uses the real extents, so the
        # statistics equal the unpadded torch GroupNorm statistics.
        s1 = jnp.sum(x, axis=(0, 1), keepdims=True).reshape(1, Cin)
        s2 = jnp.sum(x * x, axis=(0, 1), keepdims=True).reshape(1, Cin)
        ch = jax.lax.broadcasted_iota(jnp.int32, (1, Cin), 1)
        mean_c = jnp.zeros((1, Cin), jnp.float32)
        rstd_c = jnp.zeros((1, Cin), jnp.float32)
        for g in range(num_groups):                          # small static unroll
            in_g = (ch >= g * cpg) & (ch < (g + 1) * cpg)
            g1 = jnp.sum(jnp.where(in_g, s1, 0.0), keepdims=True) * inv_count   # (1,1)
            g2 = jnp.sum(jnp.where(in_g, s2, 0.0), keepdims=True) * inv_count
            rstd_g = jax.lax.rsqrt(g2 - g1 * g1 + eps)       # biased var, like torch
            mean_c = jnp.where(in_g, g1, mean_c)
            rstd_c = jnp.where(in_g, rstd_g, rstd_c)
        scale = gamma_ref[...].astype(jnp.float32) * rstd_c                    # (1, Cin)
        shift = beta_ref[...].astype(jnp.float32) - mean_c * scale
        # padded channels: gamma/beta are zero-padded and belong to no group -> scale =
        # shift = 0, so they stay exactly zero through GN + SiLU.
        x = x * scale.reshape(1, 1, Cin) + shift.reshape(1, 1, Cin)
        x = x * jax.nn.sigmoid(x)                            # SiLU
        if pad > 0:
            # The torch conv zero-pads the *activated* tensor; mask the border back to 0.
            ri = jax.lax.broadcasted_iota(jnp.int32, (Hp, Wp, 1), 0)
            ci = jax.lax.broadcasted_iota(jnp.int32, (Hp, Wp, 1), 1)
            valid = (ri >= pad) & (ri < pad + H) & (ci >= pad) & (ci < pad + W)
            x = jnp.where(valid, x, 0.0)

    acc = jnp.zeros((Ho * Wo, Co), jnp.float32)
    for kh in range(KH):
        for kw in range(KW):
            xt = x[kh:kh + Ho, kw:kw + Wo, :].reshape(Ho * Wo, Cin)
            acc = acc + jnp.dot(xt, w_ref[kh * KW + kw],
                                preferred_element_type=jnp.float32)
    acc = acc + b_ref[...].astype(jnp.float32)
    if has_res:
        acc = acc + res_ref[0].reshape(Ho * Wo, Co).astype(jnp.float32)
    o_ref[0] = acc.reshape(Ho, Wo, Co).astype(o_ref.dtype)


def conv2d_nhwc(x, w_p, b_p, *, ksize, pad, gn=None, residual=None):
    """Stride-1 conv on channel-padded NHWC activations.

    x: (B, H, W, Cin_p);  w_p: (KH*KW, Cin_p, Cout_p);  b_p: (1, Cout_p).
    gn (optional): dict(gamma=(1,Cin_p), beta=(1,Cin_p), c_real, num_groups, eps) --
    fuses GroupNorm + SiLU on the input.  residual (optional): (B, Ho, Wo, Cout_p)
    added to the output.  Grid = (batch, cout-tiles), both parallel.
    """
    # TODO(synk): add output-row tiling with halo DMA for large H*W (currently one padded
    # image per batch must fit VMEM; fine for typical discriminator feature maps).  Also
    # GN statistics are recomputed per cout-tile when Cout_p > 256.
    B, H, W, Cin_x = x.shape
    ntaps, Cin_w, Cout_p = w_p.shape
    assert Cin_w == Cin_x and ntaps == ksize * ksize
    xp = jnp.pad(x, ((0, 0), (pad, pad), (pad, pad), (0, 0))) if pad else x
    Hp, Wp = H + 2 * pad, W + 2 * pad
    Ho, Wo = Hp - ksize + 1, Wp - ksize + 1
    tco = 256 if Cout_p % 256 == 0 else 128
    n_co = Cout_p // tco

    fuse_gn = gn is not None
    has_res = residual is not None
    if fuse_gn:
        num_groups = gn["num_groups"]
        cpg = gn["c_real"] // num_groups
        eps = gn.get("eps", 1e-5)
        inv_count = 1.0 / float(cpg * H * W)
    else:
        num_groups, cpg, eps, inv_count = 0, 0, 0.0, 0.0

    kern = functools.partial(_conv_kernel, KH=ksize, KW=ksize, pad=pad, H=H, W=W,
                             fuse_gn=fuse_gn, has_res=has_res, num_groups=num_groups,
                             cpg=cpg, eps=eps, inv_count=inv_count)

    in_specs = [pl.BlockSpec((1, Hp, Wp, Cin_x), lambda b, j: (b, 0, 0, 0))]
    args = [xp]
    if fuse_gn:
        in_specs += [pl.BlockSpec((1, Cin_x), lambda b, j: (0, 0)),
                     pl.BlockSpec((1, Cin_x), lambda b, j: (0, 0))]
        args += [gn["gamma"], gn["beta"]]
    in_specs += [pl.BlockSpec((ntaps, Cin_x, tco), lambda b, j: (0, 0, j)),
                 pl.BlockSpec((1, tco), lambda b, j: (0, j))]
    args += [w_p, b_p]
    if has_res:
        in_specs.append(pl.BlockSpec((1, Ho, Wo, tco), lambda b, j: (b, 0, 0, j)))
        args.append(residual)

    bytes_io = 4 * (B * Hp * Wp * Cin_x + ntaps * Cin_x * Cout_p
                    + B * Ho * Wo * Cout_p * (2 if has_res else 1))
    return pl.pallas_call(
        kern,
        out_shape=jax.ShapeDtypeStruct((B, Ho, Wo, Cout_p), x.dtype),
        grid=(B, n_co),
        in_specs=in_specs,
        out_specs=pl.BlockSpec((1, Ho, Wo, tco), lambda b, j: (b, 0, 0, j)),
        compiler_params=pltpu.CompilerParams(dimension_semantics=("parallel", "parallel")),
        cost_estimate=pl.CostEstimate(
            flops=2 * B * Ho * Wo * ntaps * Cin_x * Cout_p,
            transcendentals=(B * Hp * Wp * Cin_x) if fuse_gn else 0,
            bytes_accessed=bytes_io),
    )(*args)


def downsample_conv(x, w_s2d, b_p):
    """4x4 / stride-2 / pad-1 conv as space-to-depth + a stride-1 2x2 conv kernel."""
    B, H, W, Cp = x.shape
    Ho, Wo = H // 2, W // 2
    xp = jnp.pad(x, ((0, 0), (1, 1), (1, 1), (0, 0)))
    phases = []
    for ph in range(2):
        for pw in range(2):
            phases.append(xp[:, ph::2, pw::2, :][:, :Ho + 1, :Wo + 1, :])
    xs = jnp.concatenate(phases, axis=-1)                    # (B, Ho+1, Wo+1, 4*Cp)
    return conv2d_nhwc(xs, w_s2d, b_p, ksize=2, pad=0)


# ----------------------------------------------------------------------------
# Fused attention block: "transposed" GroupNorm + QKV proj + SDPA + out proj + residual,
# one kernel invocation per batch element (all data stays in VMEM).
# ----------------------------------------------------------------------------
def _fused_attn_kernel(x_ref, gamma_ref, beta_ref, w_in_ref, w_out_ref, o_ref, *,
                       e_real, num_heads, num_groups, eps, inv_count):
    x = x_ref[0].astype(jnp.float32)                         # (L, Cp); padded cols are 0
    L, Cp = x.shape
    lpg = L // num_groups

    # GroupNorm with L (=H*W) playing the channel role (faithful to the torch code).
    s1 = jnp.sum(x, axis=1, keepdims=True)                   # (L, 1)
    s2 = jnp.sum(x * x, axis=1, keepdims=True)
    row = jax.lax.broadcasted_iota(jnp.int32, (L, 1), 0)
    mean_l = jnp.zeros((L, 1), jnp.float32)
    rstd_l = jnp.zeros((L, 1), jnp.float32)
    for g in range(num_groups):                              # small static unroll
        in_g = (row >= g * lpg) & (row < (g + 1) * lpg)
        g1 = jnp.sum(jnp.where(in_g, s1, 0.0), keepdims=True) * inv_count      # (1,1)
        g2 = jnp.sum(jnp.where(in_g, s2, 0.0), keepdims=True) * inv_count
        rstd_g = jax.lax.rsqrt(g2 - g1 * g1 + eps)
        mean_l = jnp.where(in_g, g1, mean_l)
        rstd_l = jnp.where(in_g, rstd_g, rstd_l)
    y = (x - mean_l) * rstd_l * gamma_ref[...] + beta_ref[...]          # (L, Cp)

    # QKV projection (bias-free).  Rows of w_in beyond the real channel count are zero,
    # so the (normalized) padded channels of y contribute nothing.
    qkv = jnp.dot(y, w_in_ref[...], preferred_element_type=jnp.float32)  # (L, >=3E)

    dh = e_real // num_heads
    scale = 1.0 / (dh ** 0.5)
    outs = []
    for h in range(num_heads):
        q = qkv[:, h * dh:(h + 1) * dh]
        k = qkv[:, e_real + h * dh:e_real + (h + 1) * dh]
        v = qkv[:, 2 * e_real + h * dh:2 * e_real + (h + 1) * dh]
        s = jnp.dot(q, k.T, preferred_element_type=jnp.float32) * scale
        s = s - jnp.max(s, axis=-1, keepdims=True)
        p = jnp.exp(s)
        p = p / jnp.sum(p, axis=-1, keepdims=True)
        outs.append(jnp.dot(p, v, preferred_element_type=jnp.float32))
    if Cp > e_real:
        outs.append(jnp.zeros((L, Cp - e_real), jnp.float32))            # keep padding 0
    attn_o = jnp.concatenate(outs, axis=-1)                               # (L, Cp)

    # Output projection + residual add ("out += out_attn").
    merged = x + jnp.dot(attn_o, w_out_ref[...], preferred_element_type=jnp.float32)
    o_ref[0] = merged.astype(o_ref.dtype)


def fused_attention(x, gamma, beta, w_in_p, w_out_p, *, e_real, num_heads, num_groups,
                    eps=1e-5):
    """x: (B, L, Cp) lane-dense with padded channels exactly zero."""
    B, L, Cp = x.shape
    P3 = w_in_p.shape[1]
    inv_count = 1.0 / float((L // num_groups) * e_real)
    kern = functools.partial(_fused_attn_kernel, e_real=e_real, num_heads=num_heads,
                             num_groups=num_groups, eps=eps, inv_count=inv_count)
    return pl.pallas_call(
        kern,
        out_shape=jax.ShapeDtypeStruct((B, L, Cp), x.dtype),
        grid=(B,),
        in_specs=[pl.BlockSpec((1, L, Cp), lambda b: (b, 0, 0)),
                  pl.BlockSpec((L, 1), lambda b: (0, 0)),
                  pl.BlockSpec((L, 1), lambda b: (0, 0)),
                  pl.BlockSpec((Cp, P3), lambda b: (0, 0)),
                  pl.BlockSpec((Cp, Cp), lambda b: (0, 0))],
        out_specs=pl.BlockSpec((1, L, Cp), lambda b: (b, 0, 0)),
        compiler_params=pltpu.CompilerParams(dimension_semantics=("parallel",)),
    )(x, gamma.reshape(L, 1).astype(jnp.float32), beta.reshape(L, 1).astype(jnp.float32),
      w_in_p, w_out_p)


# ----------------------------------------------------------------------------
# Parameter init (torch layout) + one-time kernel-ready preparation (pad to 128 lanes)
# ----------------------------------------------------------------------------
def spectral_normalize(w, n_iter=20):
    """Deterministic spectral normalization (power iteration) -- weight prep only."""
    wm = w.reshape(w.shape[0], -1)
    u = jnp.full((wm.shape[0],), 1.0 / jnp.sqrt(wm.shape[0]), wm.dtype)
    for _ in range(n_iter):
        v = wm.T @ u
        v = v / (jnp.linalg.norm(v) + 1e-12)
        u = wm @ v
        u = u / (jnp.linalg.norm(u) + 1e-12)
    sigma = u @ (wm @ v)
    return w / sigma


def init_params(key, in_ch, out_ch, num_layers, attn):
    layers = []
    for i in range(num_layers):
        cin = in_ch if i == 0 else out_ch
        keys = jax.random.split(key, 16)
        key = keys[-1]
        p = dict(
            gn1_w=1.0 + 0.1 * jax.random.normal(keys[0], (cin,), jnp.float32),
            gn1_b=0.1 * jax.random.normal(keys[1], (cin,), jnp.float32),
            conv1_w=spectral_normalize(0.2 * jax.random.normal(keys[2], (out_ch, cin, 3, 3), jnp.float32)),
            conv1_b=0.05 * jax.random.normal(keys[3], (out_ch,), jnp.float32),
            gn2_w=1.0 + 0.1 * jax.random.normal(keys[4], (out_ch,), jnp.float32),
            gn2_b=0.1 * jax.random.normal(keys[5], (out_ch,), jnp.float32),
            conv2_w=spectral_normalize(0.2 * jax.random.normal(keys[6], (out_ch, out_ch, 3, 3), jnp.float32)),
            conv2_b=0.05 * jax.random.normal(keys[7], (out_ch,), jnp.float32),
            res_w=spectral_normalize(0.2 * jax.random.normal(keys[8], (out_ch, cin, 1, 1), jnp.float32)),
            res_b=0.05 * jax.random.normal(keys[9], (out_ch,), jnp.float32),
        )
        if attn:
            p.update(
                attn_gn_w=1.0 + 0.1 * jax.random.normal(keys[10], (out_ch,), jnp.float32),
                attn_gn_b=0.1 * jax.random.normal(keys[11], (out_ch,), jnp.float32),
                in_proj_w=0.2 * jax.random.normal(keys[12], (3 * out_ch, out_ch), jnp.float32),
                out_proj_w=0.2 * jax.random.normal(keys[13], (out_ch, out_ch), jnp.float32),
            )
        layers.append(p)
    kd1, kd2 = jax.random.split(key)
    down = dict(
        w=spectral_normalize(0.2 * jax.random.normal(kd1, (out_ch, out_ch, 4, 4), jnp.float32)),
        b=0.05 * jax.random.normal(kd2, (out_ch,), jnp.float32),
    )
    return layers, down


def _prep_conv_weight(w, b, cin_p, cout_p):
    """torch (Cout, Cin, KH, KW) -> (KH*KW, cin_p, cout_p) tap-major, zero padded."""
    Cout, Cin, KH, KW = w.shape
    wt = jnp.transpose(w, (2, 3, 1, 0)).reshape(KH * KW, Cin, Cout)
    wt = _pad_axis(_pad_axis(wt, 1, cin_p), 2, cout_p)
    return wt, _pad_axis(b.reshape(1, Cout), 1, cout_p)


def _prep_s2d_weight(w, b, cin_p, cout_p):
    """4x4 stride-2 conv -> 2x2 stride-1 conv over 4 stacked input phases."""
    Cout, Cin, _, _ = w.shape
    parts = []
    for qh in range(2):
        for qw in range(2):
            blocks = []
            for ph in range(2):
                for pw in range(2):
                    blk = jnp.transpose(w[:, :, 2 * qh + ph, 2 * qw + pw], (1, 0))  # (Cin, Cout)
                    blocks.append(_pad_axis(_pad_axis(blk, 0, cin_p), 1, cout_p))
            parts.append(jnp.concatenate(blocks, axis=0))     # (4*cin_p, cout_p)
    wt = jnp.stack(parts, axis=0)                             # (4, 4*cin_p, cout_p)
    return wt, _pad_axis(b.reshape(1, Cout), 1, cout_p)


def prepare_params(layer_params, down_params, *, in_ch, out_ch, attn):
    cp = _round_up(max(in_ch, out_ch), 128)
    prepped = []
    for p in layer_params:
        q = dict(
            gn1_gamma=_pad_axis(p["gn1_w"].reshape(1, -1), 1, cp),
            gn1_beta=_pad_axis(p["gn1_b"].reshape(1, -1), 1, cp),
            gn2_gamma=_pad_axis(p["gn2_w"].reshape(1, -1), 1, cp),
            gn2_beta=_pad_axis(p["gn2_b"].reshape(1, -1), 1, cp),
        )
        q["conv1_w"], q["conv1_b"] = _prep_conv_weight(p["conv1_w"], p["conv1_b"], cp, cp)
        q["conv2_w"], q["conv2_b"] = _prep_conv_weight(p["conv2_w"], p["conv2_b"], cp, cp)
        q["res_w"], q["res_b"] = _prep_conv_weight(p["res_w"], p["res_b"], cp, cp)
        if attn:
            E = out_ch
            q["attn_gn_gamma"] = p["attn_gn_w"]
            q["attn_gn_beta"] = p["attn_gn_b"]
            w_in = jnp.transpose(p["in_proj_w"], (1, 0))                      # (E, 3E)
            q["in_proj_w"] = _pad_axis(_pad_axis(w_in, 0, cp), 1, _round_up(3 * E, 128))
            w_out = jnp.transpose(p["out_proj_w"], (1, 0))                    # (E, E)
            q["out_proj_w"] = _pad_axis(_pad_axis(w_out, 0, cp), 1, cp)
        prepped.append(q)
    d = None
    if down_params is not None:
        wd, bd = _prep_s2d_weight(down_params["w"], down_params["b"], cp, cp)
        d = dict(w=wd, b=bd)
    return prepped, d


# ----------------------------------------------------------------------------
# Forward pass (mirrors DiscriminatorDownBlock.forward)
# ----------------------------------------------------------------------------
def discriminator_down_block(x_nchw, layers_p, down_p, *, in_channels, out_channels,
                             num_heads, norm_channels, attn, down_sample):
    cp = _round_up(max(in_channels, out_channels), 128)
    B, _, H, W = x_nchw.shape
    out = _pad_axis(jnp.transpose(x_nchw, (0, 2, 3, 1)), 3, cp)      # NHWC, 128-padded

    for i, p in enumerate(layers_p):
        cin_real = in_channels if i == 0 else out_channels
        resnet_input = out
        # resnet_conv_first: GroupNorm -> SiLU -> 3x3 conv (all fused in one kernel)
        h = conv2d_nhwc(out, p["conv1_w"], p["conv1_b"], ksize=3, pad=1,
                        gn=dict(gamma=p["gn1_gamma"], beta=p["gn1_beta"],
                                c_real=cin_real, num_groups=norm_channels))
        # resnet_conv_second
        h2 = conv2d_nhwc(h, p["conv2_w"], p["conv2_b"], ksize=3, pad=1,
                         gn=dict(gamma=p["gn2_gamma"], beta=p["gn2_beta"],
                                 c_real=out_channels, num_groups=norm_channels))
        # residual 1x1 conv on the layer input; "out = conv2(...) + res(resnet_input)"
        out = conv2d_nhwc(resnet_input, p["res_w"], p["res_b"], ksize=1, pad=0,
                          residual=h2)

        if attn:
            L = H * W
            E = out_channels
            assert L == E and L % norm_channels == 0, \
                "attention GroupNorm (as written in torch) requires H*W == out_channels"
            att = fused_attention(out.reshape(B, L, cp),                 # free NHWC reshape
                                  p["attn_gn_gamma"], p["attn_gn_beta"],
                                  p["in_proj_w"], p["out_proj_w"],
                                  e_real=E, num_heads=num_heads, num_groups=norm_channels)
            out = att.reshape(B, H, W, cp)

    if down_sample:
        out = downsample_conv(out, down_p["w"], down_p["b"])

    out = out[..., :out_channels]                                    # strip channel padding
    return jnp.transpose(out, (0, 3, 1, 2))                          # back to NCHW


# ----------------------------------------------------------------------------
# Pure-JAX (NCHW) reference of the torch module, for correctness validation
# ----------------------------------------------------------------------------
def _ref_group_norm(x, gamma, beta, num_groups, eps=1e-5):
    B, C = x.shape[0], x.shape[1]
    orig = x.shape
    xg = x.reshape(B, num_groups, -1)
    mean = jnp.mean(xg, axis=-1, keepdims=True)
    var = jnp.mean((xg - mean) ** 2, axis=-1, keepdims=True)
    xn = ((xg - mean) * jax.lax.rsqrt(var + eps)).reshape(orig)
    shape = (1, C) + (1,) * (len(orig) - 2)
    return xn * gamma.reshape(shape) + beta.reshape(shape)


def _ref_conv2d(x, w, b, stride=1, padding=0):
    y = jax.lax.conv_general_dilated(
        x, w, window_strides=(stride, stride),
        padding=[(padding, padding), (padding, padding)],
        dimension_numbers=("NCHW", "OIHW", "NCHW"))
    return y + b.reshape(1, -1, 1, 1)


def reference_forward(x, layer_params, down_params, *, num_heads, norm_channels,
                      attn, down_sample):
    out = x
    for p in layer_params:
        resnet_input = out
        h = _ref_group_norm(out, p["gn1_w"], p["gn1_b"], norm_channels)
        h = h * jax.nn.sigmoid(h)
        h = _ref_conv2d(h, p["conv1_w"], p["conv1_b"], padding=1)
        h = _ref_group_norm(h, p["gn2_w"], p["gn2_b"], norm_channels)
        h = h * jax.nn.sigmoid(h)
        h = _ref_conv2d(h, p["conv2_w"], p["conv2_b"], padding=1)
        out = h + _ref_conv2d(resnet_input, p["res_w"], p["res_b"])
        if attn:
            B, C, H, W = out.shape
            L = H * W
            a = jnp.transpose(out.reshape(B, C, L), (0, 2, 1))            # (B, L, C)
            a = _ref_group_norm(a, p["attn_gn_w"], p["attn_gn_b"], norm_channels)
            E, nh = C, num_heads
            dh = E // nh
            qkv = a @ p["in_proj_w"].T                                    # (B, L, 3E)
            q, k, v = qkv[..., :E], qkv[..., E:2 * E], qkv[..., 2 * E:]
            def heads(t):
                return jnp.transpose(t.reshape(B, L, nh, dh), (0, 2, 1, 3))
            qh, kh, vh = heads(q), heads(k), heads(v)
            s = jnp.einsum("bhld,bhmd->bhlm", qh, kh) / (dh ** 0.5)
            pm = jax.nn.softmax(s, axis=-1)
            o = jnp.einsum("bhlm,bhmd->bhld", pm, vh)
            o = jnp.transpose(o, (0, 2, 1, 3)).reshape(B, L, E)
            o = o @ p["out_proj_w"].T
            out = out + jnp.transpose(o, (0, 2, 1)).reshape(B, C, H, W)
    if down_sample:
        out = _ref_conv2d(out, down_params["w"], down_params["b"], stride=2, padding=1)
    return out


# ----------------------------------------------------------------------------
if __name__ == "__main__":
    IN_CH, OUT_CH = 8, 16
    B, H, W = 2, 4, 4            # H*W == OUT_CH, required by the attn GroupNorm as written
    NUM_LAYERS, NUM_HEADS, NORM_CH = 2, 4, 4
    ATTN, DOWN = True, True

    key = jax.random.PRNGKey(0)
    kx, kp = jax.random.split(key)
    x = jax.random.normal(kx, (B, IN_CH, H, W), jnp.float32)
    layer_params, down_params = init_params(kp, IN_CH, OUT_CH, NUM_LAYERS, ATTN)
    prepped_layers, prepped_down = prepare_params(layer_params, down_params,
                                                  in_ch=IN_CH, out_ch=OUT_CH, attn=ATTN)

    fwd = jax.jit(functools.partial(
        discriminator_down_block,
        in_channels=IN_CH, out_channels=OUT_CH, num_heads=NUM_HEADS,
        norm_channels=NORM_CH, attn=ATTN, down_sample=DOWN))
    out = fwd(x, prepped_layers, prepped_down)
    jax.block_until_ready(out)
    assert out.shape == (B, OUT_CH, H // 2, W // 2), out.shape
    assert bool(jnp.all(jnp.isfinite(out)))

    ref = reference_forward(x, layer_params, down_params,
                            num_heads=NUM_HEADS, norm_channels=NORM_CH,
                            attn=ATTN, down_sample=DOWN)
    assert out.shape == ref.shape
    assert bool(jnp.allclose(out, ref, atol=3e-2, rtol=3e-2)), \
        float(jnp.max(jnp.abs(out - ref)))
    print("KERNEL_OK")
</pallas_src>

<mosaic_0001>
module attributes {stable_mosaic.version = 11 : i64} {
  func.func @_conv_kernel(%arg0: i32, %arg1: i32, %arg2: memref<1x6x6x128xf32, #tpu.memory_space<vmem>>, %arg3: memref<1x128xf32, #tpu.memory_space<vmem>>, %arg4: memref<1x128xf32, #tpu.memory_space<vmem>>, %arg5: memref<9x128x128xf32, #tpu.memory_space<vmem>>, %arg6: memref<1x128xf32, #tpu.memory_space<vmem>>, %arg7: memref<1x4x4x128xf32, #tpu.memory_space<vmem>>) attributes {dimension_semantics = [#tpu.dimension_semantics<parallel>, #tpu.dimension_semantics<parallel>], iteration_bounds = array<i64: 2, 1>, scalar_prefetch = 0 : i64, scratch_operands = 0 : i64, tpu.core_type = #tpu.core_type<tc>, window_params = [{transform_indices = @transform_0, window_bounds = array<i64: 1, 6, 6, 128>}, {pipeline_mode = #tpu.pipeline_mode<synchronous>, transform_indices = @transform_1, window_bounds = array<i64: 1, 128>}, {pipeline_mode = #tpu.pipeline_mode<synchronous>, transform_indices = @transform_2, window_bounds = array<i64: 1, 128>}, {transform_indices = @transform_3, window_bounds = array<i64: 9, 128, 128>}, {transform_indices = @transform_4, window_bounds = array<i64: 1, 128>}, {transform_indices = @transform_5, window_bounds = array<i64: 1, 4, 4, 128>}]} {
    %c0 = arith.constant 0 : index
    %c0_0 = arith.constant 0 : index
    %c0_1 = arith.constant 0 : index
    %c0_2 = arith.constant 0 : index
    %0 = vector.load %arg2[%c0, %c0_0, %c0_1, %c0_2] : memref<1x6x6x128xf32, #tpu.memory_space<vmem>>, vector<1x6x6x128xf32>
    %1 = vector.shape_cast %0 : vector<1x6x6x128xf32> to vector<6x6x128xf32>
    %cst = arith.constant dense<0.000000e+00> : vector<128xf32>
    %2 = vector.multi_reduction <add>, %1, %cst [0, 1] : vector<6x6x128xf32> to vector<128xf32>
    %3 = vector.shape_cast %2 : vector<128xf32> to vector<1x1x128xf32>
    %4 = vector.shape_cast %3 : vector<1x1x128xf32> to vector<1x128xf32>
    %5 = arith.mulf %1, %1 : vector<6x6x128xf32>
    %cst_3 = arith.constant dense<0.000000e+00> : vector<128xf32>
    %6 = vector.multi_reduction <add>, %5, %cst_3 [0, 1] : vector<6x6x128xf32> to vector<128xf32>
    %7 = vector.shape_cast %6 : vector<128xf32> to vector<1x1x128xf32>
    %8 = vector.shape_cast %7 : vector<1x1x128xf32> to vector<1x128xf32>
    %9 = tpu.iota {dimensions = array<i32: 1>} : vector<1x128xi32>
    %cst_4 = arith.constant 0.000000e+00 : f32
    %10 = vector.broadcast %cst_4 : f32 to vector<1x128xf32>
    %cst_5 = arith.constant 0.000000e+00 : f32
    %11 = vector.broadcast %cst_5 : f32 to vector<1x128xf32>
    %c0_i32 = arith.constant 0 : i32
    %12 = vector.broadcast %c0_i32 : i32 to vector<1x128xi32>
    %13 = arith.cmpi sge, %9, %12 : vector<1x128xi32>
    %c2_i32 = arith.constant 2 : i32
    %14 = vector.broadcast %c2_i32 : i32 to vector<1x128xi32>
    %15 = arith.cmpi slt, %9, %14 : vector<1x128xi32>
    %16 = arith.andi %13, %15 : vector<1x128xi1>
    %cst_6 = arith.constant 0.000000e+00 : f32
    %17 = vector.broadcast %cst_6 : f32 to vector<1x128xf32>
    %18 = arith.select %16, %4, %17 : vector<1x128xi1>, vector<1x128xf32>
    %19 = vector.shape_cast %18 : vector<1x128xf32> to vector<1x1x128xf32>
    %cst_7 = arith.constant dense<0.000000e+00> : vector<1xf32>
    %20 = vector.multi_reduction <add>, %19, %cst_7 [1, 2] : vector<1x1x128xf32> to vector<1xf32>
    %21 = vector.shape_cast %20 : vector<1xf32> to vector<1x1x1xf32>
    %22 = vector.extract %21[0, 0, 0] : f32 from vector<1x1x1xf32>
    %23 = vector.broadcast %22 : f32 to vector<1x1xf32>
    %cst_8 = arith.constant 3.125000e-02 : f32
    %24 = vector.broadcast %cst_8 : f32 to vector<1x1xf32>
    %25 = arith.mulf %23, %24 : vector<1x1xf32>
    %cst_9 = arith.constant 0.000000e+00 : f32
    %26 = vector.broadcast %cst_9 : f32 to vector<1x128xf32>
    %27 = arith.select %16, %8, %26 : vector<1x128xi1>, vector<1x128xf32>
    %28 = vector.shape_cast %27 : vector<1x128xf32> to vector<1x1x128xf32>
    %cst_10 = arith.constant dense<0.000000e+00> : vector<1xf32>
    %29 = vector.multi_reduction <add>, %28, %cst_10 [1, 2] : vector<1x1x128xf32> to vector<1xf32>
    %30 = vector.shape_cast %29 : vector<1xf32> to vector<1x1x1xf32>
    %31 = vector.extract %30[0, 0, 0] : f32 from vector<1x1x1xf32>
    %32 = vector.broadcast %31 : f32 to vector<1x1xf32>
    %cst_11 = arith.constant 3.125000e-02 : f32
    %33 = vector.broadcast %cst_11 : f32 to vector<1x1xf32>
    %34 = arith.mulf %32, %33 : vector<1x1xf32>
    %35 = arith.mulf %25, %25 : vector<1x1xf32>
    %36 = arith.subf %34, %35 : vector<1x1xf32>
    %cst_12 = arith.constant 9.99999974E-6 : f32
    %37 = vector.broadcast %cst_12 : f32 to vector<1x1xf32>
    %38 = arith.addf %36, %37 : vector<1x1xf32>
    %39 = math.rsqrt %38 : vector<1x1xf32>
    %40 = vector.shape_cast %25 : vector<1x1xf32> to vector<1x1xf32>
    %41 = vector.broadcast %40 : vector<1x1xf32> to vector<1x128xf32>
    %42 = arith.select %16, %41, %10 : vector<1x128xi1>, vector<1x128xf32>
    %43 = vector.shape_cast %39 : vector<1x1xf32> to vector<1x1xf32>
    %44 = vector.broadcast %43 : vector<1x1xf32> to vector<1x128xf32>
    %45 = arith.select %16, %44, %11 : vector<1x128xi1>, vector<1x128xf32>
    %c2_i32_13 = arith.constant 2 : i32
    %46 = vector.broadcast %c2_i32_13 : i32 to vector<1x128xi32>
    %47 = arith.cmpi sge, %9, %46 : vector<1x128xi32>
    %c4_i32 = arith.constant 4 : i32
    %48 = vector.broadcast %c4_i32 : i32 to vector<1x128xi32>
    %49 = arith.cmpi slt, %9, %48 : vector<1x128xi32>
    %50 = arith.andi %47, %49 : vector<1x128xi1>
    %cst_14 = arith.constant 0.000000e+00 : f32
    %51 = vector.broadcast %cst_14 : f32 to vector<1x128xf32>
    %52 = arith.select %50, %4, %51 : vector<1x128xi1>, vector<1x128xf32>
    %53 = vector.shape_cast %52 : vector<1x128xf32> to vector<1x1x128xf32>
    %cst_15 = arith.constant dense<0.000000e+00> : vector<1xf32>
    %54 = vector.multi_reduction <add>, %53, %cst_15 [1, 2] : vector<1x1x128xf32> to vector<1xf32>
    %55 = vector.shape_cast %54 : vector<1xf32> to vector<1x1x1xf32>
    %56 = vector.extract %55[0, 0, 0] : f32 from vector<1x1x1xf32>
    %57 = vector.broadcast %56 : f32 to vector<1x1xf32>
    %cst_16 = arith.constant 3.125000e-02 : f32
    %58 = vector.broadcast %cst_16 : f32 to vector<1x1xf32>
    %59 = arith.mulf %57, %58 : vector<1x1xf32>
    %cst_17 = arith.constant 0.000000e+00 : f32
    %60 = vector.broadcast %cst_17 : f32 to vector<1x128xf32>
    %61 = arith.select %50, %8, %60 : vector<1x128xi1>, vector<1x128xf32>
    %62 = vector.shape_cast %61 : vector<1x128xf32> to vector<1x1x128xf32>
    %cst_18 = arith.constant dense<0.000000e+00> : vector<1xf32>
    %63 = vector.multi_reduction <add>, %62, %cst_18 [1, 2] : vector<1x1x128xf32> to vector<1xf32>
    %64 = vector.shape_cast %63 : vector<1xf32> to vector<1x1x1xf32>
    %65 = vector.extract %64[0, 0, 0] : f32 from vector<1x1x1xf32>
    %66 = vector.broadcast %65 : f32 to vector<1x1xf32>
    %cst_19 = arith.constant 3.125000e-02 : f32
    %67 = vector.broadcast %cst_19 : f32 to vector<1x1xf32>
    %68 = arith.mulf %66, %67 : vector<1x1xf32>
    %69 = arith.mulf %59, %59 : vector<1x1xf32>
    %70 = arith.subf %68, %69 : vector<1x1xf32>
    %cst_20 = arith.constant 9.99999974E-6 : f32
    %71 = vector.broadcast %cst_20 : f32 to vector<1x1xf32>
    %72 = arith.addf %70, %71 : vector<1x1xf32>
    %73 = math.rsqrt %72 : vector<1x1xf32>
    %74 = vector.shape_cast %59 : vector<1x1xf32> to vector<1x1xf32>
    %75 = vector.broadcast %74 : vector<1x1xf32> to vector<1x128xf32>
    %76 = arith.select %50, %75, %42 : vector<1x128xi1>, vector<1x128xf32>
    %77 = vector.shape_cast %73 : vector<1x1xf32> to vector<1x1xf32>
    %78 = vector.broadcast %77 : vector<1x1xf32> to vector<1x128xf32>
    %79 = arith.select %50, %78, %45 : vector<1x128xi1>, vector<1x128xf32>
    %c4_i32_21 = arith.constant 4 : i32
    %80 = vector.broadcast %c4_i32_21 : i32 to vector<1x128xi32>
    %81 = arith.cmpi sge, %9, %80 : vector<1x128xi32>
    %c6_i32 = arith.constant 6 : i32
    %82 = vector.broadcast %c6_i32 : i32 to vector<1x128xi32>
    %83 = arith.cmpi slt, %9, %82 : vector<1x128xi32>
    %84 = arith.andi %81, %83 : vector<1x128xi1>
    %cst_22 = arith.constant 0.000000e+00 : f32
    %85 = vector.broadcast %cst_22 : f32 to vector<1x128xf32>
    %86 = arith.select %84, %4, %85 : vector<1x128xi1>, vector<1x128xf32>
    %87 = vector.shape_cast %86 : vector<1x128xf32> to vector<1x1x128xf32>
    %cst_23 = arith.constant dense<0.000000e+00> : vector<1xf32>
    %88 = vector.multi_reduction <add>, %87, %cst_23 [1, 2] : vector<1x1x128xf32> to vector<1xf32>
    %89 = vector.shape_cast %88 : vector<1xf32> to vector<1x1x1xf32>
    %90 = vector.extract %89[0, 0, 0] : f32 from vector<1x1x1xf32>
    %91 = vector.broadcast %90 : f32 to vector<1x1xf32>
    %cst_24 = arith.constant 3.125000e-02 : f32
    %92 = vector.broadcast %cst_24 : f32 to vector<1x1xf32>
    %93 = arith.mulf %91, %92 : vector<1x1xf32>
    %cst_25 = arith.constant 0.000000e+00 : f32
    %94 = vector.broadcast %cst_25 : f32 to vector<1x128xf32>
    %95 = arith.select %84, %8, %94 : vector<1x128xi1>, vector<1x128xf32>
    %96 = vector.shape_cast %95 : vector<1x128xf32> to vector<1x1x128xf32>
    %cst_26 = arith.constant dense<0.000000e+00> : vector<1xf32>
    %97 = vector.multi_reduction <add>, %96, %cst_26 [1, 2] : vector<1x1x128xf32> to vector<1xf32>
    %98 = vector.shape_cast %97 : vector<1xf32> to vector<1x1x1xf32>
    %99 = vector.extract %98[0, 0, 0] : f32 from vector<1x1x1xf32>
    %100 = vector.broadcast %99 : f32 to vector<1x1xf32>
    %cst_27 = arith.constant 3.125000e-02 : f32
    %101 = vector.broadcast %cst_27 : f32 to vector<1x1xf32>
    %102 = arith.mulf %100, %101 : vector<1x1xf32>
    %103 = arith.mulf %93, %93 : vector<1x1xf32>
    %104 = arith.subf %102, %103 : vector<1x1xf32>
    %cst_28 = arith.constant 9.99999974E-6 : f32
    %105 = vector.broadcast %cst_28 : f32 to vector<1x1xf32>
    %106 = arith.addf %104, %105 : vector<1x1xf32>
    %107 = math.rsqrt %106 : vector<1x1xf32>
    %108 = vector.shape_cast %93 : vector<1x1xf32> to vector<1x1xf32>
    %109 = vector.broadcast %108 : vector<1x1xf32> to vector<1x128xf32>
    %110 = arith.select %84, %109, %76 : vector<1x128xi1>, vector<1x128xf32>
    %111 = vector.shape_cast %107 : vector<1x1xf32> to vector<1x1xf32>
    %112 = vector.broadcast %111 : vector<1x1xf32> to vector<1x128xf32>
    %113 = arith.select %84, %112, %79 : vector<1x128xi1>, vector<1x128xf32>
    %c6_i32_29 = arith.constant 6 : i32
    %114 = vector.broadcast %c6_i32_29 : i32 to vector<1x128xi32>
    %115 = arith.cmpi sge, %9, %114 : vector<1x128xi32>
    %c8_i32 = arith.constant 8 : i32
    %116 = vector.broadcast %c8_i32 : i32 to vector<1x128xi32>
    %117 = arith.cmpi slt, %9, %116 : vector<1x128xi32>
    %118 = arith.andi %115, %117 : vector<1x128xi1>
    %cst_30 = arith.constant 0.000000e+00 : f32
    %119 = vector.broadcast %cst_30 : f32 to vector<1x128xf32>
    %120 = arith.select %118, %4, %119 : vector<1x128xi1>, vector<1x128xf32>
    %121 = vector.shape_cast %120 : vector<1x128xf32> to vector<1x1x128xf32>
    %cst_31 = arith.constant dense<0.000000e+00> : vector<1xf32>
    %122 = vector.multi_reduction <add>, %121, %cst_31 [1, 2] : vector<1x1x128xf32> to vector<1xf32>
    %123 = vector.shape_cast %122 : vector<1xf32> to vector<1x1x1xf32>
    %124 = vector.extract %123[0, 0, 0] : f32 from vector<1x1x1xf32>
    %125 = vector.broadcast %124 : f32 to vector<1x1xf32>
    %cst_32 = arith.constant 3.125000e-02 : f32
    %126 = vector.broadcast %cst_32 : f32 to vector<1x1xf32>
    %127 = arith.mulf %125, %126 : vector<1x1xf32>
    %cst_33 = arith.constant 0.000000e+00 : f32
    %128 = vector.broadcast %cst_33 : f32 to vector<1x128xf32>
    %129 = arith.select %118, %8, %128 : vector<1x128xi1>, vector<1x128xf32>
    %130 = vector.shape_cast %129 : vector<1x128xf32> to vector<1x1x128xf32>
    %cst_34 = arith.constant dense<0.000000e+00> : vector<1xf32>
    %131 = vector.multi_reduction <add>, %130, %cst_34 [1, 2] : vector<1x1x128xf32> to vector<1xf32>
    %132 = vector.shape_cast %131 : vector<1xf32> to vector<1x1x1xf32>
    %133 = vector.extract %132[0, 0, 0] : f32 from vector<1x1x1xf32>
    %134 = vector.broadcast %133 : f32 to vector<1x1xf32>
    %cst_35 = arith.constant 3.125000e-02 : f32
    %135 = vector.broadcast %cst_35 : f32 to vector<1x1xf32>
    %136 = arith.mulf %134, %135 : vector<1x1xf32>
    %137 = arith.mulf %127, %127 : vector<1x1xf32>
    %138 = arith.subf %136, %137 : vector<1x1xf32>
    %cst_36 = arith.constant 9.99999974E-6 : f32
    %139 = vector.broadcast %cst_36 : f32 to vector<1x1xf32>
    %140 = arith.addf %138, %139 : vector<1x1xf32>
    %141 = math.rsqrt %140 : vector<1x1xf32>
    %142 = vector.shape_cast %127 : vector<1x1xf32> to vector<1x1xf32>
    %143 = vector.broadcast %142 : vector<1x1xf32> to vector<1x128xf32>
    %144 = arith.select %118, %143, %110 : vector<1x128xi1>, vector<1x128xf32>
    %145 = vector.shape_cast %141 : vector<1x1xf32> to vector<1x1xf32>
    %146 = vector.broadcast %145 : vector<1x1xf32> to vector<1x128xf32>
    %147 = arith.select %118, %146, %113 : vector<1x128xi1>, vector<1x128xf32>
    %c0_37 = arith.constant 0 : index
    %c0_38 = arith.constant 0 : index
    %148 = vector.load %arg3[%c0_37, %c0_38] : memref<1x128xf32, #tpu.memory_space<vmem>>, vector<1x128xf32>
    %149 = arith.mulf %148, %147 : vector<1x128xf32>
    %c0_39 = arith.constant 0 : index
    %c0_40 = arith.constant 0 : index
    %150 = vector.load %arg4[%c0_39, %c0_40] : memref<1x128xf32, #tpu.memory_space<vmem>>, vector<1x128xf32>
    %151 = arith.mulf %144, %149 : vector<1x128xf32>
    %152 = arith.subf %150, %151 : vector<1x128xf32>
    %153 = vector.shape_cast %149 : vector<1x128xf32> to vector<1x1x128xf32>
    %154 = vector.broadcast %153 : vector<1x1x128xf32> to vector<6x6x128xf32>
    %155 = arith.mulf %1, %154 : vector<6x6x128xf32>
    %156 = vector.shape_cast %152 : vector<1x128xf32> to vector<1x1x128xf32>
    %157 = vector.broadcast %156 : vector<1x1x128xf32> to vector<6x6x128xf32>
    %158 = arith.addf %155, %157 : vector<6x6x128xf32>
    %159 = arith.negf %158 : vector<6x6x128xf32>
    %160 = math.exp %159 : vector<6x6x128xf32>
    %cst_41 = arith.constant 1.000000e+00 : f32
    %161 = vector.broadcast %cst_41 : f32 to vector<6x6x128xf32>
    %162 = arith.addf %161, %160 : vector<6x6x128xf32>
    %163 = arith.divf %161, %162 : vector<6x6x128xf32>
    %164 = arith.mulf %158, %163 : vector<6x6x128xf32>
    %165 = tpu.iota {dimensions = array<i32: 0>} : vector<6x6x1xi32>
    %166 = tpu.iota {dimensions = array<i32: 1>} : vector<6x6x1xi32>
    %c1_i32 = arith.constant 1 : i32
    %167 = vector.broadcast %c1_i32 : i32 to vector<6x6x1xi32>
    %168 = arith.cmpi sge, %165, %167 : vector<6x6x1xi32>
    %c5_i32 = arith.constant 5 : i32
    %169 = vector.broadcast %c5_i32 : i32 to vector<6x6x1xi32>
    %170 = arith.cmpi slt, %165, %169 : vector<6x6x1xi32>
    %171 = arith.andi %168, %170 : vector<6x6x1xi1>
    %c1_i32_42 = arith.constant 1 : i32
    %172 = vector.broadcast %c1_i32_42 : i32 to vector<6x6x1xi32>
    %173 = arith.cmpi sge, %166, %172 : vector<6x6x1xi32>
    %174 = arith.andi %171, %173 : vector<6x6x1xi1>
    %c5_i32_43 = arith.constant 5 : i32
    %175 = vector.broadcast %c5_i32_43 : i32 to vector<6x6x1xi32>
    %176 = arith.cmpi slt, %166, %175 : vector<6x6x1xi32>
    %177 = arith.andi %174, %176 : vector<6x6x1xi1>
    %cst_44 = arith.constant 0.000000e+00 : f32
    %178 = vector.shape_cast %177 : vector<6x6x1xi1> to vector<6x6x1xi1>
    %179 = vector.broadcast %178 : vector<6x6x1xi1> to vector<6x6x128xi1>
    %180 = vector.broadcast %cst_44 : f32 to vector<6x6x128xf32>
    %181 = arith.select %179, %164, %180 : vector<6x6x128xi1>, vector<6x6x128xf32>
    %cst_45 = arith.constant 0.000000e+00 : f32
    %182 = vector.broadcast %cst_45 : f32 to vector<16x128xf32>
    %183 = vector.extract_strided_slice %181 {offsets = [0, 0, 0], sizes = [4, 4, 128], strides = [1, 1, 1]} : vector<6x6x128xf32> to vector<4x4x128xf32>
    %184 = vector.shape_cast %183 : vector<4x4x128xf32> to vector<16x128xf32>
    %c0_46 = arith.constant 0 : index
    %c0_47 = arith.constant 0 : index
    %c0_48 = arith.constant 0 : index
    %185 = vector.load %arg5[%c0_46, %c0_47, %c0_48] : memref<9x128x128xf32, #tpu.memory_space<vmem>>, vector<1x128x128xf32>
    %186 = vector.shape_cast %185 : vector<1x128x128xf32> to vector<128x128xf32>
    %cst_49 = arith.constant dense<0.000000e+00> : vector<16x128xf32>
    %187 = tpu.matmul %184, %186, %cst_49 {dimension_numbers = #tpu.dot_dimension_numbers<[1], [0], [0], [1], [0, 0, 1, 1], [], []>} : vector<16x128xf32>, vector<128x128xf32>, vector<16x128xf32> -> vector<16x128xf32>
    %188 = arith.addf %182, %187 : vector<16x128xf32>
    %189 = vector.extract_strided_slice %181 {offsets = [0, 1, 0], sizes = [4, 4, 128], strides = [1, 1, 1]} : vector<6x6x128xf32> to vector<4x4x128xf32>
    %190 = vector.shape_cast %189 : vector<4x4x128xf32> to vector<16x128xf32>
    %c1 = arith.constant 1 : index
    %c0_50 = arith.constant 0 : index
    %c0_51 = arith.constant 0 : index
    %191 = vector.load %arg5[%c1, %c0_50, %c0_51] : memref<9x128x128xf32, #tpu.memory_space<vmem>>, vector<1x128x128xf32>
    %192 = vector.shape_cast %191 : vector<1x128x128xf32> to vector<128x128xf32>
    %cst_52 = arith.constant dense<0.000000e+00> : vector<16x128xf32>
    %193 = tpu.matmul %190, %192, %cst_52 {dimension_numbers = #tpu.dot_dimension_numbers<[1], [0], [0], [1], [0, 0, 1, 1], [], []>} : vector<16x128xf32>, vector<128x128xf32>, vector<16x128xf32> -> vector<16x128xf32>
    %194 = arith.addf %188, %193 : vector<16x128xf32>
    %195 = vector.extract_strided_slice %181 {offsets = [0, 2, 0], sizes = [4, 4, 128], strides = [1, 1, 1]} : vector<6x6x128xf32> to vector<4x4x128xf32>
    %196 = vector.shape_cast %195 : vector<4x4x128xf32> to vector<16x128xf32>
    %c2 = arith.constant 2 : index
    %c0_53 = arith.constant 0 : index
    %c0_54 = arith.constant 0 : index
    %197 = vector.load %arg5[%c2, %c0_53, %c0_54] : memref<9x128x128xf32, #tpu.memory_space<vmem>>, vector<1x128x128xf32>
    %198 = vector.shape_cast %197 : vector<1x128x128xf32> to vector<128x128xf32>
    %cst_55 = arith.constant dense<0.000000e+00> : vector<16x128xf32>
    %199 = tpu.matmul %196, %198, %cst_55 {dimension_numbers = #tpu.dot_dimension_numbers<[1], [0], [0], [1], [0, 0, 1, 1], [], []>} : vector<16x128xf32>, vector<128x128xf32>, vector<16x128xf32> -> vector<16x128xf32>
    %200 = arith.addf %194, %199 : vector<16x128xf32>
    %201 = vector.extract_strided_slice %181 {offsets = [1, 0, 0], sizes = [4, 4, 128], strides = [1, 1, 1]} : vector<6x6x128xf32> to vector<4x4x128xf32>
    %202 = vector.shape_cast %201 : vector<4x4x128xf32> to vector<16x128xf32>
    %c3 = arith.constant 3 : index
    %c0_56 = arith.constant 0 : index
    %c0_57 = arith.constant 0 : index
    %203 = vector.load %arg5[%c3, %c0_56, %c0_57] : memref<9x128x128xf32, #tpu.memory_space<vmem>>, vector<1x128x128xf32>
    %204 = vector.shape_cast %203 : vector<1x128x128xf32> to vector<128x128xf32>
    %cst_58 = arith.constant dense<0.000000e+00> : vector<16x128xf32>
    %205 = tpu.matmul %202, %204, %cst_58 {dimension_numbers = #tpu.dot_dimension_numbers<[1], [0], [0], [1], [0, 0, 1, 1], [], []>} : vector<16x128xf32>, vector<128x128xf32>, vector<16x128xf32> -> vector<16x128xf32>
    %206 = arith.addf %200, %205 : vector<16x128xf32>
    %207 = vector.extract_strided_slice %181 {offsets = [1, 1, 0], sizes = [4, 4, 128], strides = [1, 1, 1]} : vector<6x6x128xf32> to vector<4x4x128xf32>
    %208 = vector.shape_cast %207 : vector<4x4x128xf32> to vector<16x128xf32>
    %c4 = arith.constant 4 : index
    %c0_59 = arith.constant 0 : index
    %c0_60 = arith.constant 0 : index
    %209 = vector.load %arg5[%c4, %c0_59, %c0_60] : memref<9x128x128xf32, #tpu.memory_space<vmem>>, vector<1x128x128xf32>
    %210 = vector.shape_cast %209 : vector<1x128x128xf32> to vector<128x128xf32>
    %cst_61 = arith.constant dense<0.000000e+00> : vector<16x128xf32>
    %211 = tpu.matmul %208, %210, %cst_61 {dimension_numbers = #tpu.dot_dimension_numbers<[1], [0], [0], [1], [0, 0, 1, 1], [], []>} : vector<16x128xf32>, vector<128x128xf32>, vector<16x128xf32> -> vector<16x128xf32>
    %212 = arith.addf %206, %211 : vector<16x128xf32>
    %213 = vector.extract_strided_slice %181 {offsets = [1, 2, 0], sizes = [4, 4, 128], strides = [1, 1, 1]} : vector<6x6x128xf32> to vector<4x4x128xf32>
    %214 = vector.shape_cast %213 : vector<4x4x128xf32> to vector<16x128xf32>
    %c5 = arith.constant 5 : index
    %c0_62 = arith.constant 0 : index
    %c0_63 = arith.constant 0 : index
    %215 = vector.load %arg5[%c5, %c0_62, %c0_63] : memref<9x128x128xf32, #tpu.memory_space<vmem>>, vector<1x128x128xf32>
    %216 = vector.shape_cast %215 : vector<1x128x128xf32> to vector<128x128xf32>
    %cst_64 = arith.constant dense<0.000000e+00> : vector<16x128xf32>
    %217 = tpu.matmul %214, %216, %cst_64 {dimension_numbers = #tpu.dot_dimension_numbers<[1], [0], [0], [1], [0, 0, 1, 1], [], []>} : vector<16x128xf32>, vector<128x128xf32>, vector<16x128xf32> -> vector<16x128xf32>
    %218 = arith.addf %212, %217 : vector<16x128xf32>
    %219 = vector.extract_strided_slice %181 {offsets = [2, 0, 0], sizes = [4, 4, 128], strides = [1, 1, 1]} : vector<6x6x128xf32> to vector<4x4x128xf32>
    %220 = vector.shape_cast %219 : vector<4x4x128xf32> to vector<16x128xf32>
    %c6 = arith.constant 6 : index
    %c0_65 = arith.constant 0 : index
    %c0_66 = arith.constant 0 : index
    %221 = vector.load %arg5[%c6, %c0_65, %c0_66] : memref<9x128x128xf32, #tpu.memory_space<vmem>>, vector<1x128x128xf32>
    %222 = vector.shape_cast %221 : vector<1x128x128xf32> to vector<128x128xf32>
    %cst_67 = arith.constant dense<0.000000e+00> : vector<16x128xf32>
    %223 = tpu.matmul %220, %222, %cst_67 {dimension_numbers = #tpu.dot_dimension_numbers<[1], [0], [0], [1], [0, 0, 1, 1], [], []>} : vector<16x128xf32>, vector<128x128xf32>, vector<16x128xf32> -> vector<16x128xf32>
    %224 = arith.addf %218, %223 : vector<16x128xf32>
    %225 = vector.extract_strided_slice %181 {offsets = [2, 1, 0], sizes = [4, 4, 128], strides = [1, 1, 1]} : vector<6x6x128xf32> to vector<4x4x128xf32>
    %226 = vector.shape_cast %225 : vector<4x4x128xf32> to vector<16x128xf32>
    %c7 = arith.constant 7 : index
    %c0_68 = arith.constant 0 : index
    %c0_69 = arith.constant 0 : index
    %227 = vector.load %arg5[%c7, %c0_68, %c0_69] : memref<9x128x128xf32, #tpu.memory_space<vmem>>, vector<1x128x128xf32>
    %228 = vector.shape_cast %227 : vector<1x128x128xf32> to vector<128x128xf32>
    %cst_70 = arith.constant dense<0.000000e+00> : vector<16x128xf32>
    %229 = tpu.matmul %226, %228, %cst_70 {dimension_numbers = #tpu.dot_dimension_numbers<[1], [0], [0], [1], [0, 0, 1, 1], [], []>} : vector<16x128xf32>, vector<128x128xf32>, vector<16x128xf32> -> vector<16x128xf32>
    %230 = arith.addf %224, %229 : vector<16x128xf32>
    %231 = vector.extract_strided_slice %181 {offsets = [2, 2, 0], sizes = [4, 4, 128], strides = [1, 1, 1]} : vector<6x6x128xf32> to vector<4x4x128xf32>
    %232 = vector.shape_cast %231 : vector<4x4x128xf32> to vector<16x128xf32>
    %c8 = arith.constant 8 : index
    %c0_71 = arith.constant 0 : index
    %c0_72 = arith.constant 0 : index
    %233 = vector.load %arg5[%c8, %c0_71, %c0_72] : memref<9x128x128xf32, #tpu.memory_space<vmem>>, vector<1x128x128xf32>
    %234 = vector.shape_cast %233 : vector<1x128x128xf32> to vector<128x128xf32>
    %cst_73 = arith.constant dense<0.000000e+00> : vector<16x128xf32>
    %235 = tpu.matmul %232, %234, %cst_73 {dimension_numbers = #tpu.dot_dimension_numbers<[1], [0], [0], [1], [0, 0, 1, 1], [], []>} : vector<16x128xf32>, vector<128x128xf32>, vector<16x128xf32> -> vector<16x128xf32>
    %236 = arith.addf %230, %235 : vector<16x128xf32>
    %c0_74 = arith.constant 0 : index
    %c0_75 = arith.constant 0 : index
    %237 = vector.load %arg6[%c0_74, %c0_75] : memref<1x128xf32, #tpu.memory_space<vmem>>, vector<1x128xf32>
    %238 = vector.broadcast %237 : vector<1x128xf32> to vector<16x128xf32>
    %239 = arith.addf %236, %238 : vector<16x128xf32>
    %240 = vector.shape_cast %239 : vector<16x128xf32> to vector<4x4x128xf32>
    %c0_76 = arith.constant 0 : index
    %c0_77 = arith.constant 0 : index
    %c0_78 = arith.constant 0 : index
    %c0_79 = arith.constant 0 : index
    %241 = vector.load %arg7[%c0_76, %c0_77, %c0_78, %c0_79] : memref<1x4x4x128xf32, #tpu.memory_space<vmem>>, vector<1x4x4x128xf32>
    %242 = vector.shape_cast %241 : vector<1x4x4x128xf32> to vector<4x4x128xf32>
    %243 = vector.shape_cast %240 : vector<4x4x128xf32> to vector<1x4x4x128xf32>
    tpu.vector_store %arg7[%c0_76, %c0_77, %c0_78, %c0_79], %243 {strides = array<i32>} : memref<1x4x4x128xf32, #tpu.memory_space<vmem>>, vector<1x4x4x128xf32>,
    return
  }
  func.func @transform_0(%arg0: i32, %arg1: i32) -> (i32, i32, i32, i32) {
    %c0_i32 = arith.constant 0 : i32
    %c0_i32_0 = arith.constant 0 : i32
    %c0_i32_1 = arith.constant 0 : i32
    %c0_i32_2 = arith.constant 0 : i32
    return %arg0, %c0_i32, %c0_i32_0, %c0_i32_1 : i32, i32, i32, i32
  }
  func.func @transform_1(%arg0: i32, %arg1: i32) -> (i32, i32) {
    %c0_i32 = arith.constant 0 : i32
    %c0_i32_0 = arith.constant 0 : i32
    %c0_i32_1 = arith.constant 0 : i32
    return %c0_i32, %c0_i32_0 : i32, i32
  }
  func.func @transform_2(%arg0: i32, %arg1: i32) -> (i32, i32) {
    %c0_i32 = arith.constant 0 : i32
    %c0_i32_0 = arith.constant 0 : i32
    %c0_i32_1 = arith.constant 0 : i32
    return %c0_i32, %c0_i32_0 : i32, i32
  }
  func.func @transform_3(%arg0: i32, %arg1: i32) -> (i32, i32, i32) {
    %c0_i32 = arith.constant 0 : i32
    %c0_i32_0 = arith.constant 0 : i32
    %c0_i32_1 = arith.constant 0 : i32
    return %c0_i32, %c0_i32_0, %arg1 : i32, i32, i32
  }
  func.func @transform_4(%arg0: i32, %arg1: i32) -> (i32, i32) {
    %c0_i32 = arith.constant 0 : i32
    %c0_i32_0 = arith.constant 0 : i32
    return %c0_i32, %arg1 : i32, i32
  }
  func.func @transform_5(%arg0: i32, %arg1: i32) -> (i32, i32, i32, i32) {
    %c0_i32 = arith.constant 0 : i32
    %c0_i32_0 = arith.constant 0 : i32
    %c0_i32_1 = arith.constant 0 : i32
    return %arg0, %c0_i32, %c0_i32_0, %arg1 : i32, i32, i32, i32
  }
}

module attributes {stable_mosaic.version = 11 : i64} {
  func.func @_conv_kernel(%arg0: i32, %arg1: i32, %arg2: memref<1x6x6x128xf32, #tpu.memory_space<vmem>>, %arg3: memref<1x128xf32, #tpu.memory_space<vmem>>, %arg4: memref<1x128xf32, #tpu.memory_space<vmem>>, %arg5: memref<9x128x128xf32, #tpu.memory_space<vmem>>, %arg6: memref<1x128xf32, #tpu.memory_space<vmem>>, %arg7: memref<1x4x4x128xf32, #tpu.memory_space<vmem>>) attributes {dimension_semantics = [#tpu.dimension_semantics<parallel>, #tpu.dimension_semantics<parallel>], iteration_bounds = array<i64: 2, 1>, scalar_prefetch = 0 : i64, scratch_operands = 0 : i64, tpu.core_type = #tpu.core_type<tc>, window_params = [{transform_indices = @transform_0, window_bounds = array<i64: 1, 6, 6, 128>}, {pipeline_mode = #tpu.pipeline_mode<synchronous>, transform_indices = @transform_1, window_bounds = array<i64: 1, 128>}, {pipeline_mode = #tpu.pipeline_mode<synchronous>, transform_indices = @transform_2, window_bounds = array<i64: 1, 128>}, {transform_indices = @transform_3, window_bounds = array<i64: 9, 128, 128>}, {transform_indices = @transform_4, window_bounds = array<i64: 1, 128>}, {transform_indices = @transform_5, window_bounds = array<i64: 1, 4, 4, 128>}]} {
    %c0 = arith.constant 0 : index
    %c0_0 = arith.constant 0 : index
    %c0_1 = arith.constant 0 : index
    %c0_2 = arith.constant 0 : index
    %0 = vector.load %arg2[%c0, %c0_0, %c0_1, %c0_2] : memref<1x6x6x128xf32, #tpu.memory_space<vmem>>, vector<1x6x6x128xf32>
    %1 = vector.shape_cast %0 : vector<1x6x6x128xf32> to vector<6x6x128xf32>
    %cst = arith.constant dense<0.000000e+00> : vector<128xf32>
    %2 = vector.multi_reduction <add>, %1, %cst [0, 1] : vector<6x6x128xf32> to vector<128xf32>
    %3 = vector.shape_cast %2 : vector<128xf32> to vector<1x1x128xf32>
    %4 = vector.shape_cast %3 : vector<1x1x128xf32> to vector<1x128xf32>
    %5 = arith.mulf %1, %1 : vector<6x6x128xf32>
    %cst_3 = arith.constant dense<0.000000e+00> : vector<128xf32>
    %6 = vector.multi_reduction <add>, %5, %cst_3 [0, 1] : vector<6x6x128xf32> to vector<128xf32>
    %7 = vector.shape_cast %6 : vector<128xf32> to vector<1x1x128xf32>
    %8 = vector.shape_cast %7 : vector<1x1x128xf32> to vector<1x128xf32>
    %9 = tpu.iota {dimensions = array<i32: 1>} : vector<1x128xi32>
    %cst_4 = arith.constant 0.000000e+00 : f32
    %10 = vector.broadcast %cst_4 : f32 to vector<1x128xf32>
    %cst_5 = arith.constant 0.000000e+00 : f32
    %11 = vector.broadcast %cst_5 : f32 to vector<1x128xf32>
    %c0_i32 = arith.constant 0 : i32
    %12 = vector.broadcast %c0_i32 : i32 to vector<1x128xi32>
    %13 = arith.cmpi sge, %9, %12 : vector<1x128xi32>
    %c4_i32 = arith.constant 4 : i32
    %14 = vector.broadcast %c4_i32 : i32 to vector<1x128xi32>
    %15 = arith.cmpi slt, %9, %14 : vector<1x128xi32>
    %16 = arith.andi %13, %15 : vector<1x128xi1>
    %cst_6 = arith.constant 0.000000e+00 : f32
    %17 = vector.broadcast %cst_6 : f32 to vector<1x128xf32>
    %18 = arith.select %16, %4, %17 : vector<1x128xi1>, vector<1x128xf32>
    %19 = vector.shape_cast %18 : vector<1x128xf32> to vector<1x1x128xf32>
    %cst_7 = arith.constant dense<0.000000e+00> : vector<1xf32>
    %20 = vector.multi_reduction <add>, %19, %cst_7 [1, 2] : vector<1x1x128xf32> to vector<1xf32>
    %21 = vector.shape_cast %20 : vector<1xf32> to vector<1x1x1xf32>
    %22 = vector.extract %21[0, 0, 0] : f32 from vector<1x1x1xf32>
    %23 = vector.broadcast %22 : f32 to vector<1x1xf32>
    %cst_8 = arith.constant 1.562500e-02 : f32
    %24 = vector.broadcast %cst_8 : f32 to vector<1x1xf32>
    %25 = arith.mulf %23, %24 : vector<1x1xf32>
    %cst_9 = arith.constant 0.000000e+00 : f32
    %26 = vector.broadcast %cst_9 : f32 to vector<1x128xf32>
    %27 = arith.select %16, %8, %26 : vector<1x128xi1>, vector<1x128xf32>
    %28 = vector.shape_cast %27 : vector<1x128xf32> to vector<1x1x128xf32>
    %cst_10 = arith.constant dense<0.000000e+00> : vector<1xf32>
    %29 = vector.multi_reduction <add>, %28, %cst_10 [1, 2] : vector<1x1x128xf32> to vector<1xf32>
    %30 = vector.shape_cast %29 : vector<1xf32> to vector<1x1x1xf32>
    %31 = vector.extract %30[0, 0, 0] : f32 from vector<1x1x1xf32>
    %32 = vector.broadcast %31 : f32 to vector<1x1xf32>
    %cst_11 = arith.constant 1.562500e-02 : f32
    %33 = vector.broadcast %cst_11 : f32 to vector<1x1xf32>
    %34 = arith.mulf %32, %33 : vector<1x1xf32>
    %35 = arith.mulf %25, %25 : vector<1x1xf32>
    %36 = arith.subf %34, %35 : vector<1x1xf32>
    %cst_12 = arith.constant 9.99999974E-6 : f32
    %37 = vector.broadcast %cst_12 : f32 to vector<1x1xf32>
    %38 = arith.addf %36, %37 : vector<1x1xf32>
    %39 = math.rsqrt %38 : vector<1x1xf32>
    %40 = vector.shape_cast %25 : vector<1x1xf32> to vector<1x1xf32>
    %41 = vector.broadcast %40 : vector<1x1xf32> to vector<1x128xf32>
    %42 = arith.select %16, %41, %10 : vector<1x128xi1>, vector<1x128xf32>
    %43 = vector.shape_cast %39 : vector<1x1xf32> to vector<1x1xf32>
    %44 = vector.broadcast %43 : vector<1x1xf32> to vector<1x128xf32>
    %45 = arith.select %16, %44, %11 : vector<1x128xi1>, vector<1x128xf32>
    %c4_i32_13 = arith.constant 4 : i32
    %46 = vector.broadcast %c4_i32_13 : i32 to vector<1x128xi32>
    %47 = arith.cmpi sge, %9, %46 : vector<1x128xi32>
    %c8_i32 = arith.constant 8 : i32
    %48 = vector.broadcast %c8_i32 : i32 to vector<1x128xi32>
    %49 = arith.cmpi slt, %9, %48 : vector<1x128xi32>
    %50 = arith.andi %47, %49 : vector<1x128xi1>
    %cst_14 = arith.constant 0.000000e+00 : f32
    %51 = vector.broadcast %cst_14 : f32 to vector<1x128xf32>
    %52 = arith.select %50, %4, %51 : vector<1x128xi1>, vector<1x128xf32>
    %53 = vector.shape_cast %52 : vector<1x128xf32> to vector<1x1x128xf32>
    %cst_15 = arith.constant dense<0.000000e+00> : vector<1xf32>
    %54 = vector.multi_reduction <add>, %53, %cst_15 [1, 2] : vector<1x1x128xf32> to vector<1xf32>
    %55 = vector.shape_cast %54 : vector<1xf32> to vector<1x1x1xf32>
    %56 = vector.extract %55[0, 0, 0] : f32 from vector<1x1x1xf32>
    %57 = vector.broadcast %56 : f32 to vector<1x1xf32>
    %cst_16 = arith.constant 1.562500e-02 : f32
    %58 = vector.broadcast %cst_16 : f32 to vector<1x1xf32>
    %59 = arith.mulf %57, %58 : vector<1x1xf32>
    %cst_17 = arith.constant 0.000000e+00 : f32
    %60 = vector.broadcast %cst_17 : f32 to vector<1x128xf32>
    %61 = arith.select %50, %8, %60 : vector<1x128xi1>, vector<1x128xf32>
    %62 = vector.shape_cast %61 : vector<1x128xf32> to vector<1x1x128xf32>
    %cst_18 = arith.constant dense<0.000000e+00> : vector<1xf32>
    %63 = vector.multi_reduction <add>, %62, %cst_18 [1, 2] : vector<1x1x128xf32> to vector<1xf32>
    %64 = vector.shape_cast %63 : vector<1xf32> to vector<1x1x1xf32>
    %65 = vector.extract %64[0, 0, 0] : f32 from vector<1x1x1xf32>
    %66 = vector.broadcast %65 : f32 to vector<1x1xf32>
    %cst_19 = arith.constant 1.562500e-02 : f32
    %67 = vector.broadcast %cst_19 : f32 to vector<1x1xf32>
    %68 = arith.mulf %66, %67 : vector<1x1xf32>
    %69 = arith.mulf %59, %59 : vector<1x1xf32>
    %70 = arith.subf %68, %69 : vector<1x1xf32>
    %cst_20 = arith.constant 9.99999974E-6 : f32
    %71 = vector.broadcast %cst_20 : f32 to vector<1x1xf32>
    %72 = arith.addf %70, %71 : vector<1x1xf32>
    %73 = math.rsqrt %72 : vector<1x1xf32>
    %74 = vector.shape_cast %59 : vector<1x1xf32> to vector<1x1xf32>
    %75 = vector.broadcast %74 : vector<1x1xf32> to vector<1x128xf32>
    %76 = arith.select %50, %75, %42 : vector<1x128xi1>, vector<1x128xf32>
    %77 = vector.shape_cast %73 : vector<1x1xf32> to vector<1x1xf32>
    %78 = vector.broadcast %77 : vector<1x1xf32> to vector<1x128xf32>
    %79 = arith.select %50, %78, %45 : vector<1x128xi1>, vector<1x128xf32>
    %c8_i32_21 = arith.constant 8 : i32
    %80 = vector.broadcast %c8_i32_21 : i32 to vector<1x128xi32>
    %81 = arith.cmpi sge, %9, %80 : vector<1x128xi32>
    %c12_i32 = arith.constant 12 : i32
    %82 = vector.broadcast %c12_i32 : i32 to vector<1x128xi32>
    %83 = arith.cmpi slt, %9, %82 : vector<1x128xi32>
    %84 = arith.andi %81, %83 : vector<1x128xi1>
    %cst_22 = arith.constant 0.000000e+00 : f32
    %85 = vector.broadcast %cst_22 : f32 to vector<1x128xf32>
    %86 = arith.select %84, %4, %85 : vector<1x128xi1>, vector<1x128xf32>
    %87 = vector.shape_cast %86 : vector<1x128xf32> to vector<1x1x128xf32>
    %cst_23 = arith.constant dense<0.000000e+00> : vector<1xf32>
    %88 = vector.multi_reduction <add>, %87, %cst_23 [1, 2] : vector<1x1x128xf32> to vector<1xf32>
    %89 = vector.shape_cast %88 : vector<1xf32> to vector<1x1x1xf32>
    %90 = vector.extract %89[0, 0, 0] : f32 from vector<1x1x1xf32>
    %91 = vector.broadcast %90 : f32 to vector<1x1xf32>
    %cst_24 = arith.constant 1.562500e-02 : f32
    %92 = vector.broadcast %cst_24 : f32 to vector<1x1xf32>
    %93 = arith.mulf %91, %92 : vector<1x1xf32>
    %cst_25 = arith.constant 0.000000e+00 : f32
    %94 = vector.broadcast %cst_25 : f32 to vector<1x128xf32>
    %95 = arith.select %84, %8, %94 : vector<1x128xi1>, vector<1x128xf32>
    %96 = vector.shape_cast %95 : vector<1x128xf32> to vector<1x1x128xf32>
    %cst_26 = arith.constant dense<0.000000e+00> : vector<1xf32>
    %97 = vector.multi_reduction <add>, %96, %cst_26 [1, 2] : vector<1x1x128xf32> to vector<1xf32>
    %98 = vector.shape_cast %97 : vector<1xf32> to vector<1x1x1xf32>
    %99 = vector.extract %98[0, 0, 0] : f32 from vector<1x1x1xf32>
    %100 = vector.broadcast %99 : f32 to vector<1x1xf32>
    %cst_27 = arith.constant 1.562500e-02 : f32
    %101 = vector.broadcast %cst_27 : f32 to vector<1x1xf32>
    %102 = arith.mulf %100, %101 : vector<1x1xf32>
    %103 = arith.mulf %93, %93 : vector<1x1xf32>
    %104 = arith.subf %102, %103 : vector<1x1xf32>
    %cst_28 = arith.constant 9.99999974E-6 : f32
    %105 = vector.broadcast %cst_28 : f32 to vector<1x1xf32>
    %106 = arith.addf %104, %105 : vector<1x1xf32>
    %107 = math.rsqrt %106 : vector<1x1xf32>
    %108 = vector.shape_cast %93 : vector<1x1xf32> to vector<1x1xf32>
    %109 = vector.broadcast %108 : vector<1x1xf32> to vector<1x128xf32>
    %110 = arith.select %84, %109, %76 : vector<1x128xi1>, vector<1x128xf32>
    %111 = vector.shape_cast %107 : vector<1x1xf32> to vector<1x1xf32>
    %112 = vector.broadcast %111 : vector<1x1xf32> to vector<1x128xf32>
    %113 = arith.select %84, %112, %79 : vector<1x128xi1>, vector<1x128xf32>
    %c12_i32_29 = arith.constant 12 : i32
    %114 = vector.broadcast %c12_i32_29 : i32 to vector<1x128xi32>
    %115 = arith.cmpi sge, %9, %114 : vector<1x128xi32>
    %c16_i32 = arith.constant 16 : i32
    %116 = vector.broadcast %c16_i32 : i32 to vector<1x128xi32>
    %117 = arith.cmpi slt, %9, %116 : vector<1x128xi32>
    %118 = arith.andi %115, %117 : vector<1x128xi1>
    %cst_30 = arith.constant 0.000000e+00 : f32
    %119 = vector.broadcast %cst_30 : f32 to vector<1x128xf32>
    %120 = arith.select %118, %4, %119 : vector<1x128xi1>, vector<1x128xf32>
    %121 = vector.shape_cast %120 : vector<1x128xf32> to vector<1x1x128xf32>
    %cst_31 = arith.constant dense<0.000000e+00> : vector<1xf32>
    %122 = vector.multi_reduction <add>, %121, %cst_31 [1, 2] : vector<1x1x128xf32> to vector<1xf32>
    %123 = vector.shape_cast %122 : vector<1xf32> to vector<1x1x1xf32>
    %124 = vector.extract %123[0, 0, 0] : f32 from vector<1x1x1xf32>
    %125 = vector.broadcast %124 : f32 to vector<1x1xf32>
    %cst_32 = arith.constant 1.562500e-02 : f32
    %126 = vector.broadcast %cst_32 : f32 to vector<1x1xf32>
    %127 = arith.mulf %125, %126 : vector<1x1xf32>
    %cst_33 = arith.constant 0.000000e+00 : f32
    %128 = vector.broadcast %cst_33 : f32 to vector<1x128xf32>
    %129 = arith.select %118, %8, %128 : vector<1x128xi1>, vector<1x128xf32>
    %130 = vector.shape_cast %129 : vector<1x128xf32> to vector<1x1x128xf32>
    %cst_34 = arith.constant dense<0.000000e+00> : vector<1xf32>
    %131 = vector.multi_reduction <add>, %130, %cst_34 [1, 2] : vector<1x1x128xf32> to vector<1xf32>
    %132 = vector.shape_cast %131 : vector<1xf32> to vector<1x1x1xf32>
    %133 = vector.extract %132[0, 0, 0] : f32 from vector<1x1x1xf32>
    %134 = vector.broadcast %133 : f32 to vector<1x1xf32>
    %cst_35 = arith.constant 1.562500e-02 : f32
    %135 = vector.broadcast %cst_35 : f32 to vector<1x1xf32>
    %136 = arith.mulf %134, %135 : vector<1x1xf32>
    %137 = arith.mulf %127, %127 : vector<1x1xf32>
    %138 = arith.subf %136, %137 : vector<1x1xf32>
    %cst_36 = arith.constant 9.99999974E-6 : f32
    %139 = vector.broadcast %cst_36 : f32 to vector<1x1xf32>
    %140 = arith.addf %138, %139 : vector<1x1xf32>
    %141 = math.rsqrt %140 : vector<1x1xf32>
    %142 = vector.shape_cast %127 : vector<1x1xf32> to vector<1x1xf32>
    %143 = vector.broadcast %142 : vector<1x1xf32> to vector<1x128xf32>
    %144 = arith.select %118, %143, %110 : vector<1x128xi1>, vector<1x128xf32>
    %145 = vector.shape_cast %141 : vector<1x1xf32> to vector<1x1xf32>
    %146 = vector.broadcast %145 : vector<1x1xf32> to vector<1x128xf32>
    %147 = arith.select %118, %146, %113 : vector<1x128xi1>, vector<1x128xf32>
    %c0_37 = arith.constant 0 : index
    %c0_38 = arith.constant 0 : index
    %148 = vector.load %arg3[%c0_37, %c0_38] : memref<1x128xf32, #tpu.memory_space<vmem>>, vector<1x128xf32>
    %149 = arith.mulf %148, %147 : vector<1x128xf32>
    %c0_39 = arith.constant 0 : index
    %c0_40 = arith.constant 0 : index
    %150 = vector.load %arg4[%c0_39, %c0_40] : memref<1x128xf32, #tpu.memory_space<vmem>>, vector<1x128xf32>
    %151 = arith.mulf %144, %149 : vector<1x128xf32>
    %152 = arith.subf %150, %151 : vector<1x128xf32>
    %153 = vector.shape_cast %149 : vector<1x128xf32> to vector<1x1x128xf32>
    %154 = vector.broadcast %153 : vector<1x1x128xf32> to vector<6x6x128xf32>
    %155 = arith.mulf %1, %154 : vector<6x6x128xf32>
    %156 = vector.shape_cast %152 : vector<1x128xf32> to vector<1x1x128xf32>
    %157 = vector.broadcast %156 : vector<1x1x128xf32> to vector<6x6x128xf32>
    %158 = arith.addf %155, %157 : vector<6x6x128xf32>
    %159 = arith.negf %158 : vector<6x6x128xf32>
    %160 = math.exp %159 : vector<6x6x128xf32>
    %cst_41 = arith.constant 1.000000e+00 : f32
    %161 = vector.broadcast %cst_41 : f32 to vector<6x6x128xf32>
    %162 = arith.addf %161, %160 : vector<6x6x128xf32>
    %163 = arith.divf %161, %162 : vector<6x6x128xf32>
    %164 = arith.mulf %158, %163 : vector<6x6x128xf32>
    %165 = tpu.iota {dimensions = array<i32: 0>} : vector<6x6x1xi32>
    %166 = tpu.iota {dimensions = array<i32: 1>} : vector<6x6x1xi32>
    %c1_i32 = arith.constant 1 : i32
    %167 = vector.broadcast %c1_i32 : i32 to vector<6x6x1xi32>
    %168 = arith.cmpi sge, %165, %167 : vector<6x6x1xi32>
    %c5_i32 = arith.constant 5 : i32
    %169 = vector.broadcast %c5_i32 : i32 to vector<6x6x1xi32>
    %170 = arith.cmpi slt, %165, %169 : vector<6x6x1xi32>
    %171 = arith.andi %168, %170 : vector<6x6x1xi1>
    %c1_i32_42 = arith.constant 1 : i32
    %172 = vector.broadcast %c1_i32_42 : i32 to vector<6x6x1xi32>
    %173 = arith.cmpi sge, %166, %172 : vector<6x6x1xi32>
    %174 = arith.andi %171, %173 : vector<6x6x1xi1>
    %c5_i32_43 = arith.constant 5 : i32
    %175 = vector.broadcast %c5_i32_43 : i32 to vector<6x6x1xi32>
    %176 = arith.cmpi slt, %166, %175 : vector<6x6x1xi32>
    %177 = arith.andi %174, %176 : vector<6x6x1xi1>
    %cst_44 = arith.constant 0.000000e+00 : f32
    %178 = vector.shape_cast %177 : vector<6x6x1xi1> to vector<6x6x1xi1>
    %179 = vector.broadcast %178 : vector<6x6x1xi1> to vector<6x6x128xi1>
    %180 = vector.broadcast %cst_44 : f32 to vector<6x6x128xf32>
    %181 = arith.select %179, %164, %180 : vector<6x6x128xi1>, vector<6x6x128xf32>
    %cst_45 = arith.constant 0.000000e+00 : f32
    %182 = vector.broadcast %cst_45 : f32 to vector<16x128xf32>
    %183 = vector.extract_strided_slice %181 {offsets = [0, 0, 0], sizes = [4, 4, 128], strides = [1, 1, 1]} : vector<6x6x128xf32> to vector<4x4x128xf32>
    %184 = vector.shape_cast %183 : vector<4x4x128xf32> to vector<16x128xf32>
    %c0_46 = arith.constant 0 : index
    %c0_47 = arith.constant 0 : index
    %c0_48 = arith.constant 0 : index
    %185 = vector.load %arg5[%c0_46, %c0_47, %c0_48] : memref<9x128x128xf32, #tpu.memory_space<vmem>>, vector<1x128x128xf32>
    %186 = vector.shape_cast %185 : vector<1x128x128xf32> to vector<128x128xf32>
    %cst_49 = arith.constant dense<0.000000e+00> : vector<16x128xf32>
    %187 = tpu.matmul %184, %186, %cst_49 {dimension_numbers = #tpu.dot_dimension_numbers<[1], [0], [0], [1], [0, 0, 1, 1], [], []>} : vector<16x128xf32>, vector<128x128xf32>, vector<16x128xf32> -> vector<16x128xf32>
    %188 = arith.addf %182, %187 : vector<16x128xf32>
    %189 = vector.extract_strided_slice %181 {offsets = [0, 1, 0], sizes = [4, 4, 128], strides = [1, 1, 1]} : vector<6x6x128xf32> to vector<4x4x128xf32>
    %190 = vector.shape_cast %189 : vector<4x4x128xf32> to vector<16x128xf32>
    %c1 = arith.constant 1 : index
    %c0_50 = arith.constant 0 : index
    %c0_51 = arith.constant 0 : index
    %191 = vector.load %arg5[%c1, %c0_50, %c0_51] : memref<9x128x128xf32, #tpu.memory_space<vmem>>, vector<1x128x128xf32>
    %192 = vector.shape_cast %191 : vector<1x128x128xf32> to vector<128x128xf32>
    %cst_52 = arith.constant dense<0.000000e+00> : vector<16x128xf32>
    %193 = tpu.matmul %190, %192, %cst_52 {dimension_numbers = #tpu.dot_dimension_numbers<[1], [0], [0], [1], [0, 0, 1, 1], [], []>} : vector<16x128xf32>, vector<128x128xf32>, vector<16x128xf32> -> vector<16x128xf32>
    %194 = arith.addf %188, %193 : vector<16x128xf32>
    %195 = vector.extract_strided_slice %181 {offsets = [0, 2, 0], sizes = [4, 4, 128], strides = [1, 1, 1]} : vector<6x6x128xf32> to vector<4x4x128xf32>
    %196 = vector.shape_cast %195 : vector<4x4x128xf32> to vector<16x128xf32>
    %c2 = arith.constant 2 : index
    %c0_53 = arith.constant 0 : index
    %c0_54 = arith.constant 0 : index
    %197 = vector.load %arg5[%c2, %c0_53, %c0_54] : memref<9x128x128xf32, #tpu.memory_space<vmem>>, vector<1x128x128xf32>
    %198 = vector.shape_cast %197 : vector<1x128x128xf32> to vector<128x128xf32>
    %cst_55 = arith.constant dense<0.000000e+00> : vector<16x128xf32>
    %199 = tpu.matmul %196, %198, %cst_55 {dimension_numbers = #tpu.dot_dimension_numbers<[1], [0], [0], [1], [0, 0, 1, 1], [], []>} : vector<16x128xf32>, vector<128x128xf32>, vector<16x128xf32> -> vector<16x128xf32>
    %200 = arith.addf %194, %199 : vector<16x128xf32>
    %201 = vector.extract_strided_slice %181 {offsets = [1, 0, 0], sizes = [4, 4, 128], strides = [1, 1, 1]} : vector<6x6x128xf32> to vector<4x4x128xf32>
    %202 = vector.shape_cast %201 : vector<4x4x128xf32> to vector<16x128xf32>
    %c3 = arith.constant 3 : index
    %c0_56 = arith.constant 0 : index
    %c0_57 = arith.constant 0 : index
    %203 = vector.load %arg5[%c3, %c0_56, %c0_57] : memref<9x128x128xf32, #tpu.memory_space<vmem>>, vector<1x128x128xf32>
    %204 = vector.shape_cast %203 : vector<1x128x128xf32> to vector<128x128xf32>
    %cst_58 = arith.constant dense<0.000000e+00> : vector<16x128xf32>
    %205 = tpu.matmul %202, %204, %cst_58 {dimension_numbers = #tpu.dot_dimension_numbers<[1], [0], [0], [1], [0, 0, 1, 1], [], []>} : vector<16x128xf32>, vector<128x128xf32>, vector<16x128xf32> -> vector<16x128xf32>
    %206 = arith.addf %200, %205 : vector<16x128xf32>
    %207 = vector.extract_strided_slice %181 {offsets = [1, 1, 0], sizes = [4, 4, 128], strides = [1, 1, 1]} : vector<6x6x128xf32> to vector<4x4x128xf32>
    %208 = vector.shape_cast %207 : vector<4x4x128xf32> to vector<16x128xf32>
    %c4 = arith.constant 4 : index
    %c0_59 = arith.constant 0 : index
    %c0_60 = arith.constant 0 : index
    %209 = vector.load %arg5[%c4, %c0_59, %c0_60] : memref<9x128x128xf32, #tpu.memory_space<vmem>>, vector<1x128x128xf32>
    %210 = vector.shape_cast %209 : vector<1x128x128xf32> to vector<128x128xf32>
    %cst_61 = arith.constant dense<0.000000e+00> : vector<16x128xf32>
    %211 = tpu.matmul %208, %210, %cst_61 {dimension_numbers = #tpu.dot_dimension_numbers<[1], [0], [0], [1], [0, 0, 1, 1], [], []>} : vector<16x128xf32>, vector<128x128xf32>, vector<16x128xf32> -> vector<16x128xf32>
    %212 = arith.addf %206, %211 : vector<16x128xf32>
    %213 = vector.extract_strided_slice %181 {offsets = [1, 2, 0], sizes = [4, 4, 128], strides = [1, 1, 1]} : vector<6x6x128xf32> to vector<4x4x128xf32>
    %214 = vector.shape_cast %213 : vector<4x4x128xf32> to vector<16x128xf32>
    %c5 = arith.constant 5 : index
    %c0_62 = arith.constant 0 : index
    %c0_63 = arith.constant 0 : index
    %215 = vector.load %arg5[%c5, %c0_62, %c0_63] : memref<9x128x128xf32, #tpu.memory_space<vmem>>, vector<1x128x128xf32>
    %216 = vector.shape_cast %215 : vector<1x128x128xf32> to vector<128x128xf32>
    %cst_64 = arith.constant dense<0.000000e+00> : vector<16x128xf32>
    %217 = tpu.matmul %214, %216, %cst_64 {dimension_numbers = #tpu.dot_dimension_numbers<[1], [0], [0], [1], [0, 0, 1, 1], [], []>} : vector<16x128xf32>, vector<128x128xf32>, vector<16x128xf32> -> vector<16x128xf32>
    %218 = arith.addf %212, %217 : vector<16x128xf32>
    %219 = vector.extract_strided_slice %181 {offsets = [2, 0, 0], sizes = [4, 4, 128], strides = [1, 1, 1]} : vector<6x6x128xf32> to vector<4x4x128xf32>
    %220 = vector.shape_cast %219 : vector<4x4x128xf32> to vector<16x128xf32>
    %c6 = arith.constant 6 : index
    %c0_65 = arith.constant 0 : index
    %c0_66 = arith.constant 0 : index
    %221 = vector.load %arg5[%c6, %c0_65, %c0_66] : memref<9x128x128xf32, #tpu.memory_space<vmem>>, vector<1x128x128xf32>
    %222 = vector.shape_cast %221 : vector<1x128x128xf32> to vector<128x128xf32>
    %cst_67 = arith.constant dense<0.000000e+00> : vector<16x128xf32>
    %223 = tpu.matmul %220, %222, %cst_67 {dimension_numbers = #tpu.dot_dimension_numbers<[1], [0], [0], [1], [0, 0, 1, 1], [], []>} : vector<16x128xf32>, vector<128x128xf32>, vector<16x128xf32> -> vector<16x128xf32>
    %224 = arith.addf %218, %223 : vector<16x128xf32>
    %225 = vector.extract_strided_slice %181 {offsets = [2, 1, 0], sizes = [4, 4, 128], strides = [1, 1, 1]} : vector<6x6x128xf32> to vector<4x4x128xf32>
    %226 = vector.shape_cast %225 : vector<4x4x128xf32> to vector<16x128xf32>
    %c7 = arith.constant 7 : index
    %c0_68 = arith.constant 0 : index
    %c0_69 = arith.constant 0 : index
    %227 = vector.load %arg5[%c7, %c0_68, %c0_69] : memref<9x128x128xf32, #tpu.memory_space<vmem>>, vector<1x128x128xf32>
    %228 = vector.shape_cast %227 : vector<1x128x128xf32> to vector<128x128xf32>
    %cst_70 = arith.constant dense<0.000000e+00> : vector<16x128xf32>
    %229 = tpu.matmul %226, %228, %cst_70 {dimension_numbers = #tpu.dot_dimension_numbers<[1], [0], [0], [1], [0, 0, 1, 1], [], []>} : vector<16x128xf32>, vector<128x128xf32>, vector<16x128xf32> -> vector<16x128xf32>
    %230 = arith.addf %224, %229 : vector<16x128xf32>
    %231 = vector.extract_strided_slice %181 {offsets = [2, 2, 0], sizes = [4, 4, 128], strides = [1, 1, 1]} : vector<6x6x128xf32> to vector<4x4x128xf32>
    %232 = vector.shape_cast %231 : vector<4x4x128xf32> to vector<16x128xf32>
    %c8 = arith.constant 8 : index
    %c0_71 = arith.constant 0 : index
    %c0_72 = arith.constant 0 : index
    %233 = vector.load %arg5[%c8, %c0_71, %c0_72] : memref<9x128x128xf32, #tpu.memory_space<vmem>>, vector<1x128x128xf32>
    %234 = vector.shape_cast %233 : vector<1x128x128xf32> to vector<128x128xf32>
    %cst_73 = arith.constant dense<0.000000e+00> : vector<16x128xf32>
    %235 = tpu.matmul %232, %234, %cst_73 {dimension_numbers = #tpu.dot_dimension_numbers<[1], [0], [0], [1], [0, 0, 1, 1], [], []>} : vector<16x128xf32>, vector<128x128xf32>, vector<16x128xf32> -> vector<16x128xf32>
    %236 = arith.addf %230, %235 : vector<16x128xf32>
    %c0_74 = arith.constant 0 : index
    %c0_75 = arith.constant 0 : index
    %237 = vector.load %arg6[%c0_74, %c0_75] : memref<1x128xf32, #tpu.memory_space<vmem>>, vector<1x128xf32>
    %238 = vector.broadcast %237 : vector<1x128xf32> to vector<16x128xf32>
    %239 = arith.addf %236, %238 : vector<16x128xf32>
    %240 = vector.shape_cast %239 : vector<16x128xf32> to vector<4x4x128xf32>
    %c0_76 = arith.constant 0 : index
    %c0_77 = arith.constant 0 : index
    %c0_78 = arith.constant 0 : index
    %c0_79 = arith.constant 0 : index
    %241 = vector.load %arg7[%c0_76, %c0_77, %c0_78, %c0_79] : memref<1x4x4x128xf32, #tpu.memory_space<vmem>>, vector<1x4x4x128xf32>
    %242 = vector.shape_cast %241 : vector<1x4x4x128xf32> to vector<4x4x128xf32>
    %243 = vector.shape_cast %240 : vector<4x4x128xf32> to vector<1x4x4x128xf32>
    tpu.vector_store %arg7[%c0_76, %c0_77, %c0_78, %c0_79], %243 {strides = array<i32>} : memref<1x4x4x128xf32, #tpu.memory_space<vmem>>, vector<1x4x4x128xf32>,
    return
  }
  func.func @transform_0(%arg0: i32, %arg1: i32) -> (i32, i32, i32, i32) {
    %c0_i32 = arith.constant 0 : i32
    %c0_i32_0 = arith.constant 0 : i32
    %c0_i32_1 = arith.constant 0 : i32
    %c0_i32_2 = arith.constant 0 : i32
    return %arg0, %c0_i32, %c0_i32_0, %c0_i32_1 : i32, i32, i32, i32
  }
  func.func @transform_1(%arg0: i32, %arg1: i32) -> (i32, i32) {
    %c0_i32 = arith.constant 0 : i32
    %c0_i32_0 = arith.constant 0 : i32
    %c0_i32_1 = arith.constant 0 : i32
    return %c0_i32, %c0_i32_0 : i32, i32
  }
  func.func @transform_2(%arg0: i32, %arg1: i32) -> (i32, i32) {
    %c0_i32 = arith.constant 0 : i32
    %c0_i32_0 = arith.constant 0 : i32
    %c0_i32_1 = arith.constant 0 : i32
    return %c0_i32, %c0_i32_0 : i32, i32
  }
  func.func @transform_3(%arg0: i32, %arg1: i32) -> (i32, i32, i32) {
    %c0_i32 = arith.constant 0 : i32
    %c0_i32_0 = arith.constant 0 : i32
    %c0_i32_1 = arith.constant 0 : i32
    return %c0_i32, %c0_i32_0, %arg1 : i32, i32, i32
  }
  func.func @transform_4(%arg0: i32, %arg1: i32) -> (i32, i32) {
    %c0_i32 = arith.constant 0 : i32
    %c0_i32_0 = arith.constant 0 : i32
    return %c0_i32, %arg1 : i32, i32
  }
  func.func @transform_5(%arg0: i32, %arg1: i32) -> (i32, i32, i32, i32) {
    %c0_i32 = arith.constant 0 : i32
    %c0_i32_0 = arith.constant 0 : i32
    %c0_i32_1 = arith.constant 0 : i32
    return %arg0, %c0_i32, %c0_i32_0, %arg1 : i32, i32, i32, i32
  }
}

module attributes {stable_mosaic.version = 11 : i64} {
  func.func @_conv_kernel(%arg0: i32, %arg1: i32, %arg2: memref<1x4x4x128xf32, #tpu.memory_space<vmem>>, %arg3: memref<1x128x128xf32, #tpu.memory_space<vmem>>, %arg4: memref<1x128xf32, #tpu.memory_space<vmem>>, %arg5: memref<1x4x4x128xf32, #tpu.memory_space<vmem>>, %arg6: memref<1x4x4x128xf32, #tpu.memory_space<vmem>>) attributes {dimension_semantics = [#tpu.dimension_semantics<parallel>, #tpu.dimension_semantics<parallel>], iteration_bounds = array<i64: 2, 1>, scalar_prefetch = 0 : i64, scratch_operands = 0 : i64, tpu.core_type = #tpu.core_type<tc>, window_params = [{transform_indices = @transform_0, window_bounds = array<i64: 1, 4, 4, 128>}, {transform_indices = @transform_1, window_bounds = array<i64: 1, 128, 128>}, {transform_indices = @transform_2, window_bounds = array<i64: 1, 128>}, {transform_indices = @transform_3, window_bounds = array<i64: 1, 4, 4, 128>}, {transform_indices = @transform_4, window_bounds = array<i64: 1, 4, 4, 128>}]} {
    %c0 = arith.constant 0 : index
    %c0_0 = arith.constant 0 : index
    %c0_1 = arith.constant 0 : index
    %c0_2 = arith.constant 0 : index
    %0 = vector.load %arg2[%c0, %c0_0, %c0_1, %c0_2] : memref<1x4x4x128xf32, #tpu.memory_space<vmem>>, vector<1x4x4x128xf32>
    %1 = vector.shape_cast %0 : vector<1x4x4x128xf32> to vector<4x4x128xf32>
    %cst = arith.constant 0.000000e+00 : f32
    %2 = vector.broadcast %cst : f32 to vector<16x128xf32>
    %3 = vector.shape_cast %1 : vector<4x4x128xf32> to vector<16x128xf32>
    %c0_3 = arith.constant 0 : index
    %c0_4 = arith.constant 0 : index
    %c0_5 = arith.constant 0 : index
    %4 = vector.load %arg3[%c0_3, %c0_4, %c0_5] : memref<1x128x128xf32, #tpu.memory_space<vmem>>, vector<1x128x128xf32>
    %5 = vector.shape_cast %4 : vector<1x128x128xf32> to vector<128x128xf32>
    %cst_6 = arith.constant dense<0.000000e+00> : vector<16x128xf32>
    %6 = tpu.matmul %3, %5, %cst_6 {dimension_numbers = #tpu.dot_dimension_numbers<[1], [0], [0], [1], [0, 0, 1, 1], [], []>} : vector<16x128xf32>, vector<128x128xf32>, vector<16x128xf32> -> vector<16x128xf32>
    %7 = arith.addf %2, %6 : vector<16x128xf32>
    %c0_7 = arith.constant 0 : index
    %c0_8 = arith.constant 0 : index
    %8 = vector.load %arg4[%c0_7, %c0_8] : memref<1x128xf32, #tpu.memory_space<vmem>>, vector<1x128xf32>
    %9 = vector.broadcast %8 : vector<1x128xf32> to vector<16x128xf32>
    %10 = arith.addf %7, %9 : vector<16x128xf32>
    %c0_9 = arith.constant 0 : index
    %c0_10 = arith.constant 0 : index
    %c0_11 = arith.constant 0 : index
    %c0_12 = arith.constant 0 : index
    %11 = vector.load %arg5[%c0_9, %c0_10, %c0_11, %c0_12] : memref<1x4x4x128xf32, #tpu.memory_space<vmem>>, vector<1x4x4x128xf32>
    %12 = vector.shape_cast %11 : vector<1x4x4x128xf32> to vector<4x4x128xf32>
    %13 = vector.shape_cast %12 : vector<4x4x128xf32> to vector<16x128xf32>
    %14 = arith.addf %10, %13 : vector<16x128xf32>
    %15 = vector.shape_cast %14 : vector<16x128xf32> to vector<4x4x128xf32>
    %c0_13 = arith.constant 0 : index
    %c0_14 = arith.constant 0 : index
    %c0_15 = arith.constant 0 : index
    %c0_16 = arith.constant 0 : index
    %16 = vector.load %arg6[%c0_13, %c0_14, %c0_15, %c0_16] : memref<1x4x4x128xf32, #tpu.memory_space<vmem>>, vector<1x4x4x128xf32>
    %17 = vector.shape_cast %16 : vector<1x4x4x128xf32> to vector<4x4x128xf32>
    %18 = vector.shape_cast %15 : vector<4x4x128xf32> to vector<1x4x4x128xf32>
    tpu.vector_store %arg6[%c0_13, %c0_14, %c0_15, %c0_16], %18 {strides = array<i32>} : memref<1x4x4x128xf32, #tpu.memory_space<vmem>>, vector<1x4x4x128xf32>,
    return
  }
  func.func @transform_0(%arg0: i32, %arg1: i32) -> (i32, i32, i32, i32) {
    %c0_i32 = arith.constant 0 : i32
    %c0_i32_0 = arith.constant 0 : i32
    %c0_i32_1 = arith.constant 0 : i32
    %c0_i32_2 = arith.constant 0 : i32
    return %arg0, %c0_i32, %c0_i32_0, %c0_i32_1 : i32, i32, i32, i32
  }
  func.func @transform_1(%arg0: i32, %arg1: i32) -> (i32, i32, i32) {
    %c0_i32 = arith.constant 0 : i32
    %c0_i32_0 = arith.constant 0 : i32
    %c0_i32_1 = arith.constant 0 : i32
    return %c0_i32, %c0_i32_0, %arg1 : i32, i32, i32
  }
  func.func @transform_2(%arg0: i32, %arg1: i32) -> (i32, i32) {
    %c0_i32 = arith.constant 0 : i32
    %c0_i32_0 = arith.constant 0 : i32
    return %c0_i32, %arg1 : i32, i32
  }
  func.func @transform_3(%arg0: i32, %arg1: i32) -> (i32, i32, i32, i32) {
    %c0_i32 = arith.constant 0 : i32
    %c0_i32_0 = arith.constant 0 : i32
    %c0_i32_1 = arith.constant 0 : i32
    return %arg0, %c0_i32, %c0_i32_0, %arg1 : i32, i32, i32, i32
  }
  func.func @transform_4(%arg0: i32, %arg1: i32) -> (i32, i32, i32, i32) {
    %c0_i32 = arith.constant 0 : i32
    %c0_i32_0 = arith.constant 0 : i32
    %c0_i32_1 = arith.constant 0 : i32
    return %arg0, %c0_i32, %c0_i32_0, %arg1 : i32, i32, i32, i32
  }
}

module attributes {stable_mosaic.version = 11 : i64} {
  func.func @_fused_attn_kernel(%arg0: i32, %arg1: memref<1x16x128xf32, #tpu.memory_space<vmem>>, %arg2: memref<16x1xf32, #tpu.memory_space<vmem>>, %arg3: memref<16x1xf32, #tpu.memory_space<vmem>>, %arg4: memref<128x128xf32, #tpu.memory_space<vmem>>, %arg5: memref<128x128xf32, #tpu.memory_space<vmem>>, %arg6: memref<1x16x128xf32, #tpu.memory_space<vmem>>) attributes {dimension_semantics = [#tpu.dimension_semantics<parallel>], iteration_bounds = array<i64: 2>, scalar_prefetch = 0 : i64, scratch_operands = 0 : i64, tpu.core_type = #tpu.core_type<tc>, window_params = [{transform_indices = @transform_0, window_bounds = array<i64: 1, 16, 128>}, {pipeline_mode = #tpu.pipeline_mode<synchronous>, transform_indices = @transform_1, window_bounds = array<i64: 16, 1>}, {pipeline_mode = #tpu.pipeline_mode<synchronous>, transform_indices = @transform_2, window_bounds = array<i64: 16, 1>}, {pipeline_mode = #tpu.pipeline_mode<synchronous>, transform_indices = @transform_3, window_bounds = array<i64: 128, 128>}, {pipeline_mode = #tpu.pipeline_mode<synchronous>, transform_indices = @transform_4, window_bounds = array<i64: 128, 128>}, {transform_indices = @transform_5, window_bounds = array<i64: 1, 16, 128>}]} {
    %c0 = arith.constant 0 : index
    %c0_0 = arith.constant 0 : index
    %c0_1 = arith.constant 0 : index
    %0 = vector.load %arg1[%c0, %c0_0, %c0_1] : memref<1x16x128xf32, #tpu.memory_space<vmem>>, vector<1x16x128xf32>
    %1 = vector.shape_cast %0 : vector<1x16x128xf32> to vector<16x128xf32>
    %cst = arith.constant dense<0.000000e+00> : vector<16xf32>
    %2 = vector.multi_reduction <add>, %1, %cst [1] : vector<16x128xf32> to vector<16xf32>
    %3 = vector.shape_cast %2 : vector<16xf32> to vector<16x1xf32>
    %4 = arith.mulf %1, %1 : vector<16x128xf32>
    %cst_2 = arith.constant dense<0.000000e+00> : vector<16xf32>
    %5 = vector.multi_reduction <add>, %4, %cst_2 [1] : vector<16x128xf32> to vector<16xf32>
    %6 = vector.shape_cast %5 : vector<16xf32> to vector<16x1xf32>
    %7 = tpu.iota {dimensions = array<i32: 0>} : vector<16x1xi32>
    %cst_3 = arith.constant 0.000000e+00 : f32
    %8 = vector.broadcast %cst_3 : f32 to vector<16x1xf32>
    %cst_4 = arith.constant 0.000000e+00 : f32
    %9 = vector.broadcast %cst_4 : f32 to vector<16x1xf32>
    %c0_i32 = arith.constant 0 : i32
    %10 = vector.broadcast %c0_i32 : i32 to vector<16x1xi32>
    %11 = arith.cmpi sge, %7, %10 : vector<16x1xi32>
    %c4_i32 = arith.constant 4 : i32
    %12 = vector.broadcast %c4_i32 : i32 to vector<16x1xi32>
    %13 = arith.cmpi slt, %7, %12 : vector<16x1xi32>
    %14 = arith.andi %11, %13 : vector<16x1xi1>
    %cst_5 = arith.constant 0.000000e+00 : f32
    %15 = vector.broadcast %cst_5 : f32 to vector<16x1xf32>
    %16 = arith.select %14, %3, %15 : vector<16x1xi1>, vector<16x1xf32>
    %17 = vector.shape_cast %16 : vector<16x1xf32> to vector<1x16x1xf32>
    %cst_6 = arith.constant dense<0.000000e+00> : vector<1xf32>
    %18 = vector.multi_reduction <add>, %17, %cst_6 [1, 2] : vector<1x16x1xf32> to vector<1xf32>
    %19 = vector.shape_cast %18 : vector<1xf32> to vector<1x1x1xf32>
    %20 = vector.extract %19[0, 0, 0] : f32 from vector<1x1x1xf32>
    %21 = vector.broadcast %20 : f32 to vector<1x1xf32>
    %cst_7 = arith.constant 1.562500e-02 : f32
    %22 = vector.broadcast %cst_7 : f32 to vector<1x1xf32>
    %23 = arith.mulf %21, %22 : vector<1x1xf32>
    %cst_8 = arith.constant 0.000000e+00 : f32
    %24 = vector.broadcast %cst_8 : f32 to vector<16x1xf32>
    %25 = arith.select %14, %6, %24 : vector<16x1xi1>, vector<16x1xf32>
    %26 = vector.shape_cast %25 : vector<16x1xf32> to vector<1x16x1xf32>
    %cst_9 = arith.constant dense<0.000000e+00> : vector<1xf32>
    %27 = vector.multi_reduction <add>, %26, %cst_9 [1, 2] : vector<1x16x1xf32> to vector<1xf32>
    %28 = vector.shape_cast %27 : vector<1xf32> to vector<1x1x1xf32>
    %29 = vector.extract %28[0, 0, 0] : f32 from vector<1x1x1xf32>
    %30 = vector.broadcast %29 : f32 to vector<1x1xf32>
    %cst_10 = arith.constant 1.562500e-02 : f32
    %31 = vector.broadcast %cst_10 : f32 to vector<1x1xf32>
    %32 = arith.mulf %30, %31 : vector<1x1xf32>
    %33 = arith.mulf %23, %23 : vector<1x1xf32>
    %34 = arith.subf %32, %33 : vector<1x1xf32>
    %cst_11 = arith.constant 9.99999974E-6 : f32
    %35 = vector.broadcast %cst_11 : f32 to vector<1x1xf32>
    %36 = arith.addf %34, %35 : vector<1x1xf32>
    %37 = math.rsqrt %36 : vector<1x1xf32>
    %38 = vector.shape_cast %23 : vector<1x1xf32> to vector<1x1xf32>
    %39 = vector.broadcast %38 : vector<1x1xf32> to vector<16x1xf32>
    %40 = arith.select %14, %39, %8 : vector<16x1xi1>, vector<16x1xf32>
    %41 = vector.shape_cast %37 : vector<1x1xf32> to vector<1x1xf32>
    %42 = vector.broadcast %41 : vector<1x1xf32> to vector<16x1xf32>
    %43 = arith.select %14, %42, %9 : vector<16x1xi1>, vector<16x1xf32>
    %c4_i32_12 = arith.constant 4 : i32
    %44 = vector.broadcast %c4_i32_12 : i32 to vector<16x1xi32>
    %45 = arith.cmpi sge, %7, %44 : vector<16x1xi32>
    %c8_i32 = arith.constant 8 : i32
    %46 = vector.broadcast %c8_i32 : i32 to vector<16x1xi32>
    %47 = arith.cmpi slt, %7, %46 : vector<16x1xi32>
    %48 = arith.andi %45, %47 : vector<16x1xi1>
    %cst_13 = arith.constant 0.000000e+00 : f32
    %49 = vector.broadcast %cst_13 : f32 to vector<16x1xf32>
    %50 = arith.select %48, %3, %49 : vector<16x1xi1>, vector<16x1xf32>
    %51 = vector.shape_cast %50 : vector<16x1xf32> to vector<1x16x1xf32>
    %cst_14 = arith.constant dense<0.000000e+00> : vector<1xf32>
    %52 = vector.multi_reduction <add>, %51, %cst_14 [1, 2] : vector<1x16x1xf32> to vector<1xf32>
    %53 = vector.shape_cast %52 : vector<1xf32> to vector<1x1x1xf32>
    %54 = vector.extract %53[0, 0, 0] : f32 from vector<1x1x1xf32>
    %55 = vector.broadcast %54 : f32 to vector<1x1xf32>
    %cst_15 = arith.constant 1.562500e-02 : f32
    %56 = vector.broadcast %cst_15 : f32 to vector<1x1xf32>
    %57 = arith.mulf %55, %56 : vector<1x1xf32>
    %cst_16 = arith.constant 0.000000e+00 : f32
    %58 = vector.broadcast %cst_16 : f32 to vector<16x1xf32>
    %59 = arith.select %48, %6, %58 : vector<16x1xi1>, vector<16x1xf32>
    %60 = vector.shape_cast %59 : vector<16x1xf32> to vector<1x16x1xf32>
    %cst_17 = arith.constant dense<0.000000e+00> : vector<1xf32>
    %61 = vector.multi_reduction <add>, %60, %cst_17 [1, 2] : vector<1x16x1xf32> to vector<1xf32>
    %62 = vector.shape_cast %61 : vector<1xf32> to vector<1x1x1xf32>
    %63 = vector.extract %62[0, 0, 0] : f32 from vector<1x1x1xf32>
    %64 = vector.broadcast %63 : f32 to vector<1x1xf32>
    %cst_18 = arith.constant 1.562500e-02 : f32
    %65 = vector.broadcast %cst_18 : f32 to vector<1x1xf32>
    %66 = arith.mulf %64, %65 : vector<1x1xf32>
    %67 = arith.mulf %57, %57 : vector<1x1xf32>
    %68 = arith.subf %66, %67 : vector<1x1xf32>
    %cst_19 = arith.constant 9.99999974E-6 : f32
    %69 = vector.broadcast %cst_19 : f32 to vector<1x1xf32>
    %70 = arith.addf %68, %69 : vector<1x1xf32>
    %71 = math.rsqrt %70 : vector<1x1xf32>
    %72 = vector.shape_cast %57 : vector<1x1xf32> to vector<1x1xf32>
    %73 = vector.broadcast %72 : vector<1x1xf32> to vector<16x1xf32>
    %74 = arith.select %48, %73, %40 : vector<16x1xi1>, vector<16x1xf32>
    %75 = vector.shape_cast %71 : vector<1x1xf32> to vector<1x1xf32>
    %76 = vector.broadcast %75 : vector<1x1xf32> to vector<16x1xf32>
    %77 = arith.select %48, %76, %43 : vector<16x1xi1>, vector<16x1xf32>
    %c8_i32_20 = arith.constant 8 : i32
    %78 = vector.broadcast %c8_i32_20 : i32 to vector<16x1xi32>
    %79 = arith.cmpi sge, %7, %78 : vector<16x1xi32>
    %c12_i32 = arith.constant 12 : i32
    %80 = vector.broadcast %c12_i32 : i32 to vector<16x1xi32>
    %81 = arith.cmpi slt, %7, %80 : vector<16x1xi32>
    %82 = arith.andi %79, %81 : vector<16x1xi1>
    %cst_21 = arith.constant 0.000000e+00 : f32
    %83 = vector.broadcast %cst_21 : f32 to vector<16x1xf32>
    %84 = arith.select %82, %3, %83 : vector<16x1xi1>, vector<16x1xf32>
    %85 = vector.shape_cast %84 : vector<16x1xf32> to vector<1x16x1xf32>
    %cst_22 = arith.constant dense<0.000000e+00> : vector<1xf32>
    %86 = vector.multi_reduction <add>, %85, %cst_22 [1, 2] : vector<1x16x1xf32> to vector<1xf32>
    %87 = vector.shape_cast %86 : vector<1xf32> to vector<1x1x1xf32>
    %88 = vector.extract %87[0, 0, 0] : f32 from vector<1x1x1xf32>
    %89 = vector.broadcast %88 : f32 to vector<1x1xf32>
    %cst_23 = arith.constant 1.562500e-02 : f32
    %90 = vector.broadcast %cst_23 : f32 to vector<1x1xf32>
    %91 = arith.mulf %89, %90 : vector<1x1xf32>
    %cst_24 = arith.constant 0.000000e+00 : f32
    %92 = vector.broadcast %cst_24 : f32 to vector<16x1xf32>
    %93 = arith.select %82, %6, %92 : vector<16x1xi1>, vector<16x1xf32>
    %94 = vector.shape_cast %93 : vector<16x1xf32> to vector<1x16x1xf32>
    %cst_25 = arith.constant dense<0.000000e+00> : vector<1xf32>
    %95 = vector.multi_reduction <add>, %94, %cst_25 [1, 2] : vector<1x16x1xf32> to vector<1xf32>
    %96 = vector.shape_cast %95 : vector<1xf32> to vector<1x1x1xf32>
    %97 = vector.extract %96[0, 0, 0] : f32 from vector<1x1x1xf32>
    %98 = vector.broadcast %97 : f32 to vector<1x1xf32>
    %cst_26 = arith.constant 1.562500e-02 : f32
    %99 = vector.broadcast %cst_26 : f32 to vector<1x1xf32>
    %100 = arith.mulf %98, %99 : vector<1x1xf32>
    %101 = arith.mulf %91, %91 : vector<1x1xf32>
    %102 = arith.subf %100, %101 : vector<1x1xf32>
    %cst_27 = arith.constant 9.99999974E-6 : f32
    %103 = vector.broadcast %cst_27 : f32 to vector<1x1xf32>
    %104 = arith.addf %102, %103 : vector<1x1xf32>
    %105 = math.rsqrt %104 : vector<1x1xf32>
    %106 = vector.shape_cast %91 : vector<1x1xf32> to vector<1x1xf32>
    %107 = vector.broadcast %106 : vector<1x1xf32> to vector<16x1xf32>
    %108 = arith.select %82, %107, %74 : vector<16x1xi1>, vector<16x1xf32>
    %109 = vector.shape_cast %105 : vector<1x1xf32> to vector<1x1xf32>
    %110 = vector.broadcast %109 : vector<1x1xf32> to vector<16x1xf32>
    %111 = arith.select %82, %110, %77 : vector<16x1xi1>, vector<16x1xf32>
    %c12_i32_28 = arith.constant 12 : i32
    %112 = vector.broadcast %c12_i32_28 : i32 to vector<16x1xi32>
    %113 = arith.cmpi sge, %7, %112 : vector<16x1xi32>
    %c16_i32 = arith.constant 16 : i32
    %114 = vector.broadcast %c16_i32 : i32 to vector<16x1xi32>
    %115 = arith.cmpi slt, %7, %114 : vector<16x1xi32>
    %116 = arith.andi %113, %115 : vector<16x1xi1>
    %cst_29 = arith.constant 0.000000e+00 : f32
    %117 = vector.broadcast %cst_29 : f32 to vector<16x1xf32>
    %118 = arith.select %116, %3, %117 : vector<16x1xi1>, vector<16x1xf32>
    %119 = vector.shape_cast %118 : vector<16x1xf32> to vector<1x16x1xf32>
    %cst_30 = arith.constant dense<0.000000e+00> : vector<1xf32>
    %120 = vector.multi_reduction <add>, %119, %cst_30 [1, 2] : vector<1x16x1xf32> to vector<1xf32>
    %121 = vector.shape_cast %120 : vector<1xf32> to vector<1x1x1xf32>
    %122 = vector.extract %121[0, 0, 0] : f32 from vector<1x1x1xf32>
    %123 = vector.broadcast %122 : f32 to vector<1x1xf32>
    %cst_31 = arith.constant 1.562500e-02 : f32
    %124 = vector.broadcast %cst_31 : f32 to vector<1x1xf32>
    %125 = arith.mulf %123, %124 : vector<1x1xf32>
    %cst_32 = arith.constant 0.000000e+00 : f32
    %126 = vector.broadcast %cst_32 : f32 to vector<16x1xf32>
    %127 = arith.select %116, %6, %126 : vector<16x1xi1>, vector<16x1xf32>
    %128 = vector.shape_cast %127 : vector<16x1xf32> to vector<1x16x1xf32>
    %cst_33 = arith.constant dense<0.000000e+00> : vector<1xf32>
    %129 = vector.multi_reduction <add>, %128, %cst_33 [1, 2] : vector<1x16x1xf32> to vector<1xf32>
    %130 = vector.shape_cast %129 : vector<1xf32> to vector<1x1x1xf32>
    %131 = vector.extract %130[0, 0, 0] : f32 from vector<1x1x1xf32>
    %132 = vector.broadcast %131 : f32 to vector<1x1xf32>
    %cst_34 = arith.constant 1.562500e-02 : f32
    %133 = vector.broadcast %cst_34 : f32 to vector<1x1xf32>
    %134 = arith.mulf %132, %133 : vector<1x1xf32>
    %135 = arith.mulf %125, %125 : vector<1x1xf32>
    %136 = arith.subf %134, %135 : vector<1x1xf32>
    %cst_35 = arith.constant 9.99999974E-6 : f32
    %137 = vector.broadcast %cst_35 : f32 to vector<1x1xf32>
    %138 = arith.addf %136, %137 : vector<1x1xf32>
    %139 = math.rsqrt %138 : vector<1x1xf32>
    %140 = vector.shape_cast %125 : vector<1x1xf32> to vector<1x1xf32>
    %141 = vector.broadcast %140 : vector<1x1xf32> to vector<16x1xf32>
    %142 = arith.select %116, %141, %108 : vector<16x1xi1>, vector<16x1xf32>
    %143 = vector.shape_cast %139 : vector<1x1xf32> to vector<1x1xf32>
    %144 = vector.broadcast %143 : vector<1x1xf32> to vector<16x1xf32>
    %145 = arith.select %116, %144, %111 : vector<16x1xi1>, vector<16x1xf32>
    %146 = vector.broadcast %142 : vector<16x1xf32> to vector<16x128xf32>
    %147 = arith.subf %1, %146 : vector<16x128xf32>
    %148 = vector.broadcast %145 : vector<16x1xf32> to vector<16x128xf32>
    %149 = arith.mulf %147, %148 : vector<16x128xf32>
    %c0_36 = arith.constant 0 : index
    %c0_37 = arith.constant 0 : index
    %150 = vector.load %arg2[%c0_36, %c0_37] : memref<16x1xf32, #tpu.memory_space<vmem>>, vector<16x1xf32>
    %151 = vector.broadcast %150 : vector<16x1xf32> to vector<16x128xf32>
    %152 = arith.mulf %149, %151 : vector<16x128xf32>
    %c0_38 = arith.constant 0 : index
    %c0_39 = arith.constant 0 : index
    %153 = vector.load %arg3[%c0_38, %c0_39] : memref<16x1xf32, #tpu.memory_space<vmem>>, vector<16x1xf32>
    %154 = vector.broadcast %153 : vector<16x1xf32> to vector<16x128xf32>
    %155 = arith.addf %152, %154 : vector<16x128xf32>
    %c0_40 = arith.constant 0 : index
    %c0_41 = arith.constant 0 : index
    %156 = vector.load %arg4[%c0_40, %c0_41] : memref<128x128xf32, #tpu.memory_space<vmem>>, vector<128x128xf32>
    %cst_42 = arith.constant dense<0.000000e+00> : vector<16x128xf32>
    %157 = tpu.matmul %155, %156, %cst_42 {dimension_numbers = #tpu.dot_dimension_numbers<[1], [0], [0], [1], [0, 0, 1, 1], [], []>} : vector<16x128xf32>, vector<128x128xf32>, vector<16x128xf32> -> vector<16x128xf32>
    %158 = vector.extract_strided_slice %157 {offsets = [0, 0], sizes = [16, 4], strides = [1, 1]} : vector<16x128xf32> to vector<16x4xf32>
    %159 = vector.extract_strided_slice %157 {offsets = [0, 16], sizes = [16, 4], strides = [1, 1]} : vector<16x128xf32> to vector<16x4xf32>
    %160 = vector.extract_strided_slice %157 {offsets = [0, 32], sizes = [16, 4], strides = [1, 1]} : vector<16x128xf32> to vector<16x4xf32>
    %161 = tpu.transpose %159, [1, 0] : vector<16x4xf32> -> vector<4x16xf32>
    %cst_43 = arith.constant dense<0.000000e+00> : vector<16x16xf32>
    %162 = tpu.matmul %158, %161, %cst_43 {dimension_numbers = #tpu.dot_dimension_numbers<[1], [0], [0], [1], [0, 0, 1, 1], [], []>} : vector<16x4xf32>, vector<4x16xf32>, vector<16x16xf32> -> vector<16x16xf32>
    %cst_44 = arith.constant 5.000000e-01 : f32
    %163 = vector.broadcast %cst_44 : f32 to vector<16x16xf32>
    %164 = arith.mulf %162, %163 : vector<16x16xf32>
    %cst_45 = arith.constant dense<0xFF800000> : vector<16xf32>
    %165 = vector.multi_reduction <maximumf>, %164, %cst_45 [1] : vector<16x16xf32> to vector<16xf32>
    %166 = vector.shape_cast %165 : vector<16xf32> to vector<16x1xf32>
    %167 = vector.broadcast %166 : vector<16x1xf32> to vector<16x16xf32>
    %168 = arith.subf %164, %167 : vector<16x16xf32>
    %169 = math.exp %168 : vector<16x16xf32>
    %cst_46 = arith.constant dense<0.000000e+00> : vector<16xf32>
    %170 = vector.multi_reduction <add>, %169, %cst_46 [1] : vector<16x16xf32> to vector<16xf32>
    %171 = vector.shape_cast %170 : vector<16xf32> to vector<16x1xf32>
    %172 = vector.broadcast %171 : vector<16x1xf32> to vector<16x16xf32>
    %173 = arith.divf %169, %172 : vector<16x16xf32>
    %cst_47 = arith.constant dense<0.000000e+00> : vector<16x4xf32>
    %174 = tpu.matmul %173, %160, %cst_47 {dimension_numbers = #tpu.dot_dimension_numbers<[1], [0], [0], [1], [0, 0, 1, 1], [], []>} : vector<16x16xf32>, vector<16x4xf32>, vector<16x4xf32> -> vector<16x4xf32>
    %175 = vector.extract_strided_slice %157 {offsets = [0, 4], sizes = [16, 4], strides = [1, 1]} : vector<16x128xf32> to vector<16x4xf32>
    %176 = vector.extract_strided_slice %157 {offsets = [0, 20], sizes = [16, 4], strides = [1, 1]} : vector<16x128xf32> to vector<16x4xf32>
    %177 = vector.extract_strided_slice %157 {offsets = [0, 36], sizes = [16, 4], strides = [1, 1]} : vector<16x128xf32> to vector<16x4xf32>
    %178 = tpu.transpose %176, [1, 0] : vector<16x4xf32> -> vector<4x16xf32>
    %cst_48 = arith.constant dense<0.000000e+00> : vector<16x16xf32>
    %179 = tpu.matmul %175, %178, %cst_48 {dimension_numbers = #tpu.dot_dimension_numbers<[1], [0], [0], [1], [0, 0, 1, 1], [], []>} : vector<16x4xf32>, vector<4x16xf32>, vector<16x16xf32> -> vector<16x16xf32>
    %cst_49 = arith.constant 5.000000e-01 : f32
    %180 = vector.broadcast %cst_49 : f32 to vector<16x16xf32>
    %181 = arith.mulf %179, %180 : vector<16x16xf32>
    %cst_50 = arith.constant dense<0xFF800000> : vector<16xf32>
    %182 = vector.multi_reduction <maximumf>, %181, %cst_50 [1] : vector<16x16xf32> to vector<16xf32>
    %183 = vector.shape_cast %182 : vector<16xf32> to vector<16x1xf32>
    %184 = vector.broadcast %183 : vector<16x1xf32> to vector<16x16xf32>
    %185 = arith.subf %181, %184 : vector<16x16xf32>
    %186 = math.exp %185 : vector<16x16xf32>
    %cst_51 = arith.constant dense<0.000000e+00> : vector<16xf32>
    %187 = vector.multi_reduction <add>, %186, %cst_51 [1] : vector<16x16xf32> to vector<16xf32>
    %188 = vector.shape_cast %187 : vector<16xf32> to vector<16x1xf32>
    %189 = vector.broadcast %188 : vector<16x1xf32> to vector<16x16xf32>
    %190 = arith.divf %186, %189 : vector<16x16xf32>
    %cst_52 = arith.constant dense<0.000000e+00> : vector<16x4xf32>
    %191 = tpu.matmul %190, %177, %cst_52 {dimension_numbers = #tpu.dot_dimension_numbers<[1], [0], [0], [1], [0, 0, 1, 1], [], []>} : vector<16x16xf32>, vector<16x4xf32>, vector<16x4xf32> -> vector<16x4xf32>
    %192 = vector.extract_strided_slice %157 {offsets = [0, 8], sizes = [16, 4], strides = [1, 1]} : vector<16x128xf32> to vector<16x4xf32>
    %193 = vector.extract_strided_slice %157 {offsets = [0, 24], sizes = [16, 4], strides = [1, 1]} : vector<16x128xf32> to vector<16x4xf32>
    %194 = vector.extract_strided_slice %157 {offsets = [0, 40], sizes = [16, 4], strides = [1, 1]} : vector<16x128xf32> to vector<16x4xf32>
    %195 = tpu.transpose %193, [1, 0] : vector<16x4xf32> -> vector<4x16xf32>
    %cst_53 = arith.constant dense<0.000000e+00> : vector<16x16xf32>
    %196 = tpu.matmul %192, %195, %cst_53 {dimension_numbers = #tpu.dot_dimension_numbers<[1], [0], [0], [1], [0, 0, 1, 1], [], []>} : vector<16x4xf32>, vector<4x16xf32>, vector<16x16xf32> -> vector<16x16xf32>
    %cst_54 = arith.constant 5.000000e-01 : f32
    %197 = vector.broadcast %cst_54 : f32 to vector<16x16xf32>
    %198 = arith.mulf %196, %197 : vector<16x16xf32>
    %cst_55 = arith.constant dense<0xFF800000> : vector<16xf32>
    %199 = vector.multi_reduction <maximumf>, %198, %cst_55 [1] : vector<16x16xf32> to vector<16xf32>
    %200 = vector.shape_cast %199 : vector<16xf32> to vector<16x1xf32>
    %201 = vector.broadcast %200 : vector<16x1xf32> to vector<16x16xf32>
    %202 = arith.subf %198, %201 : vector<16x16xf32>
    %203 = math.exp %202 : vector<16x16xf32>
    %cst_56 = arith.constant dense<0.000000e+00> : vector<16xf32>
    %204 = vector.multi_reduction <add>, %203, %cst_56 [1] : vector<16x16xf32> to vector<16xf32>
    %205 = vector.shape_cast %204 : vector<16xf32> to vector<16x1xf32>
    %206 = vector.broadcast %205 : vector<16x1xf32> to vector<16x16xf32>
    %207 = arith.divf %203, %206 : vector<16x16xf32>
    %cst_57 = arith.constant dense<0.000000e+00> : vector<16x4xf32>
    %208 = tpu.matmul %207, %194, %cst_57 {dimension_numbers = #tpu.dot_dimension_numbers<[1], [0], [0], [1], [0, 0, 1, 1], [], []>} : vector<16x16xf32>, vector<16x4xf32>, vector<16x4xf32> -> vector<16x4xf32>
    %209 = vector.extract_strided_slice %157 {offsets = [0, 12], sizes = [16, 4], strides = [1, 1]} : vector<16x128xf32> to vector<16x4xf32>
    %210 = vector.extract_strided_slice %157 {offsets = [0, 28], sizes = [16, 4], strides = [1, 1]} : vector<16x128xf32> to vector<16x4xf32>
    %211 = vector.extract_strided_slice %157 {offsets = [0, 44], sizes = [16, 4], strides = [1, 1]} : vector<16x128xf32> to vector<16x4xf32>
    %212 = tpu.transpose %210, [1, 0] : vector<16x4xf32> -> vector<4x16xf32>
    %cst_58 = arith.constant dense<0.000000e+00> : vector<16x16xf32>
    %213 = tpu.matmul %209, %212, %cst_58 {dimension_numbers = #tpu.dot_dimension_numbers<[1], [0], [0], [1], [0, 0, 1, 1], [], []>} : vector<16x4xf32>, vector<4x16xf32>, vector<16x16xf32> -> vector<16x16xf32>
    %cst_59 = arith.constant 5.000000e-01 : f32
    %214 = vector.broadcast %cst_59 : f32 to vector<16x16xf32>
    %215 = arith.mulf %213, %214 : vector<16x16xf32>
    %cst_60 = arith.constant dense<0xFF800000> : vector<16xf32>
    %216 = vector.multi_reduction <maximumf>, %215, %cst_60 [1] : vector<16x16xf32> to vector<16xf32>
    %217 = vector.shape_cast %216 : vector<16xf32> to vector<16x1xf32>
    %218 = vector.broadcast %217 : vector<16x1xf32> to vector<16x16xf32>
    %219 = arith.subf %215, %218 : vector<16x16xf32>
    %220 = math.exp %219 : vector<16x16xf32>
    %cst_61 = arith.constant dense<0.000000e+00> : vector<16xf32>
    %221 = vector.multi_reduction <add>, %220, %cst_61 [1] : vector<16x16xf32> to vector<16xf32>
    %222 = vector.shape_cast %221 : vector<16xf32> to vector<16x1xf32>
    %223 = vector.broadcast %222 : vector<16x1xf32> to vector<16x16xf32>
    %224 = arith.divf %220, %223 : vector<16x16xf32>
    %cst_62 = arith.constant dense<0.000000e+00> : vector<16x4xf32>
    %225 = tpu.matmul %224, %211, %cst_62 {dimension_numbers = #tpu.dot_dimension_numbers<[1], [0], [0], [1], [0, 0, 1, 1], [], []>} : vector<16x16xf32>, vector<16x4xf32>, vector<16x4xf32> -> vector<16x4xf32>
    %cst_63 = arith.constant 0.000000e+00 : f32
    %226 = vector.broadcast %cst_63 : f32 to vector<16x112xf32>
    %227 = tpu.concatenate %174, %191, %208, %225, %226 in 1 : vector<16x4xf32>, vector<16x4xf32>, vector<16x4xf32>, vector<16x4xf32>, vector<16x112xf32> -> vector<16x128xf32>
    %c0_64 = arith.constant 0 : index
    %c0_65 = arith.constant 0 : index
    %228 = vector.load %arg5[%c0_64, %c0_65] : memref<128x128xf32, #tpu.memory_space<vmem>>, vector<128x128xf32>
    %cst_66 = arith.constant dense<0.000000e+00> : vector<16x128xf32>
    %229 = tpu.matmul %227, %228, %cst_66 {dimension_numbers = #tpu.dot_dimension_numbers<[1], [0], [0], [1], [0, 0, 1, 1], [], []>} : vector<16x128xf32>, vector<128x128xf32>, vector<16x128xf32> -> vector<16x128xf32>
    %230 = arith.addf %1, %229 : vector<16x128xf32>
    %c0_67 = arith.constant 0 : index
    %c0_68 = arith.constant 0 : index
    %c0_69 = arith.constant 0 : index
    %231 = vector.load %arg6[%c0_67, %c0_68, %c0_69] : memref<1x16x128xf32, #tpu.memory_space<vmem>>, vector<1x16x128xf32>
    %232 = vector.shape_cast %231 : vector<1x16x128xf32> to vector<16x128xf32>
    %233 = vector.shape_cast %230 : vector<16x128xf32> to vector<1x16x128xf32>
    tpu.vector_store %arg6[%c0_67, %c0_68, %c0_69], %233 {strides = array<i32>} : memref<1x16x128xf32, #tpu.memory_space<vmem>>, vector<1x16x128xf32>,
    return
  }
  func.func @transform_0(%arg0: i32) -> (i32, i32, i32) {
    %c0_i32 = arith.constant 0 : i32
    %c0_i32_0 = arith.constant 0 : i32
    %c0_i32_1 = arith.constant 0 : i32
    return %arg0, %c0_i32, %c0_i32_0 : i32, i32, i32
  }
  func.func @transform_1(%arg0: i32) -> (i32, i32) {
    %c0_i32 = arith.constant 0 : i32
    %c0_i32_0 = arith.constant 0 : i32
    %c0_i32_1 = arith.constant 0 : i32
    return %c0_i32, %c0_i32_0 : i32, i32
  }
  func.func @transform_2(%arg0: i32) -> (i32, i32) {
    %c0_i32 = arith.constant 0 : i32
    %c0_i32_0 = arith.constant 0 : i32
    %c0_i32_1 = arith.constant 0 : i32
    return %c0_i32, %c0_i32_0 : i32, i32
  }
  func.func @transform_3(%arg0: i32) -> (i32, i32) {
    %c0_i32 = arith.constant 0 : i32
    %c0_i32_0 = arith.constant 0 : i32
    %c0_i32_1 = arith.constant 0 : i32
    return %c0_i32, %c0_i32_0 : i32, i32
  }
  func.func @transform_4(%arg0: i32) -> (i32, i32) {
    %c0_i32 = arith.constant 0 : i32
    %c0_i32_0 = arith.constant 0 : i32
    %c0_i32_1 = arith.constant 0 : i32
    return %c0_i32, %c0_i32_0 : i32, i32
  }
  func.func @transform_5(%arg0: i32) -> (i32, i32, i32) {
    %c0_i32 = arith.constant 0 : i32
    %c0_i32_0 = arith.constant 0 : i32
    %c0_i32_1 = arith.constant 0 : i32
    return %arg0, %c0_i32, %c0_i32_0 : i32, i32, i32
  }
}

module attributes {stable_mosaic.version = 11 : i64} {
  func.func @_conv_kernel(%arg0: i32, %arg1: i32, %arg2: memref<1x3x3x512xf32, #tpu.memory_space<vmem>>, %arg3: memref<4x512x128xf32, #tpu.memory_space<vmem>>, %arg4: memref<1x128xf32, #tpu.memory_space<vmem>>, %arg5: memref<1x2x2x128xf32, #tpu.memory_space<vmem>>) attributes {dimension_semantics = [#tpu.dimension_semantics<parallel>, #tpu.dimension_semantics<parallel>], iteration_bounds = array<i64: 2, 1>, scalar_prefetch = 0 : i64, scratch_operands = 0 : i64, tpu.core_type = #tpu.core_type<tc>, window_params = [{transform_indices = @transform_0, window_bounds = array<i64: 1, 3, 3, 512>}, {transform_indices = @transform_1, window_bounds = array<i64: 4, 512, 128>}, {transform_indices = @transform_2, window_bounds = array<i64: 1, 128>}, {transform_indices = @transform_3, window_bounds = array<i64: 1, 2, 2, 128>}]} {
    %c0 = arith.constant 0 : index
    %c0_0 = arith.constant 0 : index
    %c0_1 = arith.constant 0 : index
    %c0_2 = arith.constant 0 : index
    %0 = vector.load %arg2[%c0, %c0_0, %c0_1, %c0_2] : memref<1x3x3x512xf32, #tpu.memory_space<vmem>>, vector<1x3x3x512xf32>
    %1 = vector.shape_cast %0 : vector<1x3x3x512xf32> to vector<3x3x512xf32>
    %cst = arith.constant 0.000000e+00 : f32
    %2 = vector.broadcast %cst : f32 to vector<4x128xf32>
    %3 = vector.extract_strided_slice %1 {offsets = [0, 0, 0], sizes = [2, 2, 512], strides = [1, 1, 1]} : vector<3x3x512xf32> to vector<2x2x512xf32>
    %4 = vector.shape_cast %3 : vector<2x2x512xf32> to vector<4x512xf32>
    %c0_3 = arith.constant 0 : index
    %c0_4 = arith.constant 0 : index
    %c0_5 = arith.constant 0 : index
    %5 = vector.load %arg3[%c0_3, %c0_4, %c0_5] : memref<4x512x128xf32, #tpu.memory_space<vmem>>, vector<1x512x128xf32>
    %6 = vector.shape_cast %5 : vector<1x512x128xf32> to vector<512x128xf32>
    %cst_6 = arith.constant dense<0.000000e+00> : vector<4x128xf32>
    %7 = tpu.matmul %4, %6, %cst_6 {dimension_numbers = #tpu.dot_dimension_numbers<[1], [0], [0], [1], [0, 0, 1, 1], [], []>} : vector<4x512xf32>, vector<512x128xf32>, vector<4x128xf32> -> vector<4x128xf32>
    %8 = arith.addf %2, %7 : vector<4x128xf32>
    %9 = vector.extract_strided_slice %1 {offsets = [0, 1, 0], sizes = [2, 2, 512], strides = [1, 1, 1]} : vector<3x3x512xf32> to vector<2x2x512xf32>
    %10 = vector.shape_cast %9 : vector<2x2x512xf32> to vector<4x512xf32>
    %c1 = arith.constant 1 : index
    %c0_7 = arith.constant 0 : index
    %c0_8 = arith.constant 0 : index
    %11 = vector.load %arg3[%c1, %c0_7, %c0_8] : memref<4x512x128xf32, #tpu.memory_space<vmem>>, vector<1x512x128xf32>
    %12 = vector.shape_cast %11 : vector<1x512x128xf32> to vector<512x128xf32>
    %cst_9 = arith.constant dense<0.000000e+00> : vector<4x128xf32>
    %13 = tpu.matmul %10, %12, %cst_9 {dimension_numbers = #tpu.dot_dimension_numbers<[1], [0], [0], [1], [0, 0, 1, 1], [], []>} : vector<4x512xf32>, vector<512x128xf32>, vector<4x128xf32> -> vector<4x128xf32>
    %14 = arith.addf %8, %13 : vector<4x128xf32>
    %15 = vector.extract_strided_slice %1 {offsets = [1, 0, 0], sizes = [2, 2, 512], strides = [1, 1, 1]} : vector<3x3x512xf32> to vector<2x2x512xf32>
    %16 = vector.shape_cast %15 : vector<2x2x512xf32> to vector<4x512xf32>
    %c2 = arith.constant 2 : index
    %c0_10 = arith.constant 0 : index
    %c0_11 = arith.constant 0 : index
    %17 = vector.load %arg3[%c2, %c0_10, %c0_11] : memref<4x512x128xf32, #tpu.memory_space<vmem>>, vector<1x512x128xf32>
    %18 = vector.shape_cast %17 : vector<1x512x128xf32> to vector<512x128xf32>
    %cst_12 = arith.constant dense<0.000000e+00> : vector<4x128xf32>
    %19 = tpu.matmul %16, %18, %cst_12 {dimension_numbers = #tpu.dot_dimension_numbers<[1], [0], [0], [1], [0, 0, 1, 1], [], []>} : vector<4x512xf32>, vector<512x128xf32>, vector<4x128xf32> -> vector<4x128xf32>
    %20 = arith.addf %14, %19 : vector<4x128xf32>
    %21 = vector.extract_strided_slice %1 {offsets = [1, 1, 0], sizes = [2, 2, 512], strides = [1, 1, 1]} : vector<3x3x512xf32> to vector<2x2x512xf32>
    %22 = vector.shape_cast %21 : vector<2x2x512xf32> to vector<4x512xf32>
    %c3 = arith.constant 3 : index
    %c0_13 = arith.constant 0 : index
    %c0_14 = arith.constant 0 : index
    %23 = vector.load %arg3[%c3, %c0_13, %c0_14] : memref<4x512x128xf32, #tpu.memory_space<vmem>>, vector<1x512x128xf32>
    %24 = vector.shape_cast %23 : vector<1x512x128xf32> to vector<512x128xf32>
    %cst_15 = arith.constant dense<0.000000e+00> : vector<4x128xf32>
    %25 = tpu.matmul %22, %24, %cst_15 {dimension_numbers = #tpu.dot_dimension_numbers<[1], [0], [0], [1], [0, 0, 1, 1], [], []>} : vector<4x512xf32>, vector<512x128xf32>, vector<4x128xf32> -> vector<4x128xf32>
    %26 = arith.addf %20, %25 : vector<4x128xf32>
    %c0_16 = arith.constant 0 : index
    %c0_17 = arith.constant 0 : index
    %27 = vector.load %arg4[%c0_16, %c0_17] : memref<1x128xf32, #tpu.memory_space<vmem>>, vector<1x128xf32>
    %28 = vector.broadcast %27 : vector<1x128xf32> to vector<4x128xf32>
    %29 = arith.addf %26, %28 : vector<4x128xf32>
    %30 = vector.shape_cast %29 : vector<4x128xf32> to vector<2x2x128xf32>
    %c0_18 = arith.constant 0 : index
    %c0_19 = arith.constant 0 : index
    %c0_20 = arith.constant 0 : index
    %c0_21 = arith.constant 0 : index
    %31 = vector.load %arg5[%c0_18, %c0_19, %c0_20, %c0_21] : memref<1x2x2x128xf32, #tpu.memory_space<vmem>>, vector<1x2x2x128xf32>
    %32 = vector.shape_cast %31 : vector<1x2x2x128xf32> to vector<2x2x128xf32>
    %33 = vector.shape_cast %30 : vector<2x2x128xf32> to vector<1x2x2x128xf32>
    tpu.vector_store %arg5[%c0_18, %c0_19, %c0_20, %c0_21], %33 {strides = array<i32>} : memref<1x2x2x128xf32, #tpu.memory_space<vmem>>, vector<1x2x2x128xf32>,
    return
  }
  func.func @transform_0(%arg0: i32, %arg1: i32) -> (i32, i32, i32, i32) {
    %c0_i32 = arith.constant 0 : i32
    %c0_i32_0 = arith.constant 0 : i32
    %c0_i32_1 = arith.constant 0 : i32
    %c0_i32_2 = arith.constant 0 : i32
    return %arg0, %c0_i32, %c0_i32_0, %c0_i32_1 : i32, i32, i32, i32
  }
  func.func @transform_1(%arg0: i32, %arg1: i32) -> (i32, i32, i32) {
    %c0_i32 = arith.constant 0 : i32
    %c0_i32_0 = arith.constant 0 : i32
    %c0_i32_1 = arith.constant 0 : i32
    return %c0_i32, %c0_i32_0, %arg1 : i32, i32, i32
  }
  func.func @transform_2(%arg0: i32, %arg1: i32) -> (i32, i32) {
    %c0_i32 = arith.constant 0 : i32
    %c0_i32_0 = arith.constant 0 : i32
    return %c0_i32, %arg1 : i32, i32
  }
  func.func @transform_3(%arg0: i32, %arg1: i32) -> (i32, i32, i32, i32) {
    %c0_i32 = arith.constant 0 : i32
    %c0_i32_0 = arith.constant 0 : i32
    %c0_i32_1 = arith.constant 0 : i32
    return %arg0, %c0_i32, %c0_i32_0, %arg1 : i32, i32, i32, i32
  }
}

</mosaic_0001>

<llo_original>
// kernel: discriminator_down_block.11
$region0: #{discriminator_down_block.11}
  #allocation0 [shape = 'u32[]', space=smem, size = 0x4, offset = 0x4, fixed_abs, tag = 'smem constant byte address 0x4 - core index']
  #allocation1 [shape = 'u32[144,128]{1,0:T(1,128)}', space=vmem, size = 0x12000, scoped, tag = 'internal scratch']
  %s0 = inlined_call_operand.vmem [shape: f32[2,4,4,128], index: 0, kind: input, shape index: {}]
  %s1 = inlined_call_operand.vmem [shape: f32[1,128,128], index: 1, kind: input, shape index: {}]
  %s2 = inlined_call_operand.vmem [shape: f32[1,128], index: 2, kind: input, shape index: {}]
  %s3 = inlined_call_operand.vmem [shape: f32[2,4,4,128], index: 3, kind: input, shape index: {}]
  %s4 = inlined_call_operand.vmem [shape: f32[2,4,4,128], index: 4, kind: output, shape index: {}]
  %s5 = sld [smem:[#allocation0]]
  $region49: #{discriminator_down_block.11} parent=0
    _
  %s7 = ssub.s32 1, %s5
  %s8 = scalar_select 0, %s7, %s5
  loop: start=0, step=1, limit=4
  $region2: #{discriminator_down_block.11} parent=0 // loop_pre_header
    _
  $region3: #{discriminator_down_block.11} parent=0 // loop_header
    %s10 = sphi 0, %s14
    %p11 = scmp.ge.s32.totalorder %s10, 4
    %s17 = sphi 0, %s29
    %s18 = sphi 0, %s25
    %s19 = sphi 0, %s17
    %s20 = sphi 0, %s18
    %s21 = sphi 0, %s19
    %s22 = sphi 0, %s20
    %s32 = sphi 0, %s34
    %s35 = sphi 0, %s32
    %s36 = sphi 0, %s35
    %s52 = sphi 0, %s36
    %s58 = sphi 0, %s60
    %s61 = sphi 0, %s58
    %s62 = sphi 0, %s61
    %s78 = sphi 0, %s62
    %s84 = sphi 0, %s86
    %s87 = sphi 0, %s84
    %s88 = sphi 0, %s87
    %s104 = sphi 0, %s88
    %s112 = sphi 0, %s114
    %s115 = sphi 0, %s112
    %s116 = sphi 0, %s115
    %s132 = sphi 0, %s116
    %s140 = sphi 0, %s142
    %s143 = sphi 0, %s140
    %s144 = sphi 0, %s143
    %s160 = sphi 0, %s144
  $region4: #{discriminator_down_block.11} parent=0 // loop_header_branch
    %13 = sbr.rel (%p11) target = $region8
  $region5: #{discriminator_down_block.11} parent=0 // loop_body
    %s15 = ssub.s32 %s10, 1
    %s16 = ssub.s32 %s10, 2
    %s23 = sadd.s32 1, %s18
    %p24 = scmp.ge.s32.totalorder %s23, 1
    %s25 = scalar_select %p24, 0, %s23
    %s26 = sadd.s32 1, %s17
    %s27 = scalar_select %p24, %s26, %s17
    %p28 = scmp.ge.s32.totalorder %s27, 2
    %s29 = scalar_select %p28, 0, %s27
    %s30 = ssub.s32 %s17, %s29
    %p31 = scmp.eq.s32.totalorder %s30, 0
    %s33 = sadd.s32 %s32, 1
    %s34 = scalar_select %p31, %s32, %s33
    %p37 = pneg %p31
    %p38 = scmp.eq.s32.totalorder %s10, 1
    %p39 = por %p37, %p38
    %p40 = scmp.ne.s32.totalorder %s32, %s35
    %p41 = scmp.eq.s32.totalorder %s10, 0
    %p42 = por %p40, %p41
    %p43 = scmp.ne.s32.totalorder %s32, %s35
    %p44 = scmp.eq.s32.totalorder %s15, 1
    %p45 = por %p43, %p44
    %p46 = scmp.ne.s32.totalorder %s35, %s36
    %p47 = scmp.eq.s32.totalorder %s15, 0
    %p48 = por %p46, %p47
    %p49 = scmp.ne.s32.totalorder %s35, %s36
    %p50 = scmp.eq.s32.totalorder %s16, 1
    %p51 = por %p49, %p50
    %p53 = scmp.ne.s32.totalorder %s36, %s52
    %p54 = scmp.eq.s32.totalorder %s16, 0
    %p55 = por %p53, %p54
    %s56 = ssub.s32 %s18, %s25
    %p57 = scmp.eq.s32.totalorder %s56, 0
    %s59 = sadd.s32 %s58, 1
    %s60 = scalar_select %p57, %s58, %s59
    %p63 = pneg %p57
    %p64 = scmp.eq.s32.totalorder %s10, 1
    %p65 = por %p63, %p64
    %p66 = scmp.ne.s32.totalorder %s58, %s61
    %p67 = scmp.eq.s32.totalorder %s10, 0
    %p68 = por %p66, %p67
    %p69 = scmp.ne.s32.totalorder %s58, %s61
    %p70 = scmp.eq.s32.totalorder %s15, 1
    %p71 = por %p69, %p70
    %p72 = scmp.ne.s32.totalorder %s61, %s62
    %p73 = scmp.eq.s32.totalorder %s15, 0
    %p74 = por %p72, %p73
    %p75 = scmp.ne.s32.totalorder %s61, %s62
    %p76 = scmp.eq.s32.totalorder %s16, 1
    %p77 = por %p75, %p76
    %p79 = scmp.ne.s32.totalorder %s62, %s78
    %p80 = scmp.eq.s32.totalorder %s16, 0
    %p81 = por %p79, %p80
    %s82 = ssub.s32 %s18, %s25
    %p83 = scmp.eq.s32.totalorder %s82, 0
    %s85 = sadd.s32 %s84, 1
    %s86 = scalar_select %p83, %s84, %s85
    %p89 = pneg %p83
    %p90 = scmp.eq.s32.totalorder %s10, 1
    %p91 = por %p89, %p90
    %p92 = scmp.ne.s32.totalorder %s84, %s87
    %p93 = scmp.eq.s32.totalorder %s10, 0
    %p94 = por %p92, %p93
    %p95 = scmp.ne.s32.totalorder %s84, %s87
    %p96 = scmp.eq.s32.totalorder %s15, 1
    %p97 = por %p95, %p96
    %p98 = scmp.ne.s32.totalorder %s87, %s88
    %p99 = scmp.eq.s32.totalorder %s15, 0
    %p100 = por %p98, %p99
    %p101 = scmp.ne.s32.totalorder %s87, %s88
    %p102 = scmp.eq.s32.totalorder %s16, 1
    %p103 = por %p101, %p102
    %p105 = scmp.ne.s32.totalorder %s88, %s104
    %p106 = scmp.eq.s32.totalorder %s16, 0
    %p107 = por %p105, %p106
    %s108 = ssub.s32 %s17, %s29
    %s109 = ssub.s32 %s18, %s25
    %s110 = sor.u32 %s108, %s109
    %p111 = scmp.eq.s32.totalorder %s110, 0
    %s113 = sadd.s32 %s112, 1
    %s114 = scalar_select %p111, %s112, %s113
    %p117 = pneg %p111
    %p118 = scmp.eq.s32.totalorder %s10, 1
    %p119 = por %p117, %p118
    %p120 = scmp.ne.s32.totalorder %s112, %s115
    %p121 = scmp.eq.s32.totalorder %s10, 0
    %p122 = por %p120, %p121
    %p123 = scmp.ne.s32.totalorder %s112, %s115
    %p124 = scmp.eq.s32.totalorder %s15, 1
    %p125 = por %p123, %p124
    %p126 = scmp.ne.s32.totalorder %s115, %s116
    %p127 = scmp.eq.s32.totalorder %s15, 0
    %p128 = por %p126, %p127
    %p129 = scmp.ne.s32.totalorder %s115, %s116
    %p130 = scmp.eq.s32.totalorder %s16, 1
    %p131 = por %p129, %p130
    %p133 = scmp.ne.s32.totalorder %s116, %s132
    %p134 = scmp.eq.s32.totalorder %s16, 0
    %p135 = por %p133, %p134
    %s136 = ssub.s32 %s17, %s29
    %s137 = ssub.s32 %s18, %s25
    %s138 = sor.u32 %s136, %s137
    %p139 = scmp.eq.s32.totalorder %s138, 0
    %s141 = sadd.s32 %s140, 1
    %s142 = scalar_select %p139, %s140, %s141
    %p145 = pneg %p139
    %p146 = scmp.eq.s32.totalorder %s10, 1
    %p147 = por %p145, %p146
    %p148 = scmp.ne.s32.totalorder %s140, %s143
    %p149 = scmp.eq.s32.totalorder %s10, 0
    %p150 = por %p148, %p149
    %p151 = scmp.ne.s32.totalorder %s140, %s143
    %p152 = scmp.eq.s32.totalorder %s15, 1
    %p153 = por %p151, %p152
    %p154 = scmp.ne.s32.totalorder %s143, %s144
    %p155 = scmp.eq.s32.totalorder %s15, 0
    %p156 = por %p154, %p155
    %p157 = scmp.ne.s32.totalorder %s143, %s144
    %p158 = scmp.eq.s32.totalorder %s16, 1
    %p159 = por %p157, %p158
    %p161 = scmp.ne.s32.totalorder %s144, %s160
    %p162 = scmp.eq.s32.totalorder %s16, 0
    %p163 = por %p161, %p162
    %p164 = scmp.le.s32.totalorder 1, %s10
    %p165 = scmp.lt.s32.totalorder %s10, 3
    %p166 = pnand %p164, %p165
    %p167 = pneg %p166
    // Predicated region
    $region9: #{discriminator_down_block.11} parent=5 // pred_check
      _
    $region10: #{discriminator_down_block.11} parent=5 // pred_check_branch
      %169 = sbr.rel (%p166) target = $region12
    $region11: #{discriminator_down_block.11} parent=5 // pred_region
      %s170 = ssub.s32 %s10, 1
      // Predicated region
      $region13: #{discriminator_down_block.11} parent=11 // pred_check
        %p171 = pneg %p74
      $region14: #{discriminator_down_block.11} parent=11 // pred_check_branch
        %173 = sbr.rel (%p171) target = $region16
      $region15: #{discriminator_down_block.11} parent=11 // pred_region
        %p174 = scmp.lt.s32.totalorder %s20, 0
        %s175 = scalar_select %p174, %s20, 0
        %s176 = smul.addr %s175, 8
        %s177 = scalar_lea.vmem %s1, %s176
      $region16: #{discriminator_down_block.11} parent=11 // pred_fallthru
        _
      // Predicated region
      $region17: #{discriminator_down_block.11} parent=11 // pred_check
        %p178 = pneg %p100
      $region18: #{discriminator_down_block.11} parent=11 // pred_check_branch
        %180 = sbr.rel (%p178) target = $region20
      $region19: #{discriminator_down_block.11} parent=11 // pred_region
        %p181 = scmp.lt.s32.totalorder %s20, 0
        %s182 = scalar_select %p181, %s20, 0
        %s183 = scalar_lea.vmem %s2, %s182
      $region20: #{discriminator_down_block.11} parent=11 // pred_fallthru
        _
    $region12: #{discriminator_down_block.11} parent=5 // pred_fallthru
      _
    %p184 = scmp.lt.s32.totalorder %s10, 2
    // Predicated region
    $region21: #{discriminator_down_block.11} parent=5 // pred_check
      %p185 = pneg %p184
    $region22: #{discriminator_down_block.11} parent=5 // pred_check_branch
      %187 = sbr.rel (%p185) target = $region24
    $region23: #{discriminator_down_block.11} parent=5 // pred_region
      // Predicated region
      $region25: #{discriminator_down_block.11} parent=23 // pred_check
        %p188 = pneg %p42
      $region26: #{discriminator_down_block.11} parent=23 // pred_check_branch
        %190 = sbr.rel (%p188) target = $region28
      $region27: #{discriminator_down_block.11} parent=23 // pred_region
        %p191 = scmp.lt.s32.totalorder %s17, 1
        %s192 = scalar_select %p191, %s17, 1
        %s193 = smul.addr %s192, 4
        %s194 = smul.addr %s193, 4
        %s195 = scalar_lea.vmem %s0, %s194
      $region28: #{discriminator_down_block.11} parent=23 // pred_fallthru
        _
      // Predicated region
      $region29: #{discriminator_down_block.11} parent=23 // pred_check
        %p196 = pneg %p122
      $region30: #{discriminator_down_block.11} parent=23 // pred_check_branch
        %198 = sbr.rel (%p196) target = $region32
      $region31: #{discriminator_down_block.11} parent=23 // pred_region
        %p199 = scmp.lt.s32.totalorder %s17, 1
        %s200 = scalar_select %p199, %s17, 1
        %p201 = scmp.lt.s32.totalorder %s18, 0
        %s202 = scalar_select %p201, %s18, 0
        %s203 = smul.addr %s200, 4
        %s204 = sadd.s32 %s202, %s203
        %s205 = smul.addr %s204, 4
        %s206 = scalar_lea.vmem %s3, %s205
      $region32: #{discriminator_down_block.11} parent=23 // pred_fallthru
        _
    $region24: #{discriminator_down_block.11} parent=5 // pred_fallthru
      _
    %p207 = scmp.le.s32.totalorder 1, %s10
    %p208 = scmp.lt.s32.totalorder %s10, 3
    %p209 = pnand %p207, %p208
    %p210 = pneg %p209
    // Predicated region
    $region33: #{discriminator_down_block.11} parent=5 // pred_check
      _
    $region34: #{discriminator_down_block.11} parent=5 // pred_check_branch
      %212 = sbr.rel (%p209) target = $region36
    $region35: #{discriminator_down_block.11} parent=5 // pred_region
      %s213 = ssub.s32 %s10, 1
      %p214 = scmp.lt.s32.totalorder %s19, 1
      %s215 = scalar_select %p214, %s19, 1
      %s216 = smul.addr %s215, 4
      %s217 = smul.addr %s216, 4
      %s218 = scalar_lea.vmem %s0, %s217
      %p219 = pneg %p48
      %p220 = pneg %p45
      %p221 = scmp.lt.s32.totalorder %s20, 0
      %s222 = scalar_select %p221, %s20, 0
      %s223 = smul.addr %s222, 8
      %s224 = scalar_lea.vmem %s1, %s223
      %p225 = pneg %p74
      %p226 = pneg %p71
      %p227 = scmp.lt.s32.totalorder %s20, 0
      %s228 = scalar_select %p227, %s20, 0
      %s229 = scalar_lea.vmem %s2, %s228
      %p230 = pneg %p100
      %p231 = pneg %p97
      %p232 = scmp.lt.s32.totalorder %s19, 1
      %s233 = scalar_select %p232, %s19, 1
      %p234 = scmp.lt.s32.totalorder %s20, 0
      %s235 = scalar_select %p234, %s20, 0
      %s236 = smul.addr %s233, 4
      %s237 = sadd.s32 %s235, %s236
      %s238 = smul.addr %s237, 4
      %s239 = scalar_lea.vmem %s3, %s238
      %p240 = pneg %p128
      %p241 = pneg %p125
      %p242 = pneg %p156
      %p243 = pneg %p153
      %p244 = scmp.lt.s32.totalorder %s19, 1
      %s245 = scalar_select %p244, %s19, 1
      %p246 = scmp.lt.s32.totalorder %s20, 0
      %s247 = scalar_select %p246, %s20, 0
      %s248 = smul.addr %s245, 4
      %s249 = sadd.s32 %s247, %s248
      %s250 = smul.addr %s249, 4
      %s251 = scalar_lea.vmem %s4, %s250
      %p252 = scmp.lt.s32.totalorder %s19, 1
      %s253 = scalar_select %p252, %s19, 1
      %s254 = smul.addr %s253, 4
      %s255 = smul.addr %s254, 4
      %s256 = scalar_lea.vmem %s0, %s255
      %p257 = scmp.lt.s32.totalorder %s20, 0
      %s258 = scalar_select %p257, %s20, 0
      %s259 = smul.addr %s258, 8
      %s260 = scalar_lea.vmem %s1, %s259
      %p261 = scmp.lt.s32.totalorder %s20, 0
      %s262 = scalar_select %p261, %s20, 0
      %s263 = scalar_lea.vmem %s2, %s262
      %p264 = scmp.lt.s32.totalorder %s19, 1
      %s265 = scalar_select %p264, %s19, 1
      %p266 = scmp.lt.s32.totalorder %s20, 0
      %s267 = scalar_select %p266, %s20, 0
      %s268 = smul.addr %s265, 4
      %s269 = sadd.s32 %s267, %s268
      %s270 = smul.addr %s269, 4
      %s271 = scalar_lea.vmem %s3, %s270
      %p272 = scmp.lt.s32.totalorder %s19, 1
      %s273 = scalar_select %p272, %s19, 1
      %p274 = scmp.lt.s32.totalorder %s20, 0
      %s275 = scalar_select %p274, %s20, 0
      %s276 = smul.addr %s273, 4
      %s277 = sadd.s32 %s275, %s276
      %s278 = smul.addr %s277, 4
      %s279 = scalar_lea.vmem %s4, %s278
      %v280 = vld [vmem:[%s256] sm:$0xf]
      %v281 = vld [vmem:[%s256 + $0x4] sm:$0xf]
      %v282 = vld [vmem:[%s256 + $0x8] sm:$0xf]
      %v283 = vld [vmem:[%s256 + $0xc] sm:$0xf]
      %v284 = vld [vmem:[%s260] sm:$0xff]
      %v285 = vld [vmem:[%s260 + $0x8] sm:$0xff]
      %v286 = vld [vmem:[%s260 + $0x10] sm:$0xff]
      %v287 = vld [vmem:[%s260 + $0x18] sm:$0xff]
      %v288 = vld [vmem:[%s260 + $0x20] sm:$0xff]
      %v289 = vld [vmem:[%s260 + $0x28] sm:$0xff]
      %v290 = vld [vmem:[%s260 + $0x30] sm:$0xff]
      %v291 = vld [vmem:[%s260 + $0x38] sm:$0xff]
      %v292 = vld [vmem:[%s260 + $0x40] sm:$0xff]
      %v293 = vld [vmem:[%s260 + $0x48] sm:$0xff]
      %v294 = vld [vmem:[%s260 + $0x50] sm:$0xff]
      %v295 = vld [vmem:[%s260 + $0x58] sm:$0xff]
      %v296 = vld [vmem:[%s260 + $0x60] sm:$0xff]
      %v297 = vld [vmem:[%s260 + $0x68] sm:$0xff]
      %v298 = vld [vmem:[%s260 + $0x70] sm:$0xff]
      %v299 = vld [vmem:[%s260 + $0x78] sm:$0xff]
      %v300 = vld [vmem:[%s263] sm:$0x1]
      %v302 = vlaneseq
      %v303 = vshrl.u32 %v302, 7
      %v304 = vsub.s32 0, %v303
      %v305 = vrot.slane %v300, %v304
      %v311 = vcombine.low %v280, %v281
      %v312 = vcombine.low %v282, %v283
      %315 = vmatprep.subr.mxu0 0.0
      %316 = vmatpush1.msra.mxu0 %v299
      %317 = vmatprep.subr.mxu0 0.0
      %318 = vmatpush1.msra.mxu0 %v298
      %319 = vmatprep.subr.mxu0 0.0
      %320 = vmatpush1.msra.mxu0 %v297
      %321 = vmatprep.subr.mxu0 0.0
      %322 = vmatpush1.msra.mxu0 %v296
      %323 = vmatprep.subr.mxu0 0.0
      %324 = vmatpush1.msra.mxu0 %v295
      %325 = vmatprep.subr.mxu0 0.0
      %326 = vmatpush1.msra.mxu0 %v294
      %327 = vmatprep.subr.mxu0 0.0
      %328 = vmatpush1.msra.mxu0 %v293
      %329 = vmatprep.subr.mxu0 0.0
      %330 = vmatpush1.msra.mxu0 %v292
      %331 = vmatprep.subr.mxu0 0.0
      %332 = vmatpush1.msra.mxu0 %v291
      %333 = vmatprep.subr.mxu0 0.0
      %334 = vmatpush1.msra.mxu0 %v290
      %335 = vmatprep.subr.mxu0 0.0
      %336 = vmatpush1.msra.mxu0 %v289
      %337 = vmatprep.subr.mxu0 0.0
      %338 = vmatpush1.msra.mxu0 %v288
      %339 = vmatprep.subr.mxu0 0.0
      %340 = vmatpush1.msra.mxu0 %v287
      %341 = vmatprep.subr.mxu0 0.0
      %342 = vmatpush1.msra.mxu0 %v286
      %343 = vmatprep.subr.mxu0 0.0
      %344 = vmatpush1.msra.mxu0 %v285
      %345 = vmatprep.subr.mxu0 0.0
      %346 = vmatpush1.msra.mxu0 %v284
      %347 = vmatprep.subr.mxu0 0.0
      %348 = vmatpush2.msra.mxu0 0.0
      %349 = vmatprep.subr.mxu0 0.0
      %350 = vmatpush2.msra.mxu0 0.0
      %351 = vmatprep.subr.mxu0 0.0
      %352 = vmatpush2.msra.mxu0 0.0
      %353 = vmatprep.subr.mxu0 0.0
      %354 = vmatpush2.msra.mxu0 0.0
      %355 = vmatprep.subr.mxu0 0.0
      %356 = vmatpush2.msra.mxu0 0.0
      %357 = vmatprep.subr.mxu0 0.0
      %358 = vmatpush2.msra.mxu0 0.0
      %359 = vmatprep.subr.mxu0 0.0
      %360 = vmatpush2.msra.mxu0 0.0
      %361 = vmatprep.subr.mxu0 0.0
      %362 = vmatpush2.msra.mxu0 0.0
      %363 = vmatprep.subr.mxu0 0.0
      %364 = vmatpush2.msra.mxu0 0.0
      %365 = vmatprep.subr.mxu0 0.0
      %366 = vmatpush2.msra.mxu0 0.0
      %367 = vmatprep.subr.mxu0 0.0
      %368 = vmatpush2.msra.mxu0 0.0
      %369 = vmatprep.subr.mxu0 0.0
      %370 = vmatpush2.msra.mxu0 0.0
      %371 = vmatprep.subr.mxu0 0.0
      %372 = vmatpush2.msra.mxu0 0.0
      %373 = vmatprep.subr.mxu0 0.0
      %374 = vmatpush2.msra.mxu0 0.0
      %375 = vmatprep.subr.mxu0 0.0
      %376 = vmatpush2.msra.mxu0 0.0
      %377 = vmatprep.subr.mxu0 0.0
      %378 = vmatpush2.msra.mxu0 0.0
      %379 = vmatprep.mubr.f32.mxu0 0.0
      %380 = vmatmul.mubr.f32.gmra.mxu0 %v311
      %v381 = vpop.f32.mrf.mxu0
      %v382 = vadd.f32 %v305, %v381
      %v383 = vpop.f32.mrf.mxu0
      %384 = vmatprep.mubr.f32.mxu0 0.0
      %385 = vmatmul.mubr.f32.gmra.mxu0 %v312
      %v386 = vpop.f32.mrf.mxu0
      %v387 = vadd.f32 %v305, %v386
      %v388 = vpop.f32.mrf.mxu0
      %389 = vdwg.mxu0
      %v390 = vld [vmem:[%s271] sm:$0xf]
      %v391 = vld [vmem:[%s271 + $0x4] sm:$0xf]
      %v392 = vld [vmem:[%s271 + $0x8] sm:$0xf]
      %v393 = vld [vmem:[%s271 + $0xc] sm:$0xf]
      %v398 = vcombine.low %v390, %v391
      %v399 = vcombine.low %v392, %v393
      %v402 = vadd.f32 %v382, %v398
      %v403 = vadd.f32 %v387, %v399
      %v406 = vcombine.high %v402, %v402
      %v407 = vcombine.high %v403, %v403
      %410 = vst [vmem:[%s279] sm:$0xf] %v402
      %411 = vst [vmem:[%s279 + $0x4] sm:$0xf] %v406
      %412 = vst [vmem:[%s279 + $0x8] sm:$0xf] %v403
      %413 = vst [vmem:[%s279 + $0xc] sm:$0xf] %v407
      %p414 = scmp.lt.s32.totalorder %s19, 1
      %s415 = scalar_select %p414, %s19, 1
      %p416 = scmp.lt.s32.totalorder %s20, 0
      %s417 = scalar_select %p416, %s20, 0
      %s418 = smul.addr %s415, 4
      %s419 = sadd.s32 %s417, %s418
      %s420 = smul.addr %s419, 4
      %s421 = scalar_lea.vmem %s4, %s420
      // Predicated region
      $region37: #{discriminator_down_block.11} parent=35 // pred_check
        %p422 = pneg %p153
      $region38: #{discriminator_down_block.11} parent=35 // pred_check_branch
        %424 = sbr.rel (%p422) target = $region40
      $region39: #{discriminator_down_block.11} parent=35 // pred_region
        _
      $region40: #{discriminator_down_block.11} parent=35 // pred_fallthru
        _
    $region36: #{discriminator_down_block.11} parent=5 // pred_fallthru
      _
    %p425 = scmp.le.s32.totalorder 2, %s10
    // Predicated region
    $region41: #{discriminator_down_block.11} parent=5 // pred_check
      %p426 = pneg %p425
    $region42: #{discriminator_down_block.11} parent=5 // pred_check_branch
      %428 = sbr.rel (%p426) target = $region44
    $region43: #{discriminator_down_block.11} parent=5 // pred_region
      %s429 = ssub.s32 %s10, 2
      // Predicated region
      $region45: #{discriminator_down_block.11} parent=43 // pred_check
        %p430 = pneg %p159
      $region46: #{discriminator_down_block.11} parent=43 // pred_check_branch
        %432 = sbr.rel (%p430) target = $region48
      $region47: #{discriminator_down_block.11} parent=43 // pred_region
        %p433 = scmp.lt.s32.totalorder %s21, 1
        %s434 = scalar_select %p433, %s21, 1
        %p435 = scmp.lt.s32.totalorder %s22, 0
        %s436 = scalar_select %p435, %s22, 0
        %s437 = smul.addr %s434, 4
        %s438 = sadd.s32 %s436, %s437
        %s439 = smul.addr %s438, 4
        %s440 = scalar_lea.vmem %s4, %s439
      $region48: #{discriminator_down_block.11} parent=43 // pred_fallthru
        _
    $region44: #{discriminator_down_block.11} parent=5 // pred_fallthru
      _
  $region6: #{discriminator_down_block.11} parent=0 // loop_footer
    %s14 = sadd.s32 1, %s10
  $region7: #{discriminator_down_block.11} parent=0 // loop_footer_branch
    %9 = sbr.rel target = $region3
  $region8: #{discriminator_down_block.11} parent=0 // loop_exit
    _

// kernel: discriminator_down_block.9
$region0: #{discriminator_down_block.9}
  #allocation0 [shape = 'u32[]', space=smem, size = 0x4, offset = 0x4, fixed_abs, tag = 'smem constant byte address 0x4 - core index']
  #allocation1 [shape = 'u32[144,128]{1,0:T(1,128)}', space=vmem, size = 0x12000, scoped, tag = 'internal scratch']
  %s0 = inlined_call_operand.vmem [shape: f32[2,6,6,128], index: 0, kind: input, shape index: {}]
  %s1 = inlined_call_operand.vmem [shape: f32[1,128], index: 1, kind: input, shape index: {}]
  %s2 = inlined_call_operand.vmem [shape: f32[1,128], index: 2, kind: input, shape index: {}]
  %s3 = inlined_call_operand.hbm [shape: f32[9,128,128], index: 3, kind: input, shape index: {}]
  %s4 = inlined_call_operand.vmem [shape: f32[1,128], index: 4, kind: input, shape index: {}]
  %s5 = inlined_call_operand.vmem [shape: f32[2,4,4,128], index: 5, kind: output, shape index: {}]
  %s6 = sld [smem:[#allocation0]]
  $region57: #{discriminator_down_block.9} parent=0
    _
  %s8 = ssub.s32 1, %s6
  %s9 = scalar_select 0, %s8, %s6
  $region1: #{discriminator_down_block.9} parent=0
    #allocation2 [shape = 'u8[589824]{0}', space=vmem, size = 0x90000, scoped, tag = 'input window, operand 3, single buffered']
    #allocation3 [shape = 's32[2]{0}', space=sflag, size = 0x8, scoped, tag = 'scoped memory for discriminator_down_block.9']
    %10 = vsyncpa [#allocation3], 0
    loop: start=0, step=1, limit=4
    $region2: #{discriminator_down_block.9} parent=1 // loop_pre_header
      _
    $region3: #{discriminator_down_block.9} parent=1 // loop_header
      %s12 = sphi 0, %s16
      %p13 = scmp.ge.s32.totalorder %s12, 4
      %s19 = sphi 0, %s31
      %s20 = sphi 0, %s27
      %s21 = sphi 0, %s19
      %s22 = sphi 0, %s20
      %s23 = sphi 0, %s21
      %s24 = sphi 0, %s22
      %s34 = sphi 0, %s36
      %s37 = sphi 0, %s34
      %s38 = sphi 0, %s37
      %s54 = sphi 0, %s38
      %s58 = sphi 0, %s58
      %s60 = sphi 0, %s58
      %s61 = sphi 0, %s60
      %s75 = sphi 0, %s61
      %s79 = sphi 0, %s79
      %s81 = sphi 0, %s79
      %s82 = sphi 0, %s81
      %s96 = sphi 0, %s82
      %s102 = sphi 0, %s104
      %s105 = sphi 0, %s102
      %s106 = sphi 0, %s105
      %s122 = sphi 0, %s106
      %s128 = sphi 0, %s130
      %s131 = sphi 0, %s128
      %s132 = sphi 0, %s131
      %s148 = sphi 0, %s132
      %s156 = sphi 0, %s158
      %s159 = sphi 0, %s156
      %s160 = sphi 0, %s159
      %s176 = sphi 0, %s160
    $region4: #{discriminator_down_block.9} parent=1 // loop_header_branch
      %15 = sbr.rel (%p13) target = $region8
    $region5: #{discriminator_down_block.9} parent=1 // loop_body
      %s17 = ssub.s32 %s12, 1
      %s18 = ssub.s32 %s12, 2
      %s25 = sadd.s32 1, %s20
      %p26 = scmp.ge.s32.totalorder %s25, 1
      %s27 = scalar_select %p26, 0, %s25
      %s28 = sadd.s32 1, %s19
      %s29 = scalar_select %p26, %s28, %s19
      %p30 = scmp.ge.s32.totalorder %s29, 2
      %s31 = scalar_select %p30, 0, %s29
      %s32 = ssub.s32 %s19, %s31
      %p33 = scmp.eq.s32.totalorder %s32, 0
      %s35 = sadd.s32 %s34, 1
      %s36 = scalar_select %p33, %s34, %s35
      %p39 = pneg %p33
      %p40 = scmp.eq.s32.totalorder %s12, 1
      %p41 = por %p39, %p40
      %p42 = scmp.ne.s32.totalorder %s34, %s37
      %p43 = scmp.eq.s32.totalorder %s12, 0
      %p44 = por %p42, %p43
      %p45 = scmp.ne.s32.totalorder %s34, %s37
      %p46 = scmp.eq.s32.totalorder %s17, 1
      %p47 = por %p45, %p46
      %p48 = scmp.ne.s32.totalorder %s37, %s38
      %p49 = scmp.eq.s32.totalorder %s17, 0
      %p50 = por %p48, %p49
      %p51 = scmp.ne.s32.totalorder %s37, %s38
      %p52 = scmp.eq.s32.totalorder %s18, 1
      %p53 = por %p51, %p52
      %p55 = scmp.ne.s32.totalorder %s38, %s54
      %p56 = scmp.eq.s32.totalorder %s18, 0
      %p57 = por %p55, %p56
      %s59 = sadd.s32 %s58, 1
      %p62 = scmp.eq.s32.totalorder %s12, 1
      %p63 = scmp.ne.s32.totalorder %s58, %s60
      %p64 = scmp.eq.s32.totalorder %s12, 0
      %p65 = por %p63, %p64
      %p66 = scmp.ne.s32.totalorder %s58, %s60
      %p67 = scmp.eq.s32.totalorder %s17, 1
      %p68 = por %p66, %p67
      %p69 = scmp.ne.s32.totalorder %s60, %s61
      %p70 = scmp.eq.s32.totalorder %s17, 0
      %p71 = por %p69, %p70
      %p72 = scmp.ne.s32.totalorder %s60, %s61
      %p73 = scmp.eq.s32.totalorder %s18, 1
      %p74 = por %p72, %p73
      %p76 = scmp.ne.s32.totalorder %s61, %s75
      %p77 = scmp.eq.s32.totalorder %s18, 0
      %p78 = por %p76, %p77
      %s80 = sadd.s32 %s79, 1
      %p83 = scmp.eq.s32.totalorder %s12, 1
      %p84 = scmp.ne.s32.totalorder %s79, %s81
      %p85 = scmp.eq.s32.totalorder %s12, 0
      %p86 = por %p84, %p85
      %p87 = scmp.ne.s32.totalorder %s79, %s81
      %p88 = scmp.eq.s32.totalorder %s17, 1
      %p89 = por %p87, %p88
      %p90 = scmp.ne.s32.totalorder %s81, %s82
      %p91 = scmp.eq.s32.totalorder %s17, 0
      %p92 = por %p90, %p91
      %p93 = scmp.ne.s32.totalorder %s81, %s82
      %p94 = scmp.eq.s32.totalorder %s18, 1
      %p95 = por %p93, %p94
      %p97 = scmp.ne.s32.totalorder %s82, %s96
      %p98 = scmp.eq.s32.totalorder %s18, 0
      %p99 = por %p97, %p98
      %s100 = ssub.s32 %s20, %s27
      %p101 = scmp.eq.s32.totalorder %s100, 0
      %s103 = sadd.s32 %s102, 1
      %s104 = scalar_select %p101, %s102, %s103
      %p107 = pneg %p101
      %p108 = scmp.eq.s32.totalorder %s12, 1
      %p109 = por %p107, %p108
      %p110 = scmp.ne.s32.totalorder %s102, %s105
      %p111 = scmp.eq.s32.totalorder %s12, 0
      %p112 = por %p110, %p111
      %p113 = scmp.ne.s32.totalorder %s102, %s105
      %p114 = scmp.eq.s32.totalorder %s17, 1
      %p115 = por %p113, %p114
      %p116 = scmp.ne.s32.totalorder %s105, %s106
      %p117 = scmp.eq.s32.totalorder %s17, 0
      %p118 = por %p116, %p117
      %p119 = scmp.ne.s32.totalorder %s105, %s106
      %p120 = scmp.eq.s32.totalorder %s18, 1
      %p121 = por %p119, %p120
      %p123 = scmp.ne.s32.totalorder %s106, %s122
      %p124 = scmp.eq.s32.totalorder %s18, 0
      %p125 = por %p123, %p124
      %s126 = ssub.s32 %s20, %s27
      %p127 = scmp.eq.s32.totalorder %s126, 0
      %s129 = sadd.s32 %s128, 1
      %s130 = scalar_select %p127, %s128, %s129
      %p133 = pneg %p127
      %p134 = scmp.eq.s32.totalorder %s12, 1
      %p135 = por %p133, %p134
      %p136 = scmp.ne.s32.totalorder %s128, %s131
      %p137 = scmp.eq.s32.totalorder %s12, 0
      %p138 = por %p136, %p137
      %p139 = scmp.ne.s32.totalorder %s128, %s131
      %p140 = scmp.eq.s32.totalorder %s17, 1
      %p141 = por %p139, %p140
      %p142 = scmp.ne.s32.totalorder %s131, %s132
      %p143 = scmp.eq.s32.totalorder %s17, 0
      %p144 = por %p142, %p143
      %p145 = scmp.ne.s32.totalorder %s131, %s132
      %p146 = scmp.eq.s32.totalorder %s18, 1
      %p147 = por %p145, %p146
      %p149 = scmp.ne.s32.totalorder %s132, %s148
      %p150 = scmp.eq.s32.totalorder %s18, 0
      %p151 = por %p149, %p150
      %s152 = ssub.s32 %s19, %s31
      %s153 = ssub.s32 %s20, %s27
      %s154 = sor.u32 %s152, %s153
      %p155 = scmp.eq.s32.totalorder %s154, 0
      %s157 = sadd.s32 %s156, 1
      %s158 = scalar_select %p155, %s156, %s157
      %p161 = pneg %p155
      %p162 = scmp.eq.s32.totalorder %s12, 1
      %p163 = por %p161, %p162
      %p164 = scmp.ne.s32.totalorder %s156, %s159
      %p165 = scmp.eq.s32.totalorder %s12, 0
      %p166 = por %p164, %p165
      %p167 = scmp.ne.s32.totalorder %s156, %s159
      %p168 = scmp.eq.s32.totalorder %s17, 1
      %p169 = por %p167, %p168
      %p170 = scmp.ne.s32.totalorder %s159, %s160
      %p171 = scmp.eq.s32.totalorder %s17, 0
      %p172 = por %p170, %p171
      %p173 = scmp.ne.s32.totalorder %s159, %s160
      %p174 = scmp.eq.s32.totalorder %s18, 1
      %p175 = por %p173, %p174
      %p177 = scmp.ne.s32.totalorder %s160, %s176
      %p178 = scmp.eq.s32.totalorder %s18, 0
      %p179 = por %p177, %p178
      %p180 = scmp.le.s32.totalorder 1, %s12
      %p181 = scmp.lt.s32.totalorder %s12, 3
      %p182 = pnand %p180, %p181
      %p183 = pneg %p182
      // Predicated region
      $region9: #{discriminator_down_block.9} parent=5 // pred_check
        _
      $region10: #{discriminator_down_block.9} parent=5 // pred_check_branch
        %185 = sbr.rel (%p182) target = $region12
      $region11: #{discriminator_down_block.9} parent=5 // pred_region
        %s186 = ssub.s32 %s12, 1
        // Predicated region
        $region13: #{discriminator_down_block.9} parent=11 // pred_check
          %p187 = pneg %p71
        $region14: #{discriminator_down_block.9} parent=11 // pred_check_branch
          %189 = sbr.rel (%p187) target = $region16
        $region15: #{discriminator_down_block.9} parent=11 // pred_region
          _
        $region16: #{discriminator_down_block.9} parent=11 // pred_fallthru
          _
        // Predicated region
        $region17: #{discriminator_down_block.9} parent=11 // pred_check
          %p190 = pneg %p92
        $region18: #{discriminator_down_block.9} parent=11 // pred_check_branch
          %192 = sbr.rel (%p190) target = $region20
        $region19: #{discriminator_down_block.9} parent=11 // pred_region
          _
        $region20: #{discriminator_down_block.9} parent=11 // pred_fallthru
          _
        // Predicated region
        $region21: #{discriminator_down_block.9} parent=11 // pred_check
          %p193 = pneg %p118
        $region22: #{discriminator_down_block.9} parent=11 // pred_check_branch
          %195 = sbr.rel (%p193) target = $region24
        $region23: #{discriminator_down_block.9} parent=11 // pred_region
          %s197 = ssub.s32 18432, 18432
          %198 = vsyncadd [#allocation3], %s197
          %s199 = smul.addr %s22, 128
          %s200 = scalar_lea.hbm %s3, %s199
          %s201 = sshll.u32 [#allocation2], 4
          %s202 = int_to_ptr.vmem [resolvable:$true] %s201
          %207 = dma.hbm_to_vmem [thread:$0]  %s200, 18432, %s202, [#allocation3], 128, 128, 8
        $region24: #{discriminator_down_block.9} parent=11 // pred_fallthru
          _
        // Predicated region
        $region25: #{discriminator_down_block.9} parent=11 // pred_check
          %p208 = pneg %p144
        $region26: #{discriminator_down_block.9} parent=11 // pred_check_branch
          %210 = sbr.rel (%p208) target = $region28
        $region27: #{discriminator_down_block.9} parent=11 // pred_region
          %p211 = scmp.lt.s32.totalorder %s22, 0
          %s212 = scalar_select %p211, %s22, 0
          %s213 = scalar_lea.vmem %s4, %s212
        $region28: #{discriminator_down_block.9} parent=11 // pred_fallthru
          _
      $region12: #{discriminator_down_block.9} parent=5 // pred_fallthru
        _
      %p214 = scmp.lt.s32.totalorder %s12, 2
      // Predicated region
      $region29: #{discriminator_down_block.9} parent=5 // pred_check
        %p215 = pneg %p214
      $region30: #{discriminator_down_block.9} parent=5 // pred_check_branch
        %217 = sbr.rel (%p215) target = $region32
      $region31: #{discriminator_down_block.9} parent=5 // pred_region
        // Predicated region
        $region33: #{discriminator_down_block.9} parent=31 // pred_check
          %p218 = pneg %p44
        $region34: #{discriminator_down_block.9} parent=31 // pred_check_branch
          %220 = sbr.rel (%p218) target = $region36
        $region35: #{discriminator_down_block.9} parent=31 // pred_region
          %p221 = scmp.lt.s32.totalorder %s19, 1
          %s222 = scalar_select %p221, %s19, 1
          %s223 = smul.addr %s222, 6
          %s224 = smul.addr %s223, 8
          %s225 = scalar_lea.vmem %s0, %s224
        $region36: #{discriminator_down_block.9} parent=31 // pred_fallthru
          _
      $region32: #{discriminator_down_block.9} parent=5 // pred_fallthru
        _
      %p226 = scmp.le.s32.totalorder 1, %s12
      %p227 = scmp.lt.s32.totalorder %s12, 3
      %p228 = pnand %p226, %p227
      %p229 = pneg %p228
      // Predicated region
      $region37: #{discriminator_down_block.9} parent=5 // pred_check
        _
      $region38: #{discriminator_down_block.9} parent=5 // pred_check_branch
        %231 = sbr.rel (%p228) target = $region40
      $region39: #{discriminator_down_block.9} parent=5 // pred_region
        %s232 = ssub.s32 %s12, 1
        // Predicated region
        $region41: #{discriminator_down_block.9} parent=39 // pred_check
          %p233 = pneg %p118
        $region42: #{discriminator_down_block.9} parent=39 // pred_check_branch
          %235 = sbr.rel (%p233) target = $region44
        $region43: #{discriminator_down_block.9} parent=39 // pred_region
          %236 = dma.done [#allocation3], 18432
        $region44: #{discriminator_down_block.9} parent=39 // pred_fallthru
          _
        %p237 = scmp.lt.s32.totalorder %s21, 1
        %s238 = scalar_select %p237, %s21, 1
        %s239 = smul.addr %s238, 6
        %s240 = smul.addr %s239, 8
        %s241 = scalar_lea.vmem %s0, %s240
        %p242 = pneg %p50
        %p243 = pneg %p47
        %p244 = pneg %p71
        %p245 = pneg %p68
        %p246 = pneg %p92
        %p247 = pneg %p89
        %p248 = pneg %p118
        %p249 = pneg %p115
        %p250 = scmp.lt.s32.totalorder %s22, 0
        %s251 = scalar_select %p250, %s22, 0
        %s252 = scalar_lea.vmem %s4, %s251
        %p253 = pneg %p144
        %p254 = pneg %p141
        %p255 = pneg %p172
        %p256 = pneg %p169
        %p257 = scmp.lt.s32.totalorder %s21, 1
        %s258 = scalar_select %p257, %s21, 1
        %p259 = scmp.lt.s32.totalorder %s22, 0
        %s260 = scalar_select %p259, %s22, 0
        %s261 = smul.addr %s258, 4
        %s262 = sadd.s32 %s260, %s261
        %s263 = smul.addr %s262, 4
        %s264 = scalar_lea.vmem %s5, %s263
        %p265 = scmp.lt.s32.totalorder %s21, 1
        %s266 = scalar_select %p265, %s21, 1
        %s267 = smul.addr %s266, 6
        %s268 = smul.addr %s267, 8
        %s269 = scalar_lea.vmem %s0, %s268
        %p270 = scmp.lt.s32.totalorder %s22, 0
        %s271 = scalar_select %p270, %s22, 0
        %s272 = scalar_lea.vmem %s4, %s271
        %p273 = scmp.lt.s32.totalorder %s21, 1
        %s274 = scalar_select %p273, %s21, 1
        %p275 = scmp.lt.s32.totalorder %s22, 0
        %s276 = scalar_select %p275, %s22, 0
        %s277 = smul.addr %s274, 4
        %s278 = sadd.s32 %s276, %s277
        %s279 = smul.addr %s278, 4
        %s280 = scalar_lea.vmem %s5, %s279
        %v281 = vld [vmem:[%s269] sm:$0x3f]
        %v282 = vld [vmem:[%s269 + $0x8] sm:$0x3f]
        %v283 = vld [vmem:[%s269 + $0x10] sm:$0x3f]
        %v284 = vld [vmem:[%s269 + $0x18] sm:$0x3f]
        %v285 = vld [vmem:[%s269 + $0x20] sm:$0x3f]
        %v286 = vld [vmem:[%s269 + $0x28] sm:$0x3f]
        %vm287 = vcmask 1045504
        %v288 = vsel %vm287, %v281, 0.0
        %v289 = vsel %vm287, %v282, 0.0
        %v290 = vadd.f32 %v288, %v289
        %v291 = vsel %vm287, %v283, 0.0
        %v292 = vadd.f32 %v290, %v291
        %v293 = vsel %vm287, %v284, 0.0
        %v294 = vadd.f32 %v292, %v293
        %v295 = vsel %vm287, %v285, 0.0
        %v296 = vadd.f32 %v294, %v295
        %v297 = vsel %vm287, %v286, 0.0
        %v298 = vadd.f32 %v296, %v297
        %v299 = vrot.slane %v298, 4
        %v300 = vadd.f32 %v298, %v299
        %v301 = vrot.slane %v300, 2
        %v302 = vadd.f32 %v300, %v301
        %v303 = vrot.slane %v302, 1
        %v304 = vadd.f32 %v302, %v303
        %v305 = vmul.f32 %v281, %v281
        %v306 = vmul.f32 %v282, %v282
        %v307 = vmul.f32 %v283, %v283
        %v308 = vmul.f32 %v284, %v284
        %v309 = vmul.f32 %v285, %v285
        %v310 = vmul.f32 %v286, %v286
        %v311 = vsel %vm287, %v305, 0.0
        %v312 = vsel %vm287, %v306, 0.0
        %v313 = vadd.f32 %v311, %v312
        %v314 = vsel %vm287, %v307, 0.0
        %v315 = vadd.f32 %v313, %v314
        %v316 = vsel %vm287, %v308, 0.0
        %v317 = vadd.f32 %v315, %v316
        %v318 = vsel %vm287, %v309, 0.0
        %v319 = vadd.f32 %v317, %v318
        %v320 = vsel %vm287, %v310, 0.0
        %v321 = vadd.f32 %v319, %v320
        %v322 = vrot.slane %v321, 4
        %v323 = vadd.f32 %v321, %v322
        %v324 = vrot.slane %v323, 2
        %v325 = vadd.f32 %v323, %v324
        %v326 = vrot.slane %v325, 1
        %v327 = vadd.f32 %v325, %v326
        %v328 = vlaneseq
        %v329 = vand.u32 %v328, 127
        %vm330 = vcmp.ge.s32.totalorder %v329, 0
        %vm331 = vcmp.lt.s32.totalorder %v329, 2
        %vm332 = vmand %vm330, %vm331
        %v333 = vsel %vm332, %v304, 0.0
        %vm334 = vcmask 1040384
        %v335 = vsel %vm334, %v333, 0.0
        %336 = vadd.xlane.f32.xlu0 %v335
        %v337 = vpop.xlane.xlu0 %336
        %v338 = vrot.slane %v337, 4
        %v339 = vadd.f32 %v337, %v338
        %v340 = vrot.slane %v339, 2
        %v341 = vadd.f32 %v339, %v340
        %v342 = vrot.slane %v341, 1
        %v343 = vadd.f32 %v341, %v342
        %s344 = vtos %v343
        %v345 = vstv %s344
        %v346 = vmul.f32 %v345, 0.03125
        %v347 = vsel %vm332, %v327, 0.0
        %v348 = vsel %vm334, %v347, 0.0
        %349 = vadd.xlane.f32.xlu0 %v348
        %v350 = vpop.xlane.xlu0 %349
        %v351 = vrot.slane %v350, 4
        %v352 = vadd.f32 %v350, %v351
        %v353 = vrot.slane %v352, 2
        %v354 = vadd.f32 %v352, %v353
        %v355 = vrot.slane %v354, 1
        %v356 = vadd.f32 %v354, %v355
        %s357 = vtos %v356
        %v358 = vstv %s357
        %v359 = vmul.f32 %v358, 0.03125
        %v360 = vmul.f32 %v346, %v346
        %v361 = vsub.f32 %v359, %v360
        %v362 = vadd.f32 %v361, 1e-05
        %v363 = vrsqrt.pop %v362
        %v364 = vsel %vm332, %v346, 0.0
        %v365 = vsel %vm332, %v363, 0.0
        %vm366 = vcmp.ge.s32.totalorder %v329, 2
        %vm367 = vcmp.lt.s32.totalorder %v329, 4
        %vm368 = vmand %vm366, %vm367
        %v369 = vsel %vm368, %v304, 0.0
        %v370 = vsel %vm334, %v369, 0.0
        %371 = vadd.xlane.f32.xlu0 %v370
        %v372 = vpop.xlane.xlu0 %371
        %v373 = vrot.slane %v372, 4
        %v374 = vadd.f32 %v372, %v373
        %v375 = vrot.slane %v374, 2
        %v376 = vadd.f32 %v374, %v375
        %v377 = vrot.slane %v376, 1
        %v378 = vadd.f32 %v376, %v377
        %s379 = vtos %v378
        %v380 = vstv %s379
        %v381 = vmul.f32 %v380, 0.03125
        %v382 = vsel %vm368, %v327, 0.0
        %v383 = vsel %vm334, %v382, 0.0
        %384 = vadd.xlane.f32.xlu0 %v383
        %v385 = vpop.xlane.xlu0 %384
        %v386 = vrot.slane %v385, 4
        %v387 = vadd.f32 %v385, %v386
        %v388 = vrot.slane %v387, 2
        %v389 = vadd.f32 %v387, %v388
        %v390 = vrot.slane %v389, 1
        %v391 = vadd.f32 %v389, %v390
        %s392 = vtos %v391
        %v393 = vstv %s392
        %v394 = vmul.f32 %v393, 0.03125
        %v395 = vmul.f32 %v381, %v381
        %v396 = vsub.f32 %v394, %v395
        %v397 = vadd.f32 %v396, 1e-05
        %v398 = vrsqrt.pop %v397
        %v399 = vsel %vm368, %v381, %v364
        %v400 = vsel %vm368, %v398, %v365
        %vm401 = vcmp.ge.s32.totalorder %v329, 4
        %vm402 = vcmp.lt.s32.totalorder %v329, 6
        %vm403 = vmand %vm401, %vm402
        %v404 = vsel %vm403, %v304, 0.0
        %v405 = vsel %vm334, %v404, 0.0
        %406 = vadd.xlane.f32.xlu0 %v405
        %v407 = vpop.xlane.xlu0 %406
        %v408 = vrot.slane %v407, 4
        %v409 = vadd.f32 %v407, %v408
        %v410 = vrot.slane %v409, 2
        %v411 = vadd.f32 %v409, %v410
        %v412 = vrot.slane %v411, 1
        %v413 = vadd.f32 %v411, %v412
        %s414 = vtos %v413
        %v415 = vstv %s414
        %v416 = vmul.f32 %v415, 0.03125
        %v417 = vsel %vm403, %v327, 0.0
        %v418 = vsel %vm334, %v417, 0.0
        %419 = vadd.xlane.f32.xlu0 %v418
        %v420 = vpop.xlane.xlu0 %419
        %v421 = vrot.slane %v420, 4
        %v422 = vadd.f32 %v420, %v421
        %v423 = vrot.slane %v422, 2
        %v424 = vadd.f32 %v422, %v423
        %v425 = vrot.slane %v424, 1
        %v426 = vadd.f32 %v424, %v425
        %s427 = vtos %v426
        %v428 = vstv %s427
        %v429 = vmul.f32 %v428, 0.03125
        %v430 = vmul.f32 %v416, %v416
        %v431 = vsub.f32 %v429, %v430
        %v432 = vadd.f32 %v431, 1e-05
        %v433 = vrsqrt.pop %v432
        %v434 = vsel %vm403, %v416, %v399
        %v435 = vsel %vm403, %v433, %v400
        %vm436 = vcmp.ge.s32.totalorder %v329, 6
        %vm437 = vcmp.lt.s32.totalorder %v329, 8
        %vm438 = vmand %vm436, %vm437
        %v439 = vsel %vm438, %v304, 0.0
        %v440 = vsel %vm334, %v439, 0.0
        %441 = vadd.xlane.f32.xlu0 %v440
        %v442 = vpop.xlane.xlu0 %441
        %v443 = vrot.slane %v442, 4
        %v444 = vadd.f32 %v442, %v443
        %v445 = vrot.slane %v444, 2
        %v446 = vadd.f32 %v444, %v445
        %v447 = vrot.slane %v446, 1
        %v448 = vadd.f32 %v446, %v447
        %s449 = vtos %v448
        %v450 = vstv %s449
        %v451 = vmul.f32 %v450, 0.03125
        %v452 = vsel %vm438, %v327, 0.0
        %v453 = vsel %vm334, %v452, 0.0
        %454 = vadd.xlane.f32.xlu0 %v453
        %v455 = vpop.xlane.xlu0 %454
        %v456 = vrot.slane %v455, 4
        %v457 = vadd.f32 %v455, %v456
        %v458 = vrot.slane %v457, 2
        %v459 = vadd.f32 %v457, %v458
        %v460 = vrot.slane %v459, 1
        %v461 = vadd.f32 %v459, %v460
        %s462 = vtos %v461
        %v463 = vstv %s462
        %v464 = vmul.f32 %v463, 0.03125
        %v465 = vmul.f32 %v451, %v451
        %v466 = vsub.f32 %v464, %v465
        %v467 = vadd.f32 %v466, 1e-05
        %v468 = vrsqrt.pop %v467
        %v469 = vsel %vm438, %v451, %v434
        %v470 = vsel %vm438, %v468, %v435
        %v471 = vld [vmem:[%s1] sm:$0x1]
        %v472 = vmul.f32 %v471, %v470
        %v473 = vld [vmem:[%s2] sm:$0x1]
        %v474 = vmul.f32 %v469, %v472
        %v475 = vsub.f32 %v473, %v474
        %v477 = vlaneseq
        %v478 = vshrl.u32 %v477, 7
        %v479 = vsub.s32 0, %v478
        %v480 = vrot.slane %v472, %v479
        %v482 = vmul.f32 %v281, %v480
        %v483 = vmul.f32 %v282, %v480
        %v484 = vmul.f32 %v283, %v480
        %v485 = vmul.f32 %v284, %v480
        %v486 = vmul.f32 %v285, %v480
        %v487 = vmul.f32 %v286, %v480
        %v489 = vlaneseq
        %v490 = vshrl.u32 %v489, 7
        %v491 = vsub.s32 0, %v490
        %v492 = vrot.slane %v475, %v491
        %v494 = vadd.f32 %v482, %v492
        %v495 = vadd.f32 %v483, %v492
        %v496 = vadd.f32 %v484, %v492
        %v497 = vadd.f32 %v485, %v492
        %v498 = vadd.f32 %v486, %v492
        %v499 = vadd.f32 %v487, %v492
        %v500 = vxor.u32 %v494, 2147483648
        %v501 = vxor.u32 %v495, 2147483648
        %v502 = vxor.u32 %v496, 2147483648
        %v503 = vxor.u32 %v497, 2147483648
        %v504 = vxor.u32 %v498, 2147483648
        %v505 = vxor.u32 %v499, 2147483648
        %v506 = vmul.f32 %v500, 1.442695
        %v507 = vpow.pop %v506
        %v508 = vmul.f32 %v501, 1.442695
        %v509 = vpow.pop %v508
        %v510 = vmul.f32 %v502, 1.442695
        %v511 = vpow.pop %v510
        %v512 = vmul.f32 %v503, 1.442695
        %v513 = vpow.pop %v512
        %v514 = vmul.f32 %v504, 1.442695
        %v515 = vpow.pop %v514
        %v516 = vmul.f32 %v505, 1.442695
        %v517 = vpow.pop %v516
        %v518 = vadd.f32 %v507, 1.0
        %v519 = vadd.f32 %v509, 1.0
        %v520 = vadd.f32 %v511, 1.0
        %v521 = vadd.f32 %v513, 1.0
        %v522 = vadd.f32 %v515, 1.0
        %v523 = vadd.f32 %v517, 1.0
        %v524 = vrcp.pop %v518
        %v525 = vmul.f32 1.0, %v524
        %v526 = vrcp.pop %v519
        %v527 = vmul.f32 1.0, %v526
        %v528 = vrcp.pop %v520
        %v529 = vmul.f32 1.0, %v528
        %v530 = vrcp.pop %v521
        %v531 = vmul.f32 1.0, %v530
        %v532 = vrcp.pop %v522
        %v533 = vmul.f32 1.0, %v532
        %v534 = vrcp.pop %v523
        %v535 = vmul.f32 1.0, %v534
        %v536 = vmul.f32 %v494, %v525
        %v537 = vmul.f32 %v495, %v527
        %v538 = vmul.f32 %v496, %v529
        %v539 = vmul.f32 %v497, %v531
        %v540 = vmul.f32 %v498, %v533
        %v541 = vmul.f32 %v499, %v535
        %v542 = vlaneseq
        %v543 = vshrl.u32 %v542, 7
        %vm544 = vcmp.ge.s32.totalorder %v543, 1
        %vm545 = vmand 0, %vm544
        %vm546 = vmand 1, %vm544
        %vm547 = vcmp.lt.s32.totalorder %v543, 5
        %vm548 = vmand %vm545, %vm547
        %vm549 = vmand %vm546, %vm547
        %v550 = vsel %vm548, 1, 0
        %v551 = vsel %vm549, 1, 0
        %vm552 = vcmp.eq.s32.totalorder %v550, 1
        %vm553 = vcmp.eq.s32.totalorder %v551, 1
        %v554 = vsel %vm552, %v536, 0.0
        %v555 = vsel %vm553, %v537, 0.0
        %v556 = vsel %vm553, %v538, 0.0
        %v557 = vsel %vm553, %v539, 0.0
        %v558 = vsel %vm553, %v540, 0.0
        %v559 = vsel %vm552, %v541, 0.0
        %v560 = vld [vmem:[#allocation2] sm:$0xff]
        %v561 = vld [vmem:[#allocation2 + $0x8] sm:$0xff]
        %v562 = vld [vmem:[#allocation2 + $0x10] sm:$0xff]
        %v563 = vld [vmem:[#allocation2 + $0x18] sm:$0xff]
        %v564 = vld [vmem:[#allocation2 + $0x20] sm:$0xff]
        %v565 = vld [vmem:[#allocation2 + $0x28] sm:$0xff]
        %v566 = vld [vmem:[#allocation2 + $0x30] sm:$0xff]
        %v567 = vld [vmem:[#allocation2 + $0x38] sm:$0xff]
        %v568 = vld [vmem:[#allocation2 + $0x40] sm:$0xff]
        %v569 = vld [vmem:[#allocation2 + $0x48] sm:$0xff]
        %v570 = vld [vmem:[#allocation2 + $0x50] sm:$0xff]
        %v571 = vld [vmem:[#allocation2 + $0x58] sm:$0xff]
        %v572 = vld [vmem:[#allocation2 + $0x60] sm:$0xff]
        %v573 = vld [vmem:[#allocation2 + $0x68] sm:$0xff]
        %v574 = vld [vmem:[#allocation2 + $0x70] sm:$0xff]
        %v575 = vld [vmem:[#allocation2 + $0x78] sm:$0xff]
        %v580 = vcombine.high %v554, %v554
        %v581 = vcombine.high %v555, %v555
        %v582 = vcombine.high %v556, %v556
        %v583 = vcombine.high %v557, %v557
        %vm584 = vcmask 1042432
        %vm585 = vcmask 1046532
        %vm586 = vmor %vm584, %vm585
        %v587 = vrot.slane %v554, 5
        %v588 = vrot.slane %v587, 4
        %v589 = vrot.slane %v580, 5
        %v590 = vsel %vm586, %v588, %v589
        %v591 = vrot.slane %v555, 5
        %v592 = vrot.slane %v591, 4
        %v593 = vrot.slane %v581, 5
        %v594 = vsel %vm586, %v592, %v593
        %v595 = vrot.slane %v556, 5
        %v596 = vrot.slane %v595, 4
        %v597 = vrot.slane %v582, 5
        %v598 = vsel %vm586, %v596, %v597
        %v599 = vrot.slane %v557, 5
        %v600 = vrot.slane %v599, 4
        %v601 = vrot.slane %v583, 5
        %v602 = vsel %vm586, %v600, %v601
        %s603 = scalar_lea.vmem [#allocation2], 128
        %v604 = vld [vmem:[%s603] sm:$0xff]
        %v605 = vld [vmem:[%s603 + $0x8] sm:$0xff]
        %v606 = vld [vmem:[%s603 + $0x10] sm:$0xff]
        %v607 = vld [vmem:[%s603 + $0x18] sm:$0xff]
        %v608 = vld [vmem:[%s603 + $0x20] sm:$0xff]
        %v609 = vld [vmem:[%s603 + $0x28] sm:$0xff]
        %v610 = vld [vmem:[%s603 + $0x30] sm:$0xff]
        %v611 = vld [vmem:[%s603 + $0x38] sm:$0xff]
        %v612 = vld [vmem:[%s603 + $0x40] sm:$0xff]
        %v613 = vld [vmem:[%s603 + $0x48] sm:$0xff]
        %v614 = vld [vmem:[%s603 + $0x50] sm:$0xff]
        %v615 = vld [vmem:[%s603 + $0x58] sm:$0xff]
        %v616 = vld [vmem:[%s603 + $0x60] sm:$0xff]
        %v617 = vld [vmem:[%s603 + $0x68] sm:$0xff]
        %v618 = vld [vmem:[%s603 + $0x70] sm:$0xff]
        %v619 = vld [vmem:[%s603 + $0x78] sm:$0xff]
        %v620 = vcombine.low %v590, %v594
        %v621 = vcombine.low %v598, %v602
        %624 = vmatprep.subr.mxu0 0.0
        %625 = vmatpush1.msra.mxu0 %v619
        %626 = vmatprep.subr.mxu0 0.0
        %627 = vmatpush1.msra.mxu0 %v618
        %628 = vmatprep.subr.mxu0 0.0
        %629 = vmatpush1.msra.mxu0 %v617
        %630 = vmatprep.subr.mxu0 0.0
        %631 = vmatpush1.msra.mxu0 %v616
        %632 = vmatprep.subr.mxu0 0.0
        %633 = vmatpush1.msra.mxu0 %v615
        %634 = vmatprep.subr.mxu0 0.0
        %635 = vmatpush1.msra.mxu0 %v614
        %636 = vmatprep.subr.mxu0 0.0
        %637 = vmatpush1.msra.mxu0 %v613
        %638 = vmatprep.subr.mxu0 0.0
        %639 = vmatpush1.msra.mxu0 %v612
        %640 = vmatprep.subr.mxu0 0.0
        %641 = vmatpush1.msra.mxu0 %v611
        %642 = vmatprep.subr.mxu0 0.0
        %643 = vmatpush1.msra.mxu0 %v610
        %644 = vmatprep.subr.mxu0 0.0
        %645 = vmatpush1.msra.mxu0 %v609
        %646 = vmatprep.subr.mxu0 0.0
        %647 = vmatpush1.msra.mxu0 %v608
        %648 = vmatprep.subr.mxu0 0.0
        %649 = vmatpush1.msra.mxu0 %v607
        %650 = vmatprep.subr.mxu0 0.0
        %651 = vmatpush1.msra.mxu0 %v606
        %652 = vmatprep.subr.mxu0 0.0
        %653 = vmatpush1.msra.mxu0 %v605
        %654 = vmatprep.subr.mxu0 0.0
        %655 = vmatpush1.msra.mxu0 %v604
        %656 = vmatprep.subr.mxu0 0.0
        %657 = vmatpush2.msra.mxu0 0.0
        %658 = vmatprep.subr.mxu0 0.0
        %659 = vmatpush2.msra.mxu0 0.0
        %660 = vmatprep.subr.mxu0 0.0
        %661 = vmatpush2.msra.mxu0 0.0
        %662 = vmatprep.subr.mxu0 0.0
        %663 = vmatpush2.msra.mxu0 0.0
        %664 = vmatprep.subr.mxu0 0.0
        %665 = vmatpush2.msra.mxu0 0.0
        %666 = vmatprep.subr.mxu0 0.0
        %667 = vmatpush2.msra.mxu0 0.0
        %668 = vmatprep.subr.mxu0 0.0
        %669 = vmatpush2.msra.mxu0 0.0
        %670 = vmatprep.subr.mxu0 0.0
        %671 = vmatpush2.msra.mxu0 0.0
        %672 = vmatprep.subr.mxu0 0.0
        %673 = vmatpush2.msra.mxu0 0.0
        %674 = vmatprep.subr.mxu0 0.0
        %675 = vmatpush2.msra.mxu0 0.0
        %676 = vmatprep.subr.mxu0 0.0
        %677 = vmatpush2.msra.mxu0 0.0
        %678 = vmatprep.subr.mxu0 0.0
        %679 = vmatpush2.msra.mxu0 0.0
        %680 = vmatprep.subr.mxu0 0.0
        %681 = vmatpush2.msra.mxu0 0.0
        %682 = vmatprep.subr.mxu0 0.0
        %683 = vmatpush2.msra.mxu0 0.0
        %684 = vmatprep.subr.mxu0 0.0
        %685 = vmatpush2.msra.mxu0 0.0
        %686 = vmatprep.subr.mxu0 0.0
        %687 = vmatpush2.msra.mxu0 0.0
        %688 = vmatprep.mubr.f32.mxu0 0.0
        %689 = vmatmul.mubr.f32.gmra.mxu0 %v620
        %v690 = vpop.f32.mrf.mxu0
        %v691 = vadd.f32 0.0, %v690
        %v692 = vpop.f32.mrf.mxu0
        %693 = vmatprep.mubr.f32.mxu0 0.0
        %694 = vmatmul.mubr.f32.gmra.mxu0 %v621
        %v695 = vpop.f32.mrf.mxu0
        %v696 = vadd.f32 0.0, %v695
        %v697 = vpop.f32.mrf.mxu0
        %698 = vdwg.mxu0
        %v699 = vcombine.low %v554, %v555
        %v700 = vcombine.low %v556, %v557
        %703 = vmatprep.subr.mxu0 0.0
        %704 = vmatpush1.msra.mxu0 %v575
        %705 = vmatprep.subr.mxu0 0.0
        %706 = vmatpush1.msra.mxu0 %v574
        %707 = vmatprep.subr.mxu0 0.0
        %708 = vmatpush1.msra.mxu0 %v573
        %709 = vmatprep.subr.mxu0 0.0
        %710 = vmatpush1.msra.mxu0 %v572
        %711 = vmatprep.subr.mxu0 0.0
        %712 = vmatpush1.msra.mxu0 %v571
        %713 = vmatprep.subr.mxu0 0.0
        %714 = vmatpush1.msra.mxu0 %v570
        %715 = vmatprep.subr.mxu0 0.0
        %716 = vmatpush1.msra.mxu0 %v569
        %717 = vmatprep.subr.mxu0 0.0
        %718 = vmatpush1.msra.mxu0 %v568
        %719 = vmatprep.subr.mxu0 0.0
        %720 = vmatpush1.msra.mxu0 %v567
        %721 = vmatprep.subr.mxu0 0.0
        %722 = vmatpush1.msra.mxu0 %v566
        %723 = vmatprep.subr.mxu0 0.0
        %724 = vmatpush1.msra.mxu0 %v565
        %725 = vmatprep.subr.mxu0 0.0
        %726 = vmatpush1.msra.mxu0 %v564
        %727 = vmatprep.subr.mxu0 0.0
        %728 = vmatpush1.msra.mxu0 %v563
        %729 = vmatprep.subr.mxu0 0.0
        %730 = vmatpush1.msra.mxu0 %v562
        %731 = vmatprep.subr.mxu0 0.0
        %732 = vmatpush1.msra.mxu0 %v561
        %733 = vmatprep.subr.mxu0 0.0
        %734 = vmatpush1.msra.mxu0 %v560
        %735 = vmatprep.subr.mxu0 0.0
        %736 = vmatpush2.msra.mxu0 0.0
        %737 = vmatprep.subr.mxu0 0.0
        %738 = vmatpush2.msra.mxu0 0.0
        %739 = vmatprep.subr.mxu0 0.0
        %740 = vmatpush2.msra.mxu0 0.0
        %741 = vmatprep.subr.mxu0 0.0
        %742 = vmatpush2.msra.mxu0 0.0
        %743 = vmatprep.subr.mxu0 0.0
        %744 = vmatpush2.msra.mxu0 0.0
        %745 = vmatprep.subr.mxu0 0.0
        %746 = vmatpush2.msra.mxu0 0.0
        %747 = vmatprep.subr.mxu0 0.0
        %748 = vmatpush2.msra.mxu0 0.0
        %749 = vmatprep.subr.mxu0 0.0
        %750 = vmatpush2.msra.mxu0 0.0
        %751 = vmatprep.subr.mxu0 0.0
        %752 = vmatpush2.msra.mxu0 0.0
        %753 = vmatprep.subr.mxu0 0.0
        %754 = vmatpush2.msra.mxu0 0.0
        %755 = vmatprep.subr.mxu0 0.0
        %756 = vmatpush2.msra.mxu0 0.0
        %757 = vmatprep.subr.mxu0 0.0
        %758 = vmatpush2.msra.mxu0 0.0
        %759 = vmatprep.subr.mxu0 0.0
        %760 = vmatpush2.msra.mxu0 0.0
        %761 = vmatprep.subr.mxu0 0.0
        %762 = vmatpush2.msra.mxu0 0.0
        %763 = vmatprep.subr.mxu0 0.0
        %764 = vmatpush2.msra.mxu0 0.0
        %765 = vmatprep.subr.mxu0 0.0
        %766 = vmatpush2.msra.mxu0 0.0
        %767 = vmatprep.mubr.f32.mxu0 0.0
        %768 = vmatmul.mubr.f32.gmra.mxu0 %v699
        %v769 = vpop.f32.mrf.mxu0
        %v770 = vadd.f32 %v691, %v769
        %v771 = vpop.f32.mrf.mxu0
        %772 = vmatprep.mubr.f32.mxu0 0.0
        %773 = vmatmul.mubr.f32.gmra.mxu0 %v700
        %v774 = vpop.f32.mrf.mxu0
        %v775 = vadd.f32 %v696, %v774
        %v776 = vpop.f32.mrf.mxu0
        %777 = vdwg.mxu0
        %vm778 = vcmask 1041408
        %vm779 = vcmask 1045508
        %vm780 = vmor %vm778, %vm779
        %v781 = vrot.slane %v554, 6
        %v782 = vrot.slane %v781, 4
        %v783 = vrot.slane %v580, 6
        %v784 = vsel %vm780, %v782, %v783
        %v785 = vrot.slane %v555, 6
        %v786 = vrot.slane %v785, 4
        %v787 = vrot.slane %v581, 6
        %v788 = vsel %vm780, %v786, %v787
        %v789 = vrot.slane %v556, 6
        %v790 = vrot.slane %v789, 4
        %v791 = vrot.slane %v582, 6
        %v792 = vsel %vm780, %v790, %v791
        %v793 = vrot.slane %v557, 6
        %v794 = vrot.slane %v793, 4
        %v795 = vrot.slane %v583, 6
        %v796 = vsel %vm780, %v794, %v795
        %s797 = scalar_lea.vmem [#allocation2], 256
        %v798 = vld [vmem:[%s797] sm:$0xff]
        %v799 = vld [vmem:[%s797 + $0x8] sm:$0xff]
        %v800 = vld [vmem:[%s797 + $0x10] sm:$0xff]
        %v801 = vld [vmem:[%s797 + $0x18] sm:$0xff]
        %v802 = vld [vmem:[%s797 + $0x20] sm:$0xff]
        %v803 = vld [vmem:[%s797 + $0x28] sm:$0xff]
        %v804 = vld [vmem:[%s797 + $0x30] sm:$0xff]
        %v805 = vld [vmem:[%s797 + $0x38] sm:$0xff]
        %v806 = vld [vmem:[%s797 + $0x40] sm:$0xff]
        %v807 = vld [vmem:[%s797 + $0x48] sm:$0xff]
        %v808 = vld [vmem:[%s797 + $0x50] sm:$0xff]
        %v809 = vld [vmem:[%s797 + $0x58] sm:$0xff]
        %v810 = vld [vmem:[%s797 + $0x60] sm:$0xff]
        %v811 = vld [vmem:[%s797 + $0x68] sm:$0xff]
        %v812 = vld [vmem:[%s797 + $0x70] sm:$0xff]
        %v813 = vld [vmem:[%s797 + $0x78] sm:$0xff]
        %v814 = vcombine.low %v784, %v788
        %v815 = vcombine.low %v792, %v796
        %818 = vmatprep.subr.mxu0 0.0
        %819 = vmatpush1.msra.mxu0 %v813
        %820 = vmatprep.subr.mxu0 0.0
        %821 = vmatpush1.msra.mxu0 %v812
        %822 = vmatprep.subr.mxu0 0.0
        %823 = vmatpush1.msra.mxu0 %v811
        %824 = vmatprep.subr.mxu0 0.0
        %825 = vmatpush1.msra.mxu0 %v810
        %826 = vmatprep.subr.mxu0 0.0
        %827 = vmatpush1.msra.mxu0 %v809
        %828 = vmatprep.subr.mxu0 0.0
        %829 = vmatpush1.msra.mxu0 %v808
        %830 = vmatprep.subr.mxu0 0.0
        %831 = vmatpush1.msra.mxu0 %v807
        %832 = vmatprep.subr.mxu0 0.0
        %833 = vmatpush1.msra.mxu0 %v806
        %834 = vmatprep.subr.mxu0 0.0
        %835 = vmatpush1.msra.mxu0 %v805
        %836 = vmatprep.subr.mxu0 0.0
        %837 = vmatpush1.msra.mxu0 %v804
        %838 = vmatprep.subr.mxu0 0.0
        %839 = vmatpush1.msra.mxu0 %v803
        %840 = vmatprep.subr.mxu0 0.0
        %841 = vmatpush1.msra.mxu0 %v802
        %842 = vmatprep.subr.mxu0 0.0
        %843 = vmatpush1.msra.mxu0 %v801
        %844 = vmatprep.subr.mxu0 0.0
        %845 = vmatpush1.msra.mxu0 %v800
        %846 = vmatprep.subr.mxu0 0.0
        %847 = vmatpush1.msra.mxu0 %v799
        %848 = vmatprep.subr.mxu0 0.0
        %849 = vmatpush1.msra.mxu0 %v798
        %850 = vmatprep.subr.mxu0 0.0
        %851 = vmatpush2.msra.mxu0 0.0
        %852 = vmatprep.subr.mxu0 0.0
        %853 = vmatpush2.msra.mxu0 0.0
        %854 = vmatprep.subr.mxu0 0.0
        %855 = vmatpush2.msra.mxu0 0.0
        %856 = vmatprep.subr.mxu0 0.0
        %857 = vmatpush2.msra.mxu0 0.0
        %858 = vmatprep.subr.mxu0 0.0
        %859 = vmatpush2.msra.mxu0 0.0
        %860 = vmatprep.subr.mxu0 0.0
        %861 = vmatpush2.msra.mxu0 0.0
        %862 = vmatprep.subr.mxu0 0.0
        %863 = vmatpush2.msra.mxu0 0.0
        %864 = vmatprep.subr.mxu0 0.0
        %865 = vmatpush2.msra.mxu0 0.0
        %866 = vmatprep.subr.mxu0 0.0
        %867 = vmatpush2.msra.mxu0 0.0
        %868 = vmatprep.subr.mxu0 0.0
        %869 = vmatpush2.msra.mxu0 0.0
        %870 = vmatprep.subr.mxu0 0.0
        %871 = vmatpush2.msra.mxu0 0.0
        %872 = vmatprep.subr.mxu0 0.0
        %873 = vmatpush2.msra.mxu0 0.0
        %874 = vmatprep.subr.mxu0 0.0
        %875 = vmatpush2.msra.mxu0 0.0
        %876 = vmatprep.subr.mxu0 0.0
        %877 = vmatpush2.msra.mxu0 0.0
        %878 = vmatprep.subr.mxu0 0.0
        %879 = vmatpush2.msra.mxu0 0.0
        %880 = vmatprep.subr.mxu0 0.0
        %881 = vmatpush2.msra.mxu0 0.0
        %882 = vmatprep.mubr.f32.mxu0 0.0
        %883 = vmatmul.mubr.f32.gmra.mxu0 %v814
        %v884 = vpop.f32.mrf.mxu0
        %v885 = vadd.f32 0.0, %v884
        %v886 = vpop.f32.mrf.mxu0
        %887 = vmatprep.mubr.f32.mxu0 0.0
        %888 = vmatmul.mubr.f32.gmra.mxu0 %v815
        %v889 = vpop.f32.mrf.mxu0
        %v890 = vadd.f32 0.0, %v889
        %v891 = vpop.f32.mrf.mxu0
        %892 = vdwg.mxu0
        %v893 = vadd.f32 %v770, %v885
        %v894 = vadd.f32 %v775, %v890
        %s895 = scalar_lea.vmem [#allocation2], 384
        %v896 = vld [vmem:[%s895] sm:$0xff]
        %v897 = vld [vmem:[%s895 + $0x8] sm:$0xff]
        %v898 = vld [vmem:[%s895 + $0x10] sm:$0xff]
        %v899 = vld [vmem:[%s895 + $0x18] sm:$0xff]
        %v900 = vld [vmem:[%s895 + $0x20] sm:$0xff]
        %v901 = vld [vmem:[%s895 + $0x28] sm:$0xff]
        %v902 = vld [vmem:[%s895 + $0x30] sm:$0xff]
        %v903 = vld [vmem:[%s895 + $0x38] sm:$0xff]
        %v904 = vld [vmem:[%s895 + $0x40] sm:$0xff]
        %v905 = vld [vmem:[%s895 + $0x48] sm:$0xff]
        %v906 = vld [vmem:[%s895 + $0x50] sm:$0xff]
        %v907 = vld [vmem:[%s895 + $0x58] sm:$0xff]
        %v908 = vld [vmem:[%s895 + $0x60] sm:$0xff]
        %v909 = vld [vmem:[%s895 + $0x68] sm:$0xff]
        %v910 = vld [vmem:[%s895 + $0x70] sm:$0xff]
        %v911 = vld [vmem:[%s895 + $0x78] sm:$0xff]
        %v913 = vcombine.low %v555, %v556
        %v914 = vcombine.low %v557, %v558
        %917 = vmatprep.subr.mxu0 0.0
        %918 = vmatpush1.msra.mxu0 %v911
        %919 = vmatprep.subr.mxu0 0.0
        %920 = vmatpush1.msra.mxu0 %v910
        %921 = vmatprep.subr.mxu0 0.0
        %922 = vmatpush1.msra.mxu0 %v909
        %923 = vmatprep.subr.mxu0 0.0
        %924 = vmatpush1.msra.mxu0 %v908
        %925 = vmatprep.subr.mxu0 0.0
        %926 = vmatpush1.msra.mxu0 %v907
        %927 = vmatprep.subr.mxu0 0.0
        %928 = vmatpush1.msra.mxu0 %v906
        %929 = vmatprep.subr.mxu0 0.0
        %930 = vmatpush1.msra.mxu0 %v905
        %931 = vmatprep.subr.mxu0 0.0
        %932 = vmatpush1.msra.mxu0 %v904
        %933 = vmatprep.subr.mxu0 0.0
        %934 = vmatpush1.msra.mxu0 %v903
        %935 = vmatprep.subr.mxu0 0.0
        %936 = vmatpush1.msra.mxu0 %v902
        %937 = vmatprep.subr.mxu0 0.0
        %938 = vmatpush1.msra.mxu0 %v901
        %939 = vmatprep.subr.mxu0 0.0
        %940 = vmatpush1.msra.mxu0 %v900
        %941 = vmatprep.subr.mxu0 0.0
        %942 = vmatpush1.msra.mxu0 %v899
        %943 = vmatprep.subr.mxu0 0.0
        %944 = vmatpush1.msra.mxu0 %v898
        %945 = vmatprep.subr.mxu0 0.0
        %946 = vmatpush1.msra.mxu0 %v897
        %947 = vmatprep.subr.mxu0 0.0
        %948 = vmatpush1.msra.mxu0 %v896
        %949 = vmatprep.subr.mxu0 0.0
        %950 = vmatpush2.msra.mxu0 0.0
        %951 = vmatprep.subr.mxu0 0.0
        %952 = vmatpush2.msra.mxu0 0.0
        %953 = vmatprep.subr.mxu0 0.0
        %954 = vmatpush2.msra.mxu0 0.0
        %955 = vmatprep.subr.mxu0 0.0
        %956 = vmatpush2.msra.mxu0 0.0
        %957 = vmatprep.subr.mxu0 0.0
        %958 = vmatpush2.msra.mxu0 0.0
        %959 = vmatprep.subr.mxu0 0.0
        %960 = vmatpush2.msra.mxu0 0.0
        %961 = vmatprep.subr.mxu0 0.0
        %962 = vmatpush2.msra.mxu0 0.0
        %963 = vmatprep.subr.mxu0 0.0
        %964 = vmatpush2.msra.mxu0 0.0
        %965 = vmatprep.subr.mxu0 0.0
        %966 = vmatpush2.msra.mxu0 0.0
        %967 = vmatprep.subr.mxu0 0.0
        %968 = vmatpush2.msra.mxu0 0.0
        %969 = vmatprep.subr.mxu0 0.0
        %970 = vmatpush2.msra.mxu0 0.0
        %971 = vmatprep.subr.mxu0 0.0
        %972 = vmatpush2.msra.mxu0 0.0
        %973 = vmatprep.subr.mxu0 0.0
        %974 = vmatpush2.msra.mxu0 0.0
        %975 = vmatprep.subr.mxu0 0.0
        %976 = vmatpush2.msra.mxu0 0.0
        %977 = vmatprep.subr.mxu0 0.0
        %978 = vmatpush2.msra.mxu0 0.0
        %979 = vmatprep.subr.mxu0 0.0
        %980 = vmatpush2.msra.mxu0 0.0
        %981 = vmatprep.mubr.f32.mxu0 0.0
        %982 = vmatmul.mubr.f32.gmra.mxu0 %v913
        %v983 = vpop.f32.mrf.mxu0
        %v984 = vadd.f32 0.0, %v983
        %v985 = vpop.f32.mrf.mxu0
        %986 = vmatprep.mubr.f32.mxu0 0.0
        %987 = vmatmul.mubr.f32.gmra.mxu0 %v914
        %v988 = vpop.f32.mrf.mxu0
        %v989 = vadd.f32 0.0, %v988
        %v990 = vpop.f32.mrf.mxu0
        %991 = vdwg.mxu0
        %v992 = vadd.f32 %v893, %v984
        %v993 = vadd.f32 %v894, %v989
        %v994 = vcombine.high %v558, %v558
        %v995 = vrot.slane %v558, 5
        %v996 = vrot.slane %v995, 4
        %v997 = vrot.slane %v994, 5
        %v998 = vsel %vm586, %v996, %v997
        %s999 = scalar_lea.vmem [#allocation2], 512
        %v1000 = vld [vmem:[%s999] sm:$0xff]
        %v1001 = vld [vmem:[%s999 + $0x8] sm:$0xff]
        %v1002 = vld [vmem:[%s999 + $0x10] sm:$0xff]
        %v1003 = vld [vmem:[%s999 + $0x18] sm:$0xff]
        %v1004 = vld [vmem:[%s999 + $0x20] sm:$0xff]
        %v1005 = vld [vmem:[%s999 + $0x28] sm:$0xff]
        %v1006 = vld [vmem:[%s999 + $0x30] sm:$0xff]
        %v1007 = vld [vmem:[%s999 + $0x38] sm:$0xff]
        %v1008 = vld [vmem:[%s999 + $0x40] sm:$0xff]
        %v1009 = vld [vmem:[%s999 + $0x48] sm:$0xff]
        %v1010 = vld [vmem:[%s999 + $0x50] sm:$0xff]
        %v1011 = vld [vmem:[%s999 + $0x58] sm:$0xff]
        %v1012 = vld [vmem:[%s999 + $0x60] sm:$0xff]
        %v1013 = vld [vmem:[%s999 + $0x68] sm:$0xff]
        %v1014 = vld [vmem:[%s999 + $0x70] sm:$0xff]
        %v1015 = vld [vmem:[%s999 + $0x78] sm:$0xff]
        %v1016 = vcombine.low %v594, %v598
        %v1017 = vcombine.low %v602, %v998
        %1020 = vmatprep.subr.mxu0 0.0
        %1021 = vmatpush1.msra.mxu0 %v1015
        %1022 = vmatprep.subr.mxu0 0.0
        %1023 = vmatpush1.msra.mxu0 %v1014
        %1024 = vmatprep.subr.mxu0 0.0
        %1025 = vmatpush1.msra.mxu0 %v1013
        %1026 = vmatprep.subr.mxu0 0.0
        %1027 = vmatpush1.msra.mxu0 %v1012
        %1028 = vmatprep.subr.mxu0 0.0
        %1029 = vmatpush1.msra.mxu0 %v1011
        %1030 = vmatprep.subr.mxu0 0.0
        %1031 = vmatpush1.msra.mxu0 %v1010
        %1032 = vmatprep.subr.mxu0 0.0
        %1033 = vmatpush1.msra.mxu0 %v1009
        %1034 = vmatprep.subr.mxu0 0.0
        %1035 = vmatpush1.msra.mxu0 %v1008
        %1036 = vmatprep.subr.mxu0 0.0
        %1037 = vmatpush1.msra.mxu0 %v1007
        %1038 = vmatprep.subr.mxu0 0.0
        %1039 = vmatpush1.msra.mxu0 %v1006
        %1040 = vmatprep.subr.mxu0 0.0
        %1041 = vmatpush1.msra.mxu0 %v1005
        %1042 = vmatprep.subr.mxu0 0.0
        %1043 = vmatpush1.msra.mxu0 %v1004
        %1044 = vmatprep.subr.mxu0 0.0
        %1045 = vmatpush1.msra.mxu0 %v1003
        %1046 = vmatprep.subr.mxu0 0.0
        %1047 = vmatpush1.msra.mxu0 %v1002
        %1048 = vmatprep.subr.mxu0 0.0
        %1049 = vmatpush1.msra.mxu0 %v1001
        %1050 = vmatprep.subr.mxu0 0.0
        %1051 = vmatpush1.msra.mxu0 %v1000
        %1052 = vmatprep.subr.mxu0 0.0
        %1053 = vmatpush2.msra.mxu0 0.0
        %1054 = vmatprep.subr.mxu0 0.0
        %1055 = vmatpush2.msra.mxu0 0.0
        %1056 = vmatprep.subr.mxu0 0.0
        %1057 = vmatpush2.msra.mxu0 0.0
        %1058 = vmatprep.subr.mxu0 0.0
        %1059 = vmatpush2.msra.mxu0 0.0
        %1060 = vmatprep.subr.mxu0 0.0
        %1061 = vmatpush2.msra.mxu0 0.0
        %1062 = vmatprep.subr.mxu0 0.0
        %1063 = vmatpush2.msra.mxu0 0.0
        %1064 = vmatprep.subr.mxu0 0.0
        %1065 = vmatpush2.msra.mxu0 0.0
        %1066 = vmatprep.subr.mxu0 0.0
        %1067 = vmatpush2.msra.mxu0 0.0
        %1068 = vmatprep.subr.mxu0 0.0
        %1069 = vmatpush2.msra.mxu0 0.0
        %1070 = vmatprep.subr.mxu0 0.0
        %1071 = vmatpush2.msra.mxu0 0.0
        %1072 = vmatprep.subr.mxu0 0.0
        %1073 = vmatpush2.msra.mxu0 0.0
        %1074 = vmatprep.subr.mxu0 0.0
        %1075 = vmatpush2.msra.mxu0 0.0
        %1076 = vmatprep.subr.mxu0 0.0
        %1077 = vmatpush2.msra.mxu0 0.0
        %1078 = vmatprep.subr.mxu0 0.0
        %1079 = vmatpush2.msra.mxu0 0.0
        %1080 = vmatprep.subr.mxu0 0.0
        %1081 = vmatpush2.msra.mxu0 0.0
        %1082 = vmatprep.subr.mxu0 0.0
        %1083 = vmatpush2.msra.mxu0 0.0
        %1084 = vmatprep.mubr.f32.mxu0 0.0
        %1085 = vmatmul.mubr.f32.gmra.mxu0 %v1016
        %v1086 = vpop.f32.mrf.mxu0
        %v1087 = vadd.f32 0.0, %v1086
        %v1088 = vpop.f32.mrf.mxu0
        %1089 = vmatprep.mubr.f32.mxu0 0.0
        %1090 = vmatmul.mubr.f32.gmra.mxu0 %v1017
        %v1091 = vpop.f32.mrf.mxu0
        %v1092 = vadd.f32 0.0, %v1091
        %v1093 = vpop.f32.mrf.mxu0
        %1094 = vdwg.mxu0
        %v1095 = vadd.f32 %v992, %v1087
        %v1096 = vadd.f32 %v993, %v1092
        %v1097 = vrot.slane %v558, 6
        %v1098 = vrot.slane %v1097, 4
        %v1099 = vrot.slane %v994, 6
        %v1100 = vsel %vm780, %v1098, %v1099
        %s1101 = scalar_lea.vmem [#allocation2], 640
        %v1102 = vld [vmem:[%s1101] sm:$0xff]
        %v1103 = vld [vmem:[%s1101 + $0x8] sm:$0xff]
        %v1104 = vld [vmem:[%s1101 + $0x10] sm:$0xff]
        %v1105 = vld [vmem:[%s1101 + $0x18] sm:$0xff]
        %v1106 = vld [vmem:[%s1101 + $0x20] sm:$0xff]
        %v1107 = vld [vmem:[%s1101 + $0x28] sm:$0xff]
        %v1108 = vld [vmem:[%s1101 + $0x30] sm:$0xff]
        %v1109 = vld [vmem:[%s1101 + $0x38] sm:$0xff]
        %v1110 = vld [vmem:[%s1101 + $0x40] sm:$0xff]
        %v1111 = vld [vmem:[%s1101 + $0x48] sm:$0xff]
        %v1112 = vld [vmem:[%s1101 + $0x50] sm:$0xff]
        %v1113 = vld [vmem:[%s1101 + $0x58] sm:$0xff]
        %v1114 = vld [vmem:[%s1101 + $0x60] sm:$0xff]
        %v1115 = vld [vmem:[%s1101 + $0x68] sm:$0xff]
        %v1116 = vld [vmem:[%s1101 + $0x70] sm:$0xff]
        %v1117 = vld [vmem:[%s1101 + $0x78] sm:$0xff]
        %v1118 = vcombine.low %v788, %v792
        %v1119 = vcombine.low %v796, %v1100
        %1122 = vmatprep.subr.mxu0 0.0
        %1123 = vmatpush1.msra.mxu0 %v1117
        %1124 = vmatprep.subr.mxu0 0.0
        %1125 = vmatpush1.msra.mxu0 %v1116
        %1126 = vmatprep.subr.mxu0 0.0
        %1127 = vmatpush1.msra.mxu0 %v1115
        %1128 = vmatprep.subr.mxu0 0.0
        %1129 = vmatpush1.msra.mxu0 %v1114
        %1130 = vmatprep.subr.mxu0 0.0
        %1131 = vmatpush1.msra.mxu0 %v1113
        %1132 = vmatprep.subr.mxu0 0.0
        %1133 = vmatpush1.msra.mxu0 %v1112
        %1134 = vmatprep.subr.mxu0 0.0
        %1135 = vmatpush1.msra.mxu0 %v1111
        %1136 = vmatprep.subr.mxu0 0.0
        %1137 = vmatpush1.msra.mxu0 %v1110
        %1138 = vmatprep.subr.mxu0 0.0
        %1139 = vmatpush1.msra.mxu0 %v1109
        %1140 = vmatprep.subr.mxu0 0.0
        %1141 = vmatpush1.msra.mxu0 %v1108
        %1142 = vmatprep.subr.mxu0 0.0
        %1143 = vmatpush1.msra.mxu0 %v1107
        %1144 = vmatprep.subr.mxu0 0.0
        %1145 = vmatpush1.msra.mxu0 %v1106
        %1146 = vmatprep.subr.mxu0 0.0
        %1147 = vmatpush1.msra.mxu0 %v1105
        %1148 = vmatprep.subr.mxu0 0.0
        %1149 = vmatpush1.msra.mxu0 %v1104
        %1150 = vmatprep.subr.mxu0 0.0
        %1151 = vmatpush1.msra.mxu0 %v1103
        %1152 = vmatprep.subr.mxu0 0.0
        %1153 = vmatpush1.msra.mxu0 %v1102
        %1154 = vmatprep.subr.mxu0 0.0
        %1155 = vmatpush2.msra.mxu0 0.0
        %1156 = vmatprep.subr.mxu0 0.0
        %1157 = vmatpush2.msra.mxu0 0.0
        %1158 = vmatprep.subr.mxu0 0.0
        %1159 = vmatpush2.msra.mxu0 0.0
        %1160 = vmatprep.subr.mxu0 0.0
        %1161 = vmatpush2.msra.mxu0 0.0
        %1162 = vmatprep.subr.mxu0 0.0
        %1163 = vmatpush2.msra.mxu0 0.0
        %1164 = vmatprep.subr.mxu0 0.0
        %1165 = vmatpush2.msra.mxu0 0.0
        %1166 = vmatprep.subr.mxu0 0.0
        %1167 = vmatpush2.msra.mxu0 0.0
        %1168 = vmatprep.subr.mxu0 0.0
        %1169 = vmatpush2.msra.mxu0 0.0
        %1170 = vmatprep.subr.mxu0 0.0
        %1171 = vmatpush2.msra.mxu0 0.0
        %1172 = vmatprep.subr.mxu0 0.0
        %1173 = vmatpush2.msra.mxu0 0.0
        %1174 = vmatprep.subr.mxu0 0.0
        %1175 = vmatpush2.msra.mxu0 0.0
        %1176 = vmatprep.subr.mxu0 0.0
        %1177 = vmatpush2.msra.mxu0 0.0
        %1178 = vmatprep.subr.mxu0 0.0
        %1179 = vmatpush2.msra.mxu0 0.0
        %1180 = vmatprep.subr.mxu0 0.0
        %1181 = vmatpush2.msra.mxu0 0.0
        %1182 = vmatprep.subr.mxu0 0.0
        %1183 = vmatpush2.msra.mxu0 0.0
        %1184 = vmatprep.subr.mxu0 0.0
        %1185 = vmatpush2.msra.mxu0 0.0
        %1186 = vmatprep.mubr.f32.mxu0 0.0
        %1187 = vmatmul.mubr.f32.gmra.mxu0 %v1118
        %v1188 = vpop.f32.mrf.mxu0
        %v1189 = vadd.f32 0.0, %v1188
        %v1190 = vpop.f32.mrf.mxu0
        %1191 = vmatprep.mubr.f32.mxu0 0.0
        %1192 = vmatmul.mubr.f32.gmra.mxu0 %v1119
        %v1193 = vpop.f32.mrf.mxu0
        %v1194 = vadd.f32 0.0, %v1193
        %v1195 = vpop.f32.mrf.mxu0
        %1196 = vdwg.mxu0
        %v1197 = vadd.f32 %v1095, %v1189
        %v1198 = vadd.f32 %v1096, %v1194
        %s1199 = scalar_lea.vmem [#allocation2], 768
        %v1200 = vld [vmem:[%s1199] sm:$0xff]
        %v1201 = vld [vmem:[%s1199 + $0x8] sm:$0xff]
        %v1202 = vld [vmem:[%s1199 + $0x10] sm:$0xff]
        %v1203 = vld [vmem:[%s1199 + $0x18] sm:$0xff]
        %v1204 = vld [vmem:[%s1199 + $0x20] sm:$0xff]
        %v1205 = vld [vmem:[%s1199 + $0x28] sm:$0xff]
        %v1206 = vld [vmem:[%s1199 + $0x30] sm:$0xff]
        %v1207 = vld [vmem:[%s1199 + $0x38] sm:$0xff]
        %v1208 = vld [vmem:[%s1199 + $0x40] sm:$0xff]
        %v1209 = vld [vmem:[%s1199 + $0x48] sm:$0xff]
        %v1210 = vld [vmem:[%s1199 + $0x50] sm:$0xff]
        %v1211 = vld [vmem:[%s1199 + $0x58] sm:$0xff]
        %v1212 = vld [vmem:[%s1199 + $0x60] sm:$0xff]
        %v1213 = vld [vmem:[%s1199 + $0x68] sm:$0xff]
        %v1214 = vld [vmem:[%s1199 + $0x70] sm:$0xff]
        %v1215 = vld [vmem:[%s1199 + $0x78] sm:$0xff]
        %v1217 = vcombine.low %v558, %v559
        %1219 = vmatprep.subr.mxu0 0.0
        %1220 = vmatpush1.msra.mxu0 %v1215
        %1221 = vmatprep.subr.mxu0 0.0
        %1222 = vmatpush1.msra.mxu0 %v1214
        %1223 = vmatprep.subr.mxu0 0.0
        %1224 = vmatpush1.msra.mxu0 %v1213
        %1225 = vmatprep.subr.mxu0 0.0
        %1226 = vmatpush1.msra.mxu0 %v1212
        %1227 = vmatprep.subr.mxu0 0.0
        %1228 = vmatpush1.msra.mxu0 %v1211
        %1229 = vmatprep.subr.mxu0 0.0
        %1230 = vmatpush1.msra.mxu0 %v1210
        %1231 = vmatprep.subr.mxu0 0.0
        %1232 = vmatpush1.msra.mxu0 %v1209
        %1233 = vmatprep.subr.mxu0 0.0
        %1234 = vmatpush1.msra.mxu0 %v1208
        %1235 = vmatprep.subr.mxu0 0.0
        %1236 = vmatpush1.msra.mxu0 %v1207
        %1237 = vmatprep.subr.mxu0 0.0
        %1238 = vmatpush1.msra.mxu0 %v1206
        %1239 = vmatprep.subr.mxu0 0.0
        %1240 = vmatpush1.msra.mxu0 %v1205
        %1241 = vmatprep.subr.mxu0 0.0
        %1242 = vmatpush1.msra.mxu0 %v1204
        %1243 = vmatprep.subr.mxu0 0.0
        %1244 = vmatpush1.msra.mxu0 %v1203
        %1245 = vmatprep.subr.mxu0 0.0
        %1246 = vmatpush1.msra.mxu0 %v1202
        %1247 = vmatprep.subr.mxu0 0.0
        %1248 = vmatpush1.msra.mxu0 %v1201
        %1249 = vmatprep.subr.mxu0 0.0
        %1250 = vmatpush1.msra.mxu0 %v1200
        %1251 = vmatprep.subr.mxu0 0.0
        %1252 = vmatpush2.msra.mxu0 0.0
        %1253 = vmatprep.subr.mxu0 0.0
        %1254 = vmatpush2.msra.mxu0 0.0
        %1255 = vmatprep.subr.mxu0 0.0
        %1256 = vmatpush2.msra.mxu0 0.0
        %1257 = vmatprep.subr.mxu0 0.0
        %1258 = vmatpush2.msra.mxu0 0.0
        %1259 = vmatprep.subr.mxu0 0.0
        %1260 = vmatpush2.msra.mxu0 0.0
        %1261 = vmatprep.subr.mxu0 0.0
        %1262 = vmatpush2.msra.mxu0 0.0
        %1263 = vmatprep.subr.mxu0 0.0
        %1264 = vmatpush2.msra.mxu0 0.0
        %1265 = vmatprep.subr.mxu0 0.0
        %1266 = vmatpush2.msra.mxu0 0.0
        %1267 = vmatprep.subr.mxu0 0.0
        %1268 = vmatpush2.msra.mxu0 0.0
        %1269 = vmatprep.subr.mxu0 0.0
        %1270 = vmatpush2.msra.mxu0 0.0
        %1271 = vmatprep.subr.mxu0 0.0
        %1272 = vmatpush2.msra.mxu0 0.0
        %1273 = vmatprep.subr.mxu0 0.0
        %1274 = vmatpush2.msra.mxu0 0.0
        %1275 = vmatprep.subr.mxu0 0.0
        %1276 = vmatpush2.msra.mxu0 0.0
        %1277 = vmatprep.subr.mxu0 0.0
        %1278 = vmatpush2.msra.mxu0 0.0
        %1279 = vmatprep.subr.mxu0 0.0
        %1280 = vmatpush2.msra.mxu0 0.0
        %1281 = vmatprep.subr.mxu0 0.0
        %1282 = vmatpush2.msra.mxu0 0.0
        %1283 = vmatprep.mubr.f32.mxu0 0.0
        %1284 = vmatmul.mubr.f32.gmra.mxu0 %v700
        %v1285 = vpop.f32.mrf.mxu0
        %v1286 = vadd.f32 0.0, %v1285
        %v1287 = vpop.f32.mrf.mxu0
        %1288 = vmatprep.mubr.f32.mxu0 0.0
        %1289 = vmatmul.mubr.f32.gmra.mxu0 %v1217
        %v1290 = vpop.f32.mrf.mxu0
        %v1291 = vadd.f32 0.0, %v1290
        %v1292 = vpop.f32.mrf.mxu0
        %1293 = vdwg.mxu0
        %v1294 = vadd.f32 %v1197, %v1286
        %v1295 = vadd.f32 %v1198, %v1291
        %v1296 = vcombine.high %v559, %v559
        %v1297 = vrot.slane %v559, 5
        %v1298 = vrot.slane %v1297, 4
        %v1299 = vrot.slane %v1296, 5
        %v1300 = vsel %vm586, %v1298, %v1299
        %s1301 = scalar_lea.vmem [#allocation2], 896
        %v1302 = vld [vmem:[%s1301] sm:$0xff]
        %v1303 = vld [vmem:[%s1301 + $0x8] sm:$0xff]
        %v1304 = vld [vmem:[%s1301 + $0x10] sm:$0xff]
        %v1305 = vld [vmem:[%s1301 + $0x18] sm:$0xff]
        %v1306 = vld [vmem:[%s1301 + $0x20] sm:$0xff]
        %v1307 = vld [vmem:[%s1301 + $0x28] sm:$0xff]
        %v1308 = vld [vmem:[%s1301 + $0x30] sm:$0xff]
        %v1309 = vld [vmem:[%s1301 + $0x38] sm:$0xff]
        %v1310 = vld [vmem:[%s1301 + $0x40] sm:$0xff]
        %v1311 = vld [vmem:[%s1301 + $0x48] sm:$0xff]
        %v1312 = vld [vmem:[%s1301 + $0x50] sm:$0xff]
        %v1313 = vld [vmem:[%s1301 + $0x58] sm:$0xff]
        %v1314 = vld [vmem:[%s1301 + $0x60] sm:$0xff]
        %v1315 = vld [vmem:[%s1301 + $0x68] sm:$0xff]
        %v1316 = vld [vmem:[%s1301 + $0x70] sm:$0xff]
        %v1317 = vld [vmem:[%s1301 + $0x78] sm:$0xff]
        %v1318 = vcombine.low %v998, %v1300
        %1320 = vmatprep.subr.mxu0 0.0
        %1321 = vmatpush1.msra.mxu0 %v1317
        %1322 = vmatprep.subr.mxu0 0.0
        %1323 = vmatpush1.msra.mxu0 %v1316
        %1324 = vmatprep.subr.mxu0 0.0
        %1325 = vmatpush1.msra.mxu0 %v1315
        %1326 = vmatprep.subr.mxu0 0.0
        %1327 = vmatpush1.msra.mxu0 %v1314
        %1328 = vmatprep.subr.mxu0 0.0
        %1329 = vmatpush1.msra.mxu0 %v1313
        %1330 = vmatprep.subr.mxu0 0.0
        %1331 = vmatpush1.msra.mxu0 %v1312
        %1332 = vmatprep.subr.mxu0 0.0
        %1333 = vmatpush1.msra.mxu0 %v1311
        %1334 = vmatprep.subr.mxu0 0.0
        %1335 = vmatpush1.msra.mxu0 %v1310
        %1336 = vmatprep.subr.mxu0 0.0
        %1337 = vmatpush1.msra.mxu0 %v1309
        %1338 = vmatprep.subr.mxu0 0.0
        %1339 = vmatpush1.msra.mxu0 %v1308
        %1340 = vmatprep.subr.mxu0 0.0
        %1341 = vmatpush1.msra.mxu0 %v1307
        %1342 = vmatprep.subr.mxu0 0.0
        %1343 = vmatpush1.msra.mxu0 %v1306
        %1344 = vmatprep.subr.mxu0 0.0
        %1345 = vmatpush1.msra.mxu0 %v1305
        %1346 = vmatprep.subr.mxu0 0.0
        %1347 = vmatpush1.msra.mxu0 %v1304
        %1348 = vmatprep.subr.mxu0 0.0
        %1349 = vmatpush1.msra.mxu0 %v1303
        %1350 = vmatprep.subr.mxu0 0.0
        %1351 = vmatpush1.msra.mxu0 %v1302
        %1352 = vmatprep.subr.mxu0 0.0
        %1353 = vmatpush2.msra.mxu0 0.0
        %1354 = vmatprep.subr.mxu0 0.0
        %1355 = vmatpush2.msra.mxu0 0.0
        %1356 = vmatprep.subr.mxu0 0.0
        %1357 = vmatpush2.msra.mxu0 0.0
        %1358 = vmatprep.subr.mxu0 0.0
        %1359 = vmatpush2.msra.mxu0 0.0
        %1360 = vmatprep.subr.mxu0 0.0
        %1361 = vmatpush2.msra.mxu0 0.0
        %1362 = vmatprep.subr.mxu0 0.0
        %1363 = vmatpush2.msra.mxu0 0.0
        %1364 = vmatprep.subr.mxu0 0.0
        %1365 = vmatpush2.msra.mxu0 0.0
        %1366 = vmatprep.subr.mxu0 0.0
        %1367 = vmatpush2.msra.mxu0 0.0
        %1368 = vmatprep.subr.mxu0 0.0
        %1369 = vmatpush2.msra.mxu0 0.0
        %1370 = vmatprep.subr.mxu0 0.0
        %1371 = vmatpush2.msra.mxu0 0.0
        %1372 = vmatprep.subr.mxu0 0.0
        %1373 = vmatpush2.msra.mxu0 0.0
        %1374 = vmatprep.subr.mxu0 0.0
        %1375 = vmatpush2.msra.mxu0 0.0
        %1376 = vmatprep.subr.mxu0 0.0
        %1377 = vmatpush2.msra.mxu0 0.0
        %1378 = vmatprep.subr.mxu0 0.0
        %1379 = vmatpush2.msra.mxu0 0.0
        %1380 = vmatprep.subr.mxu0 0.0
        %1381 = vmatpush2.msra.mxu0 0.0
        %1382 = vmatprep.subr.mxu0 0.0
        %1383 = vmatpush2.msra.mxu0 0.0
        %1384 = vmatprep.mubr.f32.mxu0 0.0
        %1385 = vmatmul.mubr.f32.gmra.mxu0 %v621
        %v1386 = vpop.f32.mrf.mxu0
        %v1387 = vadd.f32 0.0, %v1386
        %v1388 = vpop.f32.mrf.mxu0
        %1389 = vmatprep.mubr.f32.mxu0 0.0
        %1390 = vmatmul.mubr.f32.gmra.mxu0 %v1318
        %v1391 = vpop.f32.mrf.mxu0
        %v1392 = vadd.f32 0.0, %v1391
        %v1393 = vpop.f32.mrf.mxu0
        %1394 = vdwg.mxu0
        %v1395 = vadd.f32 %v1294, %v1387
        %v1396 = vadd.f32 %v1295, %v1392
        %v1397 = vrot.slane %v559, 6
        %v1398 = vrot.slane %v1397, 4
        %v1399 = vrot.slane %v1296, 6
        %v1400 = vsel %vm780, %v1398, %v1399
        %s1401 = scalar_lea.vmem [#allocation2], 1024
        %v1402 = vld [vmem:[%s1401] sm:$0xff]
        %v1403 = vld [vmem:[%s1401 + $0x8] sm:$0xff]
        %v1404 = vld [vmem:[%s1401 + $0x10] sm:$0xff]
        %v1405 = vld [vmem:[%s1401 + $0x18] sm:$0xff]
        %v1406 = vld [vmem:[%s1401 + $0x20] sm:$0xff]
        %v1407 = vld [vmem:[%s1401 + $0x28] sm:$0xff]
        %v1408 = vld [vmem:[%s1401 + $0x30] sm:$0xff]
        %v1409 = vld [vmem:[%s1401 + $0x38] sm:$0xff]
        %v1410 = vld [vmem:[%s1401 + $0x40] sm:$0xff]
        %v1411 = vld [vmem:[%s1401 + $0x48] sm:$0xff]
        %v1412 = vld [vmem:[%s1401 + $0x50] sm:$0xff]
        %v1413 = vld [vmem:[%s1401 + $0x58] sm:$0xff]
        %v1414 = vld [vmem:[%s1401 + $0x60] sm:$0xff]
        %v1415 = vld [vmem:[%s1401 + $0x68] sm:$0xff]
        %v1416 = vld [vmem:[%s1401 + $0x70] sm:$0xff]
        %v1417 = vld [vmem:[%s1401 + $0x78] sm:$0xff]
        %v1418 = vcombine.low %v1100, %v1400
        %1420 = vmatprep.subr.mxu0 0.0
        %1421 = vmatpush1.msra.mxu0 %v1417
        %1422 = vmatprep.subr.mxu0 0.0
        %1423 = vmatpush1.msra.mxu0 %v1416
        %1424 = vmatprep.subr.mxu0 0.0
        %1425 = vmatpush1.msra.mxu0 %v1415
        %1426 = vmatprep.subr.mxu0 0.0
        %1427 = vmatpush1.msra.mxu0 %v1414
        %1428 = vmatprep.subr.mxu0 0.0
        %1429 = vmatpush1.msra.mxu0 %v1413
        %1430 = vmatprep.subr.mxu0 0.0
        %1431 = vmatpush1.msra.mxu0 %v1412
        %1432 = vmatprep.subr.mxu0 0.0
        %1433 = vmatpush1.msra.mxu0 %v1411
        %1434 = vmatprep.subr.mxu0 0.0
        %1435 = vmatpush1.msra.mxu0 %v1410
        %1436 = vmatprep.subr.mxu0 0.0
        %1437 = vmatpush1.msra.mxu0 %v1409
        %1438 = vmatprep.subr.mxu0 0.0
        %1439 = vmatpush1.msra.mxu0 %v1408
        %1440 = vmatprep.subr.mxu0 0.0
        %1441 = vmatpush1.msra.mxu0 %v1407
        %1442 = vmatprep.subr.mxu0 0.0
        %1443 = vmatpush1.msra.mxu0 %v1406
        %1444 = vmatprep.subr.mxu0 0.0
        %1445 = vmatpush1.msra.mxu0 %v1405
        %1446 = vmatprep.subr.mxu0 0.0
        %1447 = vmatpush1.msra.mxu0 %v1404
        %1448 = vmatprep.subr.mxu0 0.0
        %1449 = vmatpush1.msra.mxu0 %v1403
        %1450 = vmatprep.subr.mxu0 0.0
        %1451 = vmatpush1.msra.mxu0 %v1402
        %1452 = vmatprep.subr.mxu0 0.0
        %1453 = vmatpush2.msra.mxu0 0.0
        %1454 = vmatprep.subr.mxu0 0.0
        %1455 = vmatpush2.msra.mxu0 0.0
        %1456 = vmatprep.subr.mxu0 0.0
        %1457 = vmatpush2.msra.mxu0 0.0
        %1458 = vmatprep.subr.mxu0 0.0
        %1459 = vmatpush2.msra.mxu0 0.0
        %1460 = vmatprep.subr.mxu0 0.0
        %1461 = vmatpush2.msra.mxu0 0.0
        %1462 = vmatprep.subr.mxu0 0.0
        %1463 = vmatpush2.msra.mxu0 0.0
        %1464 = vmatprep.subr.mxu0 0.0
        %1465 = vmatpush2.msra.mxu0 0.0
        %1466 = vmatprep.subr.mxu0 0.0
        %1467 = vmatpush2.msra.mxu0 0.0
        %1468 = vmatprep.subr.mxu0 0.0
        %1469 = vmatpush2.msra.mxu0 0.0
        %1470 = vmatprep.subr.mxu0 0.0
        %1471 = vmatpush2.msra.mxu0 0.0
        %1472 = vmatprep.subr.mxu0 0.0
        %1473 = vmatpush2.msra.mxu0 0.0
        %1474 = vmatprep.subr.mxu0 0.0
        %1475 = vmatpush2.msra.mxu0 0.0
        %1476 = vmatprep.subr.mxu0 0.0
        %1477 = vmatpush2.msra.mxu0 0.0
        %1478 = vmatprep.subr.mxu0 0.0
        %1479 = vmatpush2.msra.mxu0 0.0
        %1480 = vmatprep.subr.mxu0 0.0
        %1481 = vmatpush2.msra.mxu0 0.0
        %1482 = vmatprep.subr.mxu0 0.0
        %1483 = vmatpush2.msra.mxu0 0.0
        %1484 = vmatprep.mubr.f32.mxu0 0.0
        %1485 = vmatmul.mubr.f32.gmra.mxu0 %v815
        %v1486 = vpop.f32.mrf.mxu0
        %v1487 = vadd.f32 0.0, %v1486
        %v1488 = vpop.f32.mrf.mxu0
        %1489 = vmatprep.mubr.f32.mxu0 0.0
        %1490 = vmatmul.mubr.f32.gmra.mxu0 %v1418
        %v1491 = vpop.f32.mrf.mxu0
        %v1492 = vadd.f32 0.0, %v1491
        %v1493 = vpop.f32.mrf.mxu0
        %1494 = vdwg.mxu0
        %v1495 = vadd.f32 %v1395, %v1487
        %v1496 = vadd.f32 %v1396, %v1492
        %v1497 = vld [vmem:[%s272] sm:$0x1]
        %v1499 = vlaneseq
        %v1500 = vshrl.u32 %v1499, 7
        %v1501 = vsub.s32 0, %v1500
        %v1502 = vrot.slane %v1497, %v1501
        %v1504 = vadd.f32 %v1495, %v1502
        %v1505 = vadd.f32 %v1496, %v1502
        %v1508 = vcombine.high %v1504, %v1504
        %v1509 = vcombine.high %v1505, %v1505
        %1512 = vst [vmem:[%s280] sm:$0xf] %v1504
        %1513 = vst [vmem:[%s280 + $0x4] sm:$0xf] %v1508
        %1514 = vst [vmem:[%s280 + $0x8] sm:$0xf] %v1505
        %1515 = vst [vmem:[%s280 + $0xc] sm:$0xf] %v1509
        %p1516 = scmp.lt.s32.totalorder %s21, 1
        %s1517 = scalar_select %p1516, %s21, 1
        %p1518 = scmp.lt.s32.totalorder %s22, 0
        %s1519 = scalar_select %p1518, %s22, 0
        %s1520 = smul.addr %s1517, 4
        %s1521 = sadd.s32 %s1519, %s1520
        %s1522 = smul.addr %s1521, 4
        %s1523 = scalar_lea.vmem %s5, %s1522
        // Predicated region
        $region45: #{discriminator_down_block.9} parent=39 // pred_check
          %p1524 = pneg %p169
        $region46: #{discriminator_down_block.9} parent=39 // pred_check_branch
          %1526 = sbr.rel (%p1524) target = $region48
        $region47: #{discriminator_down_block.9} parent=39 // pred_region
          _
        $region48: #{discriminator_down_block.9} parent=39 // pred_fallthru
          _
      $region40: #{discriminator_down_block.9} parent=5 // pred_fallthru
        _
      %p1527 = scmp.le.s32.totalorder 2, %s12
      // Predicated region
      $region49: #{discriminator_down_block.9} parent=5 // pred_check
        %p1528 = pneg %p1527
      $region50: #{discriminator_down_block.9} parent=5 // pred_check_branch
        %1530 = sbr.rel (%p1528) target = $region52
      $region51: #{discriminator_down_block.9} parent=5 // pred_region
        %s1531 = ssub.s32 %s12, 2
        // Predicated region
        $region53: #{discriminator_down_block.9} parent=51 // pred_check
          %p1532 = pneg %p175
        $region54: #{discriminator_down_block.9} parent=51 // pred_check_branch
          %1534 = sbr.rel (%p1532) target = $region56
        $region55: #{discriminator_down_block.9} parent=51 // pred_region
          %p1535 = scmp.lt.s32.totalorder %s23, 1
          %s1536 = scalar_select %p1535, %s23, 1
          %p1537 = scmp.lt.s32.totalorder %s24, 0
          %s1538 = scalar_select %p1537, %s24, 0
          %s1539 = smul.addr %s1536, 4
          %s1540 = sadd.s32 %s1538, %s1539
          %s1541 = smul.addr %s1540, 4
          %s1542 = scalar_lea.vmem %s5, %s1541
        $region56: #{discriminator_down_block.9} parent=51 // pred_fallthru
          _
      $region52: #{discriminator_down_block.9} parent=5 // pred_fallthru
        _
    $region6: #{discriminator_down_block.9} parent=1 // loop_footer
      %s16 = sadd.s32 1, %s12
    $region7: #{discriminator_down_block.9} parent=1 // loop_footer_branch
      %11 = sbr.rel target = $region3
    $region8: #{discriminator_down_block.9} parent=1 // loop_exit
      _
    %1543 = vsyncpa [#allocation3], 1
    %s1544 = scalar_lea.sflag [#allocation3], 1
    %1545 = vsyncpa %s1544, 1

// kernel: discriminator_down_block.12
$region0: #{discriminator_down_block.12}
  #allocation0 [shape = 'u32[]', space=smem, size = 0x4, offset = 0x4, fixed_abs, tag = 'smem constant byte address 0x4 - core index']
  #allocation1 [shape = 'u32[144,128]{1,0:T(1,128)}', space=vmem, size = 0x12000, scoped, tag = 'internal scratch']
  %s0 = inlined_call_operand.vmem [shape: f32[2,16,128], index: 0, kind: input, shape index: {}]
  %s1 = inlined_call_operand.vmem [shape: f32[16,1], index: 1, kind: input, shape index: {}]
  %s2 = inlined_call_operand.vmem [shape: f32[16,1], index: 2, kind: input, shape index: {}]
  %s3 = inlined_call_operand.vmem [shape: f32[128,128], index: 3, kind: input, shape index: {}]
  %s4 = inlined_call_operand.vmem [shape: f32[128,128], index: 4, kind: input, shape index: {}]
  %s5 = inlined_call_operand.vmem [shape: f32[2,16,128], index: 5, kind: output, shape index: {}]
  %s6 = sld [smem:[#allocation0]]
  $region53: #{discriminator_down_block.12} parent=0
    _
  %s8 = ssub.s32 1, %s6
  %s9 = scalar_select 0, %s8, %s6
  loop: start=0, step=1, limit=4
  $region2: #{discriminator_down_block.12} parent=0 // loop_pre_header
    _
  $region3: #{discriminator_down_block.12} parent=0 // loop_header
    %s11 = sphi 0, %s15
    %p12 = scmp.ge.s32.totalorder %s11, 4
    %s21 = sphi 0, %s23
    %s24 = sphi 0, %s21
    %s25 = sphi 0, %s24
    %s41 = sphi 0, %s25
    %s45 = sphi 0, %s45
    %s47 = sphi 0, %s45
    %s48 = sphi 0, %s47
    %s62 = sphi 0, %s48
    %s66 = sphi 0, %s66
    %s68 = sphi 0, %s66
    %s69 = sphi 0, %s68
    %s83 = sphi 0, %s69
    %s87 = sphi 0, %s87
    %s89 = sphi 0, %s87
    %s90 = sphi 0, %s89
    %s104 = sphi 0, %s90
    %s108 = sphi 0, %s108
    %s110 = sphi 0, %s108
    %s111 = sphi 0, %s110
    %s125 = sphi 0, %s111
    %s131 = sphi 0, %s133
    %s134 = sphi 0, %s131
    %s135 = sphi 0, %s134
    %s151 = sphi 0, %s135
  $region4: #{discriminator_down_block.12} parent=0 // loop_header_branch
    %14 = sbr.rel (%p12) target = $region8
  $region5: #{discriminator_down_block.12} parent=0 // loop_body
    %s16 = ssub.s32 %s11, 1
    %s17 = ssub.s32 %s11, 2
    %s18 = sadd.s32 %s11, 1
    %s19 = ssub.s32 %s11, %s18
    %p20 = scmp.eq.s32.totalorder %s19, 0
    %s22 = sadd.s32 %s21, 1
    %s23 = scalar_select %p20, %s21, %s22
    %p26 = pneg %p20
    %p27 = scmp.eq.s32.totalorder %s11, 1
    %p28 = por %p26, %p27
    %p29 = scmp.ne.s32.totalorder %s21, %s24
    %p30 = scmp.eq.s32.totalorder %s11, 0
    %p31 = por %p29, %p30
    %p32 = scmp.ne.s32.totalorder %s21, %s24
    %p33 = scmp.eq.s32.totalorder %s16, 1
    %p34 = por %p32, %p33
    %p35 = scmp.ne.s32.totalorder %s24, %s25
    %p36 = scmp.eq.s32.totalorder %s16, 0
    %p37 = por %p35, %p36
    %p38 = scmp.ne.s32.totalorder %s24, %s25
    %p39 = scmp.eq.s32.totalorder %s17, 1
    %p40 = por %p38, %p39
    %p42 = scmp.ne.s32.totalorder %s25, %s41
    %p43 = scmp.eq.s32.totalorder %s17, 0
    %p44 = por %p42, %p43
    %s46 = sadd.s32 %s45, 1
    %p49 = scmp.eq.s32.totalorder %s11, 1
    %p50 = scmp.ne.s32.totalorder %s45, %s47
    %p51 = scmp.eq.s32.totalorder %s11, 0
    %p52 = por %p50, %p51
    %p53 = scmp.ne.s32.totalorder %s45, %s47
    %p54 = scmp.eq.s32.totalorder %s16, 1
    %p55 = por %p53, %p54
    %p56 = scmp.ne.s32.totalorder %s47, %s48
    %p57 = scmp.eq.s32.totalorder %s16, 0
    %p58 = por %p56, %p57
    %p59 = scmp.ne.s32.totalorder %s47, %s48
    %p60 = scmp.eq.s32.totalorder %s17, 1
    %p61 = por %p59, %p60
    %p63 = scmp.ne.s32.totalorder %s48, %s62
    %p64 = scmp.eq.s32.totalorder %s17, 0
    %p65 = por %p63, %p64
    %s67 = sadd.s32 %s66, 1
    %p70 = scmp.eq.s32.totalorder %s11, 1
    %p71 = scmp.ne.s32.totalorder %s66, %s68
    %p72 = scmp.eq.s32.totalorder %s11, 0
    %p73 = por %p71, %p72
    %p74 = scmp.ne.s32.totalorder %s66, %s68
    %p75 = scmp.eq.s32.totalorder %s16, 1
    %p76 = por %p74, %p75
    %p77 = scmp.ne.s32.totalorder %s68, %s69
    %p78 = scmp.eq.s32.totalorder %s16, 0
    %p79 = por %p77, %p78
    %p80 = scmp.ne.s32.totalorder %s68, %s69
    %p81 = scmp.eq.s32.totalorder %s17, 1
    %p82 = por %p80, %p81
    %p84 = scmp.ne.s32.totalorder %s69, %s83
    %p85 = scmp.eq.s32.totalorder %s17, 0
    %p86 = por %p84, %p85
    %s88 = sadd.s32 %s87, 1
    %p91 = scmp.eq.s32.totalorder %s11, 1
    %p92 = scmp.ne.s32.totalorder %s87, %s89
    %p93 = scmp.eq.s32.totalorder %s11, 0
    %p94 = por %p92, %p93
    %p95 = scmp.ne.s32.totalorder %s87, %s89
    %p96 = scmp.eq.s32.totalorder %s16, 1
    %p97 = por %p95, %p96
    %p98 = scmp.ne.s32.totalorder %s89, %s90
    %p99 = scmp.eq.s32.totalorder %s16, 0
    %p100 = por %p98, %p99
    %p101 = scmp.ne.s32.totalorder %s89, %s90
    %p102 = scmp.eq.s32.totalorder %s17, 1
    %p103 = por %p101, %p102
    %p105 = scmp.ne.s32.totalorder %s90, %s104
    %p106 = scmp.eq.s32.totalorder %s17, 0
    %p107 = por %p105, %p106
    %s109 = sadd.s32 %s108, 1
    %p112 = scmp.eq.s32.totalorder %s11, 1
    %p113 = scmp.ne.s32.totalorder %s108, %s110
    %p114 = scmp.eq.s32.totalorder %s11, 0
    %p115 = por %p113, %p114
    %p116 = scmp.ne.s32.totalorder %s108, %s110
    %p117 = scmp.eq.s32.totalorder %s16, 1
    %p118 = por %p116, %p117
    %p119 = scmp.ne.s32.totalorder %s110, %s111
    %p120 = scmp.eq.s32.totalorder %s16, 0
    %p121 = por %p119, %p120
    %p122 = scmp.ne.s32.totalorder %s110, %s111
    %p123 = scmp.eq.s32.totalorder %s17, 1
    %p124 = por %p122, %p123
    %p126 = scmp.ne.s32.totalorder %s111, %s125
    %p127 = scmp.eq.s32.totalorder %s17, 0
    %p128 = por %p126, %p127
    %s129 = ssub.s32 %s11, %s18
    %p130 = scmp.eq.s32.totalorder %s129, 0
    %s132 = sadd.s32 %s131, 1
    %s133 = scalar_select %p130, %s131, %s132
    %p136 = pneg %p130
    %p137 = scmp.eq.s32.totalorder %s11, 1
    %p138 = por %p136, %p137
    %p139 = scmp.ne.s32.totalorder %s131, %s134
    %p140 = scmp.eq.s32.totalorder %s11, 0
    %p141 = por %p139, %p140
    %p142 = scmp.ne.s32.totalorder %s131, %s134
    %p143 = scmp.eq.s32.totalorder %s16, 1
    %p144 = por %p142, %p143
    %p145 = scmp.ne.s32.totalorder %s134, %s135
    %p146 = scmp.eq.s32.totalorder %s16, 0
    %p147 = por %p145, %p146
    %p148 = scmp.ne.s32.totalorder %s134, %s135
    %p149 = scmp.eq.s32.totalorder %s17, 1
    %p150 = por %p148, %p149
    %p152 = scmp.ne.s32.totalorder %s135, %s151
    %p153 = scmp.eq.s32.totalorder %s17, 0
    %p154 = por %p152, %p153
    %p155 = scmp.le.s32.totalorder 1, %s11
    %p156 = scmp.lt.s32.totalorder %s11, 3
    %p157 = pnand %p155, %p156
    %p158 = pneg %p157
    // Predicated region
    $region9: #{discriminator_down_block.12} parent=5 // pred_check
      _
    $region10: #{discriminator_down_block.12} parent=5 // pred_check_branch
      %160 = sbr.rel (%p157) target = $region12
    $region11: #{discriminator_down_block.12} parent=5 // pred_region
      %s161 = ssub.s32 %s11, 1
      // Predicated region
      $region13: #{discriminator_down_block.12} parent=11 // pred_check
        %p162 = pneg %p58
      $region14: #{discriminator_down_block.12} parent=11 // pred_check_branch
        %164 = sbr.rel (%p162) target = $region16
      $region15: #{discriminator_down_block.12} parent=11 // pred_region
        _
      $region16: #{discriminator_down_block.12} parent=11 // pred_fallthru
        _
      // Predicated region
      $region17: #{discriminator_down_block.12} parent=11 // pred_check
        %p165 = pneg %p79
      $region18: #{discriminator_down_block.12} parent=11 // pred_check_branch
        %167 = sbr.rel (%p165) target = $region20
      $region19: #{discriminator_down_block.12} parent=11 // pred_region
        _
      $region20: #{discriminator_down_block.12} parent=11 // pred_fallthru
        _
      // Predicated region
      $region21: #{discriminator_down_block.12} parent=11 // pred_check
        %p168 = pneg %p100
      $region22: #{discriminator_down_block.12} parent=11 // pred_check_branch
        %170 = sbr.rel (%p168) target = $region24
      $region23: #{discriminator_down_block.12} parent=11 // pred_region
        _
      $region24: #{discriminator_down_block.12} parent=11 // pred_fallthru
        _
      // Predicated region
      $region25: #{discriminator_down_block.12} parent=11 // pred_check
        %p171 = pneg %p121
      $region26: #{discriminator_down_block.12} parent=11 // pred_check_branch
        %173 = sbr.rel (%p171) target = $region28
      $region27: #{discriminator_down_block.12} parent=11 // pred_region
        _
      $region28: #{discriminator_down_block.12} parent=11 // pred_fallthru
        _
    $region12: #{discriminator_down_block.12} parent=5 // pred_fallthru
      _
    %p174 = scmp.lt.s32.totalorder %s11, 2
    // Predicated region
    $region29: #{discriminator_down_block.12} parent=5 // pred_check
      %p175 = pneg %p174
    $region30: #{discriminator_down_block.12} parent=5 // pred_check_branch
      %177 = sbr.rel (%p175) target = $region32
    $region31: #{discriminator_down_block.12} parent=5 // pred_region
      // Predicated region
      $region33: #{discriminator_down_block.12} parent=31 // pred_check
        %p178 = pneg %p31
      $region34: #{discriminator_down_block.12} parent=31 // pred_check_branch
        %180 = sbr.rel (%p178) target = $region36
      $region35: #{discriminator_down_block.12} parent=31 // pred_region
        %p181 = scmp.lt.s32.totalorder %s11, 1
        %s182 = scalar_select %p181, %s11, 1
        %s183 = smul.addr %s182, 2
        %s184 = smul.addr %s183, 8
        %s185 = scalar_lea.vmem %s0, %s184
      $region36: #{discriminator_down_block.12} parent=31 // pred_fallthru
        _
    $region32: #{discriminator_down_block.12} parent=5 // pred_fallthru
      _
    %p186 = scmp.le.s32.totalorder 1, %s11
    %p187 = scmp.lt.s32.totalorder %s11, 3
    %p188 = pnand %p186, %p187
    %p189 = pneg %p188
    // Predicated region
    $region37: #{discriminator_down_block.12} parent=5 // pred_check
      _
    $region38: #{discriminator_down_block.12} parent=5 // pred_check_branch
      %191 = sbr.rel (%p188) target = $region40
    $region39: #{discriminator_down_block.12} parent=5 // pred_region
      %s192 = ssub.s32 %s11, 1
      %p193 = scmp.lt.s32.totalorder %s16, 1
      %s194 = scalar_select %p193, %s16, 1
      %s195 = smul.addr %s194, 2
      %s196 = smul.addr %s195, 8
      %s197 = scalar_lea.vmem %s0, %s196
      %p198 = pneg %p37
      %p199 = pneg %p34
      %p200 = pneg %p58
      %p201 = pneg %p55
      %p202 = pneg %p79
      %p203 = pneg %p76
      %p204 = pneg %p100
      %p205 = pneg %p97
      %p206 = pneg %p121
      %p207 = pneg %p118
      %p208 = pneg %p147
      %p209 = pneg %p144
      %p210 = scmp.lt.s32.totalorder %s16, 1
      %s211 = scalar_select %p210, %s16, 1
      %s212 = smul.addr %s211, 2
      %s213 = smul.addr %s212, 8
      %s214 = scalar_lea.vmem %s5, %s213
      %p215 = scmp.lt.s32.totalorder %s16, 1
      %s216 = scalar_select %p215, %s16, 1
      %s217 = smul.addr %s216, 2
      %s218 = smul.addr %s217, 8
      %s219 = scalar_lea.vmem %s0, %s218
      %p220 = scmp.lt.s32.totalorder %s16, 1
      %s221 = scalar_select %p220, %s16, 1
      %s222 = smul.addr %s221, 2
      %s223 = smul.addr %s222, 8
      %s224 = scalar_lea.vmem %s5, %s223
      %v225 = vld [vmem:[%s219] sm:$0xff]
      %v226 = vld [vmem:[%s219 + $0x8] sm:$0xff]
      %227 = vadd.xlane.f32.xlu0 %v225
      %v228 = vpop.xlane.xlu0 %227
      %229 = vadd.xlane.f32.xlu0 %v226
      %v230 = vpop.xlane.xlu0 %229
      %v231 = vmul.f32 %v225, %v225
      %v232 = vmul.f32 %v226, %v226
      %233 = vadd.xlane.f32.xlu0 %v231
      %v234 = vpop.xlane.xlu0 %233
      %235 = vadd.xlane.f32.xlu0 %v232
      %v236 = vpop.xlane.xlu0 %235
      %v237 = vlaneseq
      %v238 = vshrl.u32 %v237, 7
      %v239 = vadd.s32 %v238, 8
      %vm240 = vcmp.ge.s32.totalorder %v238, 0
      %vm241 = vcmp.ge.s32.totalorder %v239, 0
      %vm242 = vcmp.lt.s32.totalorder %v238, 4
      %vm243 = vcmp.lt.s32.totalorder %v239, 4
      %vm244 = vmand %vm240, %vm242
      %vm245 = vmand %vm241, %vm243
      %v246 = vsel %vm244, %v228, 0.0
      %v247 = vsel %vm245, %v230, 0.0
      %vm248 = vcmask 7168
      %v249 = vsel %vm248, %v246, 0.0
      %v250 = vsel %vm248, %v247, 0.0
      %v251 = vadd.f32 %v249, %v250
      %252 = vadd.xlane.f32.xlu0 %v251
      %v253 = vpop.xlane.xlu0 %252
      %v254 = vrot.slane %v253, 4
      %v255 = vadd.f32 %v253, %v254
      %v256 = vrot.slane %v255, 2
      %v257 = vadd.f32 %v255, %v256
      %v258 = vrot.slane %v257, 1
      %v259 = vadd.f32 %v257, %v258
      %s260 = vtos %v259
      %v261 = vstv %s260
      %v262 = vmul.f32 %v261, 0.015625
      %v263 = vsel %vm244, %v234, 0.0
      %v264 = vsel %vm245, %v236, 0.0
      %v265 = vsel %vm248, %v263, 0.0
      %v266 = vsel %vm248, %v264, 0.0
      %v267 = vadd.f32 %v265, %v266
      %268 = vadd.xlane.f32.xlu0 %v267
      %v269 = vpop.xlane.xlu0 %268
      %v270 = vrot.slane %v269, 4
      %v271 = vadd.f32 %v269, %v270
      %v272 = vrot.slane %v271, 2
      %v273 = vadd.f32 %v271, %v272
      %v274 = vrot.slane %v273, 1
      %v275 = vadd.f32 %v273, %v274
      %s276 = vtos %v275
      %v277 = vstv %s276
      %v278 = vmul.f32 %v277, 0.015625
      %v279 = vmul.f32 %v262, %v262
      %v280 = vsub.f32 %v278, %v279
      %v281 = vadd.f32 %v280, 1e-05
      %v282 = vrsqrt.pop %v281
      %v283 = vsel %vm244, %v262, 0.0
      %v284 = vsel %vm245, %v262, 0.0
      %v285 = vsel %vm244, %v282, 0.0
      %v286 = vsel %vm245, %v282, 0.0
      %vm287 = vcmp.ge.s32.totalorder %v238, 4
      %vm288 = vcmp.ge.s32.totalorder %v239, 4
      %vm289 = vcmp.lt.s32.totalorder %v238, 8
      %vm290 = vcmp.lt.s32.totalorder %v239, 8
      %vm291 = vmand %vm287, %vm289
      %vm292 = vmand %vm288, %vm290
      %v293 = vsel %vm291, %v228, 0.0
      %v294 = vsel %vm292, %v230, 0.0
      %v295 = vsel %vm248, %v293, 0.0
      %v296 = vsel %vm248, %v294, 0.0
      %v297 = vadd.f32 %v295, %v296
      %298 = vadd.xlane.f32.xlu0 %v297
      %v299 = vpop.xlane.xlu0 %298
      %v300 = vrot.slane %v299, 4
      %v301 = vadd.f32 %v299, %v300
      %v302 = vrot.slane %v301, 2
      %v303 = vadd.f32 %v301, %v302
      %v304 = vrot.slane %v303, 1
      %v305 = vadd.f32 %v303, %v304
      %s306 = vtos %v305
      %v307 = vstv %s306
      %v308 = vmul.f32 %v307, 0.015625
      %v309 = vsel %vm291, %v234, 0.0
      %v310 = vsel %vm292, %v236, 0.0
      %v311 = vsel %vm248, %v309, 0.0
      %v312 = vsel %vm248, %v310, 0.0
      %v313 = vadd.f32 %v311, %v312
      %314 = vadd.xlane.f32.xlu0 %v313
      %v315 = vpop.xlane.xlu0 %314
      %v316 = vrot.slane %v315, 4
      %v317 = vadd.f32 %v315, %v316
      %v318 = vrot.slane %v317, 2
      %v319 = vadd.f32 %v317, %v318
      %v320 = vrot.slane %v319, 1
      %v321 = vadd.f32 %v319, %v320
      %s322 = vtos %v321
      %v323 = vstv %s322
      %v324 = vmul.f32 %v323, 0.015625
      %v325 = vmul.f32 %v308, %v308
      %v326 = vsub.f32 %v324, %v325
      %v327 = vadd.f32 %v326, 1e-05
      %v328 = vrsqrt.pop %v327
      %v329 = vsel %vm291, %v308, %v283
      %v330 = vsel %vm292, %v308, %v284
      %v331 = vsel %vm291, %v328, %v285
      %v332 = vsel %vm292, %v328, %v286
      %vm333 = vcmp.ge.s32.totalorder %v238, 8
      %vm334 = vcmp.ge.s32.totalorder %v239, 8
      %vm335 = vcmp.lt.s32.totalorder %v238, 12
      %vm336 = vcmp.lt.s32.totalorder %v239, 12
      %vm337 = vmand %vm333, %vm335
      %vm338 = vmand %vm334, %vm336
      %v339 = vsel %vm337, %v228, 0.0
      %v340 = vsel %vm338, %v230, 0.0
      %v341 = vsel %vm248, %v339, 0.0
      %v342 = vsel %vm248, %v340, 0.0
      %v343 = vadd.f32 %v341, %v342
      %344 = vadd.xlane.f32.xlu0 %v343
      %v345 = vpop.xlane.xlu0 %344
      %v346 = vrot.slane %v345, 4
      %v347 = vadd.f32 %v345, %v346
      %v348 = vrot.slane %v347, 2
      %v349 = vadd.f32 %v347, %v348
      %v350 = vrot.slane %v349, 1
      %v351 = vadd.f32 %v349, %v350
      %s352 = vtos %v351
      %v353 = vstv %s352
      %v354 = vmul.f32 %v353, 0.015625
      %v355 = vsel %vm337, %v234, 0.0
      %v356 = vsel %vm338, %v236, 0.0
      %v357 = vsel %vm248, %v355, 0.0
      %v358 = vsel %vm248, %v356, 0.0
      %v359 = vadd.f32 %v357, %v358
      %360 = vadd.xlane.f32.xlu0 %v359
      %v361 = vpop.xlane.xlu0 %360
      %v362 = vrot.slane %v361, 4
      %v363 = vadd.f32 %v361, %v362
      %v364 = vrot.slane %v363, 2
      %v365 = vadd.f32 %v363, %v364
      %v366 = vrot.slane %v365, 1
      %v367 = vadd.f32 %v365, %v366
      %s368 = vtos %v367
      %v369 = vstv %s368
      %v370 = vmul.f32 %v369, 0.015625
      %v371 = vmul.f32 %v354, %v354
      %v372 = vsub.f32 %v370, %v371
      %v373 = vadd.f32 %v372, 1e-05
      %v374 = vrsqrt.pop %v373
      %v375 = vsel %vm337, %v354, %v329
      %v376 = vsel %vm338, %v354, %v330
      %v377 = vsel %vm337, %v374, %v331
      %v378 = vsel %vm338, %v374, %v332
      %vm379 = vcmp.ge.s32.totalorder %v238, 12
      %vm380 = vcmp.ge.s32.totalorder %v239, 12
      %vm381 = vcmp.lt.s32.totalorder %v238, 16
      %vm382 = vcmp.lt.s32.totalorder %v239, 16
      %vm383 = vmand %vm379, %vm381
      %vm384 = vmand %vm380, %vm382
      %v385 = vsel %vm383, %v228, 0.0
      %v386 = vsel %vm384, %v230, 0.0
      %v387 = vsel %vm248, %v385, 0.0
      %v388 = vsel %vm248, %v386, 0.0
      %v389 = vadd.f32 %v387, %v388
      %390 = vadd.xlane.f32.xlu0 %v389
      %v391 = vpop.xlane.xlu0 %390
      %v392 = vrot.slane %v391, 4
      %v393 = vadd.f32 %v391, %v392
      %v394 = vrot.slane %v393, 2
      %v395 = vadd.f32 %v393, %v394
      %v396 = vrot.slane %v395, 1
      %v397 = vadd.f32 %v395, %v396
      %s398 = vtos %v397
      %v399 = vstv %s398
      %v400 = vmul.f32 %v399, 0.015625
      %v401 = vsel %vm383, %v234, 0.0
      %v402 = vsel %vm384, %v236, 0.0
      %v403 = vsel %vm248, %v401, 0.0
      %v404 = vsel %vm248, %v402, 0.0
      %v405 = vadd.f32 %v403, %v404
      %406 = vadd.xlane.f32.xlu0 %v405
      %v407 = vpop.xlane.xlu0 %406
      %v408 = vrot.slane %v407, 4
      %v409 = vadd.f32 %v407, %v408
      %v410 = vrot.slane %v409, 2
      %v411 = vadd.f32 %v409, %v410
      %v412 = vrot.slane %v411, 1
      %v413 = vadd.f32 %v411, %v412
      %s414 = vtos %v413
      %v415 = vstv %s414
      %v416 = vmul.f32 %v415, 0.015625
      %v417 = vmul.f32 %v400, %v400
      %v418 = vsub.f32 %v416, %v417
      %v419 = vadd.f32 %v418, 1e-05
      %v420 = vrsqrt.pop %v419
      %v421 = vsel %vm383, %v400, %v375
      %v422 = vsel %vm384, %v400, %v376
      %v423 = vsel %vm383, %v420, %v377
      %v424 = vsel %vm384, %v420, %v378
      %v425 = vsub.f32 %v225, %v421
      %v426 = vsub.f32 %v226, %v422
      %v427 = vmul.f32 %v425, %v423
      %v428 = vmul.f32 %v426, %v424
      %v429 = vld [vmem:[%s1] sm:$0xff]
      %v430 = vld [vmem:[%s1 + $0x8] sm:$0xff]
      %432 = vset.pattern.permute.xlu0 0
      %433 = vperm.xlu0 %432, %v429
      %v434 = vpop.permute.xlu0 %433
      %437 = vset.pattern.permute.xlu0 0
      %438 = vperm.xlu0 %437, %v430
      %v439 = vpop.permute.xlu0 %438
      %v441 = vmul.f32 %v427, %v434
      %v442 = vmul.f32 %v428, %v439
      %v443 = vld [vmem:[%s2] sm:$0xff]
      %v444 = vld [vmem:[%s2 + $0x8] sm:$0xff]
      %446 = vset.pattern.permute.xlu0 0
      %447 = vperm.xlu0 %446, %v443
      %v448 = vpop.permute.xlu0 %447
      %451 = vset.pattern.permute.xlu0 0
      %452 = vperm.xlu0 %451, %v444
      %v453 = vpop.permute.xlu0 %452
      %v455 = vadd.f32 %v441, %v448
      %v456 = vadd.f32 %v442, %v453
      %v457 = vld [vmem:[%s3] sm:$0xff]
      %v458 = vld [vmem:[%s3 + $0x8] sm:$0xff]
      %v459 = vld [vmem:[%s3 + $0x10] sm:$0xff]
      %v460 = vld [vmem:[%s3 + $0x18] sm:$0xff]
      %v461 = vld [vmem:[%s3 + $0x20] sm:$0xff]
      %v462 = vld [vmem:[%s3 + $0x28] sm:$0xff]
      %v463 = vld [vmem:[%s3 + $0x30] sm:$0xff]
      %v464 = vld [vmem:[%s3 + $0x38] sm:$0xff]
      %v465 = vld [vmem:[%s3 + $0x40] sm:$0xff]
      %v466 = vld [vmem:[%s3 + $0x48] sm:$0xff]
      %v467 = vld [vmem:[%s3 + $0x50] sm:$0xff]
      %v468 = vld [vmem:[%s3 + $0x58] sm:$0xff]
      %v469 = vld [vmem:[%s3 + $0x60] sm:$0xff]
      %v470 = vld [vmem:[%s3 + $0x68] sm:$0xff]
      %v471 = vld [vmem:[%s3 + $0x70] sm:$0xff]
      %v472 = vld [vmem:[%s3 + $0x78] sm:$0xff]
      %473 = vmatprep.subr.mxu0 0.0
      %474 = vmatpush1.msra.mxu0 %v472
      %475 = vmatprep.subr.mxu0 0.0
      %476 = vmatpush1.msra.mxu0 %v471
      %477 = vmatprep.subr.mxu0 0.0
      %478 = vmatpush1.msra.mxu0 %v470
      %479 = vmatprep.subr.mxu0 0.0
      %480 = vmatpush1.msra.mxu0 %v469
      %481 = vmatprep.subr.mxu0 0.0
      %482 = vmatpush1.msra.mxu0 %v468
      %483 = vmatprep.subr.mxu0 0.0
      %484 = vmatpush1.msra.mxu0 %v467
      %485 = vmatprep.subr.mxu0 0.0
      %486 = vmatpush1.msra.mxu0 %v466
      %487 = vmatprep.subr.mxu0 0.0
      %488 = vmatpush1.msra.mxu0 %v465
      %489 = vmatprep.subr.mxu0 0.0
      %490 = vmatpush1.msra.mxu0 %v464
      %491 = vmatprep.subr.mxu0 0.0
      %492 = vmatpush1.msra.mxu0 %v463
      %493 = vmatprep.subr.mxu0 0.0
      %494 = vmatpush1.msra.mxu0 %v462
      %495 = vmatprep.subr.mxu0 0.0
      %496 = vmatpush1.msra.mxu0 %v461
      %497 = vmatprep.subr.mxu0 0.0
      %498 = vmatpush1.msra.mxu0 %v460
      %499 = vmatprep.subr.mxu0 0.0
      %500 = vmatpush1.msra.mxu0 %v459
      %501 = vmatprep.subr.mxu0 0.0
      %502 = vmatpush1.msra.mxu0 %v458
      %503 = vmatprep.subr.mxu0 0.0
      %504 = vmatpush1.msra.mxu0 %v457
      %505 = vmatprep.subr.mxu0 0.0
      %506 = vmatpush2.msra.mxu0 0.0
      %507 = vmatprep.subr.mxu0 0.0
      %508 = vmatpush2.msra.mxu0 0.0
      %509 = vmatprep.subr.mxu0 0.0
      %510 = vmatpush2.msra.mxu0 0.0
      %511 = vmatprep.subr.mxu0 0.0
      %512 = vmatpush2.msra.mxu0 0.0
      %513 = vmatprep.subr.mxu0 0.0
      %514 = vmatpush2.msra.mxu0 0.0
      %515 = vmatprep.subr.mxu0 0.0
      %516 = vmatpush2.msra.mxu0 0.0
      %517 = vmatprep.subr.mxu0 0.0
      %518 = vmatpush2.msra.mxu0 0.0
      %519 = vmatprep.subr.mxu0 0.0
      %520 = vmatpush2.msra.mxu0 0.0
      %521 = vmatprep.subr.mxu0 0.0
      %522 = vmatpush2.msra.mxu0 0.0
      %523 = vmatprep.subr.mxu0 0.0
      %524 = vmatpush2.msra.mxu0 0.0
      %525 = vmatprep.subr.mxu0 0.0
      %526 = vmatpush2.msra.mxu0 0.0
      %527 = vmatprep.subr.mxu0 0.0
      %528 = vmatpush2.msra.mxu0 0.0
      %529 = vmatprep.subr.mxu0 0.0
      %530 = vmatpush2.msra.mxu0 0.0
      %531 = vmatprep.subr.mxu0 0.0
      %532 = vmatpush2.msra.mxu0 0.0
      %533 = vmatprep.subr.mxu0 0.0
      %534 = vmatpush2.msra.mxu0 0.0
      %535 = vmatprep.subr.mxu0 0.0
      %536 = vmatpush2.msra.mxu0 0.0
      %537 = vmatprep.mubr.f32.mxu0 0.0
      %538 = vmatmul.mubr.f32.gmra.mxu0 %v455
      %v539 = vpop.f32.mrf.mxu0
      %v540 = vadd.f32 0.0, %v539
      %v541 = vpop.f32.mrf.mxu0
      %542 = vmatprep.mubr.f32.mxu0 0.0
      %543 = vmatmul.mubr.f32.gmra.mxu0 %v456
      %v544 = vpop.f32.mrf.mxu0
      %v545 = vadd.f32 0.0, %v544
      %v546 = vpop.f32.mrf.mxu0
      %547 = vdwg.mxu0
      %550 = vrot.lane.b32.xlu0 %v540, 112
      %v551 = vpop.permute.xlu0 %550
      %552 = vrot.lane.b32.xlu0 %v545, 112
      %v553 = vpop.permute.xlu0 %552
      %vm554 = vcmask 31744
      %v555 = vsel %vm554, %v540, 0
      %v557 = vsel %vm554, %v545, 0
      %v559 = vsel %vm554, %v551, 0
      %v561 = vsel %vm554, %v553, 0
      %563 = vmatprep.subr.mxu0 0.0
      %564 = vmatpush1.xpose.msra.mxu0 0.0
      %565 = vmatprep.subr.mxu0 0.0
      %566 = vmatpush1.xpose.msra.mxu0 0.0
      %567 = vmatprep.subr.mxu0 0.0
      %568 = vmatpush1.xpose.msra.mxu0 0.0
      %569 = vmatprep.subr.mxu0 0.0
      %570 = vmatpush1.xpose.msra.mxu0 0.0
      %571 = vmatprep.subr.mxu0 0.0
      %572 = vmatpush1.xpose.msra.mxu0 0.0
      %573 = vmatprep.subr.mxu0 0.0
      %574 = vmatpush1.xpose.msra.mxu0 0.0
      %575 = vmatprep.subr.mxu0 0.0
      %576 = vmatpush1.xpose.msra.mxu0 0.0
      %577 = vmatprep.subr.mxu0 0.0
      %578 = vmatpush1.xpose.msra.mxu0 0.0
      %579 = vmatprep.subr.mxu0 0.0
      %580 = vmatpush1.xpose.msra.mxu0 0.0
      %581 = vmatprep.subr.mxu0 0.0
      %582 = vmatpush1.xpose.msra.mxu0 0.0
      %583 = vmatprep.subr.mxu0 0.0
      %584 = vmatpush1.xpose.msra.mxu0 0.0
      %585 = vmatprep.subr.mxu0 0.0
      %586 = vmatpush1.xpose.msra.mxu0 0.0
      %587 = vmatprep.subr.mxu0 0.0
      %588 = vmatpush1.xpose.msra.mxu0 0.0
      %589 = vmatprep.subr.mxu0 0.0
      %590 = vmatpush1.xpose.msra.mxu0 0.0
      %591 = vmatprep.subr.mxu0 0.0
      %592 = vmatpush1.xpose.msra.mxu0 %v561
      %593 = vmatprep.subr.mxu0 0.0
      %594 = vmatpush1.xpose.msra.mxu0 %v559
      %595 = vmatprep.subr.mxu0 0.0
      %596 = vmatpush2.xpose.msra.mxu0 0.0
      %597 = vmatprep.subr.mxu0 0.0
      %598 = vmatpush2.xpose.msra.mxu0 0.0
      %599 = vmatprep.subr.mxu0 0.0
      %600 = vmatpush2.xpose.msra.mxu0 0.0
      %601 = vmatprep.subr.mxu0 0.0
      %602 = vmatpush2.xpose.msra.mxu0 0.0
      %603 = vmatprep.subr.mxu0 0.0
      %604 = vmatpush2.xpose.msra.mxu0 0.0
      %605 = vmatprep.subr.mxu0 0.0
      %606 = vmatpush2.xpose.msra.mxu0 0.0
      %607 = vmatprep.subr.mxu0 0.0
      %608 = vmatpush2.xpose.msra.mxu0 0.0
      %609 = vmatprep.subr.mxu0 0.0
      %610 = vmatpush2.xpose.msra.mxu0 0.0
      %611 = vmatprep.subr.mxu0 0.0
      %612 = vmatpush2.xpose.msra.mxu0 0.0
      %613 = vmatprep.subr.mxu0 0.0
      %614 = vmatpush2.xpose.msra.mxu0 0.0
      %615 = vmatprep.subr.mxu0 0.0
      %616 = vmatpush2.xpose.msra.mxu0 0.0
      %617 = vmatprep.subr.mxu0 0.0
      %618 = vmatpush2.xpose.msra.mxu0 0.0
      %619 = vmatprep.subr.mxu0 0.0
      %620 = vmatpush2.xpose.msra.mxu0 0.0
      %621 = vmatprep.subr.mxu0 0.0
      %622 = vmatpush2.xpose.msra.mxu0 0.0
      %623 = vmatprep.subr.mxu0 0.0
      %624 = vmatpush2.xpose.msra.mxu0 0.0
      %625 = vmatprep.subr.mxu0 0.0
      %626 = vmatpush2.xpose.msra.mxu0 0.0
      %627 = vmatprep.mubr.f32.mxu0 0.0
      %628 = vmatmul.mubr.f32.gmra.mxu0 %v555
      %v629 = vpop.f32.mrf.mxu0
      %v630 = vadd.f32 0.0, %v629
      %v631 = vpop.f32.mrf.mxu0
      %632 = vmatprep.mubr.f32.mxu0 0.0
      %633 = vmatmul.mubr.f32.gmra.mxu0 %v557
      %v634 = vpop.f32.mrf.mxu0
      %v635 = vadd.f32 0.0, %v634
      %v636 = vpop.f32.mrf.mxu0
      %637 = vdwg.mxu0
      %v638 = vmul.f32 %v630, 0.5
      %v639 = vmul.f32 %v635, 0.5
      %vm640 = vcmask 130048
      %v641 = vsel %vm640, %v638, -inf
      %642 = vmax.xlane.f32.xlu0 %v641
      %v643 = vpop.xlane.xlu0 %642
      %v644 = vsel %vm640, %v639, -inf
      %645 = vmax.xlane.f32.xlu0 %v644
      %v646 = vpop.xlane.xlu0 %645
      %v647 = vsub.f32 %v638, %v643
      %v648 = vsub.f32 %v639, %v646
      %v649 = vmul.f32 %v647, 1.442695
      %v650 = vpow.pop %v649
      %v651 = vmul.f32 %v648, 1.442695
      %v652 = vpow.pop %v651
      %v653 = vsel %vm640, %v650, 0.0
      %654 = vadd.xlane.f32.xlu0 %v653
      %v655 = vpop.xlane.xlu0 %654
      %v656 = vsel %vm640, %v652, 0.0
      %657 = vadd.xlane.f32.xlu0 %v656
      %v658 = vpop.xlane.xlu0 %657
      %v659 = vrcp.pop %v655
      %v660 = vmul.f32 %v650, %v659
      %v661 = vrcp.pop %v658
      %v662 = vmul.f32 %v652, %v661
      %663 = vrot.lane.b32.xlu0 %v540, 96
      %v664 = vpop.permute.xlu0 %663
      %665 = vrot.lane.b32.xlu0 %v545, 96
      %v666 = vpop.permute.xlu0 %665
      %v670 = vsel %vm640, %v660, 0
      %v673 = vsel %vm640, %v662, 0
      %675 = vmatprep.subr.mxu0 0.0
      %676 = vmatpush1.msra.mxu0 0.0
      %677 = vmatprep.subr.mxu0 0.0
      %678 = vmatpush1.msra.mxu0 0.0
      %679 = vmatprep.subr.mxu0 0.0
      %680 = vmatpush1.msra.mxu0 0.0
      %681 = vmatprep.subr.mxu0 0.0
      %682 = vmatpush1.msra.mxu0 0.0
      %683 = vmatprep.subr.mxu0 0.0
      %684 = vmatpush1.msra.mxu0 0.0
      %685 = vmatprep.subr.mxu0 0.0
      %686 = vmatpush1.msra.mxu0 0.0
      %687 = vmatprep.subr.mxu0 0.0
      %688 = vmatpush1.msra.mxu0 0.0
      %689 = vmatprep.subr.mxu0 0.0
      %690 = vmatpush1.msra.mxu0 0.0
      %691 = vmatprep.subr.mxu0 0.0
      %692 = vmatpush1.msra.mxu0 0.0
      %693 = vmatprep.subr.mxu0 0.0
      %694 = vmatpush1.msra.mxu0 0.0
      %695 = vmatprep.subr.mxu0 0.0
      %696 = vmatpush1.msra.mxu0 0.0
      %697 = vmatprep.subr.mxu0 0.0
      %698 = vmatpush1.msra.mxu0 0.0
      %699 = vmatprep.subr.mxu0 0.0
      %700 = vmatpush1.msra.mxu0 0.0
      %701 = vmatprep.subr.mxu0 0.0
      %702 = vmatpush1.msra.mxu0 0.0
      %703 = vmatprep.subr.mxu0 0.0
      %704 = vmatpush1.msra.mxu0 %v666
      %705 = vmatprep.subr.mxu0 0.0
      %706 = vmatpush1.msra.mxu0 %v664
      %707 = vmatprep.subr.mxu0 0.0
      %708 = vmatpush2.msra.mxu0 0.0
      %709 = vmatprep.subr.mxu0 0.0
      %710 = vmatpush2.msra.mxu0 0.0
      %711 = vmatprep.subr.mxu0 0.0
      %712 = vmatpush2.msra.mxu0 0.0
      %713 = vmatprep.subr.mxu0 0.0
      %714 = vmatpush2.msra.mxu0 0.0
      %715 = vmatprep.subr.mxu0 0.0
      %716 = vmatpush2.msra.mxu0 0.0
      %717 = vmatprep.subr.mxu0 0.0
      %718 = vmatpush2.msra.mxu0 0.0
      %719 = vmatprep.subr.mxu0 0.0
      %720 = vmatpush2.msra.mxu0 0.0
      %721 = vmatprep.subr.mxu0 0.0
      %722 = vmatpush2.msra.mxu0 0.0
      %723 = vmatprep.subr.mxu0 0.0
      %724 = vmatpush2.msra.mxu0 0.0
      %725 = vmatprep.subr.mxu0 0.0
      %726 = vmatpush2.msra.mxu0 0.0
      %727 = vmatprep.subr.mxu0 0.0
      %728 = vmatpush2.msra.mxu0 0.0
      %729 = vmatprep.subr.mxu0 0.0
      %730 = vmatpush2.msra.mxu0 0.0
      %731 = vmatprep.subr.mxu0 0.0
      %732 = vmatpush2.msra.mxu0 0.0
      %733 = vmatprep.subr.mxu0 0.0
      %734 = vmatpush2.msra.mxu0 0.0
      %735 = vmatprep.subr.mxu0 0.0
      %736 = vmatpush2.msra.mxu0 0.0
      %737 = vmatprep.subr.mxu0 0.0
      %738 = vmatpush2.msra.mxu0 0.0
      %739 = vmatprep.mubr.f32.mxu0 0.0
      %740 = vmatmul.mubr.f32.gmra.mxu0 %v670
      %v741 = vpop.f32.mrf.mxu0
      %v742 = vadd.f32 0.0, %v741
      %v743 = vpop.f32.mrf.mxu0
      %744 = vmatprep.mubr.f32.mxu0 0.0
      %745 = vmatmul.mubr.f32.gmra.mxu0 %v673
      %v746 = vpop.f32.mrf.mxu0
      %v747 = vadd.f32 0.0, %v746
      %v748 = vpop.f32.mrf.mxu0
      %749 = vdwg.mxu0
      %750 = vrot.lane.b32.xlu0 %v540, 124
      %v751 = vpop.permute.xlu0 %750
      %752 = vrot.lane.b32.xlu0 %v545, 124
      %v753 = vpop.permute.xlu0 %752
      %754 = vrot.lane.b32.xlu0 %v540, 108
      %v755 = vpop.permute.xlu0 %754
      %756 = vrot.lane.b32.xlu0 %v545, 108
      %v757 = vpop.permute.xlu0 %756
      %v758 = vsel %vm554, %v751, 0
      %v760 = vsel %vm554, %v753, 0
      %v762 = vsel %vm554, %v755, 0
      %v764 = vsel %vm554, %v757, 0
      %766 = vmatprep.subr.mxu0 0.0
      %767 = vmatpush1.xpose.msra.mxu0 0.0
      %768 = vmatprep.subr.mxu0 0.0
      %769 = vmatpush1.xpose.msra.mxu0 0.0
      %770 = vmatprep.subr.mxu0 0.0
      %771 = vmatpush1.xpose.msra.mxu0 0.0
      %772 = vmatprep.subr.mxu0 0.0
      %773 = vmatpush1.xpose.msra.mxu0 0.0
      %774 = vmatprep.subr.mxu0 0.0
      %775 = vmatpush1.xpose.msra.mxu0 0.0
      %776 = vmatprep.subr.mxu0 0.0
      %777 = vmatpush1.xpose.msra.mxu0 0.0
      %778 = vmatprep.subr.mxu0 0.0
      %779 = vmatpush1.xpose.msra.mxu0 0.0
      %780 = vmatprep.subr.mxu0 0.0
      %781 = vmatpush1.xpose.msra.mxu0 0.0
      %782 = vmatprep.subr.mxu0 0.0
      %783 = vmatpush1.xpose.msra.mxu0 0.0
      %784 = vmatprep.subr.mxu0 0.0
      %785 = vmatpush1.xpose.msra.mxu0 0.0
      %786 = vmatprep.subr.mxu0 0.0
      %787 = vmatpush1.xpose.msra.mxu0 0.0
      %788 = vmatprep.subr.mxu0 0.0
      %789 = vmatpush1.xpose.msra.mxu0 0.0
      %790 = vmatprep.subr.mxu0 0.0
      %791 = vmatpush1.xpose.msra.mxu0 0.0
      %792 = vmatprep.subr.mxu0 0.0
      %793 = vmatpush1.xpose.msra.mxu0 0.0
      %794 = vmatprep.subr.mxu0 0.0
      %795 = vmatpush1.xpose.msra.mxu0 %v764
      %796 = vmatprep.subr.mxu0 0.0
      %797 = vmatpush1.xpose.msra.mxu0 %v762
      %798 = vmatprep.subr.mxu0 0.0
      %799 = vmatpush2.xpose.msra.mxu0 0.0
      %800 = vmatprep.subr.mxu0 0.0
      %801 = vmatpush2.xpose.msra.mxu0 0.0
      %802 = vmatprep.subr.mxu0 0.0
      %803 = vmatpush2.xpose.msra.mxu0 0.0
      %804 = vmatprep.subr.mxu0 0.0
      %805 = vmatpush2.xpose.msra.mxu0 0.0
      %806 = vmatprep.subr.mxu0 0.0
      %807 = vmatpush2.xpose.msra.mxu0 0.0
      %808 = vmatprep.subr.mxu0 0.0
      %809 = vmatpush2.xpose.msra.mxu0 0.0
      %810 = vmatprep.subr.mxu0 0.0
      %811 = vmatpush2.xpose.msra.mxu0 0.0
      %812 = vmatprep.subr.mxu0 0.0
      %813 = vmatpush2.xpose.msra.mxu0 0.0
      %814 = vmatprep.subr.mxu0 0.0
      %815 = vmatpush2.xpose.msra.mxu0 0.0
      %816 = vmatprep.subr.mxu0 0.0
      %817 = vmatpush2.xpose.msra.mxu0 0.0
      %818 = vmatprep.subr.mxu0 0.0
      %819 = vmatpush2.xpose.msra.mxu0 0.0
      %820 = vmatprep.subr.mxu0 0.0
      %821 = vmatpush2.xpose.msra.mxu0 0.0
      %822 = vmatprep.subr.mxu0 0.0
      %823 = vmatpush2.xpose.msra.mxu0 0.0
      %824 = vmatprep.subr.mxu0 0.0
      %825 = vmatpush2.xpose.msra.mxu0 0.0
      %826 = vmatprep.subr.mxu0 0.0
      %827 = vmatpush2.xpose.msra.mxu0 0.0
      %828 = vmatprep.subr.mxu0 0.0
      %829 = vmatpush2.xpose.msra.mxu0 0.0
      %830 = vmatprep.mubr.f32.mxu0 0.0
      %831 = vmatmul.mubr.f32.gmra.mxu0 %v758
      %v832 = vpop.f32.mrf.mxu0
      %v833 = vadd.f32 0.0, %v832
      %v834 = vpop.f32.mrf.mxu0
      %835 = vmatprep.mubr.f32.mxu0 0.0
      %836 = vmatmul.mubr.f32.gmra.mxu0 %v760
      %v837 = vpop.f32.mrf.mxu0
      %v838 = vadd.f32 0.0, %v837
      %v839 = vpop.f32.mrf.mxu0
      %840 = vdwg.mxu0
      %v841 = vmul.f32 %v833, 0.5
      %v842 = vmul.f32 %v838, 0.5
      %v843 = vsel %vm640, %v841, -inf
      %844 = vmax.xlane.f32.xlu0 %v843
      %v845 = vpop.xlane.xlu0 %844
      %v846 = vsel %vm640, %v842, -inf
      %847 = vmax.xlane.f32.xlu0 %v846
      %v848 = vpop.xlane.xlu0 %847
      %v849 = vsub.f32 %v841, %v845
      %v850 = vsub.f32 %v842, %v848
      %v851 = vmul.f32 %v849, 1.442695
      %v852 = vpow.pop %v851
      %v853 = vmul.f32 %v850, 1.442695
      %v854 = vpow.pop %v853
      %v855 = vsel %vm640, %v852, 0.0
      %856 = vadd.xlane.f32.xlu0 %v855
      %v857 = vpop.xlane.xlu0 %856
      %v858 = vsel %vm640, %v854, 0.0
      %859 = vadd.xlane.f32.xlu0 %v858
      %v860 = vpop.xlane.xlu0 %859
      %v861 = vrcp.pop %v857
      %v862 = vmul.f32 %v852, %v861
      %v863 = vrcp.pop %v860
      %v864 = vmul.f32 %v854, %v863
      %865 = vrot.lane.b32.xlu0 %v540, 92
      %v866 = vpop.permute.xlu0 %865
      %867 = vrot.lane.b32.xlu0 %v545, 92
      %v868 = vpop.permute.xlu0 %867
      %v872 = vsel %vm640, %v862, 0
      %v875 = vsel %vm640, %v864, 0
      %877 = vmatprep.subr.mxu0 0.0
      %878 = vmatpush1.msra.mxu0 0.0
      %879 = vmatprep.subr.mxu0 0.0
      %880 = vmatpush1.msra.mxu0 0.0
      %881 = vmatprep.subr.mxu0 0.0
      %882 = vmatpush1.msra.mxu0 0.0
      %883 = vmatprep.subr.mxu0 0.0
      %884 = vmatpush1.msra.mxu0 0.0
      %885 = vmatprep.subr.mxu0 0.0
      %886 = vmatpush1.msra.mxu0 0.0
      %887 = vmatprep.subr.mxu0 0.0
      %888 = vmatpush1.msra.mxu0 0.0
      %889 = vmatprep.subr.mxu0 0.0
      %890 = vmatpush1.msra.mxu0 0.0
      %891 = vmatprep.subr.mxu0 0.0
      %892 = vmatpush1.msra.mxu0 0.0
      %893 = vmatprep.subr.mxu0 0.0
      %894 = vmatpush1.msra.mxu0 0.0
      %895 = vmatprep.subr.mxu0 0.0
      %896 = vmatpush1.msra.mxu0 0.0
      %897 = vmatprep.subr.mxu0 0.0
      %898 = vmatpush1.msra.mxu0 0.0
      %899 = vmatprep.subr.mxu0 0.0
      %900 = vmatpush1.msra.mxu0 0.0
      %901 = vmatprep.subr.mxu0 0.0
      %902 = vmatpush1.msra.mxu0 0.0
      %903 = vmatprep.subr.mxu0 0.0
      %904 = vmatpush1.msra.mxu0 0.0
      %905 = vmatprep.subr.mxu0 0.0
      %906 = vmatpush1.msra.mxu0 %v868
      %907 = vmatprep.subr.mxu0 0.0
      %908 = vmatpush1.msra.mxu0 %v866
      %909 = vmatprep.subr.mxu0 0.0
      %910 = vmatpush2.msra.mxu0 0.0
      %911 = vmatprep.subr.mxu0 0.0
      %912 = vmatpush2.msra.mxu0 0.0
      %913 = vmatprep.subr.mxu0 0.0
      %914 = vmatpush2.msra.mxu0 0.0
      %915 = vmatprep.subr.mxu0 0.0
      %916 = vmatpush2.msra.mxu0 0.0
      %917 = vmatprep.subr.mxu0 0.0
      %918 = vmatpush2.msra.mxu0 0.0
      %919 = vmatprep.subr.mxu0 0.0
      %920 = vmatpush2.msra.mxu0 0.0
      %921 = vmatprep.subr.mxu0 0.0
      %922 = vmatpush2.msra.mxu0 0.0
      %923 = vmatprep.subr.mxu0 0.0
      %924 = vmatpush2.msra.mxu0 0.0
      %925 = vmatprep.subr.mxu0 0.0
      %926 = vmatpush2.msra.mxu0 0.0
      %927 = vmatprep.subr.mxu0 0.0
      %928 = vmatpush2.msra.mxu0 0.0
      %929 = vmatprep.subr.mxu0 0.0
      %930 = vmatpush2.msra.mxu0 0.0
      %931 = vmatprep.subr.mxu0 0.0
      %932 = vmatpush2.msra.mxu0 0.0
      %933 = vmatprep.subr.mxu0 0.0
      %934 = vmatpush2.msra.mxu0 0.0
      %935 = vmatprep.subr.mxu0 0.0
      %936 = vmatpush2.msra.mxu0 0.0
      %937 = vmatprep.subr.mxu0 0.0
      %938 = vmatpush2.msra.mxu0 0.0
      %939 = vmatprep.subr.mxu0 0.0
      %940 = vmatpush2.msra.mxu0 0.0
      %941 = vmatprep.mubr.f32.mxu0 0.0
      %942 = vmatmul.mubr.f32.gmra.mxu0 %v872
      %v943 = vpop.f32.mrf.mxu0
      %v944 = vadd.f32 0.0, %v943
      %v945 = vpop.f32.mrf.mxu0
      %946 = vmatprep.mubr.f32.mxu0 0.0
      %947 = vmatmul.mubr.f32.gmra.mxu0 %v875
      %v948 = vpop.f32.mrf.mxu0
      %v949 = vadd.f32 0.0, %v948
      %v950 = vpop.f32.mrf.mxu0
      %951 = vdwg.mxu0
      %952 = vrot.lane.b32.xlu0 %v540, 120
      %v953 = vpop.permute.xlu0 %952
      %954 = vrot.lane.b32.xlu0 %v545, 120
      %v955 = vpop.permute.xlu0 %954
      %956 = vrot.lane.b32.xlu0 %v540, 104
      %v957 = vpop.permute.xlu0 %956
      %958 = vrot.lane.b32.xlu0 %v545, 104
      %v959 = vpop.permute.xlu0 %958
      %v960 = vsel %vm554, %v953, 0
      %v962 = vsel %vm554, %v955, 0
      %v964 = vsel %vm554, %v957, 0
      %v966 = vsel %vm554, %v959, 0
      %968 = vmatprep.subr.mxu0 0.0
      %969 = vmatpush1.xpose.msra.mxu0 0.0
      %970 = vmatprep.subr.mxu0 0.0
      %971 = vmatpush1.xpose.msra.mxu0 0.0
      %972 = vmatprep.subr.mxu0 0.0
      %973 = vmatpush1.xpose.msra.mxu0 0.0
      %974 = vmatprep.subr.mxu0 0.0
      %975 = vmatpush1.xpose.msra.mxu0 0.0
      %976 = vmatprep.subr.mxu0 0.0
      %977 = vmatpush1.xpose.msra.mxu0 0.0
      %978 = vmatprep.subr.mxu0 0.0
      %979 = vmatpush1.xpose.msra.mxu0 0.0
      %980 = vmatprep.subr.mxu0 0.0
      %981 = vmatpush1.xpose.msra.mxu0 0.0
      %982 = vmatprep.subr.mxu0 0.0
      %983 = vmatpush1.xpose.msra.mxu0 0.0
      %984 = vmatprep.subr.mxu0 0.0
      %985 = vmatpush1.xpose.msra.mxu0 0.0
      %986 = vmatprep.subr.mxu0 0.0
      %987 = vmatpush1.xpose.msra.mxu0 0.0
      %988 = vmatprep.subr.mxu0 0.0
      %989 = vmatpush1.xpose.msra.mxu0 0.0
      %990 = vmatprep.subr.mxu0 0.0
      %991 = vmatpush1.xpose.msra.mxu0 0.0
      %992 = vmatprep.subr.mxu0 0.0
      %993 = vmatpush1.xpose.msra.mxu0 0.0
      %994 = vmatprep.subr.mxu0 0.0
      %995 = vmatpush1.xpose.msra.mxu0 0.0
      %996 = vmatprep.subr.mxu0 0.0
      %997 = vmatpush1.xpose.msra.mxu0 %v966
      %998 = vmatprep.subr.mxu0 0.0
      %999 = vmatpush1.xpose.msra.mxu0 %v964
      %1000 = vmatprep.subr.mxu0 0.0
      %1001 = vmatpush2.xpose.msra.mxu0 0.0
      %1002 = vmatprep.subr.mxu0 0.0
      %1003 = vmatpush2.xpose.msra.mxu0 0.0
      %1004 = vmatprep.subr.mxu0 0.0
      %1005 = vmatpush2.xpose.msra.mxu0 0.0
      %1006 = vmatprep.subr.mxu0 0.0
      %1007 = vmatpush2.xpose.msra.mxu0 0.0
      %1008 = vmatprep.subr.mxu0 0.0
      %1009 = vmatpush2.xpose.msra.mxu0 0.0
      %1010 = vmatprep.subr.mxu0 0.0
      %1011 = vmatpush2.xpose.msra.mxu0 0.0
      %1012 = vmatprep.subr.mxu0 0.0
      %1013 = vmatpush2.xpose.msra.mxu0 0.0
      %1014 = vmatprep.subr.mxu0 0.0
      %1015 = vmatpush2.xpose.msra.mxu0 0.0
      %1016 = vmatprep.subr.mxu0 0.0
      %1017 = vmatpush2.xpose.msra.mxu0 0.0
      %1018 = vmatprep.subr.mxu0 0.0
      %1019 = vmatpush2.xpose.msra.mxu0 0.0
      %1020 = vmatprep.subr.mxu0 0.0
      %1021 = vmatpush2.xpose.msra.mxu0 0.0
      %1022 = vmatprep.subr.mxu0 0.0
      %1023 = vmatpush2.xpose.msra.mxu0 0.0
      %1024 = vmatprep.subr.mxu0 0.0
      %1025 = vmatpush2.xpose.msra.mxu0 0.0
      %1026 = vmatprep.subr.mxu0 0.0
      %1027 = vmatpush2.xpose.msra.mxu0 0.0
      %1028 = vmatprep.subr.mxu0 0.0
      %1029 = vmatpush2.xpose.msra.mxu0 0.0
      %1030 = vmatprep.subr.mxu0 0.0
      %1031 = vmatpush2.xpose.msra.mxu0 0.0
      %1032 = vmatprep.mubr.f32.mxu0 0.0
      %1033 = vmatmul.mubr.f32.gmra.mxu0 %v960
      %v1034 = vpop.f32.mrf.mxu0
      %v1035 = vadd.f32 0.0, %v1034
      %v1036 = vpop.f32.mrf.mxu0
      %1037 = vmatprep.mubr.f32.mxu0 0.0
      %1038 = vmatmul.mubr.f32.gmra.mxu0 %v962
      %v1039 = vpop.f32.mrf.mxu0
      %v1040 = vadd.f32 0.0, %v1039
      %v1041 = vpop.f32.mrf.mxu0
      %1042 = vdwg.mxu0
      %v1043 = vmul.f32 %v1035, 0.5
      %v1044 = vmul.f32 %v1040, 0.5
      %v1045 = vsel %vm640, %v1043, -inf
      %1046 = vmax.xlane.f32.xlu0 %v1045
      %v1047 = vpop.xlane.xlu0 %1046
      %v1048 = vsel %vm640, %v1044, -inf
      %1049 = vmax.xlane.f32.xlu0 %v1048
      %v1050 = vpop.xlane.xlu0 %1049
      %v1051 = vsub.f32 %v1043, %v1047
      %v1052 = vsub.f32 %v1044, %v1050
      %v1053 = vmul.f32 %v1051, 1.442695
      %v1054 = vpow.pop %v1053
      %v1055 = vmul.f32 %v1052, 1.442695
      %v1056 = vpow.pop %v1055
      %v1057 = vsel %vm640, %v1054, 0.0
      %1058 = vadd.xlane.f32.xlu0 %v1057
      %v1059 = vpop.xlane.xlu0 %1058
      %v1060 = vsel %vm640, %v1056, 0.0
      %1061 = vadd.xlane.f32.xlu0 %v1060
      %v1062 = vpop.xlane.xlu0 %1061
      %v1063 = vrcp.pop %v1059
      %v1064 = vmul.f32 %v1054, %v1063
      %v1065 = vrcp.pop %v1062
      %v1066 = vmul.f32 %v1056, %v1065
      %1067 = vrot.lane.b32.xlu0 %v540, 88
      %v1068 = vpop.permute.xlu0 %1067
      %1069 = vrot.lane.b32.xlu0 %v545, 88
      %v1070 = vpop.permute.xlu0 %1069
      %v1074 = vsel %vm640, %v1064, 0
      %v1077 = vsel %vm640, %v1066, 0
      %1079 = vmatprep.subr.mxu0 0.0
      %1080 = vmatpush1.msra.mxu0 0.0
      %1081 = vmatprep.subr.mxu0 0.0
      %1082 = vmatpush1.msra.mxu0 0.0
      %1083 = vmatprep.subr.mxu0 0.0
      %1084 = vmatpush1.msra.mxu0 0.0
      %1085 = vmatprep.subr.mxu0 0.0
      %1086 = vmatpush1.msra.mxu0 0.0
      %1087 = vmatprep.subr.mxu0 0.0
      %1088 = vmatpush1.msra.mxu0 0.0
      %1089 = vmatprep.subr.mxu0 0.0
      %1090 = vmatpush1.msra.mxu0 0.0
      %1091 = vmatprep.subr.mxu0 0.0
      %1092 = vmatpush1.msra.mxu0 0.0
      %1093 = vmatprep.subr.mxu0 0.0
      %1094 = vmatpush1.msra.mxu0 0.0
      %1095 = vmatprep.subr.mxu0 0.0
      %1096 = vmatpush1.msra.mxu0 0.0
      %1097 = vmatprep.subr.mxu0 0.0
      %1098 = vmatpush1.msra.mxu0 0.0
      %1099 = vmatprep.subr.mxu0 0.0
      %1100 = vmatpush1.msra.mxu0 0.0
      %1101 = vmatprep.subr.mxu0 0.0
      %1102 = vmatpush1.msra.mxu0 0.0
      %1103 = vmatprep.subr.mxu0 0.0
      %1104 = vmatpush1.msra.mxu0 0.0
      %1105 = vmatprep.subr.mxu0 0.0
      %1106 = vmatpush1.msra.mxu0 0.0
      %1107 = vmatprep.subr.mxu0 0.0
      %1108 = vmatpush1.msra.mxu0 %v1070
      %1109 = vmatprep.subr.mxu0 0.0
      %1110 = vmatpush1.msra.mxu0 %v1068
      %1111 = vmatprep.subr.mxu0 0.0
      %1112 = vmatpush2.msra.mxu0 0.0
      %1113 = vmatprep.subr.mxu0 0.0
      %1114 = vmatpush2.msra.mxu0 0.0
      %1115 = vmatprep.subr.mxu0 0.0
      %1116 = vmatpush2.msra.mxu0 0.0
      %1117 = vmatprep.subr.mxu0 0.0
      %1118 = vmatpush2.msra.mxu0 0.0
      %1119 = vmatprep.subr.mxu0 0.0
      %1120 = vmatpush2.msra.mxu0 0.0
      %1121 = vmatprep.subr.mxu0 0.0
      %1122 = vmatpush2.msra.mxu0 0.0
      %1123 = vmatprep.subr.mxu0 0.0
      %1124 = vmatpush2.msra.mxu0 0.0
      %1125 = vmatprep.subr.mxu0 0.0
      %1126 = vmatpush2.msra.mxu0 0.0
      %1127 = vmatprep.subr.mxu0 0.0
      %1128 = vmatpush2.msra.mxu0 0.0
      %1129 = vmatprep.subr.mxu0 0.0
      %1130 = vmatpush2.msra.mxu0 0.0
      %1131 = vmatprep.subr.mxu0 0.0
      %1132 = vmatpush2.msra.mxu0 0.0
      %1133 = vmatprep.subr.mxu0 0.0
      %1134 = vmatpush2.msra.mxu0 0.0
      %1135 = vmatprep.subr.mxu0 0.0
      %1136 = vmatpush2.msra.mxu0 0.0
      %1137 = vmatprep.subr.mxu0 0.0
      %1138 = vmatpush2.msra.mxu0 0.0
      %1139 = vmatprep.subr.mxu0 0.0
      %1140 = vmatpush2.msra.mxu0 0.0
      %1141 = vmatprep.subr.mxu0 0.0
      %1142 = vmatpush2.msra.mxu0 0.0
      %1143 = vmatprep.mubr.f32.mxu0 0.0
      %1144 = vmatmul.mubr.f32.gmra.mxu0 %v1074
      %v1145 = vpop.f32.mrf.mxu0
      %v1146 = vadd.f32 0.0, %v1145
      %v1147 = vpop.f32.mrf.mxu0
      %1148 = vmatprep.mubr.f32.mxu0 0.0
      %1149 = vmatmul.mubr.f32.gmra.mxu0 %v1077
      %v1150 = vpop.f32.mrf.mxu0
      %v1151 = vadd.f32 0.0, %v1150
      %v1152 = vpop.f32.mrf.mxu0
      %1153 = vdwg.mxu0
      %1154 = vrot.lane.b32.xlu0 %v540, 116
      %v1155 = vpop.permute.xlu0 %1154
      %1156 = vrot.lane.b32.xlu0 %v545, 116
      %v1157 = vpop.permute.xlu0 %1156
      %1158 = vrot.lane.b32.xlu0 %v540, 100
      %v1159 = vpop.permute.xlu0 %1158
      %1160 = vrot.lane.b32.xlu0 %v545, 100
      %v1161 = vpop.permute.xlu0 %1160
      %v1162 = vsel %vm554, %v1155, 0
      %v1164 = vsel %vm554, %v1157, 0
      %v1166 = vsel %vm554, %v1159, 0
      %v1168 = vsel %vm554, %v1161, 0
      %1170 = vmatprep.subr.mxu0 0.0
      %1171 = vmatpush1.xpose.msra.mxu0 0.0
      %1172 = vmatprep.subr.mxu0 0.0
      %1173 = vmatpush1.xpose.msra.mxu0 0.0
      %1174 = vmatprep.subr.mxu0 0.0
      %1175 = vmatpush1.xpose.msra.mxu0 0.0
      %1176 = vmatprep.subr.mxu0 0.0
      %1177 = vmatpush1.xpose.msra.mxu0 0.0
      %1178 = vmatprep.subr.mxu0 0.0
      %1179 = vmatpush1.xpose.msra.mxu0 0.0
      %1180 = vmatprep.subr.mxu0 0.0
      %1181 = vmatpush1.xpose.msra.mxu0 0.0
      %1182 = vmatprep.subr.mxu0 0.0
      %1183 = vmatpush1.xpose.msra.mxu0 0.0
      %1184 = vmatprep.subr.mxu0 0.0
      %1185 = vmatpush1.xpose.msra.mxu0 0.0
      %1186 = vmatprep.subr.mxu0 0.0
      %1187 = vmatpush1.xpose.msra.mxu0 0.0
      %1188 = vmatprep.subr.mxu0 0.0
      %1189 = vmatpush1.xpose.msra.mxu0 0.0
      %1190 = vmatprep.subr.mxu0 0.0
      %1191 = vmatpush1.xpose.msra.mxu0 0.0
      %1192 = vmatprep.subr.mxu0 0.0
      %1193 = vmatpush1.xpose.msra.mxu0 0.0
      %1194 = vmatprep.subr.mxu0 0.0
      %1195 = vmatpush1.xpose.msra.mxu0 0.0
      %1196 = vmatprep.subr.mxu0 0.0
      %1197 = vmatpush1.xpose.msra.mxu0 0.0
      %1198 = vmatprep.subr.mxu0 0.0
      %1199 = vmatpush1.xpose.msra.mxu0 %v1168
      %1200 = vmatprep.subr.mxu0 0.0
      %1201 = vmatpush1.xpose.msra.mxu0 %v1166
      %1202 = vmatprep.subr.mxu0 0.0
      %1203 = vmatpush2.xpose.msra.mxu0 0.0
      %1204 = vmatprep.subr.mxu0 0.0
      %1205 = vmatpush2.xpose.msra.mxu0 0.0
      %1206 = vmatprep.subr.mxu0 0.0
      %1207 = vmatpush2.xpose.msra.mxu0 0.0
      %1208 = vmatprep.subr.mxu0 0.0
      %1209 = vmatpush2.xpose.msra.mxu0 0.0
      %1210 = vmatprep.subr.mxu0 0.0
      %1211 = vmatpush2.xpose.msra.mxu0 0.0
      %1212 = vmatprep.subr.mxu0 0.0
      %1213 = vmatpush2.xpose.msra.mxu0 0.0
      %1214 = vmatprep.subr.mxu0 0.0
      %1215 = vmatpush2.xpose.msra.mxu0 0.0
      %1216 = vmatprep.subr.mxu0 0.0
      %1217 = vmatpush2.xpose.msra.mxu0 0.0
      %1218 = vmatprep.subr.mxu0 0.0
      %1219 = vmatpush2.xpose.msra.mxu0 0.0
      %1220 = vmatprep.subr.mxu0 0.0
      %1221 = vmatpush2.xpose.msra.mxu0 0.0
      %1222 = vmatprep.subr.mxu0 0.0
      %1223 = vmatpush2.xpose.msra.mxu0 0.0
      %1224 = vmatprep.subr.mxu0 0.0
      %1225 = vmatpush2.xpose.msra.mxu0 0.0
      %1226 = vmatprep.subr.mxu0 0.0
      %1227 = vmatpush2.xpose.msra.mxu0 0.0
      %1228 = vmatprep.subr.mxu0 0.0
      %1229 = vmatpush2.xpose.msra.mxu0 0.0
      %1230 = vmatprep.subr.mxu0 0.0
      %1231 = vmatpush2.xpose.msra.mxu0 0.0
      %1232 = vmatprep.subr.mxu0 0.0
      %1233 = vmatpush2.xpose.msra.mxu0 0.0
      %1234 = vmatprep.mubr.f32.mxu0 0.0
      %1235 = vmatmul.mubr.f32.gmra.mxu0 %v1162
      %v1236 = vpop.f32.mrf.mxu0
      %v1237 = vadd.f32 0.0, %v1236
      %v1238 = vpop.f32.mrf.mxu0
      %1239 = vmatprep.mubr.f32.mxu0 0.0
      %1240 = vmatmul.mubr.f32.gmra.mxu0 %v1164
      %v1241 = vpop.f32.mrf.mxu0
      %v1242 = vadd.f32 0.0, %v1241
      %v1243 = vpop.f32.mrf.mxu0
      %1244 = vdwg.mxu0
      %v1245 = vmul.f32 %v1237, 0.5
      %v1246 = vmul.f32 %v1242, 0.5
      %v1247 = vsel %vm640, %v1245, -inf
      %1248 = vmax.xlane.f32.xlu0 %v1247
      %v1249 = vpop.xlane.xlu0 %1248
      %v1250 = vsel %vm640, %v1246, -inf
      %1251 = vmax.xlane.f32.xlu0 %v1250
      %v1252 = vpop.xlane.xlu0 %1251
      %v1253 = vsub.f32 %v1245, %v1249
      %v1254 = vsub.f32 %v1246, %v1252
      %v1255 = vmul.f32 %v1253, 1.442695
      %v1256 = vpow.pop %v1255
      %v1257 = vmul.f32 %v1254, 1.442695
      %v1258 = vpow.pop %v1257
      %v1259 = vsel %vm640, %v1256, 0.0
      %1260 = vadd.xlane.f32.xlu0 %v1259
      %v1261 = vpop.xlane.xlu0 %1260
      %v1262 = vsel %vm640, %v1258, 0.0
      %1263 = vadd.xlane.f32.xlu0 %v1262
      %v1264 = vpop.xlane.xlu0 %1263
      %v1265 = vrcp.pop %v1261
      %v1266 = vmul.f32 %v1256, %v1265
      %v1267 = vrcp.pop %v1264
      %v1268 = vmul.f32 %v1258, %v1267
      %1269 = vrot.lane.b32.xlu0 %v540, 84
      %v1270 = vpop.permute.xlu0 %1269
      %1271 = vrot.lane.b32.xlu0 %v545, 84
      %v1272 = vpop.permute.xlu0 %1271
      %v1276 = vsel %vm640, %v1266, 0
      %v1279 = vsel %vm640, %v1268, 0
      %1281 = vmatprep.subr.mxu0 0.0
      %1282 = vmatpush1.msra.mxu0 0.0
      %1283 = vmatprep.subr.mxu0 0.0
      %1284 = vmatpush1.msra.mxu0 0.0
      %1285 = vmatprep.subr.mxu0 0.0
      %1286 = vmatpush1.msra.mxu0 0.0
      %1287 = vmatprep.subr.mxu0 0.0
      %1288 = vmatpush1.msra.mxu0 0.0
      %1289 = vmatprep.subr.mxu0 0.0
      %1290 = vmatpush1.msra.mxu0 0.0
      %1291 = vmatprep.subr.mxu0 0.0
      %1292 = vmatpush1.msra.mxu0 0.0
      %1293 = vmatprep.subr.mxu0 0.0
      %1294 = vmatpush1.msra.mxu0 0.0
      %1295 = vmatprep.subr.mxu0 0.0
      %1296 = vmatpush1.msra.mxu0 0.0
      %1297 = vmatprep.subr.mxu0 0.0
      %1298 = vmatpush1.msra.mxu0 0.0
      %1299 = vmatprep.subr.mxu0 0.0
      %1300 = vmatpush1.msra.mxu0 0.0
      %1301 = vmatprep.subr.mxu0 0.0
      %1302 = vmatpush1.msra.mxu0 0.0
      %1303 = vmatprep.subr.mxu0 0.0
      %1304 = vmatpush1.msra.mxu0 0.0
      %1305 = vmatprep.subr.mxu0 0.0
      %1306 = vmatpush1.msra.mxu0 0.0
      %1307 = vmatprep.subr.mxu0 0.0
      %1308 = vmatpush1.msra.mxu0 0.0
      %1309 = vmatprep.subr.mxu0 0.0
      %1310 = vmatpush1.msra.mxu0 %v1272
      %1311 = vmatprep.subr.mxu0 0.0
      %1312 = vmatpush1.msra.mxu0 %v1270
      %1313 = vmatprep.subr.mxu0 0.0
      %1314 = vmatpush2.msra.mxu0 0.0
      %1315 = vmatprep.subr.mxu0 0.0
      %1316 = vmatpush2.msra.mxu0 0.0
      %1317 = vmatprep.subr.mxu0 0.0
      %1318 = vmatpush2.msra.mxu0 0.0
      %1319 = vmatprep.subr.mxu0 0.0
      %1320 = vmatpush2.msra.mxu0 0.0
      %1321 = vmatprep.subr.mxu0 0.0
      %1322 = vmatpush2.msra.mxu0 0.0
      %1323 = vmatprep.subr.mxu0 0.0
      %1324 = vmatpush2.msra.mxu0 0.0
      %1325 = vmatprep.subr.mxu0 0.0
      %1326 = vmatpush2.msra.mxu0 0.0
      %1327 = vmatprep.subr.mxu0 0.0
      %1328 = vmatpush2.msra.mxu0 0.0
      %1329 = vmatprep.subr.mxu0 0.0
      %1330 = vmatpush2.msra.mxu0 0.0
      %1331 = vmatprep.subr.mxu0 0.0
      %1332 = vmatpush2.msra.mxu0 0.0
      %1333 = vmatprep.subr.mxu0 0.0
      %1334 = vmatpush2.msra.mxu0 0.0
      %1335 = vmatprep.subr.mxu0 0.0
      %1336 = vmatpush2.msra.mxu0 0.0
      %1337 = vmatprep.subr.mxu0 0.0
      %1338 = vmatpush2.msra.mxu0 0.0
      %1339 = vmatprep.subr.mxu0 0.0
      %1340 = vmatpush2.msra.mxu0 0.0
      %1341 = vmatprep.subr.mxu0 0.0
      %1342 = vmatpush2.msra.mxu0 0.0
      %1343 = vmatprep.subr.mxu0 0.0
      %1344 = vmatpush2.msra.mxu0 0.0
      %1345 = vmatprep.mubr.f32.mxu0 0.0
      %1346 = vmatmul.mubr.f32.gmra.mxu0 %v1276
      %v1347 = vpop.f32.mrf.mxu0
      %v1348 = vadd.f32 0.0, %v1347
      %v1349 = vpop.f32.mrf.mxu0
      %1350 = vmatprep.mubr.f32.mxu0 0.0
      %1351 = vmatmul.mubr.f32.gmra.mxu0 %v1279
      %v1352 = vpop.f32.mrf.mxu0
      %v1353 = vadd.f32 0.0, %v1352
      %v1354 = vpop.f32.mrf.mxu0
      %1355 = vdwg.mxu0
      %1358 = vrot.lane.b32.xlu0 %v944, 4
      %v1359 = vpop.permute.xlu0 %1358
      %1360 = vrot.lane.b32.xlu0 %v949, 4
      %v1361 = vpop.permute.xlu0 %1360
      %1366 = vrot.lane.b32.xlu0 %v1146, 8
      %v1367 = vpop.permute.xlu0 %1366
      %1368 = vrot.lane.b32.xlu0 %v1151, 8
      %v1369 = vpop.permute.xlu0 %1368
      %1374 = vrot.lane.b32.xlu0 %v1348, 12
      %v1375 = vpop.permute.xlu0 %1374
      %1376 = vrot.lane.b32.xlu0 %v1353, 12
      %v1377 = vpop.permute.xlu0 %1376
      %v1380 = vsel %vm554, %v742, %v1359
      %v1381 = vsel %vm554, %v747, %v1361
      %vm1382 = vcmask 64512
      %v1383 = vsel %vm1382, %v1380, %v1367
      %v1384 = vsel %vm1382, %v1381, %v1369
      %vm1385 = vcmask 97280
      %v1386 = vsel %vm1385, %v1383, %v1375
      %v1387 = vsel %vm1385, %v1384, %v1377
      %v1388 = vsel %vm640, %v1386, 0.0
      %v1389 = vsel %vm640, %v1387, 0.0
      %v1390 = vld [vmem:[%s4] sm:$0xff]
      %v1391 = vld [vmem:[%s4 + $0x8] sm:$0xff]
      %v1392 = vld [vmem:[%s4 + $0x10] sm:$0xff]
      %v1393 = vld [vmem:[%s4 + $0x18] sm:$0xff]
      %v1394 = vld [vmem:[%s4 + $0x20] sm:$0xff]
      %v1395 = vld [vmem:[%s4 + $0x28] sm:$0xff]
      %v1396 = vld [vmem:[%s4 + $0x30] sm:$0xff]
      %v1397 = vld [vmem:[%s4 + $0x38] sm:$0xff]
      %v1398 = vld [vmem:[%s4 + $0x40] sm:$0xff]
      %v1399 = vld [vmem:[%s4 + $0x48] sm:$0xff]
      %v1400 = vld [vmem:[%s4 + $0x50] sm:$0xff]
      %v1401 = vld [vmem:[%s4 + $0x58] sm:$0xff]
      %v1402 = vld [vmem:[%s4 + $0x60] sm:$0xff]
      %v1403 = vld [vmem:[%s4 + $0x68] sm:$0xff]
      %v1404 = vld [vmem:[%s4 + $0x70] sm:$0xff]
      %v1405 = vld [vmem:[%s4 + $0x78] sm:$0xff]
      %1406 = vmatprep.subr.mxu0 0.0
      %1407 = vmatpush1.msra.mxu0 %v1405
      %1408 = vmatprep.subr.mxu0 0.0
      %1409 = vmatpush1.msra.mxu0 %v1404
      %1410 = vmatprep.subr.mxu0 0.0
      %1411 = vmatpush1.msra.mxu0 %v1403
      %1412 = vmatprep.subr.mxu0 0.0
      %1413 = vmatpush1.msra.mxu0 %v1402
      %1414 = vmatprep.subr.mxu0 0.0
      %1415 = vmatpush1.msra.mxu0 %v1401
      %1416 = vmatprep.subr.mxu0 0.0
      %1417 = vmatpush1.msra.mxu0 %v1400
      %1418 = vmatprep.subr.mxu0 0.0
      %1419 = vmatpush1.msra.mxu0 %v1399
      %1420 = vmatprep.subr.mxu0 0.0
      %1421 = vmatpush1.msra.mxu0 %v1398
      %1422 = vmatprep.subr.mxu0 0.0
      %1423 = vmatpush1.msra.mxu0 %v1397
      %1424 = vmatprep.subr.mxu0 0.0
      %1425 = vmatpush1.msra.mxu0 %v1396
      %1426 = vmatprep.subr.mxu0 0.0
      %1427 = vmatpush1.msra.mxu0 %v1395
      %1428 = vmatprep.subr.mxu0 0.0
      %1429 = vmatpush1.msra.mxu0 %v1394
      %1430 = vmatprep.subr.mxu0 0.0
      %1431 = vmatpush1.msra.mxu0 %v1393
      %1432 = vmatprep.subr.mxu0 0.0
      %1433 = vmatpush1.msra.mxu0 %v1392
      %1434 = vmatprep.subr.mxu0 0.0
      %1435 = vmatpush1.msra.mxu0 %v1391
      %1436 = vmatprep.subr.mxu0 0.0
      %1437 = vmatpush1.msra.mxu0 %v1390
      %1438 = vmatprep.subr.mxu0 0.0
      %1439 = vmatpush2.msra.mxu0 0.0
      %1440 = vmatprep.subr.mxu0 0.0
      %1441 = vmatpush2.msra.mxu0 0.0
      %1442 = vmatprep.subr.mxu0 0.0
      %1443 = vmatpush2.msra.mxu0 0.0
      %1444 = vmatprep.subr.mxu0 0.0
      %1445 = vmatpush2.msra.mxu0 0.0
      %1446 = vmatprep.subr.mxu0 0.0
      %1447 = vmatpush2.msra.mxu0 0.0
      %1448 = vmatprep.subr.mxu0 0.0
      %1449 = vmatpush2.msra.mxu0 0.0
      %1450 = vmatprep.subr.mxu0 0.0
      %1451 = vmatpush2.msra.mxu0 0.0
      %1452 = vmatprep.subr.mxu0 0.0
      %1453 = vmatpush2.msra.mxu0 0.0
      %1454 = vmatprep.subr.mxu0 0.0
      %1455 = vmatpush2.msra.mxu0 0.0
      %1456 = vmatprep.subr.mxu0 0.0
      %1457 = vmatpush2.msra.mxu0 0.0
      %1458 = vmatprep.subr.mxu0 0.0
      %1459 = vmatpush2.msra.mxu0 0.0
      %1460 = vmatprep.subr.mxu0 0.0
      %1461 = vmatpush2.msra.mxu0 0.0
      %1462 = vmatprep.subr.mxu0 0.0
      %1463 = vmatpush2.msra.mxu0 0.0
      %1464 = vmatprep.subr.mxu0 0.0
      %1465 = vmatpush2.msra.mxu0 0.0
      %1466 = vmatprep.subr.mxu0 0.0
      %1467 = vmatpush2.msra.mxu0 0.0
      %1468 = vmatprep.subr.mxu0 0.0
      %1469 = vmatpush2.msra.mxu0 0.0
      %1470 = vmatprep.mubr.f32.mxu0 0.0
      %1471 = vmatmul.mubr.f32.gmra.mxu0 %v1388
      %v1472 = vpop.f32.mrf.mxu0
      %v1473 = vadd.f32 0.0, %v1472
      %v1474 = vpop.f32.mrf.mxu0
      %1475 = vmatprep.mubr.f32.mxu0 0.0
      %1476 = vmatmul.mubr.f32.gmra.mxu0 %v1389
      %v1477 = vpop.f32.mrf.mxu0
      %v1478 = vadd.f32 0.0, %v1477
      %v1479 = vpop.f32.mrf.mxu0
      %1480 = vdwg.mxu0
      %v1481 = vadd.f32 %v225, %v1473
      %v1482 = vadd.f32 %v226, %v1478
      %1483 = vst [vmem:[%s224] sm:$0xff] %v1481
      %1484 = vst [vmem:[%s224 + $0x8] sm:$0xff] %v1482
      %p1485 = scmp.lt.s32.totalorder %s16, 1
      %s1486 = scalar_select %p1485, %s16, 1
      %s1487 = smul.addr %s1486, 2
      %s1488 = smul.addr %s1487, 8
      %s1489 = scalar_lea.vmem %s5, %s1488
      // Predicated region
      $region41: #{discriminator_down_block.12} parent=39 // pred_check
        %p1490 = pneg %p144
      $region42: #{discriminator_down_block.12} parent=39 // pred_check_branch
        %1492 = sbr.rel (%p1490) target = $region44
      $region43: #{discriminator_down_block.12} parent=39 // pred_region
        _
      $region44: #{discriminator_down_block.12} parent=39 // pred_fallthru
        _
    $region40: #{discriminator_down_block.12} parent=5 // pred_fallthru
      _
    %p1493 = scmp.le.s32.totalorder 2, %s11
    // Predicated region
    $region45: #{discriminator_down_block.12} parent=5 // pred_check
      %p1494 = pneg %p1493
    $region46: #{discriminator_down_block.12} parent=5 // pred_check_branch
      %1496 = sbr.rel (%p1494) target = $region48
    $region47: #{discriminator_down_block.12} parent=5 // pred_region
      %s1497 = ssub.s32 %s11, 2
      // Predicated region
      $region49: #{discriminator_down_block.12} parent=47 // pred_check
        %p1498 = pneg %p150
      $region50: #{discriminator_down_block.12} parent=47 // pred_check_branch
        %1500 = sbr.rel (%p1498) target = $region52
      $region51: #{discriminator_down_block.12} parent=47 // pred_region
        %p1501 = scmp.lt.s32.totalorder %s17, 1
        %s1502 = scalar_select %p1501, %s17, 1
        %s1503 = smul.addr %s1502, 2
        %s1504 = smul.addr %s1503, 8
        %s1505 = scalar_lea.vmem %s5, %s1504
      $region52: #{discriminator_down_block.12} parent=47 // pred_fallthru
        _
    $region48: #{discriminator_down_block.12} parent=5 // pred_fallthru
      _
  $region6: #{discriminator_down_block.12} parent=0 // loop_footer
    %s15 = sadd.s32 1, %s11
  $region7: #{discriminator_down_block.12} parent=0 // loop_footer_branch
    %10 = sbr.rel target = $region3
  $region8: #{discriminator_down_block.12} parent=0 // loop_exit
    _

// kernel: discriminator_down_block.10
$region0: #{discriminator_down_block.10}
  #allocation0 [shape = 'u32[]', space=smem, size = 0x4, offset = 0x4, fixed_abs, tag = 'smem constant byte address 0x4 - core index']
  #allocation1 [shape = 'u32[144,128]{1,0:T(1,128)}', space=vmem, size = 0x12000, scoped, tag = 'internal scratch']
  %s0 = inlined_call_operand.vmem [shape: f32[2,6,6,128], index: 0, kind: input, shape index: {}]
  %s1 = inlined_call_operand.vmem [shape: f32[1,128], index: 1, kind: input, shape index: {}]
  %s2 = inlined_call_operand.vmem [shape: f32[1,128], index: 2, kind: input, shape index: {}]
  %s3 = inlined_call_operand.vmem [shape: f32[9,128,128], index: 3, kind: input, shape index: {}]
  %s4 = inlined_call_operand.vmem [shape: f32[1,128], index: 4, kind: input, shape index: {}]
  %s5 = inlined_call_operand.vmem [shape: f32[2,4,4,128], index: 5, kind: output, shape index: {}]
  %s6 = sld [smem:[#allocation0]]
  $region53: #{discriminator_down_block.10} parent=0
    _
  %s8 = ssub.s32 1, %s6
  %s9 = scalar_select 0, %s8, %s6
  loop: start=0, step=1, limit=4
  $region2: #{discriminator_down_block.10} parent=0 // loop_pre_header
    _
  $region3: #{discriminator_down_block.10} parent=0 // loop_header
    %s11 = sphi 0, %s15
    %p12 = scmp.ge.s32.totalorder %s11, 4
    %s18 = sphi 0, %s30
    %s19 = sphi 0, %s26
    %s20 = sphi 0, %s18
    %s21 = sphi 0, %s19
    %s22 = sphi 0, %s20
    %s23 = sphi 0, %s21
    %s33 = sphi 0, %s35
    %s36 = sphi 0, %s33
    %s37 = sphi 0, %s36
    %s53 = sphi 0, %s37
    %s57 = sphi 0, %s57
    %s59 = sphi 0, %s57
    %s60 = sphi 0, %s59
    %s74 = sphi 0, %s60
    %s78 = sphi 0, %s78
    %s80 = sphi 0, %s78
    %s81 = sphi 0, %s80
    %s95 = sphi 0, %s81
    %s101 = sphi 0, %s103
    %s104 = sphi 0, %s101
    %s105 = sphi 0, %s104
    %s121 = sphi 0, %s105
    %s127 = sphi 0, %s129
    %s130 = sphi 0, %s127
    %s131 = sphi 0, %s130
    %s147 = sphi 0, %s131
    %s155 = sphi 0, %s157
    %s158 = sphi 0, %s155
    %s159 = sphi 0, %s158
    %s175 = sphi 0, %s159
  $region4: #{discriminator_down_block.10} parent=0 // loop_header_branch
    %14 = sbr.rel (%p12) target = $region8
  $region5: #{discriminator_down_block.10} parent=0 // loop_body
    %s16 = ssub.s32 %s11, 1
    %s17 = ssub.s32 %s11, 2
    %s24 = sadd.s32 1, %s19
    %p25 = scmp.ge.s32.totalorder %s24, 1
    %s26 = scalar_select %p25, 0, %s24
    %s27 = sadd.s32 1, %s18
    %s28 = scalar_select %p25, %s27, %s18
    %p29 = scmp.ge.s32.totalorder %s28, 2
    %s30 = scalar_select %p29, 0, %s28
    %s31 = ssub.s32 %s18, %s30
    %p32 = scmp.eq.s32.totalorder %s31, 0
    %s34 = sadd.s32 %s33, 1
    %s35 = scalar_select %p32, %s33, %s34
    %p38 = pneg %p32
    %p39 = scmp.eq.s32.totalorder %s11, 1
    %p40 = por %p38, %p39
    %p41 = scmp.ne.s32.totalorder %s33, %s36
    %p42 = scmp.eq.s32.totalorder %s11, 0
    %p43 = por %p41, %p42
    %p44 = scmp.ne.s32.totalorder %s33, %s36
    %p45 = scmp.eq.s32.totalorder %s16, 1
    %p46 = por %p44, %p45
    %p47 = scmp.ne.s32.totalorder %s36, %s37
    %p48 = scmp.eq.s32.totalorder %s16, 0
    %p49 = por %p47, %p48
    %p50 = scmp.ne.s32.totalorder %s36, %s37
    %p51 = scmp.eq.s32.totalorder %s17, 1
    %p52 = por %p50, %p51
    %p54 = scmp.ne.s32.totalorder %s37, %s53
    %p55 = scmp.eq.s32.totalorder %s17, 0
    %p56 = por %p54, %p55
    %s58 = sadd.s32 %s57, 1
    %p61 = scmp.eq.s32.totalorder %s11, 1
    %p62 = scmp.ne.s32.totalorder %s57, %s59
    %p63 = scmp.eq.s32.totalorder %s11, 0
    %p64 = por %p62, %p63
    %p65 = scmp.ne.s32.totalorder %s57, %s59
    %p66 = scmp.eq.s32.totalorder %s16, 1
    %p67 = por %p65, %p66
    %p68 = scmp.ne.s32.totalorder %s59, %s60
    %p69 = scmp.eq.s32.totalorder %s16, 0
    %p70 = por %p68, %p69
    %p71 = scmp.ne.s32.totalorder %s59, %s60
    %p72 = scmp.eq.s32.totalorder %s17, 1
    %p73 = por %p71, %p72
    %p75 = scmp.ne.s32.totalorder %s60, %s74
    %p76 = scmp.eq.s32.totalorder %s17, 0
    %p77 = por %p75, %p76
    %s79 = sadd.s32 %s78, 1
    %p82 = scmp.eq.s32.totalorder %s11, 1
    %p83 = scmp.ne.s32.totalorder %s78, %s80
    %p84 = scmp.eq.s32.totalorder %s11, 0
    %p85 = por %p83, %p84
    %p86 = scmp.ne.s32.totalorder %s78, %s80
    %p87 = scmp.eq.s32.totalorder %s16, 1
    %p88 = por %p86, %p87
    %p89 = scmp.ne.s32.totalorder %s80, %s81
    %p90 = scmp.eq.s32.totalorder %s16, 0
    %p91 = por %p89, %p90
    %p92 = scmp.ne.s32.totalorder %s80, %s81
    %p93 = scmp.eq.s32.totalorder %s17, 1
    %p94 = por %p92, %p93
    %p96 = scmp.ne.s32.totalorder %s81, %s95
    %p97 = scmp.eq.s32.totalorder %s17, 0
    %p98 = por %p96, %p97
    %s99 = ssub.s32 %s19, %s26
    %p100 = scmp.eq.s32.totalorder %s99, 0
    %s102 = sadd.s32 %s101, 1
    %s103 = scalar_select %p100, %s101, %s102
    %p106 = pneg %p100
    %p107 = scmp.eq.s32.totalorder %s11, 1
    %p108 = por %p106, %p107
    %p109 = scmp.ne.s32.totalorder %s101, %s104
    %p110 = scmp.eq.s32.totalorder %s11, 0
    %p111 = por %p109, %p110
    %p112 = scmp.ne.s32.totalorder %s101, %s104
    %p113 = scmp.eq.s32.totalorder %s16, 1
    %p114 = por %p112, %p113
    %p115 = scmp.ne.s32.totalorder %s104, %s105
    %p116 = scmp.eq.s32.totalorder %s16, 0
    %p117 = por %p115, %p116
    %p118 = scmp.ne.s32.totalorder %s104, %s105
    %p119 = scmp.eq.s32.totalorder %s17, 1
    %p120 = por %p118, %p119
    %p122 = scmp.ne.s32.totalorder %s105, %s121
    %p123 = scmp.eq.s32.totalorder %s17, 0
    %p124 = por %p122, %p123
    %s125 = ssub.s32 %s19, %s26
    %p126 = scmp.eq.s32.totalorder %s125, 0
    %s128 = sadd.s32 %s127, 1
    %s129 = scalar_select %p126, %s127, %s128
    %p132 = pneg %p126
    %p133 = scmp.eq.s32.totalorder %s11, 1
    %p134 = por %p132, %p133
    %p135 = scmp.ne.s32.totalorder %s127, %s130
    %p136 = scmp.eq.s32.totalorder %s11, 0
    %p137 = por %p135, %p136
    %p138 = scmp.ne.s32.totalorder %s127, %s130
    %p139 = scmp.eq.s32.totalorder %s16, 1
    %p140 = por %p138, %p139
    %p141 = scmp.ne.s32.totalorder %s130, %s131
    %p142 = scmp.eq.s32.totalorder %s16, 0
    %p143 = por %p141, %p142
    %p144 = scmp.ne.s32.totalorder %s130, %s131
    %p145 = scmp.eq.s32.totalorder %s17, 1
    %p146 = por %p144, %p145
    %p148 = scmp.ne.s32.totalorder %s131, %s147
    %p149 = scmp.eq.s32.totalorder %s17, 0
    %p150 = por %p148, %p149
    %s151 = ssub.s32 %s18, %s30
    %s152 = ssub.s32 %s19, %s26
    %s153 = sor.u32 %s151, %s152
    %p154 = scmp.eq.s32.totalorder %s153, 0
    %s156 = sadd.s32 %s155, 1
    %s157 = scalar_select %p154, %s155, %s156
    %p160 = pneg %p154
    %p161 = scmp.eq.s32.totalorder %s11, 1
    %p162 = por %p160, %p161
    %p163 = scmp.ne.s32.totalorder %s155, %s158
    %p164 = scmp.eq.s32.totalorder %s11, 0
    %p165 = por %p163, %p164
    %p166 = scmp.ne.s32.totalorder %s155, %s158
    %p167 = scmp.eq.s32.totalorder %s16, 1
    %p168 = por %p166, %p167
    %p169 = scmp.ne.s32.totalorder %s158, %s159
    %p170 = scmp.eq.s32.totalorder %s16, 0
    %p171 = por %p169, %p170
    %p172 = scmp.ne.s32.totalorder %s158, %s159
    %p173 = scmp.eq.s32.totalorder %s17, 1
    %p174 = por %p172, %p173
    %p176 = scmp.ne.s32.totalorder %s159, %s175
    %p177 = scmp.eq.s32.totalorder %s17, 0
    %p178 = por %p176, %p177
    %p179 = scmp.le.s32.totalorder 1, %s11
    %p180 = scmp.lt.s32.totalorder %s11, 3
    %p181 = pnand %p179, %p180
    %p182 = pneg %p181
    // Predicated region
    $region9: #{discriminator_down_block.10} parent=5 // pred_check
      _
    $region10: #{discriminator_down_block.10} parent=5 // pred_check_branch
      %184 = sbr.rel (%p181) target = $region12
    $region11: #{discriminator_down_block.10} parent=5 // pred_region
      %s185 = ssub.s32 %s11, 1
      // Predicated region
      $region13: #{discriminator_down_block.10} parent=11 // pred_check
        %p186 = pneg %p70
      $region14: #{discriminator_down_block.10} parent=11 // pred_check_branch
        %188 = sbr.rel (%p186) target = $region16
      $region15: #{discriminator_down_block.10} parent=11 // pred_region
        _
      $region16: #{discriminator_down_block.10} parent=11 // pred_fallthru
        _
      // Predicated region
      $region17: #{discriminator_down_block.10} parent=11 // pred_check
        %p189 = pneg %p91
      $region18: #{discriminator_down_block.10} parent=11 // pred_check_branch
        %191 = sbr.rel (%p189) target = $region20
      $region19: #{discriminator_down_block.10} parent=11 // pred_region
        _
      $region20: #{discriminator_down_block.10} parent=11 // pred_fallthru
        _
      // Predicated region
      $region21: #{discriminator_down_block.10} parent=11 // pred_check
        %p192 = pneg %p117
      $region22: #{discriminator_down_block.10} parent=11 // pred_check_branch
        %194 = sbr.rel (%p192) target = $region24
      $region23: #{discriminator_down_block.10} parent=11 // pred_region
        %p195 = scmp.lt.s32.totalorder %s21, 0
        %s196 = scalar_select %p195, %s21, 0
        %s197 = smul.addr %s196, 8
        %s198 = scalar_lea.vmem %s3, %s197
      $region24: #{discriminator_down_block.10} parent=11 // pred_fallthru
        _
      // Predicated region
      $region25: #{discriminator_down_block.10} parent=11 // pred_check
        %p199 = pneg %p143
      $region26: #{discriminator_down_block.10} parent=11 // pred_check_branch
        %201 = sbr.rel (%p199) target = $region28
      $region27: #{discriminator_down_block.10} parent=11 // pred_region
        %p202 = scmp.lt.s32.totalorder %s21, 0
        %s203 = scalar_select %p202, %s21, 0
        %s204 = scalar_lea.vmem %s4, %s203
      $region28: #{discriminator_down_block.10} parent=11 // pred_fallthru
        _
    $region12: #{discriminator_down_block.10} parent=5 // pred_fallthru
      _
    %p205 = scmp.lt.s32.totalorder %s11, 2
    // Predicated region
    $region29: #{discriminator_down_block.10} parent=5 // pred_check
      %p206 = pneg %p205
    $region30: #{discriminator_down_block.10} parent=5 // pred_check_branch
      %208 = sbr.rel (%p206) target = $region32
    $region31: #{discriminator_down_block.10} parent=5 // pred_region
      // Predicated region
      $region33: #{discriminator_down_block.10} parent=31 // pred_check
        %p209 = pneg %p43
      $region34: #{discriminator_down_block.10} parent=31 // pred_check_branch
        %211 = sbr.rel (%p209) target = $region36
      $region35: #{discriminator_down_block.10} parent=31 // pred_region
        %p212 = scmp.lt.s32.totalorder %s18, 1
        %s213 = scalar_select %p212, %s18, 1
        %s214 = smul.addr %s213, 6
        %s215 = smul.addr %s214, 8
        %s216 = scalar_lea.vmem %s0, %s215
      $region36: #{discriminator_down_block.10} parent=31 // pred_fallthru
        _
    $region32: #{discriminator_down_block.10} parent=5 // pred_fallthru
      _
    %p217 = scmp.le.s32.totalorder 1, %s11
    %p218 = scmp.lt.s32.totalorder %s11, 3
    %p219 = pnand %p217, %p218
    %p220 = pneg %p219
    // Predicated region
    $region37: #{discriminator_down_block.10} parent=5 // pred_check
      _
    $region38: #{discriminator_down_block.10} parent=5 // pred_check_branch
      %222 = sbr.rel (%p219) target = $region40
    $region39: #{discriminator_down_block.10} parent=5 // pred_region
      %s223 = ssub.s32 %s11, 1
      %p224 = scmp.lt.s32.totalorder %s20, 1
      %s225 = scalar_select %p224, %s20, 1
      %s226 = smul.addr %s225, 6
      %s227 = smul.addr %s226, 8
      %s228 = scalar_lea.vmem %s0, %s227
      %p229 = pneg %p49
      %p230 = pneg %p46
      %p231 = pneg %p70
      %p232 = pneg %p67
      %p233 = pneg %p91
      %p234 = pneg %p88
      %p235 = scmp.lt.s32.totalorder %s21, 0
      %s236 = scalar_select %p235, %s21, 0
      %s237 = smul.addr %s236, 8
      %s238 = scalar_lea.vmem %s3, %s237
      %p239 = pneg %p117
      %p240 = pneg %p114
      %p241 = scmp.lt.s32.totalorder %s21, 0
      %s242 = scalar_select %p241, %s21, 0
      %s243 = scalar_lea.vmem %s4, %s242
      %p244 = pneg %p143
      %p245 = pneg %p140
      %p246 = pneg %p171
      %p247 = pneg %p168
      %p248 = scmp.lt.s32.totalorder %s20, 1
      %s249 = scalar_select %p248, %s20, 1
      %p250 = scmp.lt.s32.totalorder %s21, 0
      %s251 = scalar_select %p250, %s21, 0
      %s252 = smul.addr %s249, 4
      %s253 = sadd.s32 %s251, %s252
      %s254 = smul.addr %s253, 4
      %s255 = scalar_lea.vmem %s5, %s254
      %p256 = scmp.lt.s32.totalorder %s20, 1
      %s257 = scalar_select %p256, %s20, 1
      %s258 = smul.addr %s257, 6
      %s259 = smul.addr %s258, 8
      %s260 = scalar_lea.vmem %s0, %s259
      %p261 = scmp.lt.s32.totalorder %s21, 0
      %s262 = scalar_select %p261, %s21, 0
      %s263 = smul.addr %s262, 8
      %s264 = scalar_lea.vmem %s3, %s263
      %p265 = scmp.lt.s32.totalorder %s21, 0
      %s266 = scalar_select %p265, %s21, 0
      %s267 = scalar_lea.vmem %s4, %s266
      %p268 = scmp.lt.s32.totalorder %s20, 1
      %s269 = scalar_select %p268, %s20, 1
      %p270 = scmp.lt.s32.totalorder %s21, 0
      %s271 = scalar_select %p270, %s21, 0
      %s272 = smul.addr %s269, 4
      %s273 = sadd.s32 %s271, %s272
      %s274 = smul.addr %s273, 4
      %s275 = scalar_lea.vmem %s5, %s274
      %v276 = vld [vmem:[%s260] sm:$0x3f]
      %v277 = vld [vmem:[%s260 + $0x8] sm:$0x3f]
      %v278 = vld [vmem:[%s260 + $0x10] sm:$0x3f]
      %v279 = vld [vmem:[%s260 + $0x18] sm:$0x3f]
      %v280 = vld [vmem:[%s260 + $0x20] sm:$0x3f]
      %v281 = vld [vmem:[%s260 + $0x28] sm:$0x3f]
      %vm282 = vcmask 1045504
      %v283 = vsel %vm282, %v276, 0.0
      %v284 = vsel %vm282, %v277, 0.0
      %v285 = vadd.f32 %v283, %v284
      %v286 = vsel %vm282, %v278, 0.0
      %v287 = vadd.f32 %v285, %v286
      %v288 = vsel %vm282, %v279, 0.0
      %v289 = vadd.f32 %v287, %v288
      %v290 = vsel %vm282, %v280, 0.0
      %v291 = vadd.f32 %v289, %v290
      %v292 = vsel %vm282, %v281, 0.0
      %v293 = vadd.f32 %v291, %v292
      %v294 = vrot.slane %v293, 4
      %v295 = vadd.f32 %v293, %v294
      %v296 = vrot.slane %v295, 2
      %v297 = vadd.f32 %v295, %v296
      %v298 = vrot.slane %v297, 1
      %v299 = vadd.f32 %v297, %v298
      %v300 = vmul.f32 %v276, %v276
      %v301 = vmul.f32 %v277, %v277
      %v302 = vmul.f32 %v278, %v278
      %v303 = vmul.f32 %v279, %v279
      %v304 = vmul.f32 %v280, %v280
      %v305 = vmul.f32 %v281, %v281
      %v306 = vsel %vm282, %v300, 0.0
      %v307 = vsel %vm282, %v301, 0.0
      %v308 = vadd.f32 %v306, %v307
      %v309 = vsel %vm282, %v302, 0.0
      %v310 = vadd.f32 %v308, %v309
      %v311 = vsel %vm282, %v303, 0.0
      %v312 = vadd.f32 %v310, %v311
      %v313 = vsel %vm282, %v304, 0.0
      %v314 = vadd.f32 %v312, %v313
      %v315 = vsel %vm282, %v305, 0.0
      %v316 = vadd.f32 %v314, %v315
      %v317 = vrot.slane %v316, 4
      %v318 = vadd.f32 %v316, %v317
      %v319 = vrot.slane %v318, 2
      %v320 = vadd.f32 %v318, %v319
      %v321 = vrot.slane %v320, 1
      %v322 = vadd.f32 %v320, %v321
      %v323 = vlaneseq
      %v324 = vand.u32 %v323, 127
      %vm325 = vcmp.ge.s32.totalorder %v324, 0
      %vm326 = vcmp.lt.s32.totalorder %v324, 4
      %vm327 = vmand %vm325, %vm326
      %v328 = vsel %vm327, %v299, 0.0
      %vm329 = vcmask 1040384
      %v330 = vsel %vm329, %v328, 0.0
      %331 = vadd.xlane.f32.xlu0 %v330
      %v332 = vpop.xlane.xlu0 %331
      %v333 = vrot.slane %v332, 4
      %v334 = vadd.f32 %v332, %v333
      %v335 = vrot.slane %v334, 2
      %v336 = vadd.f32 %v334, %v335
      %v337 = vrot.slane %v336, 1
      %v338 = vadd.f32 %v336, %v337
      %s339 = vtos %v338
      %v340 = vstv %s339
      %v341 = vmul.f32 %v340, 0.015625
      %v342 = vsel %vm327, %v322, 0.0
      %v343 = vsel %vm329, %v342, 0.0
      %344 = vadd.xlane.f32.xlu0 %v343
      %v345 = vpop.xlane.xlu0 %344
      %v346 = vrot.slane %v345, 4
      %v347 = vadd.f32 %v345, %v346
      %v348 = vrot.slane %v347, 2
      %v349 = vadd.f32 %v347, %v348
      %v350 = vrot.slane %v349, 1
      %v351 = vadd.f32 %v349, %v350
      %s352 = vtos %v351
      %v353 = vstv %s352
      %v354 = vmul.f32 %v353, 0.015625
      %v355 = vmul.f32 %v341, %v341
      %v356 = vsub.f32 %v354, %v355
      %v357 = vadd.f32 %v356, 1e-05
      %v358 = vrsqrt.pop %v357
      %v359 = vsel %vm327, %v341, 0.0
      %v360 = vsel %vm327, %v358, 0.0
      %vm361 = vcmp.ge.s32.totalorder %v324, 4
      %vm362 = vcmp.lt.s32.totalorder %v324, 8
      %vm363 = vmand %vm361, %vm362
      %v364 = vsel %vm363, %v299, 0.0
      %v365 = vsel %vm329, %v364, 0.0
      %366 = vadd.xlane.f32.xlu0 %v365
      %v367 = vpop.xlane.xlu0 %366
      %v368 = vrot.slane %v367, 4
      %v369 = vadd.f32 %v367, %v368
      %v370 = vrot.slane %v369, 2
      %v371 = vadd.f32 %v369, %v370
      %v372 = vrot.slane %v371, 1
      %v373 = vadd.f32 %v371, %v372
      %s374 = vtos %v373
      %v375 = vstv %s374
      %v376 = vmul.f32 %v375, 0.015625
      %v377 = vsel %vm363, %v322, 0.0
      %v378 = vsel %vm329, %v377, 0.0
      %379 = vadd.xlane.f32.xlu0 %v378
      %v380 = vpop.xlane.xlu0 %379
      %v381 = vrot.slane %v380, 4
      %v382 = vadd.f32 %v380, %v381
      %v383 = vrot.slane %v382, 2
      %v384 = vadd.f32 %v382, %v383
      %v385 = vrot.slane %v384, 1
      %v386 = vadd.f32 %v384, %v385
      %s387 = vtos %v386
      %v388 = vstv %s387
      %v389 = vmul.f32 %v388, 0.015625
      %v390 = vmul.f32 %v376, %v376
      %v391 = vsub.f32 %v389, %v390
      %v392 = vadd.f32 %v391, 1e-05
      %v393 = vrsqrt.pop %v392
      %v394 = vsel %vm363, %v376, %v359
      %v395 = vsel %vm363, %v393, %v360
      %vm396 = vcmp.ge.s32.totalorder %v324, 8
      %vm397 = vcmp.lt.s32.totalorder %v324, 12
      %vm398 = vmand %vm396, %vm397
      %v399 = vsel %vm398, %v299, 0.0
      %v400 = vsel %vm329, %v399, 0.0
      %401 = vadd.xlane.f32.xlu0 %v400
      %v402 = vpop.xlane.xlu0 %401
      %v403 = vrot.slane %v402, 4
      %v404 = vadd.f32 %v402, %v403
      %v405 = vrot.slane %v404, 2
      %v406 = vadd.f32 %v404, %v405
      %v407 = vrot.slane %v406, 1
      %v408 = vadd.f32 %v406, %v407
      %s409 = vtos %v408
      %v410 = vstv %s409
      %v411 = vmul.f32 %v410, 0.015625
      %v412 = vsel %vm398, %v322, 0.0
      %v413 = vsel %vm329, %v412, 0.0
      %414 = vadd.xlane.f32.xlu0 %v413
      %v415 = vpop.xlane.xlu0 %414
      %v416 = vrot.slane %v415, 4
      %v417 = vadd.f32 %v415, %v416
      %v418 = vrot.slane %v417, 2
      %v419 = vadd.f32 %v417, %v418
      %v420 = vrot.slane %v419, 1
      %v421 = vadd.f32 %v419, %v420
      %s422 = vtos %v421
      %v423 = vstv %s422
      %v424 = vmul.f32 %v423, 0.015625
      %v425 = vmul.f32 %v411, %v411
      %v426 = vsub.f32 %v424, %v425
      %v427 = vadd.f32 %v426, 1e-05
      %v428 = vrsqrt.pop %v427
      %v429 = vsel %vm398, %v411, %v394
      %v430 = vsel %vm398, %v428, %v395
      %vm431 = vcmp.ge.s32.totalorder %v324, 12
      %vm432 = vcmp.lt.s32.totalorder %v324, 16
      %vm433 = vmand %vm431, %vm432
      %v434 = vsel %vm433, %v299, 0.0
      %v435 = vsel %vm329, %v434, 0.0
      %436 = vadd.xlane.f32.xlu0 %v435
      %v437 = vpop.xlane.xlu0 %436
      %v438 = vrot.slane %v437, 4
      %v439 = vadd.f32 %v437, %v438
      %v440 = vrot.slane %v439, 2
      %v441 = vadd.f32 %v439, %v440
      %v442 = vrot.slane %v441, 1
      %v443 = vadd.f32 %v441, %v442
      %s444 = vtos %v443
      %v445 = vstv %s444
      %v446 = vmul.f32 %v445, 0.015625
      %v447 = vsel %vm433, %v322, 0.0
      %v448 = vsel %vm329, %v447, 0.0
      %449 = vadd.xlane.f32.xlu0 %v448
      %v450 = vpop.xlane.xlu0 %449
      %v451 = vrot.slane %v450, 4
      %v452 = vadd.f32 %v450, %v451
      %v453 = vrot.slane %v452, 2
      %v454 = vadd.f32 %v452, %v453
      %v455 = vrot.slane %v454, 1
      %v456 = vadd.f32 %v454, %v455
      %s457 = vtos %v456
      %v458 = vstv %s457
      %v459 = vmul.f32 %v458, 0.015625
      %v460 = vmul.f32 %v446, %v446
      %v461 = vsub.f32 %v459, %v460
      %v462 = vadd.f32 %v461, 1e-05
      %v463 = vrsqrt.pop %v462
      %v464 = vsel %vm433, %v446, %v429
      %v465 = vsel %vm433, %v463, %v430
      %v466 = vld [vmem:[%s1] sm:$0x1]
      %v467 = vmul.f32 %v466, %v465
      %v468 = vld [vmem:[%s2] sm:$0x1]
      %v469 = vmul.f32 %v464, %v467
      %v470 = vsub.f32 %v468, %v469
      %v472 = vlaneseq
      %v473 = vshrl.u32 %v472, 7
      %v474 = vsub.s32 0, %v473
      %v475 = vrot.slane %v467, %v474
      %v477 = vmul.f32 %v276, %v475
      %v478 = vmul.f32 %v277, %v475
      %v479 = vmul.f32 %v278, %v475
      %v480 = vmul.f32 %v279, %v475
      %v481 = vmul.f32 %v280, %v475
      %v482 = vmul.f32 %v281, %v475
      %v484 = vlaneseq
      %v485 = vshrl.u32 %v484, 7
      %v486 = vsub.s32 0, %v485
      %v487 = vrot.slane %v470, %v486
      %v489 = vadd.f32 %v477, %v487
      %v490 = vadd.f32 %v478, %v487
      %v491 = vadd.f32 %v479, %v487
      %v492 = vadd.f32 %v480, %v487
      %v493 = vadd.f32 %v481, %v487
      %v494 = vadd.f32 %v482, %v487
      %v495 = vxor.u32 %v489, 2147483648
      %v496 = vxor.u32 %v490, 2147483648
      %v497 = vxor.u32 %v491, 2147483648
      %v498 = vxor.u32 %v492, 2147483648
      %v499 = vxor.u32 %v493, 2147483648
      %v500 = vxor.u32 %v494, 2147483648
      %v501 = vmul.f32 %v495, 1.442695
      %v502 = vpow.pop %v501
      %v503 = vmul.f32 %v496, 1.442695
      %v504 = vpow.pop %v503
      %v505 = vmul.f32 %v497, 1.442695
      %v506 = vpow.pop %v505
      %v507 = vmul.f32 %v498, 1.442695
      %v508 = vpow.pop %v507
      %v509 = vmul.f32 %v499, 1.442695
      %v510 = vpow.pop %v509
      %v511 = vmul.f32 %v500, 1.442695
      %v512 = vpow.pop %v511
      %v513 = vadd.f32 %v502, 1.0
      %v514 = vadd.f32 %v504, 1.0
      %v515 = vadd.f32 %v506, 1.0
      %v516 = vadd.f32 %v508, 1.0
      %v517 = vadd.f32 %v510, 1.0
      %v518 = vadd.f32 %v512, 1.0
      %v519 = vrcp.pop %v513
      %v520 = vmul.f32 1.0, %v519
      %v521 = vrcp.pop %v514
      %v522 = vmul.f32 1.0, %v521
      %v523 = vrcp.pop %v515
      %v524 = vmul.f32 1.0, %v523
      %v525 = vrcp.pop %v516
      %v526 = vmul.f32 1.0, %v525
      %v527 = vrcp.pop %v517
      %v528 = vmul.f32 1.0, %v527
      %v529 = vrcp.pop %v518
      %v530 = vmul.f32 1.0, %v529
      %v531 = vmul.f32 %v489, %v520
      %v532 = vmul.f32 %v490, %v522
      %v533 = vmul.f32 %v491, %v524
      %v534 = vmul.f32 %v492, %v526
      %v535 = vmul.f32 %v493, %v528
      %v536 = vmul.f32 %v494, %v530
      %v537 = vlaneseq
      %v538 = vshrl.u32 %v537, 7
      %vm539 = vcmp.ge.s32.totalorder %v538, 1
      %vm540 = vmand 0, %vm539
      %vm541 = vmand 1, %vm539
      %vm542 = vcmp.lt.s32.totalorder %v538, 5
      %vm543 = vmand %vm540, %vm542
      %vm544 = vmand %vm541, %vm542
      %v545 = vsel %vm543, 1, 0
      %v546 = vsel %vm544, 1, 0
      %vm547 = vcmp.eq.s32.totalorder %v545, 1
      %vm548 = vcmp.eq.s32.totalorder %v546, 1
      %v549 = vsel %vm547, %v531, 0.0
      %v550 = vsel %vm548, %v532, 0.0
      %v551 = vsel %vm548, %v533, 0.0
      %v552 = vsel %vm548, %v534, 0.0
      %v553 = vsel %vm548, %v535, 0.0
      %v554 = vsel %vm547, %v536, 0.0
      %v555 = vld [vmem:[%s264] sm:$0xff]
      %v556 = vld [vmem:[%s264 + $0x8] sm:$0xff]
      %v557 = vld [vmem:[%s264 + $0x10] sm:$0xff]
      %v558 = vld [vmem:[%s264 + $0x18] sm:$0xff]
      %v559 = vld [vmem:[%s264 + $0x20] sm:$0xff]
      %v560 = vld [vmem:[%s264 + $0x28] sm:$0xff]
      %v561 = vld [vmem:[%s264 + $0x30] sm:$0xff]
      %v562 = vld [vmem:[%s264 + $0x38] sm:$0xff]
      %v563 = vld [vmem:[%s264 + $0x40] sm:$0xff]
      %v564 = vld [vmem:[%s264 + $0x48] sm:$0xff]
      %v565 = vld [vmem:[%s264 + $0x50] sm:$0xff]
      %v566 = vld [vmem:[%s264 + $0x58] sm:$0xff]
      %v567 = vld [vmem:[%s264 + $0x60] sm:$0xff]
      %v568 = vld [vmem:[%s264 + $0x68] sm:$0xff]
      %v569 = vld [vmem:[%s264 + $0x70] sm:$0xff]
      %v570 = vld [vmem:[%s264 + $0x78] sm:$0xff]
      %v575 = vcombine.high %v549, %v549
      %v576 = vcombine.high %v550, %v550
      %v577 = vcombine.high %v551, %v551
      %v578 = vcombine.high %v552, %v552
      %vm579 = vcmask 1042432
      %vm580 = vcmask 1046532
      %vm581 = vmor %vm579, %vm580
      %v582 = vrot.slane %v549, 5
      %v583 = vrot.slane %v582, 4
      %v584 = vrot.slane %v575, 5
      %v585 = vsel %vm581, %v583, %v584
      %v586 = vrot.slane %v550, 5
      %v587 = vrot.slane %v586, 4
      %v588 = vrot.slane %v576, 5
      %v589 = vsel %vm581, %v587, %v588
      %v590 = vrot.slane %v551, 5
      %v591 = vrot.slane %v590, 4
      %v592 = vrot.slane %v577, 5
      %v593 = vsel %vm581, %v591, %v592
      %v594 = vrot.slane %v552, 5
      %v595 = vrot.slane %v594, 4
      %v596 = vrot.slane %v578, 5
      %v597 = vsel %vm581, %v595, %v596
      %s598 = scalar_lea.vmem %s264, 128
      %v599 = vld [vmem:[%s598] sm:$0xff]
      %v600 = vld [vmem:[%s598 + $0x8] sm:$0xff]
      %v601 = vld [vmem:[%s598 + $0x10] sm:$0xff]
      %v602 = vld [vmem:[%s598 + $0x18] sm:$0xff]
      %v603 = vld [vmem:[%s598 + $0x20] sm:$0xff]
      %v604 = vld [vmem:[%s598 + $0x28] sm:$0xff]
      %v605 = vld [vmem:[%s598 + $0x30] sm:$0xff]
      %v606 = vld [vmem:[%s598 + $0x38] sm:$0xff]
      %v607 = vld [vmem:[%s598 + $0x40] sm:$0xff]
      %v608 = vld [vmem:[%s598 + $0x48] sm:$0xff]
      %v609 = vld [vmem:[%s598 + $0x50] sm:$0xff]
      %v610 = vld [vmem:[%s598 + $0x58] sm:$0xff]
      %v611 = vld [vmem:[%s598 + $0x60] sm:$0xff]
      %v612 = vld [vmem:[%s598 + $0x68] sm:$0xff]
      %v613 = vld [vmem:[%s598 + $0x70] sm:$0xff]
      %v614 = vld [vmem:[%s598 + $0x78] sm:$0xff]
      %v615 = vcombine.low %v585, %v589
      %v616 = vcombine.low %v593, %v597
      %619 = vmatprep.subr.mxu0 0.0
      %620 = vmatpush1.msra.mxu0 %v614
      %621 = vmatprep.subr.mxu0 0.0
      %622 = vmatpush1.msra.mxu0 %v613
      %623 = vmatprep.subr.mxu0 0.0
      %624 = vmatpush1.msra.mxu0 %v612
      %625 = vmatprep.subr.mxu0 0.0
      %626 = vmatpush1.msra.mxu0 %v611
      %627 = vmatprep.subr.mxu0 0.0
      %628 = vmatpush1.msra.mxu0 %v610
      %629 = vmatprep.subr.mxu0 0.0
      %630 = vmatpush1.msra.mxu0 %v609
      %631 = vmatprep.subr.mxu0 0.0
      %632 = vmatpush1.msra.mxu0 %v608
      %633 = vmatprep.subr.mxu0 0.0
      %634 = vmatpush1.msra.mxu0 %v607
      %635 = vmatprep.subr.mxu0 0.0
      %636 = vmatpush1.msra.mxu0 %v606
      %637 = vmatprep.subr.mxu0 0.0
      %638 = vmatpush1.msra.mxu0 %v605
      %639 = vmatprep.subr.mxu0 0.0
      %640 = vmatpush1.msra.mxu0 %v604
      %641 = vmatprep.subr.mxu0 0.0
      %642 = vmatpush1.msra.mxu0 %v603
      %643 = vmatprep.subr.mxu0 0.0
      %644 = vmatpush1.msra.mxu0 %v602
      %645 = vmatprep.subr.mxu0 0.0
      %646 = vmatpush1.msra.mxu0 %v601
      %647 = vmatprep.subr.mxu0 0.0
      %648 = vmatpush1.msra.mxu0 %v600
      %649 = vmatprep.subr.mxu0 0.0
      %650 = vmatpush1.msra.mxu0 %v599
      %651 = vmatprep.subr.mxu0 0.0
      %652 = vmatpush2.msra.mxu0 0.0
      %653 = vmatprep.subr.mxu0 0.0
      %654 = vmatpush2.msra.mxu0 0.0
      %655 = vmatprep.subr.mxu0 0.0
      %656 = vmatpush2.msra.mxu0 0.0
      %657 = vmatprep.subr.mxu0 0.0
      %658 = vmatpush2.msra.mxu0 0.0
      %659 = vmatprep.subr.mxu0 0.0
      %660 = vmatpush2.msra.mxu0 0.0
      %661 = vmatprep.subr.mxu0 0.0
      %662 = vmatpush2.msra.mxu0 0.0
      %663 = vmatprep.subr.mxu0 0.0
      %664 = vmatpush2.msra.mxu0 0.0
      %665 = vmatprep.subr.mxu0 0.0
      %666 = vmatpush2.msra.mxu0 0.0
      %667 = vmatprep.subr.mxu0 0.0
      %668 = vmatpush2.msra.mxu0 0.0
      %669 = vmatprep.subr.mxu0 0.0
      %670 = vmatpush2.msra.mxu0 0.0
      %671 = vmatprep.subr.mxu0 0.0
      %672 = vmatpush2.msra.mxu0 0.0
      %673 = vmatprep.subr.mxu0 0.0
      %674 = vmatpush2.msra.mxu0 0.0
      %675 = vmatprep.subr.mxu0 0.0
      %676 = vmatpush2.msra.mxu0 0.0
      %677 = vmatprep.subr.mxu0 0.0
      %678 = vmatpush2.msra.mxu0 0.0
      %679 = vmatprep.subr.mxu0 0.0
      %680 = vmatpush2.msra.mxu0 0.0
      %681 = vmatprep.subr.mxu0 0.0
      %682 = vmatpush2.msra.mxu0 0.0
      %683 = vmatprep.mubr.f32.mxu0 0.0
      %684 = vmatmul.mubr.f32.gmra.mxu0 %v615
      %v685 = vpop.f32.mrf.mxu0
      %v686 = vadd.f32 0.0, %v685
      %v687 = vpop.f32.mrf.mxu0
      %688 = vmatprep.mubr.f32.mxu0 0.0
      %689 = vmatmul.mubr.f32.gmra.mxu0 %v616
      %v690 = vpop.f32.mrf.mxu0
      %v691 = vadd.f32 0.0, %v690
      %v692 = vpop.f32.mrf.mxu0
      %693 = vdwg.mxu0
      %v694 = vcombine.low %v549, %v550
      %v695 = vcombine.low %v551, %v552
      %698 = vmatprep.subr.mxu0 0.0
      %699 = vmatpush1.msra.mxu0 %v570
      %700 = vmatprep.subr.mxu0 0.0
      %701 = vmatpush1.msra.mxu0 %v569
      %702 = vmatprep.subr.mxu0 0.0
      %703 = vmatpush1.msra.mxu0 %v568
      %704 = vmatprep.subr.mxu0 0.0
      %705 = vmatpush1.msra.mxu0 %v567
      %706 = vmatprep.subr.mxu0 0.0
      %707 = vmatpush1.msra.mxu0 %v566
      %708 = vmatprep.subr.mxu0 0.0
      %709 = vmatpush1.msra.mxu0 %v565
      %710 = vmatprep.subr.mxu0 0.0
      %711 = vmatpush1.msra.mxu0 %v564
      %712 = vmatprep.subr.mxu0 0.0
      %713 = vmatpush1.msra.mxu0 %v563
      %714 = vmatprep.subr.mxu0 0.0
      %715 = vmatpush1.msra.mxu0 %v562
      %716 = vmatprep.subr.mxu0 0.0
      %717 = vmatpush1.msra.mxu0 %v561
      %718 = vmatprep.subr.mxu0 0.0
      %719 = vmatpush1.msra.mxu0 %v560
      %720 = vmatprep.subr.mxu0 0.0
      %721 = vmatpush1.msra.mxu0 %v559
      %722 = vmatprep.subr.mxu0 0.0
      %723 = vmatpush1.msra.mxu0 %v558
      %724 = vmatprep.subr.mxu0 0.0
      %725 = vmatpush1.msra.mxu0 %v557
      %726 = vmatprep.subr.mxu0 0.0
      %727 = vmatpush1.msra.mxu0 %v556
      %728 = vmatprep.subr.mxu0 0.0
      %729 = vmatpush1.msra.mxu0 %v555
      %730 = vmatprep.subr.mxu0 0.0
      %731 = vmatpush2.msra.mxu0 0.0
      %732 = vmatprep.subr.mxu0 0.0
      %733 = vmatpush2.msra.mxu0 0.0
      %734 = vmatprep.subr.mxu0 0.0
      %735 = vmatpush2.msra.mxu0 0.0
      %736 = vmatprep.subr.mxu0 0.0
      %737 = vmatpush2.msra.mxu0 0.0
      %738 = vmatprep.subr.mxu0 0.0
      %739 = vmatpush2.msra.mxu0 0.0
      %740 = vmatprep.subr.mxu0 0.0
      %741 = vmatpush2.msra.mxu0 0.0
      %742 = vmatprep.subr.mxu0 0.0
      %743 = vmatpush2.msra.mxu0 0.0
      %744 = vmatprep.subr.mxu0 0.0
      %745 = vmatpush2.msra.mxu0 0.0
      %746 = vmatprep.subr.mxu0 0.0
      %747 = vmatpush2.msra.mxu0 0.0
      %748 = vmatprep.subr.mxu0 0.0
      %749 = vmatpush2.msra.mxu0 0.0
      %750 = vmatprep.subr.mxu0 0.0
      %751 = vmatpush2.msra.mxu0 0.0
      %752 = vmatprep.subr.mxu0 0.0
      %753 = vmatpush2.msra.mxu0 0.0
      %754 = vmatprep.subr.mxu0 0.0
      %755 = vmatpush2.msra.mxu0 0.0
      %756 = vmatprep.subr.mxu0 0.0
      %757 = vmatpush2.msra.mxu0 0.0
      %758 = vmatprep.subr.mxu0 0.0
      %759 = vmatpush2.msra.mxu0 0.0
      %760 = vmatprep.subr.mxu0 0.0
      %761 = vmatpush2.msra.mxu0 0.0
      %762 = vmatprep.mubr.f32.mxu0 0.0
      %763 = vmatmul.mubr.f32.gmra.mxu0 %v694
      %v764 = vpop.f32.mrf.mxu0
      %v765 = vadd.f32 %v686, %v764
      %v766 = vpop.f32.mrf.mxu0
      %767 = vmatprep.mubr.f32.mxu0 0.0
      %768 = vmatmul.mubr.f32.gmra.mxu0 %v695
      %v769 = vpop.f32.mrf.mxu0
      %v770 = vadd.f32 %v691, %v769
      %v771 = vpop.f32.mrf.mxu0
      %772 = vdwg.mxu0
      %vm773 = vcmask 1041408
      %vm774 = vcmask 1045508
      %vm775 = vmor %vm773, %vm774
      %v776 = vrot.slane %v549, 6
      %v777 = vrot.slane %v776, 4
      %v778 = vrot.slane %v575, 6
      %v779 = vsel %vm775, %v777, %v778
      %v780 = vrot.slane %v550, 6
      %v781 = vrot.slane %v780, 4
      %v782 = vrot.slane %v576, 6
      %v783 = vsel %vm775, %v781, %v782
      %v784 = vrot.slane %v551, 6
      %v785 = vrot.slane %v784, 4
      %v786 = vrot.slane %v577, 6
      %v787 = vsel %vm775, %v785, %v786
      %v788 = vrot.slane %v552, 6
      %v789 = vrot.slane %v788, 4
      %v790 = vrot.slane %v578, 6
      %v791 = vsel %vm775, %v789, %v790
      %s792 = scalar_lea.vmem %s264, 256
      %v793 = vld [vmem:[%s792] sm:$0xff]
      %v794 = vld [vmem:[%s792 + $0x8] sm:$0xff]
      %v795 = vld [vmem:[%s792 + $0x10] sm:$0xff]
      %v796 = vld [vmem:[%s792 + $0x18] sm:$0xff]
      %v797 = vld [vmem:[%s792 + $0x20] sm:$0xff]
      %v798 = vld [vmem:[%s792 + $0x28] sm:$0xff]
      %v799 = vld [vmem:[%s792 + $0x30] sm:$0xff]
      %v800 = vld [vmem:[%s792 + $0x38] sm:$0xff]
      %v801 = vld [vmem:[%s792 + $0x40] sm:$0xff]
      %v802 = vld [vmem:[%s792 + $0x48] sm:$0xff]
      %v803 = vld [vmem:[%s792 + $0x50] sm:$0xff]
      %v804 = vld [vmem:[%s792 + $0x58] sm:$0xff]
      %v805 = vld [vmem:[%s792 + $0x60] sm:$0xff]
      %v806 = vld [vmem:[%s792 + $0x68] sm:$0xff]
      %v807 = vld [vmem:[%s792 + $0x70] sm:$0xff]
      %v808 = vld [vmem:[%s792 + $0x78] sm:$0xff]
      %v809 = vcombine.low %v779, %v783
      %v810 = vcombine.low %v787, %v791
      %813 = vmatprep.subr.mxu0 0.0
      %814 = vmatpush1.msra.mxu0 %v808
      %815 = vmatprep.subr.mxu0 0.0
      %816 = vmatpush1.msra.mxu0 %v807
      %817 = vmatprep.subr.mxu0 0.0
      %818 = vmatpush1.msra.mxu0 %v806
      %819 = vmatprep.subr.mxu0 0.0
      %820 = vmatpush1.msra.mxu0 %v805
      %821 = vmatprep.subr.mxu0 0.0
      %822 = vmatpush1.msra.mxu0 %v804
      %823 = vmatprep.subr.mxu0 0.0
      %824 = vmatpush1.msra.mxu0 %v803
      %825 = vmatprep.subr.mxu0 0.0
      %826 = vmatpush1.msra.mxu0 %v802
      %827 = vmatprep.subr.mxu0 0.0
      %828 = vmatpush1.msra.mxu0 %v801
      %829 = vmatprep.subr.mxu0 0.0
      %830 = vmatpush1.msra.mxu0 %v800
      %831 = vmatprep.subr.mxu0 0.0
      %832 = vmatpush1.msra.mxu0 %v799
      %833 = vmatprep.subr.mxu0 0.0
      %834 = vmatpush1.msra.mxu0 %v798
      %835 = vmatprep.subr.mxu0 0.0
      %836 = vmatpush1.msra.mxu0 %v797
      %837 = vmatprep.subr.mxu0 0.0
      %838 = vmatpush1.msra.mxu0 %v796
      %839 = vmatprep.subr.mxu0 0.0
      %840 = vmatpush1.msra.mxu0 %v795
      %841 = vmatprep.subr.mxu0 0.0
      %842 = vmatpush1.msra.mxu0 %v794
      %843 = vmatprep.subr.mxu0 0.0
      %844 = vmatpush1.msra.mxu0 %v793
      %845 = vmatprep.subr.mxu0 0.0
      %846 = vmatpush2.msra.mxu0 0.0
      %847 = vmatprep.subr.mxu0 0.0
      %848 = vmatpush2.msra.mxu0 0.0
      %849 = vmatprep.subr.mxu0 0.0
      %850 = vmatpush2.msra.mxu0 0.0
      %851 = vmatprep.subr.mxu0 0.0
      %852 = vmatpush2.msra.mxu0 0.0
      %853 = vmatprep.subr.mxu0 0.0
      %854 = vmatpush2.msra.mxu0 0.0
      %855 = vmatprep.subr.mxu0 0.0
      %856 = vmatpush2.msra.mxu0 0.0
      %857 = vmatprep.subr.mxu0 0.0
      %858 = vmatpush2.msra.mxu0 0.0
      %859 = vmatprep.subr.mxu0 0.0
      %860 = vmatpush2.msra.mxu0 0.0
      %861 = vmatprep.subr.mxu0 0.0
      %862 = vmatpush2.msra.mxu0 0.0
      %863 = vmatprep.subr.mxu0 0.0
      %864 = vmatpush2.msra.mxu0 0.0
      %865 = vmatprep.subr.mxu0 0.0
      %866 = vmatpush2.msra.mxu0 0.0
      %867 = vmatprep.subr.mxu0 0.0
      %868 = vmatpush2.msra.mxu0 0.0
      %869 = vmatprep.subr.mxu0 0.0
      %870 = vmatpush2.msra.mxu0 0.0
      %871 = vmatprep.subr.mxu0 0.0
      %872 = vmatpush2.msra.mxu0 0.0
      %873 = vmatprep.subr.mxu0 0.0
      %874 = vmatpush2.msra.mxu0 0.0
      %875 = vmatprep.subr.mxu0 0.0
      %876 = vmatpush2.msra.mxu0 0.0
      %877 = vmatprep.mubr.f32.mxu0 0.0
      %878 = vmatmul.mubr.f32.gmra.mxu0 %v809
      %v879 = vpop.f32.mrf.mxu0
      %v880 = vadd.f32 0.0, %v879
      %v881 = vpop.f32.mrf.mxu0
      %882 = vmatprep.mubr.f32.mxu0 0.0
      %883 = vmatmul.mubr.f32.gmra.mxu0 %v810
      %v884 = vpop.f32.mrf.mxu0
      %v885 = vadd.f32 0.0, %v884
      %v886 = vpop.f32.mrf.mxu0
      %887 = vdwg.mxu0
      %v888 = vadd.f32 %v765, %v880
      %v889 = vadd.f32 %v770, %v885
      %s890 = scalar_lea.vmem %s264, 384
      %v891 = vld [vmem:[%s890] sm:$0xff]
      %v892 = vld [vmem:[%s890 + $0x8] sm:$0xff]
      %v893 = vld [vmem:[%s890 + $0x10] sm:$0xff]
      %v894 = vld [vmem:[%s890 + $0x18] sm:$0xff]
      %v895 = vld [vmem:[%s890 + $0x20] sm:$0xff]
      %v896 = vld [vmem:[%s890 + $0x28] sm:$0xff]
      %v897 = vld [vmem:[%s890 + $0x30] sm:$0xff]
      %v898 = vld [vmem:[%s890 + $0x38] sm:$0xff]
      %v899 = vld [vmem:[%s890 + $0x40] sm:$0xff]
      %v900 = vld [vmem:[%s890 + $0x48] sm:$0xff]
      %v901 = vld [vmem:[%s890 + $0x50] sm:$0xff]
      %v902 = vld [vmem:[%s890 + $0x58] sm:$0xff]
      %v903 = vld [vmem:[%s890 + $0x60] sm:$0xff]
      %v904 = vld [vmem:[%s890 + $0x68] sm:$0xff]
      %v905 = vld [vmem:[%s890 + $0x70] sm:$0xff]
      %v906 = vld [vmem:[%s890 + $0x78] sm:$0xff]
      %v908 = vcombine.low %v550, %v551
      %v909 = vcombine.low %v552, %v553
      %912 = vmatprep.subr.mxu0 0.0
      %913 = vmatpush1.msra.mxu0 %v906
      %914 = vmatprep.subr.mxu0 0.0
      %915 = vmatpush1.msra.mxu0 %v905
      %916 = vmatprep.subr.mxu0 0.0
      %917 = vmatpush1.msra.mxu0 %v904
      %918 = vmatprep.subr.mxu0 0.0
      %919 = vmatpush1.msra.mxu0 %v903
      %920 = vmatprep.subr.mxu0 0.0
      %921 = vmatpush1.msra.mxu0 %v902
      %922 = vmatprep.subr.mxu0 0.0
      %923 = vmatpush1.msra.mxu0 %v901
      %924 = vmatprep.subr.mxu0 0.0
      %925 = vmatpush1.msra.mxu0 %v900
      %926 = vmatprep.subr.mxu0 0.0
      %927 = vmatpush1.msra.mxu0 %v899
      %928 = vmatprep.subr.mxu0 0.0
      %929 = vmatpush1.msra.mxu0 %v898
      %930 = vmatprep.subr.mxu0 0.0
      %931 = vmatpush1.msra.mxu0 %v897
      %932 = vmatprep.subr.mxu0 0.0
      %933 = vmatpush1.msra.mxu0 %v896
      %934 = vmatprep.subr.mxu0 0.0
      %935 = vmatpush1.msra.mxu0 %v895
      %936 = vmatprep.subr.mxu0 0.0
      %937 = vmatpush1.msra.mxu0 %v894
      %938 = vmatprep.subr.mxu0 0.0
      %939 = vmatpush1.msra.mxu0 %v893
      %940 = vmatprep.subr.mxu0 0.0
      %941 = vmatpush1.msra.mxu0 %v892
      %942 = vmatprep.subr.mxu0 0.0
      %943 = vmatpush1.msra.mxu0 %v891
      %944 = vmatprep.subr.mxu0 0.0
      %945 = vmatpush2.msra.mxu0 0.0
      %946 = vmatprep.subr.mxu0 0.0
      %947 = vmatpush2.msra.mxu0 0.0
      %948 = vmatprep.subr.mxu0 0.0
      %949 = vmatpush2.msra.mxu0 0.0
      %950 = vmatprep.subr.mxu0 0.0
      %951 = vmatpush2.msra.mxu0 0.0
      %952 = vmatprep.subr.mxu0 0.0
      %953 = vmatpush2.msra.mxu0 0.0
      %954 = vmatprep.subr.mxu0 0.0
      %955 = vmatpush2.msra.mxu0 0.0
      %956 = vmatprep.subr.mxu0 0.0
      %957 = vmatpush2.msra.mxu0 0.0
      %958 = vmatprep.subr.mxu0 0.0
      %959 = vmatpush2.msra.mxu0 0.0
      %960 = vmatprep.subr.mxu0 0.0
      %961 = vmatpush2.msra.mxu0 0.0
      %962 = vmatprep.subr.mxu0 0.0
      %963 = vmatpush2.msra.mxu0 0.0
      %964 = vmatprep.subr.mxu0 0.0
      %965 = vmatpush2.msra.mxu0 0.0
      %966 = vmatprep.subr.mxu0 0.0
      %967 = vmatpush2.msra.mxu0 0.0
      %968 = vmatprep.subr.mxu0 0.0
      %969 = vmatpush2.msra.mxu0 0.0
      %970 = vmatprep.subr.mxu0 0.0
      %971 = vmatpush2.msra.mxu0 0.0
      %972 = vmatprep.subr.mxu0 0.0
      %973 = vmatpush2.msra.mxu0 0.0
      %974 = vmatprep.subr.mxu0 0.0
      %975 = vmatpush2.msra.mxu0 0.0
      %976 = vmatprep.mubr.f32.mxu0 0.0
      %977 = vmatmul.mubr.f32.gmra.mxu0 %v908
      %v978 = vpop.f32.mrf.mxu0
      %v979 = vadd.f32 0.0, %v978
      %v980 = vpop.f32.mrf.mxu0
      %981 = vmatprep.mubr.f32.mxu0 0.0
      %982 = vmatmul.mubr.f32.gmra.mxu0 %v909
      %v983 = vpop.f32.mrf.mxu0
      %v984 = vadd.f32 0.0, %v983
      %v985 = vpop.f32.mrf.mxu0
      %986 = vdwg.mxu0
      %v987 = vadd.f32 %v888, %v979
      %v988 = vadd.f32 %v889, %v984
      %v989 = vcombine.high %v553, %v553
      %v990 = vrot.slane %v553, 5
      %v991 = vrot.slane %v990, 4
      %v992 = vrot.slane %v989, 5
      %v993 = vsel %vm581, %v991, %v992
      %s994 = scalar_lea.vmem %s264, 512
      %v995 = vld [vmem:[%s994] sm:$0xff]
      %v996 = vld [vmem:[%s994 + $0x8] sm:$0xff]
      %v997 = vld [vmem:[%s994 + $0x10] sm:$0xff]
      %v998 = vld [vmem:[%s994 + $0x18] sm:$0xff]
      %v999 = vld [vmem:[%s994 + $0x20] sm:$0xff]
      %v1000 = vld [vmem:[%s994 + $0x28] sm:$0xff]
      %v1001 = vld [vmem:[%s994 + $0x30] sm:$0xff]
      %v1002 = vld [vmem:[%s994 + $0x38] sm:$0xff]
      %v1003 = vld [vmem:[%s994 + $0x40] sm:$0xff]
      %v1004 = vld [vmem:[%s994 + $0x48] sm:$0xff]
      %v1005 = vld [vmem:[%s994 + $0x50] sm:$0xff]
      %v1006 = vld [vmem:[%s994 + $0x58] sm:$0xff]
      %v1007 = vld [vmem:[%s994 + $0x60] sm:$0xff]
      %v1008 = vld [vmem:[%s994 + $0x68] sm:$0xff]
      %v1009 = vld [vmem:[%s994 + $0x70] sm:$0xff]
      %v1010 = vld [vmem:[%s994 + $0x78] sm:$0xff]
      %v1011 = vcombine.low %v589, %v593
      %v1012 = vcombine.low %v597, %v993
      %1015 = vmatprep.subr.mxu0 0.0
      %1016 = vmatpush1.msra.mxu0 %v1010
      %1017 = vmatprep.subr.mxu0 0.0
      %1018 = vmatpush1.msra.mxu0 %v1009
      %1019 = vmatprep.subr.mxu0 0.0
      %1020 = vmatpush1.msra.mxu0 %v1008
      %1021 = vmatprep.subr.mxu0 0.0
      %1022 = vmatpush1.msra.mxu0 %v1007
      %1023 = vmatprep.subr.mxu0 0.0
      %1024 = vmatpush1.msra.mxu0 %v1006
      %1025 = vmatprep.subr.mxu0 0.0
      %1026 = vmatpush1.msra.mxu0 %v1005
      %1027 = vmatprep.subr.mxu0 0.0
      %1028 = vmatpush1.msra.mxu0 %v1004
      %1029 = vmatprep.subr.mxu0 0.0
      %1030 = vmatpush1.msra.mxu0 %v1003
      %1031 = vmatprep.subr.mxu0 0.0
      %1032 = vmatpush1.msra.mxu0 %v1002
      %1033 = vmatprep.subr.mxu0 0.0
      %1034 = vmatpush1.msra.mxu0 %v1001
      %1035 = vmatprep.subr.mxu0 0.0
      %1036 = vmatpush1.msra.mxu0 %v1000
      %1037 = vmatprep.subr.mxu0 0.0
      %1038 = vmatpush1.msra.mxu0 %v999
      %1039 = vmatprep.subr.mxu0 0.0
      %1040 = vmatpush1.msra.mxu0 %v998
      %1041 = vmatprep.subr.mxu0 0.0
      %1042 = vmatpush1.msra.mxu0 %v997
      %1043 = vmatprep.subr.mxu0 0.0
      %1044 = vmatpush1.msra.mxu0 %v996
      %1045 = vmatprep.subr.mxu0 0.0
      %1046 = vmatpush1.msra.mxu0 %v995
      %1047 = vmatprep.subr.mxu0 0.0
      %1048 = vmatpush2.msra.mxu0 0.0
      %1049 = vmatprep.subr.mxu0 0.0
      %1050 = vmatpush2.msra.mxu0 0.0
      %1051 = vmatprep.subr.mxu0 0.0
      %1052 = vmatpush2.msra.mxu0 0.0
      %1053 = vmatprep.subr.mxu0 0.0
      %1054 = vmatpush2.msra.mxu0 0.0
      %1055 = vmatprep.subr.mxu0 0.0
      %1056 = vmatpush2.msra.mxu0 0.0
      %1057 = vmatprep.subr.mxu0 0.0
      %1058 = vmatpush2.msra.mxu0 0.0
      %1059 = vmatprep.subr.mxu0 0.0
      %1060 = vmatpush2.msra.mxu0 0.0
      %1061 = vmatprep.subr.mxu0 0.0
      %1062 = vmatpush2.msra.mxu0 0.0
      %1063 = vmatprep.subr.mxu0 0.0
      %1064 = vmatpush2.msra.mxu0 0.0
      %1065 = vmatprep.subr.mxu0 0.0
      %1066 = vmatpush2.msra.mxu0 0.0
      %1067 = vmatprep.subr.mxu0 0.0
      %1068 = vmatpush2.msra.mxu0 0.0
      %1069 = vmatprep.subr.mxu0 0.0
      %1070 = vmatpush2.msra.mxu0 0.0
      %1071 = vmatprep.subr.mxu0 0.0
      %1072 = vmatpush2.msra.mxu0 0.0
      %1073 = vmatprep.subr.mxu0 0.0
      %1074 = vmatpush2.msra.mxu0 0.0
      %1075 = vmatprep.subr.mxu0 0.0
      %1076 = vmatpush2.msra.mxu0 0.0
      %1077 = vmatprep.subr.mxu0 0.0
      %1078 = vmatpush2.msra.mxu0 0.0
      %1079 = vmatprep.mubr.f32.mxu0 0.0
      %1080 = vmatmul.mubr.f32.gmra.mxu0 %v1011
      %v1081 = vpop.f32.mrf.mxu0
      %v1082 = vadd.f32 0.0, %v1081
      %v1083 = vpop.f32.mrf.mxu0
      %1084 = vmatprep.mubr.f32.mxu0 0.0
      %1085 = vmatmul.mubr.f32.gmra.mxu0 %v1012
      %v1086 = vpop.f32.mrf.mxu0
      %v1087 = vadd.f32 0.0, %v1086
      %v1088 = vpop.f32.mrf.mxu0
      %1089 = vdwg.mxu0
      %v1090 = vadd.f32 %v987, %v1082
      %v1091 = vadd.f32 %v988, %v1087
      %v1092 = vrot.slane %v553, 6
      %v1093 = vrot.slane %v1092, 4
      %v1094 = vrot.slane %v989, 6
      %v1095 = vsel %vm775, %v1093, %v1094
      %s1096 = scalar_lea.vmem %s264, 640
      %v1097 = vld [vmem:[%s1096] sm:$0xff]
      %v1098 = vld [vmem:[%s1096 + $0x8] sm:$0xff]
      %v1099 = vld [vmem:[%s1096 + $0x10] sm:$0xff]
      %v1100 = vld [vmem:[%s1096 + $0x18] sm:$0xff]
      %v1101 = vld [vmem:[%s1096 + $0x20] sm:$0xff]
      %v1102 = vld [vmem:[%s1096 + $0x28] sm:$0xff]
      %v1103 = vld [vmem:[%s1096 + $0x30] sm:$0xff]
      %v1104 = vld [vmem:[%s1096 + $0x38] sm:$0xff]
      %v1105 = vld [vmem:[%s1096 + $0x40] sm:$0xff]
      %v1106 = vld [vmem:[%s1096 + $0x48] sm:$0xff]
      %v1107 = vld [vmem:[%s1096 + $0x50] sm:$0xff]
      %v1108 = vld [vmem:[%s1096 + $0x58] sm:$0xff]
      %v1109 = vld [vmem:[%s1096 + $0x60] sm:$0xff]
      %v1110 = vld [vmem:[%s1096 + $0x68] sm:$0xff]
      %v1111 = vld [vmem:[%s1096 + $0x70] sm:$0xff]
      %v1112 = vld [vmem:[%s1096 + $0x78] sm:$0xff]
      %v1113 = vcombine.low %v783, %v787
      %v1114 = vcombine.low %v791, %v1095
      %1117 = vmatprep.subr.mxu0 0.0
      %1118 = vmatpush1.msra.mxu0 %v1112
      %1119 = vmatprep.subr.mxu0 0.0
      %1120 = vmatpush1.msra.mxu0 %v1111
      %1121 = vmatprep.subr.mxu0 0.0
      %1122 = vmatpush1.msra.mxu0 %v1110
      %1123 = vmatprep.subr.mxu0 0.0
      %1124 = vmatpush1.msra.mxu0 %v1109
      %1125 = vmatprep.subr.mxu0 0.0
      %1126 = vmatpush1.msra.mxu0 %v1108
      %1127 = vmatprep.subr.mxu0 0.0
      %1128 = vmatpush1.msra.mxu0 %v1107
      %1129 = vmatprep.subr.mxu0 0.0
      %1130 = vmatpush1.msra.mxu0 %v1106
      %1131 = vmatprep.subr.mxu0 0.0
      %1132 = vmatpush1.msra.mxu0 %v1105
      %1133 = vmatprep.subr.mxu0 0.0
      %1134 = vmatpush1.msra.mxu0 %v1104
      %1135 = vmatprep.subr.mxu0 0.0
      %1136 = vmatpush1.msra.mxu0 %v1103
      %1137 = vmatprep.subr.mxu0 0.0
      %1138 = vmatpush1.msra.mxu0 %v1102
      %1139 = vmatprep.subr.mxu0 0.0
      %1140 = vmatpush1.msra.mxu0 %v1101
      %1141 = vmatprep.subr.mxu0 0.0
      %1142 = vmatpush1.msra.mxu0 %v1100
      %1143 = vmatprep.subr.mxu0 0.0
      %1144 = vmatpush1.msra.mxu0 %v1099
      %1145 = vmatprep.subr.mxu0 0.0
      %1146 = vmatpush1.msra.mxu0 %v1098
      %1147 = vmatprep.subr.mxu0 0.0
      %1148 = vmatpush1.msra.mxu0 %v1097
      %1149 = vmatprep.subr.mxu0 0.0
      %1150 = vmatpush2.msra.mxu0 0.0
      %1151 = vmatprep.subr.mxu0 0.0
      %1152 = vmatpush2.msra.mxu0 0.0
      %1153 = vmatprep.subr.mxu0 0.0
      %1154 = vmatpush2.msra.mxu0 0.0
      %1155 = vmatprep.subr.mxu0 0.0
      %1156 = vmatpush2.msra.mxu0 0.0
      %1157 = vmatprep.subr.mxu0 0.0
      %1158 = vmatpush2.msra.mxu0 0.0
      %1159 = vmatprep.subr.mxu0 0.0
      %1160 = vmatpush2.msra.mxu0 0.0
      %1161 = vmatprep.subr.mxu0 0.0
      %1162 = vmatpush2.msra.mxu0 0.0
      %1163 = vmatprep.subr.mxu0 0.0
      %1164 = vmatpush2.msra.mxu0 0.0
      %1165 = vmatprep.subr.mxu0 0.0
      %1166 = vmatpush2.msra.mxu0 0.0
      %1167 = vmatprep.subr.mxu0 0.0
      %1168 = vmatpush2.msra.mxu0 0.0
      %1169 = vmatprep.subr.mxu0 0.0
      %1170 = vmatpush2.msra.mxu0 0.0
      %1171 = vmatprep.subr.mxu0 0.0
      %1172 = vmatpush2.msra.mxu0 0.0
      %1173 = vmatprep.subr.mxu0 0.0
      %1174 = vmatpush2.msra.mxu0 0.0
      %1175 = vmatprep.subr.mxu0 0.0
      %1176 = vmatpush2.msra.mxu0 0.0
      %1177 = vmatprep.subr.mxu0 0.0
      %1178 = vmatpush2.msra.mxu0 0.0
      %1179 = vmatprep.subr.mxu0 0.0
      %1180 = vmatpush2.msra.mxu0 0.0
      %1181 = vmatprep.mubr.f32.mxu0 0.0
      %1182 = vmatmul.mubr.f32.gmra.mxu0 %v1113
      %v1183 = vpop.f32.mrf.mxu0
      %v1184 = vadd.f32 0.0, %v1183
      %v1185 = vpop.f32.mrf.mxu0
      %1186 = vmatprep.mubr.f32.mxu0 0.0
      %1187 = vmatmul.mubr.f32.gmra.mxu0 %v1114
      %v1188 = vpop.f32.mrf.mxu0
      %v1189 = vadd.f32 0.0, %v1188
      %v1190 = vpop.f32.mrf.mxu0
      %1191 = vdwg.mxu0
      %v1192 = vadd.f32 %v1090, %v1184
      %v1193 = vadd.f32 %v1091, %v1189
      %s1194 = scalar_lea.vmem %s264, 768
      %v1195 = vld [vmem:[%s1194] sm:$0xff]
      %v1196 = vld [vmem:[%s1194 + $0x8] sm:$0xff]
      %v1197 = vld [vmem:[%s1194 + $0x10] sm:$0xff]
      %v1198 = vld [vmem:[%s1194 + $0x18] sm:$0xff]
      %v1199 = vld [vmem:[%s1194 + $0x20] sm:$0xff]
      %v1200 = vld [vmem:[%s1194 + $0x28] sm:$0xff]
      %v1201 = vld [vmem:[%s1194 + $0x30] sm:$0xff]
      %v1202 = vld [vmem:[%s1194 + $0x38] sm:$0xff]
      %v1203 = vld [vmem:[%s1194 + $0x40] sm:$0xff]
      %v1204 = vld [vmem:[%s1194 + $0x48] sm:$0xff]
      %v1205 = vld [vmem:[%s1194 + $0x50] sm:$0xff]
      %v1206 = vld [vmem:[%s1194 + $0x58] sm:$0xff]
      %v1207 = vld [vmem:[%s1194 + $0x60] sm:$0xff]
      %v1208 = vld [vmem:[%s1194 + $0x68] sm:$0xff]
      %v1209 = vld [vmem:[%s1194 + $0x70] sm:$0xff]
      %v1210 = vld [vmem:[%s1194 + $0x78] sm:$0xff]
      %v1212 = vcombine.low %v553, %v554
      %1214 = vmatprep.subr.mxu0 0.0
      %1215 = vmatpush1.msra.mxu0 %v1210
      %1216 = vmatprep.subr.mxu0 0.0
      %1217 = vmatpush1.msra.mxu0 %v1209
      %1218 = vmatprep.subr.mxu0 0.0
      %1219 = vmatpush1.msra.mxu0 %v1208
      %1220 = vmatprep.subr.mxu0 0.0
      %1221 = vmatpush1.msra.mxu0 %v1207
      %1222 = vmatprep.subr.mxu0 0.0
      %1223 = vmatpush1.msra.mxu0 %v1206
      %1224 = vmatprep.subr.mxu0 0.0
      %1225 = vmatpush1.msra.mxu0 %v1205
      %1226 = vmatprep.subr.mxu0 0.0
      %1227 = vmatpush1.msra.mxu0 %v1204
      %1228 = vmatprep.subr.mxu0 0.0
      %1229 = vmatpush1.msra.mxu0 %v1203
      %1230 = vmatprep.subr.mxu0 0.0
      %1231 = vmatpush1.msra.mxu0 %v1202
      %1232 = vmatprep.subr.mxu0 0.0
      %1233 = vmatpush1.msra.mxu0 %v1201
      %1234 = vmatprep.subr.mxu0 0.0
      %1235 = vmatpush1.msra.mxu0 %v1200
      %1236 = vmatprep.subr.mxu0 0.0
      %1237 = vmatpush1.msra.mxu0 %v1199
      %1238 = vmatprep.subr.mxu0 0.0
      %1239 = vmatpush1.msra.mxu0 %v1198
      %1240 = vmatprep.subr.mxu0 0.0
      %1241 = vmatpush1.msra.mxu0 %v1197
      %1242 = vmatprep.subr.mxu0 0.0
      %1243 = vmatpush1.msra.mxu0 %v1196
      %1244 = vmatprep.subr.mxu0 0.0
      %1245 = vmatpush1.msra.mxu0 %v1195
      %1246 = vmatprep.subr.mxu0 0.0
      %1247 = vmatpush2.msra.mxu0 0.0
      %1248 = vmatprep.subr.mxu0 0.0
      %1249 = vmatpush2.msra.mxu0 0.0
      %1250 = vmatprep.subr.mxu0 0.0
      %1251 = vmatpush2.msra.mxu0 0.0
      %1252 = vmatprep.subr.mxu0 0.0
      %1253 = vmatpush2.msra.mxu0 0.0
      %1254 = vmatprep.subr.mxu0 0.0
      %1255 = vmatpush2.msra.mxu0 0.0
      %1256 = vmatprep.subr.mxu0 0.0
      %1257 = vmatpush2.msra.mxu0 0.0
      %1258 = vmatprep.subr.mxu0 0.0
      %1259 = vmatpush2.msra.mxu0 0.0
      %1260 = vmatprep.subr.mxu0 0.0
      %1261 = vmatpush2.msra.mxu0 0.0
      %1262 = vmatprep.subr.mxu0 0.0
      %1263 = vmatpush2.msra.mxu0 0.0
      %1264 = vmatprep.subr.mxu0 0.0
      %1265 = vmatpush2.msra.mxu0 0.0
      %1266 = vmatprep.subr.mxu0 0.0
      %1267 = vmatpush2.msra.mxu0 0.0
      %1268 = vmatprep.subr.mxu0 0.0
      %1269 = vmatpush2.msra.mxu0 0.0
      %1270 = vmatprep.subr.mxu0 0.0
      %1271 = vmatpush2.msra.mxu0 0.0
      %1272 = vmatprep.subr.mxu0 0.0
      %1273 = vmatpush2.msra.mxu0 0.0
      %1274 = vmatprep.subr.mxu0 0.0
      %1275 = vmatpush2.msra.mxu0 0.0
      %1276 = vmatprep.subr.mxu0 0.0
      %1277 = vmatpush2.msra.mxu0 0.0
      %1278 = vmatprep.mubr.f32.mxu0 0.0
      %1279 = vmatmul.mubr.f32.gmra.mxu0 %v695
      %v1280 = vpop.f32.mrf.mxu0
      %v1281 = vadd.f32 0.0, %v1280
      %v1282 = vpop.f32.mrf.mxu0
      %1283 = vmatprep.mubr.f32.mxu0 0.0
      %1284 = vmatmul.mubr.f32.gmra.mxu0 %v1212
      %v1285 = vpop.f32.mrf.mxu0
      %v1286 = vadd.f32 0.0, %v1285
      %v1287 = vpop.f32.mrf.mxu0
      %1288 = vdwg.mxu0
      %v1289 = vadd.f32 %v1192, %v1281
      %v1290 = vadd.f32 %v1193, %v1286
      %v1291 = vcombine.high %v554, %v554
      %v1292 = vrot.slane %v554, 5
      %v1293 = vrot.slane %v1292, 4
      %v1294 = vrot.slane %v1291, 5
      %v1295 = vsel %vm581, %v1293, %v1294
      %s1296 = scalar_lea.vmem %s264, 896
      %v1297 = vld [vmem:[%s1296] sm:$0xff]
      %v1298 = vld [vmem:[%s1296 + $0x8] sm:$0xff]
      %v1299 = vld [vmem:[%s1296 + $0x10] sm:$0xff]
      %v1300 = vld [vmem:[%s1296 + $0x18] sm:$0xff]
      %v1301 = vld [vmem:[%s1296 + $0x20] sm:$0xff]
      %v1302 = vld [vmem:[%s1296 + $0x28] sm:$0xff]
      %v1303 = vld [vmem:[%s1296 + $0x30] sm:$0xff]
      %v1304 = vld [vmem:[%s1296 + $0x38] sm:$0xff]
      %v1305 = vld [vmem:[%s1296 + $0x40] sm:$0xff]
      %v1306 = vld [vmem:[%s1296 + $0x48] sm:$0xff]
      %v1307 = vld [vmem:[%s1296 + $0x50] sm:$0xff]
      %v1308 = vld [vmem:[%s1296 + $0x58] sm:$0xff]
      %v1309 = vld [vmem:[%s1296 + $0x60] sm:$0xff]
      %v1310 = vld [vmem:[%s1296 + $0x68] sm:$0xff]
      %v1311 = vld [vmem:[%s1296 + $0x70] sm:$0xff]
      %v1312 = vld [vmem:[%s1296 + $0x78] sm:$0xff]
      %v1313 = vcombine.low %v993, %v1295
      %1315 = vmatprep.subr.mxu0 0.0
      %1316 = vmatpush1.msra.mxu0 %v1312
      %1317 = vmatprep.subr.mxu0 0.0
      %1318 = vmatpush1.msra.mxu0 %v1311
      %1319 = vmatprep.subr.mxu0 0.0
      %1320 = vmatpush1.msra.mxu0 %v1310
      %1321 = vmatprep.subr.mxu0 0.0
      %1322 = vmatpush1.msra.mxu0 %v1309
      %1323 = vmatprep.subr.mxu0 0.0
      %1324 = vmatpush1.msra.mxu0 %v1308
      %1325 = vmatprep.subr.mxu0 0.0
      %1326 = vmatpush1.msra.mxu0 %v1307
      %1327 = vmatprep.subr.mxu0 0.0
      %1328 = vmatpush1.msra.mxu0 %v1306
      %1329 = vmatprep.subr.mxu0 0.0
      %1330 = vmatpush1.msra.mxu0 %v1305
      %1331 = vmatprep.subr.mxu0 0.0
      %1332 = vmatpush1.msra.mxu0 %v1304
      %1333 = vmatprep.subr.mxu0 0.0
      %1334 = vmatpush1.msra.mxu0 %v1303
      %1335 = vmatprep.subr.mxu0 0.0
      %1336 = vmatpush1.msra.mxu0 %v1302
      %1337 = vmatprep.subr.mxu0 0.0
      %1338 = vmatpush1.msra.mxu0 %v1301
      %1339 = vmatprep.subr.mxu0 0.0
      %1340 = vmatpush1.msra.mxu0 %v1300
      %1341 = vmatprep.subr.mxu0 0.0
      %1342 = vmatpush1.msra.mxu0 %v1299
      %1343 = vmatprep.subr.mxu0 0.0
      %1344 = vmatpush1.msra.mxu0 %v1298
      %1345 = vmatprep.subr.mxu0 0.0
      %1346 = vmatpush1.msra.mxu0 %v1297
      %1347 = vmatprep.subr.mxu0 0.0
      %1348 = vmatpush2.msra.mxu0 0.0
      %1349 = vmatprep.subr.mxu0 0.0
      %1350 = vmatpush2.msra.mxu0 0.0
      %1351 = vmatprep.subr.mxu0 0.0
      %1352 = vmatpush2.msra.mxu0 0.0
      %1353 = vmatprep.subr.mxu0 0.0
      %1354 = vmatpush2.msra.mxu0 0.0
      %1355 = vmatprep.subr.mxu0 0.0
      %1356 = vmatpush2.msra.mxu0 0.0
      %1357 = vmatprep.subr.mxu0 0.0
      %1358 = vmatpush2.msra.mxu0 0.0
      %1359 = vmatprep.subr.mxu0 0.0
      %1360 = vmatpush2.msra.mxu0 0.0
      %1361 = vmatprep.subr.mxu0 0.0
      %1362 = vmatpush2.msra.mxu0 0.0
      %1363 = vmatprep.subr.mxu0 0.0
      %1364 = vmatpush2.msra.mxu0 0.0
      %1365 = vmatprep.subr.mxu0 0.0
      %1366 = vmatpush2.msra.mxu0 0.0
      %1367 = vmatprep.subr.mxu0 0.0
      %1368 = vmatpush2.msra.mxu0 0.0
      %1369 = vmatprep.subr.mxu0 0.0
      %1370 = vmatpush2.msra.mxu0 0.0
      %1371 = vmatprep.subr.mxu0 0.0
      %1372 = vmatpush2.msra.mxu0 0.0
      %1373 = vmatprep.subr.mxu0 0.0
      %1374 = vmatpush2.msra.mxu0 0.0
      %1375 = vmatprep.subr.mxu0 0.0
      %1376 = vmatpush2.msra.mxu0 0.0
      %1377 = vmatprep.subr.mxu0 0.0
      %1378 = vmatpush2.msra.mxu0 0.0
      %1379 = vmatprep.mubr.f32.mxu0 0.0
      %1380 = vmatmul.mubr.f32.gmra.mxu0 %v616
      %v1381 = vpop.f32.mrf.mxu0
      %v1382 = vadd.f32 0.0, %v1381
      %v1383 = vpop.f32.mrf.mxu0
      %1384 = vmatprep.mubr.f32.mxu0 0.0
      %1385 = vmatmul.mubr.f32.gmra.mxu0 %v1313
      %v1386 = vpop.f32.mrf.mxu0
      %v1387 = vadd.f32 0.0, %v1386
      %v1388 = vpop.f32.mrf.mxu0
      %1389 = vdwg.mxu0
      %v1390 = vadd.f32 %v1289, %v1382
      %v1391 = vadd.f32 %v1290, %v1387
      %v1392 = vrot.slane %v554, 6
      %v1393 = vrot.slane %v1392, 4
      %v1394 = vrot.slane %v1291, 6
      %v1395 = vsel %vm775, %v1393, %v1394
      %s1396 = scalar_lea.vmem %s264, 1024
      %v1397 = vld [vmem:[%s1396] sm:$0xff]
      %v1398 = vld [vmem:[%s1396 + $0x8] sm:$0xff]
      %v1399 = vld [vmem:[%s1396 + $0x10] sm:$0xff]
      %v1400 = vld [vmem:[%s1396 + $0x18] sm:$0xff]
      %v1401 = vld [vmem:[%s1396 + $0x20] sm:$0xff]
      %v1402 = vld [vmem:[%s1396 + $0x28] sm:$0xff]
      %v1403 = vld [vmem:[%s1396 + $0x30] sm:$0xff]
      %v1404 = vld [vmem:[%s1396 + $0x38] sm:$0xff]
      %v1405 = vld [vmem:[%s1396 + $0x40] sm:$0xff]
      %v1406 = vld [vmem:[%s1396 + $0x48] sm:$0xff]
      %v1407 = vld [vmem:[%s1396 + $0x50] sm:$0xff]
      %v1408 = vld [vmem:[%s1396 + $0x58] sm:$0xff]
      %v1409 = vld [vmem:[%s1396 + $0x60] sm:$0xff]
      %v1410 = vld [vmem:[%s1396 + $0x68] sm:$0xff]
      %v1411 = vld [vmem:[%s1396 + $0x70] sm:$0xff]
      %v1412 = vld [vmem:[%s1396 + $0x78] sm:$0xff]
      %v1413 = vcombine.low %v1095, %v1395
      %1415 = vmatprep.subr.mxu0 0.0
      %1416 = vmatpush1.msra.mxu0 %v1412
      %1417 = vmatprep.subr.mxu0 0.0
      %1418 = vmatpush1.msra.mxu0 %v1411
      %1419 = vmatprep.subr.mxu0 0.0
      %1420 = vmatpush1.msra.mxu0 %v1410
      %1421 = vmatprep.subr.mxu0 0.0
      %1422 = vmatpush1.msra.mxu0 %v1409
      %1423 = vmatprep.subr.mxu0 0.0
      %1424 = vmatpush1.msra.mxu0 %v1408
      %1425 = vmatprep.subr.mxu0 0.0
      %1426 = vmatpush1.msra.mxu0 %v1407
      %1427 = vmatprep.subr.mxu0 0.0
      %1428 = vmatpush1.msra.mxu0 %v1406
      %1429 = vmatprep.subr.mxu0 0.0
      %1430 = vmatpush1.msra.mxu0 %v1405
      %1431 = vmatprep.subr.mxu0 0.0
      %1432 = vmatpush1.msra.mxu0 %v1404
      %1433 = vmatprep.subr.mxu0 0.0
      %1434 = vmatpush1.msra.mxu0 %v1403
      %1435 = vmatprep.subr.mxu0 0.0
      %1436 = vmatpush1.msra.mxu0 %v1402
      %1437 = vmatprep.subr.mxu0 0.0
      %1438 = vmatpush1.msra.mxu0 %v1401
      %1439 = vmatprep.subr.mxu0 0.0
      %1440 = vmatpush1.msra.mxu0 %v1400
      %1441 = vmatprep.subr.mxu0 0.0
      %1442 = vmatpush1.msra.mxu0 %v1399
      %1443 = vmatprep.subr.mxu0 0.0
      %1444 = vmatpush1.msra.mxu0 %v1398
      %1445 = vmatprep.subr.mxu0 0.0
      %1446 = vmatpush1.msra.mxu0 %v1397
      %1447 = vmatprep.subr.mxu0 0.0
      %1448 = vmatpush2.msra.mxu0 0.0
      %1449 = vmatprep.subr.mxu0 0.0
      %1450 = vmatpush2.msra.mxu0 0.0
      %1451 = vmatprep.subr.mxu0 0.0
      %1452 = vmatpush2.msra.mxu0 0.0
      %1453 = vmatprep.subr.mxu0 0.0
      %1454 = vmatpush2.msra.mxu0 0.0
      %1455 = vmatprep.subr.mxu0 0.0
      %1456 = vmatpush2.msra.mxu0 0.0
      %1457 = vmatprep.subr.mxu0 0.0
      %1458 = vmatpush2.msra.mxu0 0.0
      %1459 = vmatprep.subr.mxu0 0.0
      %1460 = vmatpush2.msra.mxu0 0.0
      %1461 = vmatprep.subr.mxu0 0.0
      %1462 = vmatpush2.msra.mxu0 0.0
      %1463 = vmatprep.subr.mxu0 0.0
      %1464 = vmatpush2.msra.mxu0 0.0
      %1465 = vmatprep.subr.mxu0 0.0
      %1466 = vmatpush2.msra.mxu0 0.0
      %1467 = vmatprep.subr.mxu0 0.0
      %1468 = vmatpush2.msra.mxu0 0.0
      %1469 = vmatprep.subr.mxu0 0.0
      %1470 = vmatpush2.msra.mxu0 0.0
      %1471 = vmatprep.subr.mxu0 0.0
      %1472 = vmatpush2.msra.mxu0 0.0
      %1473 = vmatprep.subr.mxu0 0.0
      %1474 = vmatpush2.msra.mxu0 0.0
      %1475 = vmatprep.subr.mxu0 0.0
      %1476 = vmatpush2.msra.mxu0 0.0
      %1477 = vmatprep.subr.mxu0 0.0
      %1478 = vmatpush2.msra.mxu0 0.0
      %1479 = vmatprep.mubr.f32.mxu0 0.0
      %1480 = vmatmul.mubr.f32.gmra.mxu0 %v810
      %v1481 = vpop.f32.mrf.mxu0
      %v1482 = vadd.f32 0.0, %v1481
      %v1483 = vpop.f32.mrf.mxu0
      %1484 = vmatprep.mubr.f32.mxu0 0.0
      %1485 = vmatmul.mubr.f32.gmra.mxu0 %v1413
      %v1486 = vpop.f32.mrf.mxu0
      %v1487 = vadd.f32 0.0, %v1486
      %v1488 = vpop.f32.mrf.mxu0
      %1489 = vdwg.mxu0
      %v1490 = vadd.f32 %v1390, %v1482
      %v1491 = vadd.f32 %v1391, %v1487
      %v1492 = vld [vmem:[%s267] sm:$0x1]
      %v1494 = vlaneseq
      %v1495 = vshrl.u32 %v1494, 7
      %v1496 = vsub.s32 0, %v1495
      %v1497 = vrot.slane %v1492, %v1496
      %v1499 = vadd.f32 %v1490, %v1497
      %v1500 = vadd.f32 %v1491, %v1497
      %v1503 = vcombine.high %v1499, %v1499
      %v1504 = vcombine.high %v1500, %v1500
      %1507 = vst [vmem:[%s275] sm:$0xf] %v1499
      %1508 = vst [vmem:[%s275 + $0x4] sm:$0xf] %v1503
      %1509 = vst [vmem:[%s275 + $0x8] sm:$0xf] %v1500
      %1510 = vst [vmem:[%s275 + $0xc] sm:$0xf] %v1504
      %p1511 = scmp.lt.s32.totalorder %s20, 1
      %s1512 = scalar_select %p1511, %s20, 1
      %p1513 = scmp.lt.s32.totalorder %s21, 0
      %s1514 = scalar_select %p1513, %s21, 0
      %s1515 = smul.addr %s1512, 4
      %s1516 = sadd.s32 %s1514, %s1515
      %s1517 = smul.addr %s1516, 4
      %s1518 = scalar_lea.vmem %s5, %s1517
      // Predicated region
      $region41: #{discriminator_down_block.10} parent=39 // pred_check
        %p1519 = pneg %p168
      $region42: #{discriminator_down_block.10} parent=39 // pred_check_branch
        %1521 = sbr.rel (%p1519) target = $region44
      $region43: #{discriminator_down_block.10} parent=39 // pred_region
        _
      $region44: #{discriminator_down_block.10} parent=39 // pred_fallthru
        _
    $region40: #{discriminator_down_block.10} parent=5 // pred_fallthru
      _
    %p1522 = scmp.le.s32.totalorder 2, %s11
    // Predicated region
    $region45: #{discriminator_down_block.10} parent=5 // pred_check
      %p1523 = pneg %p1522
    $region46: #{discriminator_down_block.10} parent=5 // pred_check_branch
      %1525 = sbr.rel (%p1523) target = $region48
    $region47: #{discriminator_down_block.10} parent=5 // pred_region
      %s1526 = ssub.s32 %s11, 2
      // Predicated region
      $region49: #{discriminator_down_block.10} parent=47 // pred_check
        %p1527 = pneg %p174
      $region50: #{discriminator_down_block.10} parent=47 // pred_check_branch
        %1529 = sbr.rel (%p1527) target = $region52
      $region51: #{discriminator_down_block.10} parent=47 // pred_region
        %p1530 = scmp.lt.s32.totalorder %s22, 1
        %s1531 = scalar_select %p1530, %s22, 1
        %p1532 = scmp.lt.s32.totalorder %s23, 0
        %s1533 = scalar_select %p1532, %s23, 0
        %s1534 = smul.addr %s1531, 4
        %s1535 = sadd.s32 %s1533, %s1534
        %s1536 = smul.addr %s1535, 4
        %s1537 = scalar_lea.vmem %s5, %s1536
      $region52: #{discriminator_down_block.10} parent=47 // pred_fallthru
        _
    $region48: #{discriminator_down_block.10} parent=5 // pred_fallthru
      _
  $region6: #{discriminator_down_block.10} parent=0 // loop_footer
    %s15 = sadd.s32 1, %s11
  $region7: #{discriminator_down_block.10} parent=0 // loop_footer_branch
    %10 = sbr.rel target = $region3
  $region8: #{discriminator_down_block.10} parent=0 // loop_exit
    _

// kernel: discriminator_down_block.17
$region0: #{discriminator_down_block.17}
  #allocation0 [shape = 'u32[]', space=smem, size = 0x4, offset = 0x4, fixed_abs, tag = 'smem constant byte address 0x4 - core index']
  #allocation1 [shape = 'u32[144,128]{1,0:T(1,128)}', space=vmem, size = 0x12000, scoped, tag = 'internal scratch']
  %s0 = inlined_call_operand.vmem [shape: f32[2,3,3,512], index: 0, kind: input, shape index: {}]
  %s1 = inlined_call_operand.vmem [shape: f32[4,512,128], index: 1, kind: input, shape index: {}]
  %s2 = inlined_call_operand.vmem [shape: f32[1,128], index: 2, kind: input, shape index: {}]
  %s3 = inlined_call_operand.vmem [shape: f32[2,2,2,128], index: 3, kind: output, shape index: {}]
  %s4 = sld [smem:[#allocation0]]
  $region45: #{discriminator_down_block.17} parent=0
    _
  %s6 = ssub.s32 1, %s4
  %s7 = scalar_select 0, %s6, %s4
  loop: start=0, step=1, limit=4
  $region2: #{discriminator_down_block.17} parent=0 // loop_pre_header
    _
  $region3: #{discriminator_down_block.17} parent=0 // loop_header
    %s9 = sphi 0, %s13
    %p10 = scmp.ge.s32.totalorder %s9, 4
    %s16 = sphi 0, %s28
    %s17 = sphi 0, %s24
    %s18 = sphi 0, %s16
    %s19 = sphi 0, %s17
    %s20 = sphi 0, %s18
    %s21 = sphi 0, %s19
    %s31 = sphi 0, %s33
    %s34 = sphi 0, %s31
    %s35 = sphi 0, %s34
    %s51 = sphi 0, %s35
    %s57 = sphi 0, %s59
    %s60 = sphi 0, %s57
    %s61 = sphi 0, %s60
    %s77 = sphi 0, %s61
    %s83 = sphi 0, %s85
    %s86 = sphi 0, %s83
    %s87 = sphi 0, %s86
    %s103 = sphi 0, %s87
    %s111 = sphi 0, %s113
    %s114 = sphi 0, %s111
    %s115 = sphi 0, %s114
    %s131 = sphi 0, %s115
  $region4: #{discriminator_down_block.17} parent=0 // loop_header_branch
    %12 = sbr.rel (%p10) target = $region8
  $region5: #{discriminator_down_block.17} parent=0 // loop_body
    %s14 = ssub.s32 %s9, 1
    %s15 = ssub.s32 %s9, 2
    %s22 = sadd.s32 1, %s17
    %p23 = scmp.ge.s32.totalorder %s22, 1
    %s24 = scalar_select %p23, 0, %s22
    %s25 = sadd.s32 1, %s16
    %s26 = scalar_select %p23, %s25, %s16
    %p27 = scmp.ge.s32.totalorder %s26, 2
    %s28 = scalar_select %p27, 0, %s26
    %s29 = ssub.s32 %s16, %s28
    %p30 = scmp.eq.s32.totalorder %s29, 0
    %s32 = sadd.s32 %s31, 1
    %s33 = scalar_select %p30, %s31, %s32
    %p36 = pneg %p30
    %p37 = scmp.eq.s32.totalorder %s9, 1
    %p38 = por %p36, %p37
    %p39 = scmp.ne.s32.totalorder %s31, %s34
    %p40 = scmp.eq.s32.totalorder %s9, 0
    %p41 = por %p39, %p40
    %p42 = scmp.ne.s32.totalorder %s31, %s34
    %p43 = scmp.eq.s32.totalorder %s14, 1
    %p44 = por %p42, %p43
    %p45 = scmp.ne.s32.totalorder %s34, %s35
    %p46 = scmp.eq.s32.totalorder %s14, 0
    %p47 = por %p45, %p46
    %p48 = scmp.ne.s32.totalorder %s34, %s35
    %p49 = scmp.eq.s32.totalorder %s15, 1
    %p50 = por %p48, %p49
    %p52 = scmp.ne.s32.totalorder %s35, %s51
    %p53 = scmp.eq.s32.totalorder %s15, 0
    %p54 = por %p52, %p53
    %s55 = ssub.s32 %s17, %s24
    %p56 = scmp.eq.s32.totalorder %s55, 0
    %s58 = sadd.s32 %s57, 1
    %s59 = scalar_select %p56, %s57, %s58
    %p62 = pneg %p56
    %p63 = scmp.eq.s32.totalorder %s9, 1
    %p64 = por %p62, %p63
    %p65 = scmp.ne.s32.totalorder %s57, %s60
    %p66 = scmp.eq.s32.totalorder %s9, 0
    %p67 = por %p65, %p66
    %p68 = scmp.ne.s32.totalorder %s57, %s60
    %p69 = scmp.eq.s32.totalorder %s14, 1
    %p70 = por %p68, %p69
    %p71 = scmp.ne.s32.totalorder %s60, %s61
    %p72 = scmp.eq.s32.totalorder %s14, 0
    %p73 = por %p71, %p72
    %p74 = scmp.ne.s32.totalorder %s60, %s61
    %p75 = scmp.eq.s32.totalorder %s15, 1
    %p76 = por %p74, %p75
    %p78 = scmp.ne.s32.totalorder %s61, %s77
    %p79 = scmp.eq.s32.totalorder %s15, 0
    %p80 = por %p78, %p79
    %s81 = ssub.s32 %s17, %s24
    %p82 = scmp.eq.s32.totalorder %s81, 0
    %s84 = sadd.s32 %s83, 1
    %s85 = scalar_select %p82, %s83, %s84
    %p88 = pneg %p82
    %p89 = scmp.eq.s32.totalorder %s9, 1
    %p90 = por %p88, %p89
    %p91 = scmp.ne.s32.totalorder %s83, %s86
    %p92 = scmp.eq.s32.totalorder %s9, 0
    %p93 = por %p91, %p92
    %p94 = scmp.ne.s32.totalorder %s83, %s86
    %p95 = scmp.eq.s32.totalorder %s14, 1
    %p96 = por %p94, %p95
    %p97 = scmp.ne.s32.totalorder %s86, %s87
    %p98 = scmp.eq.s32.totalorder %s14, 0
    %p99 = por %p97, %p98
    %p100 = scmp.ne.s32.totalorder %s86, %s87
    %p101 = scmp.eq.s32.totalorder %s15, 1
    %p102 = por %p100, %p101
    %p104 = scmp.ne.s32.totalorder %s87, %s103
    %p105 = scmp.eq.s32.totalorder %s15, 0
    %p106 = por %p104, %p105
    %s107 = ssub.s32 %s16, %s28
    %s108 = ssub.s32 %s17, %s24
    %s109 = sor.u32 %s107, %s108
    %p110 = scmp.eq.s32.totalorder %s109, 0
    %s112 = sadd.s32 %s111, 1
    %s113 = scalar_select %p110, %s111, %s112
    %p116 = pneg %p110
    %p117 = scmp.eq.s32.totalorder %s9, 1
    %p118 = por %p116, %p117
    %p119 = scmp.ne.s32.totalorder %s111, %s114
    %p120 = scmp.eq.s32.totalorder %s9, 0
    %p121 = por %p119, %p120
    %p122 = scmp.ne.s32.totalorder %s111, %s114
    %p123 = scmp.eq.s32.totalorder %s14, 1
    %p124 = por %p122, %p123
    %p125 = scmp.ne.s32.totalorder %s114, %s115
    %p126 = scmp.eq.s32.totalorder %s14, 0
    %p127 = por %p125, %p126
    %p128 = scmp.ne.s32.totalorder %s114, %s115
    %p129 = scmp.eq.s32.totalorder %s15, 1
    %p130 = por %p128, %p129
    %p132 = scmp.ne.s32.totalorder %s115, %s131
    %p133 = scmp.eq.s32.totalorder %s15, 0
    %p134 = por %p132, %p133
    %p135 = scmp.le.s32.totalorder 1, %s9
    %p136 = scmp.lt.s32.totalorder %s9, 3
    %p137 = pnand %p135, %p136
    %p138 = pneg %p137
    // Predicated region
    $region9: #{discriminator_down_block.17} parent=5 // pred_check
      _
    $region10: #{discriminator_down_block.17} parent=5 // pred_check_branch
      %140 = sbr.rel (%p137) target = $region12
    $region11: #{discriminator_down_block.17} parent=5 // pred_region
      %s141 = ssub.s32 %s9, 1
      // Predicated region
      $region13: #{discriminator_down_block.17} parent=11 // pred_check
        %p142 = pneg %p73
      $region14: #{discriminator_down_block.17} parent=11 // pred_check_branch
        %144 = sbr.rel (%p142) target = $region16
      $region15: #{discriminator_down_block.17} parent=11 // pred_region
        %p145 = scmp.lt.s32.totalorder %s19, 0
        %s146 = scalar_select %p145, %s19, 0
        %s147 = smul.addr %s146, 8
        %s148 = scalar_lea.vmem %s1, %s147
      $region16: #{discriminator_down_block.17} parent=11 // pred_fallthru
        _
      // Predicated region
      $region17: #{discriminator_down_block.17} parent=11 // pred_check
        %p149 = pneg %p99
      $region18: #{discriminator_down_block.17} parent=11 // pred_check_branch
        %151 = sbr.rel (%p149) target = $region20
      $region19: #{discriminator_down_block.17} parent=11 // pred_region
        %p152 = scmp.lt.s32.totalorder %s19, 0
        %s153 = scalar_select %p152, %s19, 0
        %s154 = scalar_lea.vmem %s2, %s153
      $region20: #{discriminator_down_block.17} parent=11 // pred_fallthru
        _
    $region12: #{discriminator_down_block.17} parent=5 // pred_fallthru
      _
    %p155 = scmp.lt.s32.totalorder %s9, 2
    // Predicated region
    $region21: #{discriminator_down_block.17} parent=5 // pred_check
      %p156 = pneg %p155
    $region22: #{discriminator_down_block.17} parent=5 // pred_check_branch
      %158 = sbr.rel (%p156) target = $region24
    $region23: #{discriminator_down_block.17} parent=5 // pred_region
      // Predicated region
      $region25: #{discriminator_down_block.17} parent=23 // pred_check
        %p159 = pneg %p41
      $region26: #{discriminator_down_block.17} parent=23 // pred_check_branch
        %161 = sbr.rel (%p159) target = $region28
      $region27: #{discriminator_down_block.17} parent=23 // pred_region
        %p162 = scmp.lt.s32.totalorder %s16, 1
        %s163 = scalar_select %p162, %s16, 1
        %s164 = smul.addr %s163, 12
        %s165 = smul.addr %s164, 4
        %s166 = scalar_lea.vmem %s0, %s165
      $region28: #{discriminator_down_block.17} parent=23 // pred_fallthru
        _
    $region24: #{discriminator_down_block.17} parent=5 // pred_fallthru
      _
    %p167 = scmp.le.s32.totalorder 1, %s9
    %p168 = scmp.lt.s32.totalorder %s9, 3
    %p169 = pnand %p167, %p168
    %p170 = pneg %p169
    // Predicated region
    $region29: #{discriminator_down_block.17} parent=5 // pred_check
      _
    $region30: #{discriminator_down_block.17} parent=5 // pred_check_branch
      %172 = sbr.rel (%p169) target = $region32
    $region31: #{discriminator_down_block.17} parent=5 // pred_region
      %s173 = ssub.s32 %s9, 1
      %p174 = scmp.lt.s32.totalorder %s18, 1
      %s175 = scalar_select %p174, %s18, 1
      %s176 = smul.addr %s175, 12
      %s177 = smul.addr %s176, 4
      %s178 = scalar_lea.vmem %s0, %s177
      %p179 = pneg %p47
      %p180 = pneg %p44
      %p181 = scmp.lt.s32.totalorder %s19, 0
      %s182 = scalar_select %p181, %s19, 0
      %s183 = smul.addr %s182, 8
      %s184 = scalar_lea.vmem %s1, %s183
      %p185 = pneg %p73
      %p186 = pneg %p70
      %p187 = scmp.lt.s32.totalorder %s19, 0
      %s188 = scalar_select %p187, %s19, 0
      %s189 = scalar_lea.vmem %s2, %s188
      %p190 = pneg %p99
      %p191 = pneg %p96
      %p192 = pneg %p127
      %p193 = pneg %p124
      %p194 = scmp.lt.s32.totalorder %s18, 1
      %s195 = scalar_select %p194, %s18, 1
      %p196 = scmp.lt.s32.totalorder %s19, 0
      %s197 = scalar_select %p196, %s19, 0
      %s198 = smul.addr %s195, 2
      %s199 = sadd.s32 %s197, %s198
      %s200 = smul.addr %s199, 2
      %s201 = scalar_lea.vmem %s3, %s200
      %p202 = scmp.lt.s32.totalorder %s18, 1
      %s203 = scalar_select %p202, %s18, 1
      %s204 = smul.addr %s203, 12
      %s205 = smul.addr %s204, 4
      %s206 = scalar_lea.vmem %s0, %s205
      %p207 = scmp.lt.s32.totalorder %s19, 0
      %s208 = scalar_select %p207, %s19, 0
      %s209 = smul.addr %s208, 8
      %s210 = scalar_lea.vmem %s1, %s209
      %p211 = scmp.lt.s32.totalorder %s19, 0
      %s212 = scalar_select %p211, %s19, 0
      %s213 = scalar_lea.vmem %s2, %s212
      %p214 = scmp.lt.s32.totalorder %s18, 1
      %s215 = scalar_select %p214, %s18, 1
      %p216 = scmp.lt.s32.totalorder %s19, 0
      %s217 = scalar_select %p216, %s19, 0
      %s218 = smul.addr %s215, 2
      %s219 = sadd.s32 %s217, %s218
      %s220 = smul.addr %s219, 2
      %s221 = scalar_lea.vmem %s3, %s220
      %v222 = vld [vmem:[%s206] sm:$0x77]
      %v223 = vld [vmem:[%s206 + $0x8] sm:$0x77]
      %v224 = vld [vmem:[%s206 + $0x10] sm:$0x77]
      %v225 = vld [vmem:[%s206 + $0x18] sm:$0x77]
      %v226 = vld [vmem:[%s206 + $0x20] sm:$0x77]
      %v227 = vld [vmem:[%s206 + $0x28] sm:$0x77]
      %v233 = vunpack.c.l.s4 1983009808
      %v234 = vunpack.c.0.s8 %v233
      %v235 = vlaneseq
      %v236 = vshrl.u32 %v235, 7
      %v237 = vsub.s32 %v234, %v236
      %v238 = vrot.slane %v222, %v237
      %v240 = vunpack.c.l.s4 1983009808
      %v241 = vunpack.c.0.s8 %v240
      %v242 = vlaneseq
      %v243 = vshrl.u32 %v242, 7
      %v244 = vsub.s32 %v241, %v243
      %v245 = vrot.slane %v223, %v244
      %v246 = vcombine.low %v238, %v245
      %v248 = vunpack.c.l.s4 1983009808
      %v249 = vunpack.c.0.s8 %v248
      %v250 = vlaneseq
      %v251 = vshrl.u32 %v250, 7
      %v252 = vsub.s32 %v249, %v251
      %v253 = vrot.slane %v224, %v252
      %v255 = vunpack.c.l.s4 1983009808
      %v256 = vunpack.c.0.s8 %v255
      %v257 = vlaneseq
      %v258 = vshrl.u32 %v257, 7
      %v259 = vsub.s32 %v256, %v258
      %v260 = vrot.slane %v225, %v259
      %v261 = vcombine.low %v253, %v260
      %v262 = vld [vmem:[%s210] sm:$0xff]
      %v263 = vld [vmem:[%s210 + $0x8] sm:$0xff]
      %v264 = vld [vmem:[%s210 + $0x10] sm:$0xff]
      %v265 = vld [vmem:[%s210 + $0x18] sm:$0xff]
      %v266 = vld [vmem:[%s210 + $0x20] sm:$0xff]
      %v267 = vld [vmem:[%s210 + $0x28] sm:$0xff]
      %v268 = vld [vmem:[%s210 + $0x30] sm:$0xff]
      %v269 = vld [vmem:[%s210 + $0x38] sm:$0xff]
      %v270 = vld [vmem:[%s210 + $0x40] sm:$0xff]
      %v271 = vld [vmem:[%s210 + $0x48] sm:$0xff]
      %v272 = vld [vmem:[%s210 + $0x50] sm:$0xff]
      %v273 = vld [vmem:[%s210 + $0x58] sm:$0xff]
      %v274 = vld [vmem:[%s210 + $0x60] sm:$0xff]
      %v275 = vld [vmem:[%s210 + $0x68] sm:$0xff]
      %v276 = vld [vmem:[%s210 + $0x70] sm:$0xff]
      %v277 = vld [vmem:[%s210 + $0x78] sm:$0xff]
      %v278 = vld [vmem:[%s210 + $0x80] sm:$0xff]
      %v279 = vld [vmem:[%s210 + $0x88] sm:$0xff]
      %v280 = vld [vmem:[%s210 + $0x90] sm:$0xff]
      %v281 = vld [vmem:[%s210 + $0x98] sm:$0xff]
      %v282 = vld [vmem:[%s210 + $0xa0] sm:$0xff]
      %v283 = vld [vmem:[%s210 + $0xa8] sm:$0xff]
      %v284 = vld [vmem:[%s210 + $0xb0] sm:$0xff]
      %v285 = vld [vmem:[%s210 + $0xb8] sm:$0xff]
      %v286 = vld [vmem:[%s210 + $0xc0] sm:$0xff]
      %v287 = vld [vmem:[%s210 + $0xc8] sm:$0xff]
      %v288 = vld [vmem:[%s210 + $0xd0] sm:$0xff]
      %v289 = vld [vmem:[%s210 + $0xd8] sm:$0xff]
      %v290 = vld [vmem:[%s210 + $0xe0] sm:$0xff]
      %v291 = vld [vmem:[%s210 + $0xe8] sm:$0xff]
      %v292 = vld [vmem:[%s210 + $0xf0] sm:$0xff]
      %v293 = vld [vmem:[%s210 + $0xf8] sm:$0xff]
      %v294 = vld [vmem:[%s210 + $0x100] sm:$0xff]
      %v295 = vld [vmem:[%s210 + $0x108] sm:$0xff]
      %v296 = vld [vmem:[%s210 + $0x110] sm:$0xff]
      %v297 = vld [vmem:[%s210 + $0x118] sm:$0xff]
      %v298 = vld [vmem:[%s210 + $0x120] sm:$0xff]
      %v299 = vld [vmem:[%s210 + $0x128] sm:$0xff]
      %v300 = vld [vmem:[%s210 + $0x130] sm:$0xff]
      %v301 = vld [vmem:[%s210 + $0x138] sm:$0xff]
      %v302 = vld [vmem:[%s210 + $0x140] sm:$0xff]
      %v303 = vld [vmem:[%s210 + $0x148] sm:$0xff]
      %v304 = vld [vmem:[%s210 + $0x150] sm:$0xff]
      %v305 = vld [vmem:[%s210 + $0x158] sm:$0xff]
      %v306 = vld [vmem:[%s210 + $0x160] sm:$0xff]
      %v307 = vld [vmem:[%s210 + $0x168] sm:$0xff]
      %v308 = vld [vmem:[%s210 + $0x170] sm:$0xff]
      %v309 = vld [vmem:[%s210 + $0x178] sm:$0xff]
      %v310 = vld [vmem:[%s210 + $0x180] sm:$0xff]
      %v311 = vld [vmem:[%s210 + $0x188] sm:$0xff]
      %v312 = vld [vmem:[%s210 + $0x190] sm:$0xff]
      %v313 = vld [vmem:[%s210 + $0x198] sm:$0xff]
      %v314 = vld [vmem:[%s210 + $0x1a0] sm:$0xff]
      %v315 = vld [vmem:[%s210 + $0x1a8] sm:$0xff]
      %v316 = vld [vmem:[%s210 + $0x1b0] sm:$0xff]
      %v317 = vld [vmem:[%s210 + $0x1b8] sm:$0xff]
      %v318 = vld [vmem:[%s210 + $0x1c0] sm:$0xff]
      %v319 = vld [vmem:[%s210 + $0x1c8] sm:$0xff]
      %v320 = vld [vmem:[%s210 + $0x1d0] sm:$0xff]
      %v321 = vld [vmem:[%s210 + $0x1d8] sm:$0xff]
      %v322 = vld [vmem:[%s210 + $0x1e0] sm:$0xff]
      %v323 = vld [vmem:[%s210 + $0x1e8] sm:$0xff]
      %v324 = vld [vmem:[%s210 + $0x1f0] sm:$0xff]
      %v325 = vld [vmem:[%s210 + $0x1f8] sm:$0xff]
      %v326 = vcombine.high %v238, %v245
      %v327 = vcombine.high %v253, %v260
      %vm328 = vcmask 1040384
      %vm329 = vcmask 1042434
      %vm330 = vmor %vm328, %vm329
      %vm331 = vcmask 1044484
      %vm332 = vmor %vm330, %vm331
      %vm333 = vcmask 1046534
      %vm334 = vmor %vm332, %vm333
      %v335 = vrot.slane %v246, 7
      %v336 = vrot.slane %v335, 2
      %v337 = vrot.slane %v326, 7
      %v338 = vsel %vm334, %v336, %v337
      %v339 = vrot.slane %v261, 7
      %v340 = vrot.slane %v339, 2
      %v341 = vrot.slane %v327, 7
      %v342 = vsel %vm334, %v340, %v341
      %s343 = scalar_lea.vmem %s210, 512
      %v344 = vld [vmem:[%s343] sm:$0xff]
      %v345 = vld [vmem:[%s343 + $0x8] sm:$0xff]
      %v346 = vld [vmem:[%s343 + $0x10] sm:$0xff]
      %v347 = vld [vmem:[%s343 + $0x18] sm:$0xff]
      %v348 = vld [vmem:[%s343 + $0x20] sm:$0xff]
      %v349 = vld [vmem:[%s343 + $0x28] sm:$0xff]
      %v350 = vld [vmem:[%s343 + $0x30] sm:$0xff]
      %v351 = vld [vmem:[%s343 + $0x38] sm:$0xff]
      %v352 = vld [vmem:[%s343 + $0x40] sm:$0xff]
      %v353 = vld [vmem:[%s343 + $0x48] sm:$0xff]
      %v354 = vld [vmem:[%s343 + $0x50] sm:$0xff]
      %v355 = vld [vmem:[%s343 + $0x58] sm:$0xff]
      %v356 = vld [vmem:[%s343 + $0x60] sm:$0xff]
      %v357 = vld [vmem:[%s343 + $0x68] sm:$0xff]
      %v358 = vld [vmem:[%s343 + $0x70] sm:$0xff]
      %v359 = vld [vmem:[%s343 + $0x78] sm:$0xff]
      %v360 = vld [vmem:[%s343 + $0x80] sm:$0xff]
      %v361 = vld [vmem:[%s343 + $0x88] sm:$0xff]
      %v362 = vld [vmem:[%s343 + $0x90] sm:$0xff]
      %v363 = vld [vmem:[%s343 + $0x98] sm:$0xff]
      %v364 = vld [vmem:[%s343 + $0xa0] sm:$0xff]
      %v365 = vld [vmem:[%s343 + $0xa8] sm:$0xff]
      %v366 = vld [vmem:[%s343 + $0xb0] sm:$0xff]
      %v367 = vld [vmem:[%s343 + $0xb8] sm:$0xff]
      %v368 = vld [vmem:[%s343 + $0xc0] sm:$0xff]
      %v369 = vld [vmem:[%s343 + $0xc8] sm:$0xff]
      %v370 = vld [vmem:[%s343 + $0xd0] sm:$0xff]
      %v371 = vld [vmem:[%s343 + $0xd8] sm:$0xff]
      %v372 = vld [vmem:[%s343 + $0xe0] sm:$0xff]
      %v373 = vld [vmem:[%s343 + $0xe8] sm:$0xff]
      %v374 = vld [vmem:[%s343 + $0xf0] sm:$0xff]
      %v375 = vld [vmem:[%s343 + $0xf8] sm:$0xff]
      %v376 = vld [vmem:[%s343 + $0x100] sm:$0xff]
      %v377 = vld [vmem:[%s343 + $0x108] sm:$0xff]
      %v378 = vld [vmem:[%s343 + $0x110] sm:$0xff]
      %v379 = vld [vmem:[%s343 + $0x118] sm:$0xff]
      %v380 = vld [vmem:[%s343 + $0x120] sm:$0xff]
      %v381 = vld [vmem:[%s343 + $0x128] sm:$0xff]
      %v382 = vld [vmem:[%s343 + $0x130] sm:$0xff]
      %v383 = vld [vmem:[%s343 + $0x138] sm:$0xff]
      %v384 = vld [vmem:[%s343 + $0x140] sm:$0xff]
      %v385 = vld [vmem:[%s343 + $0x148] sm:$0xff]
      %v386 = vld [vmem:[%s343 + $0x150] sm:$0xff]
      %v387 = vld [vmem:[%s343 + $0x158] sm:$0xff]
      %v388 = vld [vmem:[%s343 + $0x160] sm:$0xff]
      %v389 = vld [vmem:[%s343 + $0x168] sm:$0xff]
      %v390 = vld [vmem:[%s343 + $0x170] sm:$0xff]
      %v391 = vld [vmem:[%s343 + $0x178] sm:$0xff]
      %v392 = vld [vmem:[%s343 + $0x180] sm:$0xff]
      %v393 = vld [vmem:[%s343 + $0x188] sm:$0xff]
      %v394 = vld [vmem:[%s343 + $0x190] sm:$0xff]
      %v395 = vld [vmem:[%s343 + $0x198] sm:$0xff]
      %v396 = vld [vmem:[%s343 + $0x1a0] sm:$0xff]
      %v397 = vld [vmem:[%s343 + $0x1a8] sm:$0xff]
      %v398 = vld [vmem:[%s343 + $0x1b0] sm:$0xff]
      %v399 = vld [vmem:[%s343 + $0x1b8] sm:$0xff]
      %v400 = vld [vmem:[%s343 + $0x1c0] sm:$0xff]
      %v401 = vld [vmem:[%s343 + $0x1c8] sm:$0xff]
      %v402 = vld [vmem:[%s343 + $0x1d0] sm:$0xff]
      %v403 = vld [vmem:[%s343 + $0x1d8] sm:$0xff]
      %v404 = vld [vmem:[%s343 + $0x1e0] sm:$0xff]
      %v405 = vld [vmem:[%s343 + $0x1e8] sm:$0xff]
      %v406 = vld [vmem:[%s343 + $0x1f0] sm:$0xff]
      %v407 = vld [vmem:[%s343 + $0x1f8] sm:$0xff]
      %v408 = vcombine.low %v338, %v342
      %v409 = vcombine.high %v338, %v342
      %v411 = vunpack.c.l.s4 1983009808
      %v412 = vunpack.c.0.s8 %v411
      %v413 = vlaneseq
      %v414 = vshrl.u32 %v413, 7
      %v415 = vsub.s32 %v412, %v414
      %v416 = vrot.slane %v408, %v415
      %v418 = vunpack.c.l.s4 1983009808
      %v419 = vunpack.c.0.s8 %v418
      %v420 = vlaneseq
      %v421 = vshrl.u32 %v420, 7
      %v422 = vsub.s32 %v419, %v421
      %v423 = vrot.slane %v409, %v422
      %v424 = vcombine.high %v416, %v416
      %v425 = vcombine.high %v423, %v423
      %430 = vmatprep.subr.mxu0 0.0
      %431 = vmatpush1.msra.mxu0 %v359
      %432 = vmatprep.subr.mxu0 0.0
      %433 = vmatpush1.msra.mxu0 %v358
      %434 = vmatprep.subr.mxu0 0.0
      %435 = vmatpush1.msra.mxu0 %v357
      %436 = vmatprep.subr.mxu0 0.0
      %437 = vmatpush1.msra.mxu0 %v356
      %438 = vmatprep.subr.mxu0 0.0
      %439 = vmatpush1.msra.mxu0 %v355
      %440 = vmatprep.subr.mxu0 0.0
      %441 = vmatpush1.msra.mxu0 %v354
      %442 = vmatprep.subr.mxu0 0.0
      %443 = vmatpush1.msra.mxu0 %v353
      %444 = vmatprep.subr.mxu0 0.0
      %445 = vmatpush1.msra.mxu0 %v352
      %446 = vmatprep.subr.mxu0 0.0
      %447 = vmatpush1.msra.mxu0 %v351
      %448 = vmatprep.subr.mxu0 0.0
      %449 = vmatpush1.msra.mxu0 %v350
      %450 = vmatprep.subr.mxu0 0.0
      %451 = vmatpush1.msra.mxu0 %v349
      %452 = vmatprep.subr.mxu0 0.0
      %453 = vmatpush1.msra.mxu0 %v348
      %454 = vmatprep.subr.mxu0 0.0
      %455 = vmatpush1.msra.mxu0 %v347
      %456 = vmatprep.subr.mxu0 0.0
      %457 = vmatpush1.msra.mxu0 %v346
      %458 = vmatprep.subr.mxu0 0.0
      %459 = vmatpush1.msra.mxu0 %v345
      %460 = vmatprep.subr.mxu0 0.0
      %461 = vmatpush1.msra.mxu0 %v344
      %462 = vmatprep.subr.mxu0 0.0
      %463 = vmatpush2.msra.mxu0 %v375
      %464 = vmatprep.subr.mxu0 0.0
      %465 = vmatpush2.msra.mxu0 %v374
      %466 = vmatprep.subr.mxu0 0.0
      %467 = vmatpush2.msra.mxu0 %v373
      %468 = vmatprep.subr.mxu0 0.0
      %469 = vmatpush2.msra.mxu0 %v372
      %470 = vmatprep.subr.mxu0 0.0
      %471 = vmatpush2.msra.mxu0 %v371
      %472 = vmatprep.subr.mxu0 0.0
      %473 = vmatpush2.msra.mxu0 %v370
      %474 = vmatprep.subr.mxu0 0.0
      %475 = vmatpush2.msra.mxu0 %v369
      %476 = vmatprep.subr.mxu0 0.0
      %477 = vmatpush2.msra.mxu0 %v368
      %478 = vmatprep.subr.mxu0 0.0
      %479 = vmatpush2.msra.mxu0 %v367
      %480 = vmatprep.subr.mxu0 0.0
      %481 = vmatpush2.msra.mxu0 %v366
      %482 = vmatprep.subr.mxu0 0.0
      %483 = vmatpush2.msra.mxu0 %v365
      %484 = vmatprep.subr.mxu0 0.0
      %485 = vmatpush2.msra.mxu0 %v364
      %486 = vmatprep.subr.mxu0 0.0
      %487 = vmatpush2.msra.mxu0 %v363
      %488 = vmatprep.subr.mxu0 0.0
      %489 = vmatpush2.msra.mxu0 %v362
      %490 = vmatprep.subr.mxu0 0.0
      %491 = vmatpush2.msra.mxu0 %v361
      %492 = vmatprep.subr.mxu0 0.0
      %493 = vmatpush2.msra.mxu0 %v360
      %494 = vmatprep.mubr.f32.mxu0 %v424
      %495 = vmatmul.mubr.f32.gmra.mxu0 %v416
      %v496 = vpop.f32.mrf.mxu0
      %v497 = vadd.f32 0.0, %v496
      %v498 = vpop.f32.mrf.mxu0
      %499 = vdwg.mxu0
      %500 = vmatprep.subr.mxu0 0.0
      %501 = vmatpush1.msra.mxu0 %v391
      %502 = vmatprep.subr.mxu0 0.0
      %503 = vmatpush1.msra.mxu0 %v390
      %504 = vmatprep.subr.mxu0 0.0
      %505 = vmatpush1.msra.mxu0 %v389
      %506 = vmatprep.subr.mxu0 0.0
      %507 = vmatpush1.msra.mxu0 %v388
      %508 = vmatprep.subr.mxu0 0.0
      %509 = vmatpush1.msra.mxu0 %v387
      %510 = vmatprep.subr.mxu0 0.0
      %511 = vmatpush1.msra.mxu0 %v386
      %512 = vmatprep.subr.mxu0 0.0
      %513 = vmatpush1.msra.mxu0 %v385
      %514 = vmatprep.subr.mxu0 0.0
      %515 = vmatpush1.msra.mxu0 %v384
      %516 = vmatprep.subr.mxu0 0.0
      %517 = vmatpush1.msra.mxu0 %v383
      %518 = vmatprep.subr.mxu0 0.0
      %519 = vmatpush1.msra.mxu0 %v382
      %520 = vmatprep.subr.mxu0 0.0
      %521 = vmatpush1.msra.mxu0 %v381
      %522 = vmatprep.subr.mxu0 0.0
      %523 = vmatpush1.msra.mxu0 %v380
      %524 = vmatprep.subr.mxu0 0.0
      %525 = vmatpush1.msra.mxu0 %v379
      %526 = vmatprep.subr.mxu0 0.0
      %527 = vmatpush1.msra.mxu0 %v378
      %528 = vmatprep.subr.mxu0 0.0
      %529 = vmatpush1.msra.mxu0 %v377
      %530 = vmatprep.subr.mxu0 0.0
      %531 = vmatpush1.msra.mxu0 %v376
      %532 = vmatprep.subr.mxu0 0.0
      %533 = vmatpush2.msra.mxu0 %v407
      %534 = vmatprep.subr.mxu0 0.0
      %535 = vmatpush2.msra.mxu0 %v406
      %536 = vmatprep.subr.mxu0 0.0
      %537 = vmatpush2.msra.mxu0 %v405
      %538 = vmatprep.subr.mxu0 0.0
      %539 = vmatpush2.msra.mxu0 %v404
      %540 = vmatprep.subr.mxu0 0.0
      %541 = vmatpush2.msra.mxu0 %v403
      %542 = vmatprep.subr.mxu0 0.0
      %543 = vmatpush2.msra.mxu0 %v402
      %544 = vmatprep.subr.mxu0 0.0
      %545 = vmatpush2.msra.mxu0 %v401
      %546 = vmatprep.subr.mxu0 0.0
      %547 = vmatpush2.msra.mxu0 %v400
      %548 = vmatprep.subr.mxu0 0.0
      %549 = vmatpush2.msra.mxu0 %v399
      %550 = vmatprep.subr.mxu0 0.0
      %551 = vmatpush2.msra.mxu0 %v398
      %552 = vmatprep.subr.mxu0 0.0
      %553 = vmatpush2.msra.mxu0 %v397
      %554 = vmatprep.subr.mxu0 0.0
      %555 = vmatpush2.msra.mxu0 %v396
      %556 = vmatprep.subr.mxu0 0.0
      %557 = vmatpush2.msra.mxu0 %v395
      %558 = vmatprep.subr.mxu0 0.0
      %559 = vmatpush2.msra.mxu0 %v394
      %560 = vmatprep.subr.mxu0 0.0
      %561 = vmatpush2.msra.mxu0 %v393
      %562 = vmatprep.subr.mxu0 0.0
      %563 = vmatpush2.msra.mxu0 %v392
      %564 = vmatprep.mubr.f32.mxu0 %v425
      %565 = vmatmul.mubr.f32.gmra.mxu0 %v423
      %v566 = vpop.f32.mrf.mxu0
      %v567 = vadd.f32 %v497, %v566
      %v568 = vpop.f32.mrf.mxu0
      %569 = vdwg.mxu0
      %v570 = vcombine.low %v246, %v261
      %v571 = vcombine.high %v246, %v261
      %v573 = vunpack.c.l.s4 1983009808
      %v574 = vunpack.c.0.s8 %v573
      %v575 = vlaneseq
      %v576 = vshrl.u32 %v575, 7
      %v577 = vsub.s32 %v574, %v576
      %v578 = vrot.slane %v570, %v577
      %v580 = vunpack.c.l.s4 1983009808
      %v581 = vunpack.c.0.s8 %v580
      %v582 = vlaneseq
      %v583 = vshrl.u32 %v582, 7
      %v584 = vsub.s32 %v581, %v583
      %v585 = vrot.slane %v571, %v584
      %v586 = vcombine.high %v578, %v578
      %v587 = vcombine.high %v585, %v585
      %592 = vmatprep.subr.mxu0 0.0
      %593 = vmatpush1.msra.mxu0 %v277
      %594 = vmatprep.subr.mxu0 0.0
      %595 = vmatpush1.msra.mxu0 %v276
      %596 = vmatprep.subr.mxu0 0.0
      %597 = vmatpush1.msra.mxu0 %v275
      %598 = vmatprep.subr.mxu0 0.0
      %599 = vmatpush1.msra.mxu0 %v274
      %600 = vmatprep.subr.mxu0 0.0
      %601 = vmatpush1.msra.mxu0 %v273
      %602 = vmatprep.subr.mxu0 0.0
      %603 = vmatpush1.msra.mxu0 %v272
      %604 = vmatprep.subr.mxu0 0.0
      %605 = vmatpush1.msra.mxu0 %v271
      %606 = vmatprep.subr.mxu0 0.0
      %607 = vmatpush1.msra.mxu0 %v270
      %608 = vmatprep.subr.mxu0 0.0
      %609 = vmatpush1.msra.mxu0 %v269
      %610 = vmatprep.subr.mxu0 0.0
      %611 = vmatpush1.msra.mxu0 %v268
      %612 = vmatprep.subr.mxu0 0.0
      %613 = vmatpush1.msra.mxu0 %v267
      %614 = vmatprep.subr.mxu0 0.0
      %615 = vmatpush1.msra.mxu0 %v266
      %616 = vmatprep.subr.mxu0 0.0
      %617 = vmatpush1.msra.mxu0 %v265
      %618 = vmatprep.subr.mxu0 0.0
      %619 = vmatpush1.msra.mxu0 %v264
      %620 = vmatprep.subr.mxu0 0.0
      %621 = vmatpush1.msra.mxu0 %v263
      %622 = vmatprep.subr.mxu0 0.0
      %623 = vmatpush1.msra.mxu0 %v262
      %624 = vmatprep.subr.mxu0 0.0
      %625 = vmatpush2.msra.mxu0 %v293
      %626 = vmatprep.subr.mxu0 0.0
      %627 = vmatpush2.msra.mxu0 %v292
      %628 = vmatprep.subr.mxu0 0.0
      %629 = vmatpush2.msra.mxu0 %v291
      %630 = vmatprep.subr.mxu0 0.0
      %631 = vmatpush2.msra.mxu0 %v290
      %632 = vmatprep.subr.mxu0 0.0
      %633 = vmatpush2.msra.mxu0 %v289
      %634 = vmatprep.subr.mxu0 0.0
      %635 = vmatpush2.msra.mxu0 %v288
      %636 = vmatprep.subr.mxu0 0.0
      %637 = vmatpush2.msra.mxu0 %v287
      %638 = vmatprep.subr.mxu0 0.0
      %639 = vmatpush2.msra.mxu0 %v286
      %640 = vmatprep.subr.mxu0 0.0
      %641 = vmatpush2.msra.mxu0 %v285
      %642 = vmatprep.subr.mxu0 0.0
      %643 = vmatpush2.msra.mxu0 %v284
      %644 = vmatprep.subr.mxu0 0.0
      %645 = vmatpush2.msra.mxu0 %v283
      %646 = vmatprep.subr.mxu0 0.0
      %647 = vmatpush2.msra.mxu0 %v282
      %648 = vmatprep.subr.mxu0 0.0
      %649 = vmatpush2.msra.mxu0 %v281
      %650 = vmatprep.subr.mxu0 0.0
      %651 = vmatpush2.msra.mxu0 %v280
      %652 = vmatprep.subr.mxu0 0.0
      %653 = vmatpush2.msra.mxu0 %v279
      %654 = vmatprep.subr.mxu0 0.0
      %655 = vmatpush2.msra.mxu0 %v278
      %656 = vmatprep.mubr.f32.mxu0 %v586
      %657 = vmatmul.mubr.f32.gmra.mxu0 %v578
      %v658 = vpop.f32.mrf.mxu0
      %v659 = vadd.f32 %v567, %v658
      %v660 = vpop.f32.mrf.mxu0
      %661 = vdwg.mxu0
      %662 = vmatprep.subr.mxu0 0.0
      %663 = vmatpush1.msra.mxu0 %v309
      %664 = vmatprep.subr.mxu0 0.0
      %665 = vmatpush1.msra.mxu0 %v308
      %666 = vmatprep.subr.mxu0 0.0
      %667 = vmatpush1.msra.mxu0 %v307
      %668 = vmatprep.subr.mxu0 0.0
      %669 = vmatpush1.msra.mxu0 %v306
      %670 = vmatprep.subr.mxu0 0.0
      %671 = vmatpush1.msra.mxu0 %v305
      %672 = vmatprep.subr.mxu0 0.0
      %673 = vmatpush1.msra.mxu0 %v304
      %674 = vmatprep.subr.mxu0 0.0
      %675 = vmatpush1.msra.mxu0 %v303
      %676 = vmatprep.subr.mxu0 0.0
      %677 = vmatpush1.msra.mxu0 %v302
      %678 = vmatprep.subr.mxu0 0.0
      %679 = vmatpush1.msra.mxu0 %v301
      %680 = vmatprep.subr.mxu0 0.0
      %681 = vmatpush1.msra.mxu0 %v300
      %682 = vmatprep.subr.mxu0 0.0
      %683 = vmatpush1.msra.mxu0 %v299
      %684 = vmatprep.subr.mxu0 0.0
      %685 = vmatpush1.msra.mxu0 %v298
      %686 = vmatprep.subr.mxu0 0.0
      %687 = vmatpush1.msra.mxu0 %v297
      %688 = vmatprep.subr.mxu0 0.0
      %689 = vmatpush1.msra.mxu0 %v296
      %690 = vmatprep.subr.mxu0 0.0
      %691 = vmatpush1.msra.mxu0 %v295
      %692 = vmatprep.subr.mxu0 0.0
      %693 = vmatpush1.msra.mxu0 %v294
      %694 = vmatprep.subr.mxu0 0.0
      %695 = vmatpush2.msra.mxu0 %v325
      %696 = vmatprep.subr.mxu0 0.0
      %697 = vmatpush2.msra.mxu0 %v324
      %698 = vmatprep.subr.mxu0 0.0
      %699 = vmatpush2.msra.mxu0 %v323
      %700 = vmatprep.subr.mxu0 0.0
      %701 = vmatpush2.msra.mxu0 %v322
      %702 = vmatprep.subr.mxu0 0.0
      %703 = vmatpush2.msra.mxu0 %v321
      %704 = vmatprep.subr.mxu0 0.0
      %705 = vmatpush2.msra.mxu0 %v320
      %706 = vmatprep.subr.mxu0 0.0
      %707 = vmatpush2.msra.mxu0 %v319
      %708 = vmatprep.subr.mxu0 0.0
      %709 = vmatpush2.msra.mxu0 %v318
      %710 = vmatprep.subr.mxu0 0.0
      %711 = vmatpush2.msra.mxu0 %v317
      %712 = vmatprep.subr.mxu0 0.0
      %713 = vmatpush2.msra.mxu0 %v316
      %714 = vmatprep.subr.mxu0 0.0
      %715 = vmatpush2.msra.mxu0 %v315
      %716 = vmatprep.subr.mxu0 0.0
      %717 = vmatpush2.msra.mxu0 %v314
      %718 = vmatprep.subr.mxu0 0.0
      %719 = vmatpush2.msra.mxu0 %v313
      %720 = vmatprep.subr.mxu0 0.0
      %721 = vmatpush2.msra.mxu0 %v312
      %722 = vmatprep.subr.mxu0 0.0
      %723 = vmatpush2.msra.mxu0 %v311
      %724 = vmatprep.subr.mxu0 0.0
      %725 = vmatpush2.msra.mxu0 %v310
      %726 = vmatprep.mubr.f32.mxu0 %v587
      %727 = vmatmul.mubr.f32.gmra.mxu0 %v585
      %v728 = vpop.f32.mrf.mxu0
      %v729 = vadd.f32 %v659, %v728
      %v730 = vpop.f32.mrf.mxu0
      %731 = vdwg.mxu0
      %v735 = vunpack.c.l.s4 1983009808
      %v736 = vunpack.c.0.s8 %v735
      %v737 = vlaneseq
      %v738 = vshrl.u32 %v737, 7
      %v739 = vsub.s32 %v736, %v738
      %v740 = vrot.slane %v226, %v739
      %v742 = vunpack.c.l.s4 1983009808
      %v743 = vunpack.c.0.s8 %v742
      %v744 = vlaneseq
      %v745 = vshrl.u32 %v744, 7
      %v746 = vsub.s32 %v743, %v745
      %v747 = vrot.slane %v227, %v746
      %v748 = vcombine.low %v740, %v747
      %s749 = scalar_lea.vmem %s210, 1024
      %v750 = vld [vmem:[%s749] sm:$0xff]
      %v751 = vld [vmem:[%s749 + $0x8] sm:$0xff]
      %v752 = vld [vmem:[%s749 + $0x10] sm:$0xff]
      %v753 = vld [vmem:[%s749 + $0x18] sm:$0xff]
      %v754 = vld [vmem:[%s749 + $0x20] sm:$0xff]
      %v755 = vld [vmem:[%s749 + $0x28] sm:$0xff]
      %v756 = vld [vmem:[%s749 + $0x30] sm:$0xff]
      %v757 = vld [vmem:[%s749 + $0x38] sm:$0xff]
      %v758 = vld [vmem:[%s749 + $0x40] sm:$0xff]
      %v759 = vld [vmem:[%s749 + $0x48] sm:$0xff]
      %v760 = vld [vmem:[%s749 + $0x50] sm:$0xff]
      %v761 = vld [vmem:[%s749 + $0x58] sm:$0xff]
      %v762 = vld [vmem:[%s749 + $0x60] sm:$0xff]
      %v763 = vld [vmem:[%s749 + $0x68] sm:$0xff]
      %v764 = vld [vmem:[%s749 + $0x70] sm:$0xff]
      %v765 = vld [vmem:[%s749 + $0x78] sm:$0xff]
      %v766 = vld [vmem:[%s749 + $0x80] sm:$0xff]
      %v767 = vld [vmem:[%s749 + $0x88] sm:$0xff]
      %v768 = vld [vmem:[%s749 + $0x90] sm:$0xff]
      %v769 = vld [vmem:[%s749 + $0x98] sm:$0xff]
      %v770 = vld [vmem:[%s749 + $0xa0] sm:$0xff]
      %v771 = vld [vmem:[%s749 + $0xa8] sm:$0xff]
      %v772 = vld [vmem:[%s749 + $0xb0] sm:$0xff]
      %v773 = vld [vmem:[%s749 + $0xb8] sm:$0xff]
      %v774 = vld [vmem:[%s749 + $0xc0] sm:$0xff]
      %v775 = vld [vmem:[%s749 + $0xc8] sm:$0xff]
      %v776 = vld [vmem:[%s749 + $0xd0] sm:$0xff]
      %v777 = vld [vmem:[%s749 + $0xd8] sm:$0xff]
      %v778 = vld [vmem:[%s749 + $0xe0] sm:$0xff]
      %v779 = vld [vmem:[%s749 + $0xe8] sm:$0xff]
      %v780 = vld [vmem:[%s749 + $0xf0] sm:$0xff]
      %v781 = vld [vmem:[%s749 + $0xf8] sm:$0xff]
      %v782 = vld [vmem:[%s749 + $0x100] sm:$0xff]
      %v783 = vld [vmem:[%s749 + $0x108] sm:$0xff]
      %v784 = vld [vmem:[%s749 + $0x110] sm:$0xff]
      %v785 = vld [vmem:[%s749 + $0x118] sm:$0xff]
      %v786 = vld [vmem:[%s749 + $0x120] sm:$0xff]
      %v787 = vld [vmem:[%s749 + $0x128] sm:$0xff]
      %v788 = vld [vmem:[%s749 + $0x130] sm:$0xff]
      %v789 = vld [vmem:[%s749 + $0x138] sm:$0xff]
      %v790 = vld [vmem:[%s749 + $0x140] sm:$0xff]
      %v791 = vld [vmem:[%s749 + $0x148] sm:$0xff]
      %v792 = vld [vmem:[%s749 + $0x150] sm:$0xff]
      %v793 = vld [vmem:[%s749 + $0x158] sm:$0xff]
      %v794 = vld [vmem:[%s749 + $0x160] sm:$0xff]
      %v795 = vld [vmem:[%s749 + $0x168] sm:$0xff]
      %v796 = vld [vmem:[%s749 + $0x170] sm:$0xff]
      %v797 = vld [vmem:[%s749 + $0x178] sm:$0xff]
      %v798 = vld [vmem:[%s749 + $0x180] sm:$0xff]
      %v799 = vld [vmem:[%s749 + $0x188] sm:$0xff]
      %v800 = vld [vmem:[%s749 + $0x190] sm:$0xff]
      %v801 = vld [vmem:[%s749 + $0x198] sm:$0xff]
      %v802 = vld [vmem:[%s749 + $0x1a0] sm:$0xff]
      %v803 = vld [vmem:[%s749 + $0x1a8] sm:$0xff]
      %v804 = vld [vmem:[%s749 + $0x1b0] sm:$0xff]
      %v805 = vld [vmem:[%s749 + $0x1b8] sm:$0xff]
      %v806 = vld [vmem:[%s749 + $0x1c0] sm:$0xff]
      %v807 = vld [vmem:[%s749 + $0x1c8] sm:$0xff]
      %v808 = vld [vmem:[%s749 + $0x1d0] sm:$0xff]
      %v809 = vld [vmem:[%s749 + $0x1d8] sm:$0xff]
      %v810 = vld [vmem:[%s749 + $0x1e0] sm:$0xff]
      %v811 = vld [vmem:[%s749 + $0x1e8] sm:$0xff]
      %v812 = vld [vmem:[%s749 + $0x1f0] sm:$0xff]
      %v813 = vld [vmem:[%s749 + $0x1f8] sm:$0xff]
      %v814 = vcombine.low %v261, %v748
      %v815 = vcombine.high %v261, %v748
      %v817 = vunpack.c.l.s4 1983009808
      %v818 = vunpack.c.0.s8 %v817
      %v819 = vlaneseq
      %v820 = vshrl.u32 %v819, 7
      %v821 = vsub.s32 %v818, %v820
      %v822 = vrot.slane %v814, %v821
      %v824 = vunpack.c.l.s4 1983009808
      %v825 = vunpack.c.0.s8 %v824
      %v826 = vlaneseq
      %v827 = vshrl.u32 %v826, 7
      %v828 = vsub.s32 %v825, %v827
      %v829 = vrot.slane %v815, %v828
      %v830 = vcombine.high %v822, %v822
      %v831 = vcombine.high %v829, %v829
      %836 = vmatprep.subr.mxu0 0.0
      %837 = vmatpush1.msra.mxu0 %v765
      %838 = vmatprep.subr.mxu0 0.0
      %839 = vmatpush1.msra.mxu0 %v764
      %840 = vmatprep.subr.mxu0 0.0
      %841 = vmatpush1.msra.mxu0 %v763
      %842 = vmatprep.subr.mxu0 0.0
      %843 = vmatpush1.msra.mxu0 %v762
      %844 = vmatprep.subr.mxu0 0.0
      %845 = vmatpush1.msra.mxu0 %v761
      %846 = vmatprep.subr.mxu0 0.0
      %847 = vmatpush1.msra.mxu0 %v760
      %848 = vmatprep.subr.mxu0 0.0
      %849 = vmatpush1.msra.mxu0 %v759
      %850 = vmatprep.subr.mxu0 0.0
      %851 = vmatpush1.msra.mxu0 %v758
      %852 = vmatprep.subr.mxu0 0.0
      %853 = vmatpush1.msra.mxu0 %v757
      %854 = vmatprep.subr.mxu0 0.0
      %855 = vmatpush1.msra.mxu0 %v756
      %856 = vmatprep.subr.mxu0 0.0
      %857 = vmatpush1.msra.mxu0 %v755
      %858 = vmatprep.subr.mxu0 0.0
      %859 = vmatpush1.msra.mxu0 %v754
      %860 = vmatprep.subr.mxu0 0.0
      %861 = vmatpush1.msra.mxu0 %v753
      %862 = vmatprep.subr.mxu0 0.0
      %863 = vmatpush1.msra.mxu0 %v752
      %864 = vmatprep.subr.mxu0 0.0
      %865 = vmatpush1.msra.mxu0 %v751
      %866 = vmatprep.subr.mxu0 0.0
      %867 = vmatpush1.msra.mxu0 %v750
      %868 = vmatprep.subr.mxu0 0.0
      %869 = vmatpush2.msra.mxu0 %v781
      %870 = vmatprep.subr.mxu0 0.0
      %871 = vmatpush2.msra.mxu0 %v780
      %872 = vmatprep.subr.mxu0 0.0
      %873 = vmatpush2.msra.mxu0 %v779
      %874 = vmatprep.subr.mxu0 0.0
      %875 = vmatpush2.msra.mxu0 %v778
      %876 = vmatprep.subr.mxu0 0.0
      %877 = vmatpush2.msra.mxu0 %v777
      %878 = vmatprep.subr.mxu0 0.0
      %879 = vmatpush2.msra.mxu0 %v776
      %880 = vmatprep.subr.mxu0 0.0
      %881 = vmatpush2.msra.mxu0 %v775
      %882 = vmatprep.subr.mxu0 0.0
      %883 = vmatpush2.msra.mxu0 %v774
      %884 = vmatprep.subr.mxu0 0.0
      %885 = vmatpush2.msra.mxu0 %v773
      %886 = vmatprep.subr.mxu0 0.0
      %887 = vmatpush2.msra.mxu0 %v772
      %888 = vmatprep.subr.mxu0 0.0
      %889 = vmatpush2.msra.mxu0 %v771
      %890 = vmatprep.subr.mxu0 0.0
      %891 = vmatpush2.msra.mxu0 %v770
      %892 = vmatprep.subr.mxu0 0.0
      %893 = vmatpush2.msra.mxu0 %v769
      %894 = vmatprep.subr.mxu0 0.0
      %895 = vmatpush2.msra.mxu0 %v768
      %896 = vmatprep.subr.mxu0 0.0
      %897 = vmatpush2.msra.mxu0 %v767
      %898 = vmatprep.subr.mxu0 0.0
      %899 = vmatpush2.msra.mxu0 %v766
      %900 = vmatprep.mubr.f32.mxu0 %v830
      %901 = vmatmul.mubr.f32.gmra.mxu0 %v822
      %v902 = vpop.f32.mrf.mxu0
      %v903 = vadd.f32 0.0, %v902
      %v904 = vpop.f32.mrf.mxu0
      %905 = vdwg.mxu0
      %906 = vmatprep.subr.mxu0 0.0
      %907 = vmatpush1.msra.mxu0 %v797
      %908 = vmatprep.subr.mxu0 0.0
      %909 = vmatpush1.msra.mxu0 %v796
      %910 = vmatprep.subr.mxu0 0.0
      %911 = vmatpush1.msra.mxu0 %v795
      %912 = vmatprep.subr.mxu0 0.0
      %913 = vmatpush1.msra.mxu0 %v794
      %914 = vmatprep.subr.mxu0 0.0
      %915 = vmatpush1.msra.mxu0 %v793
      %916 = vmatprep.subr.mxu0 0.0
      %917 = vmatpush1.msra.mxu0 %v792
      %918 = vmatprep.subr.mxu0 0.0
      %919 = vmatpush1.msra.mxu0 %v791
      %920 = vmatprep.subr.mxu0 0.0
      %921 = vmatpush1.msra.mxu0 %v790
      %922 = vmatprep.subr.mxu0 0.0
      %923 = vmatpush1.msra.mxu0 %v789
      %924 = vmatprep.subr.mxu0 0.0
      %925 = vmatpush1.msra.mxu0 %v788
      %926 = vmatprep.subr.mxu0 0.0
      %927 = vmatpush1.msra.mxu0 %v787
      %928 = vmatprep.subr.mxu0 0.0
      %929 = vmatpush1.msra.mxu0 %v786
      %930 = vmatprep.subr.mxu0 0.0
      %931 = vmatpush1.msra.mxu0 %v785
      %932 = vmatprep.subr.mxu0 0.0
      %933 = vmatpush1.msra.mxu0 %v784
      %934 = vmatprep.subr.mxu0 0.0
      %935 = vmatpush1.msra.mxu0 %v783
      %936 = vmatprep.subr.mxu0 0.0
      %937 = vmatpush1.msra.mxu0 %v782
      %938 = vmatprep.subr.mxu0 0.0
      %939 = vmatpush2.msra.mxu0 %v813
      %940 = vmatprep.subr.mxu0 0.0
      %941 = vmatpush2.msra.mxu0 %v812
      %942 = vmatprep.subr.mxu0 0.0
      %943 = vmatpush2.msra.mxu0 %v811
      %944 = vmatprep.subr.mxu0 0.0
      %945 = vmatpush2.msra.mxu0 %v810
      %946 = vmatprep.subr.mxu0 0.0
      %947 = vmatpush2.msra.mxu0 %v809
      %948 = vmatprep.subr.mxu0 0.0
      %949 = vmatpush2.msra.mxu0 %v808
      %950 = vmatprep.subr.mxu0 0.0
      %951 = vmatpush2.msra.mxu0 %v807
      %952 = vmatprep.subr.mxu0 0.0
      %953 = vmatpush2.msra.mxu0 %v806
      %954 = vmatprep.subr.mxu0 0.0
      %955 = vmatpush2.msra.mxu0 %v805
      %956 = vmatprep.subr.mxu0 0.0
      %957 = vmatpush2.msra.mxu0 %v804
      %958 = vmatprep.subr.mxu0 0.0
      %959 = vmatpush2.msra.mxu0 %v803
      %960 = vmatprep.subr.mxu0 0.0
      %961 = vmatpush2.msra.mxu0 %v802
      %962 = vmatprep.subr.mxu0 0.0
      %963 = vmatpush2.msra.mxu0 %v801
      %964 = vmatprep.subr.mxu0 0.0
      %965 = vmatpush2.msra.mxu0 %v800
      %966 = vmatprep.subr.mxu0 0.0
      %967 = vmatpush2.msra.mxu0 %v799
      %968 = vmatprep.subr.mxu0 0.0
      %969 = vmatpush2.msra.mxu0 %v798
      %970 = vmatprep.mubr.f32.mxu0 %v831
      %971 = vmatmul.mubr.f32.gmra.mxu0 %v829
      %v972 = vpop.f32.mrf.mxu0
      %v973 = vadd.f32 %v903, %v972
      %v974 = vpop.f32.mrf.mxu0
      %975 = vdwg.mxu0
      %v976 = vadd.f32 %v729, %v973
      %v977 = vcombine.high %v740, %v747
      %v978 = vrot.slane %v748, 7
      %v979 = vrot.slane %v978, 2
      %v980 = vrot.slane %v977, 7
      %v981 = vsel %vm334, %v979, %v980
      %s982 = scalar_lea.vmem %s210, 1536
      %v983 = vld [vmem:[%s982] sm:$0xff]
      %v984 = vld [vmem:[%s982 + $0x8] sm:$0xff]
      %v985 = vld [vmem:[%s982 + $0x10] sm:$0xff]
      %v986 = vld [vmem:[%s982 + $0x18] sm:$0xff]
      %v987 = vld [vmem:[%s982 + $0x20] sm:$0xff]
      %v988 = vld [vmem:[%s982 + $0x28] sm:$0xff]
      %v989 = vld [vmem:[%s982 + $0x30] sm:$0xff]
      %v990 = vld [vmem:[%s982 + $0x38] sm:$0xff]
      %v991 = vld [vmem:[%s982 + $0x40] sm:$0xff]
      %v992 = vld [vmem:[%s982 + $0x48] sm:$0xff]
      %v993 = vld [vmem:[%s982 + $0x50] sm:$0xff]
      %v994 = vld [vmem:[%s982 + $0x58] sm:$0xff]
      %v995 = vld [vmem:[%s982 + $0x60] sm:$0xff]
      %v996 = vld [vmem:[%s982 + $0x68] sm:$0xff]
      %v997 = vld [vmem:[%s982 + $0x70] sm:$0xff]
      %v998 = vld [vmem:[%s982 + $0x78] sm:$0xff]
      %v999 = vld [vmem:[%s982 + $0x80] sm:$0xff]
      %v1000 = vld [vmem:[%s982 + $0x88] sm:$0xff]
      %v1001 = vld [vmem:[%s982 + $0x90] sm:$0xff]
      %v1002 = vld [vmem:[%s982 + $0x98] sm:$0xff]
      %v1003 = vld [vmem:[%s982 + $0xa0] sm:$0xff]
      %v1004 = vld [vmem:[%s982 + $0xa8] sm:$0xff]
      %v1005 = vld [vmem:[%s982 + $0xb0] sm:$0xff]
      %v1006 = vld [vmem:[%s982 + $0xb8] sm:$0xff]
      %v1007 = vld [vmem:[%s982 + $0xc0] sm:$0xff]
      %v1008 = vld [vmem:[%s982 + $0xc8] sm:$0xff]
      %v1009 = vld [vmem:[%s982 + $0xd0] sm:$0xff]
      %v1010 = vld [vmem:[%s982 + $0xd8] sm:$0xff]
      %v1011 = vld [vmem:[%s982 + $0xe0] sm:$0xff]
      %v1012 = vld [vmem:[%s982 + $0xe8] sm:$0xff]
      %v1013 = vld [vmem:[%s982 + $0xf0] sm:$0xff]
      %v1014 = vld [vmem:[%s982 + $0xf8] sm:$0xff]
      %v1015 = vld [vmem:[%s982 + $0x100] sm:$0xff]
      %v1016 = vld [vmem:[%s982 + $0x108] sm:$0xff]
      %v1017 = vld [vmem:[%s982 + $0x110] sm:$0xff]
      %v1018 = vld [vmem:[%s982 + $0x118] sm:$0xff]
      %v1019 = vld [vmem:[%s982 + $0x120] sm:$0xff]
      %v1020 = vld [vmem:[%s982 + $0x128] sm:$0xff]
      %v1021 = vld [vmem:[%s982 + $0x130] sm:$0xff]
      %v1022 = vld [vmem:[%s982 + $0x138] sm:$0xff]
      %v1023 = vld [vmem:[%s982 + $0x140] sm:$0xff]
      %v1024 = vld [vmem:[%s982 + $0x148] sm:$0xff]
      %v1025 = vld [vmem:[%s982 + $0x150] sm:$0xff]
      %v1026 = vld [vmem:[%s982 + $0x158] sm:$0xff]
      %v1027 = vld [vmem:[%s982 + $0x160] sm:$0xff]
      %v1028 = vld [vmem:[%s982 + $0x168] sm:$0xff]
      %v1029 = vld [vmem:[%s982 + $0x170] sm:$0xff]
      %v1030 = vld [vmem:[%s982 + $0x178] sm:$0xff]
      %v1031 = vld [vmem:[%s982 + $0x180] sm:$0xff]
      %v1032 = vld [vmem:[%s982 + $0x188] sm:$0xff]
      %v1033 = vld [vmem:[%s982 + $0x190] sm:$0xff]
      %v1034 = vld [vmem:[%s982 + $0x198] sm:$0xff]
      %v1035 = vld [vmem:[%s982 + $0x1a0] sm:$0xff]
      %v1036 = vld [vmem:[%s982 + $0x1a8] sm:$0xff]
      %v1037 = vld [vmem:[%s982 + $0x1b0] sm:$0xff]
      %v1038 = vld [vmem:[%s982 + $0x1b8] sm:$0xff]
      %v1039 = vld [vmem:[%s982 + $0x1c0] sm:$0xff]
      %v1040 = vld [vmem:[%s982 + $0x1c8] sm:$0xff]
      %v1041 = vld [vmem:[%s982 + $0x1d0] sm:$0xff]
      %v1042 = vld [vmem:[%s982 + $0x1d8] sm:$0xff]
      %v1043 = vld [vmem:[%s982 + $0x1e0] sm:$0xff]
      %v1044 = vld [vmem:[%s982 + $0x1e8] sm:$0xff]
      %v1045 = vld [vmem:[%s982 + $0x1f0] sm:$0xff]
      %v1046 = vld [vmem:[%s982 + $0x1f8] sm:$0xff]
      %v1047 = vcombine.low %v342, %v981
      %v1048 = vcombine.high %v342, %v981
      %v1050 = vunpack.c.l.s4 1983009808
      %v1051 = vunpack.c.0.s8 %v1050
      %v1052 = vlaneseq
      %v1053 = vshrl.u32 %v1052, 7
      %v1054 = vsub.s32 %v1051, %v1053
      %v1055 = vrot.slane %v1047, %v1054
      %v1057 = vunpack.c.l.s4 1983009808
      %v1058 = vunpack.c.0.s8 %v1057
      %v1059 = vlaneseq
      %v1060 = vshrl.u32 %v1059, 7
      %v1061 = vsub.s32 %v1058, %v1060
      %v1062 = vrot.slane %v1048, %v1061
      %v1063 = vcombine.high %v1055, %v1055
      %v1064 = vcombine.high %v1062, %v1062
      %1069 = vmatprep.subr.mxu0 0.0
      %1070 = vmatpush1.msra.mxu0 %v998
      %1071 = vmatprep.subr.mxu0 0.0
      %1072 = vmatpush1.msra.mxu0 %v997
      %1073 = vmatprep.subr.mxu0 0.0
      %1074 = vmatpush1.msra.mxu0 %v996
      %1075 = vmatprep.subr.mxu0 0.0
      %1076 = vmatpush1.msra.mxu0 %v995
      %1077 = vmatprep.subr.mxu0 0.0
      %1078 = vmatpush1.msra.mxu0 %v994
      %1079 = vmatprep.subr.mxu0 0.0
      %1080 = vmatpush1.msra.mxu0 %v993
      %1081 = vmatprep.subr.mxu0 0.0
      %1082 = vmatpush1.msra.mxu0 %v992
      %1083 = vmatprep.subr.mxu0 0.0
      %1084 = vmatpush1.msra.mxu0 %v991
      %1085 = vmatprep.subr.mxu0 0.0
      %1086 = vmatpush1.msra.mxu0 %v990
      %1087 = vmatprep.subr.mxu0 0.0
      %1088 = vmatpush1.msra.mxu0 %v989
      %1089 = vmatprep.subr.mxu0 0.0
      %1090 = vmatpush1.msra.mxu0 %v988
      %1091 = vmatprep.subr.mxu0 0.0
      %1092 = vmatpush1.msra.mxu0 %v987
      %1093 = vmatprep.subr.mxu0 0.0
      %1094 = vmatpush1.msra.mxu0 %v986
      %1095 = vmatprep.subr.mxu0 0.0
      %1096 = vmatpush1.msra.mxu0 %v985
      %1097 = vmatprep.subr.mxu0 0.0
      %1098 = vmatpush1.msra.mxu0 %v984
      %1099 = vmatprep.subr.mxu0 0.0
      %1100 = vmatpush1.msra.mxu0 %v983
      %1101 = vmatprep.subr.mxu0 0.0
      %1102 = vmatpush2.msra.mxu0 %v1014
      %1103 = vmatprep.subr.mxu0 0.0
      %1104 = vmatpush2.msra.mxu0 %v1013
      %1105 = vmatprep.subr.mxu0 0.0
      %1106 = vmatpush2.msra.mxu0 %v1012
      %1107 = vmatprep.subr.mxu0 0.0
      %1108 = vmatpush2.msra.mxu0 %v1011
      %1109 = vmatprep.subr.mxu0 0.0
      %1110 = vmatpush2.msra.mxu0 %v1010
      %1111 = vmatprep.subr.mxu0 0.0
      %1112 = vmatpush2.msra.mxu0 %v1009
      %1113 = vmatprep.subr.mxu0 0.0
      %1114 = vmatpush2.msra.mxu0 %v1008
      %1115 = vmatprep.subr.mxu0 0.0
      %1116 = vmatpush2.msra.mxu0 %v1007
      %1117 = vmatprep.subr.mxu0 0.0
      %1118 = vmatpush2.msra.mxu0 %v1006
      %1119 = vmatprep.subr.mxu0 0.0
      %1120 = vmatpush2.msra.mxu0 %v1005
      %1121 = vmatprep.subr.mxu0 0.0
      %1122 = vmatpush2.msra.mxu0 %v1004
      %1123 = vmatprep.subr.mxu0 0.0
      %1124 = vmatpush2.msra.mxu0 %v1003
      %1125 = vmatprep.subr.mxu0 0.0
      %1126 = vmatpush2.msra.mxu0 %v1002
      %1127 = vmatprep.subr.mxu0 0.0
      %1128 = vmatpush2.msra.mxu0 %v1001
      %1129 = vmatprep.subr.mxu0 0.0
      %1130 = vmatpush2.msra.mxu0 %v1000
      %1131 = vmatprep.subr.mxu0 0.0
      %1132 = vmatpush2.msra.mxu0 %v999
      %1133 = vmatprep.mubr.f32.mxu0 %v1063
      %1134 = vmatmul.mubr.f32.gmra.mxu0 %v1055
      %v1135 = vpop.f32.mrf.mxu0
      %v1136 = vadd.f32 0.0, %v1135
      %v1137 = vpop.f32.mrf.mxu0
      %1138 = vdwg.mxu0
      %1139 = vmatprep.subr.mxu0 0.0
      %1140 = vmatpush1.msra.mxu0 %v1030
      %1141 = vmatprep.subr.mxu0 0.0
      %1142 = vmatpush1.msra.mxu0 %v1029
      %1143 = vmatprep.subr.mxu0 0.0
      %1144 = vmatpush1.msra.mxu0 %v1028
      %1145 = vmatprep.subr.mxu0 0.0
      %1146 = vmatpush1.msra.mxu0 %v1027
      %1147 = vmatprep.subr.mxu0 0.0
      %1148 = vmatpush1.msra.mxu0 %v1026
      %1149 = vmatprep.subr.mxu0 0.0
      %1150 = vmatpush1.msra.mxu0 %v1025
      %1151 = vmatprep.subr.mxu0 0.0
      %1152 = vmatpush1.msra.mxu0 %v1024
      %1153 = vmatprep.subr.mxu0 0.0
      %1154 = vmatpush1.msra.mxu0 %v1023
      %1155 = vmatprep.subr.mxu0 0.0
      %1156 = vmatpush1.msra.mxu0 %v1022
      %1157 = vmatprep.subr.mxu0 0.0
      %1158 = vmatpush1.msra.mxu0 %v1021
      %1159 = vmatprep.subr.mxu0 0.0
      %1160 = vmatpush1.msra.mxu0 %v1020
      %1161 = vmatprep.subr.mxu0 0.0
      %1162 = vmatpush1.msra.mxu0 %v1019
      %1163 = vmatprep.subr.mxu0 0.0
      %1164 = vmatpush1.msra.mxu0 %v1018
      %1165 = vmatprep.subr.mxu0 0.0
      %1166 = vmatpush1.msra.mxu0 %v1017
      %1167 = vmatprep.subr.mxu0 0.0
      %1168 = vmatpush1.msra.mxu0 %v1016
      %1169 = vmatprep.subr.mxu0 0.0
      %1170 = vmatpush1.msra.mxu0 %v1015
      %1171 = vmatprep.subr.mxu0 0.0
      %1172 = vmatpush2.msra.mxu0 %v1046
      %1173 = vmatprep.subr.mxu0 0.0
      %1174 = vmatpush2.msra.mxu0 %v1045
      %1175 = vmatprep.subr.mxu0 0.0
      %1176 = vmatpush2.msra.mxu0 %v1044
      %1177 = vmatprep.subr.mxu0 0.0
      %1178 = vmatpush2.msra.mxu0 %v1043
      %1179 = vmatprep.subr.mxu0 0.0
      %1180 = vmatpush2.msra.mxu0 %v1042
      %1181 = vmatprep.subr.mxu0 0.0
      %1182 = vmatpush2.msra.mxu0 %v1041
      %1183 = vmatprep.subr.mxu0 0.0
      %1184 = vmatpush2.msra.mxu0 %v1040
      %1185 = vmatprep.subr.mxu0 0.0
      %1186 = vmatpush2.msra.mxu0 %v1039
      %1187 = vmatprep.subr.mxu0 0.0
      %1188 = vmatpush2.msra.mxu0 %v1038
      %1189 = vmatprep.subr.mxu0 0.0
      %1190 = vmatpush2.msra.mxu0 %v1037
      %1191 = vmatprep.subr.mxu0 0.0
      %1192 = vmatpush2.msra.mxu0 %v1036
      %1193 = vmatprep.subr.mxu0 0.0
      %1194 = vmatpush2.msra.mxu0 %v1035
      %1195 = vmatprep.subr.mxu0 0.0
      %1196 = vmatpush2.msra.mxu0 %v1034
      %1197 = vmatprep.subr.mxu0 0.0
      %1198 = vmatpush2.msra.mxu0 %v1033
      %1199 = vmatprep.subr.mxu0 0.0
      %1200 = vmatpush2.msra.mxu0 %v1032
      %1201 = vmatprep.subr.mxu0 0.0
      %1202 = vmatpush2.msra.mxu0 %v1031
      %1203 = vmatprep.mubr.f32.mxu0 %v1064
      %1204 = vmatmul.mubr.f32.gmra.mxu0 %v1062
      %v1205 = vpop.f32.mrf.mxu0
      %v1206 = vadd.f32 %v1136, %v1205
      %v1207 = vpop.f32.mrf.mxu0
      %1208 = vdwg.mxu0
      %v1209 = vadd.f32 %v976, %v1206
      %v1210 = vld [vmem:[%s213] sm:$0x1]
      %v1212 = vlaneseq
      %v1213 = vshrl.u32 %v1212, 7
      %v1214 = vsub.s32 0, %v1213
      %v1215 = vrot.slane %v1210, %v1214
      %v1217 = vadd.f32 %v1209, %v1215
      %v1220 = vunpack.c.l.s4 1983009808
      %v1221 = vunpack.c.0.s8 %v1220
      %v1222 = vlaneseq
      %v1223 = vshrl.u32 %v1222, 7
      %v1224 = vsub.s32 %v1221, %v1223
      %v1225 = vrot.slane %v1217, %v1224
      %v1226 = vcombine.high %v1225, %v1225
      %1229 = vst [vmem:[%s221] sm:$0x3] %v1225
      %1230 = vst [vmem:[%s221 + $0x2] sm:$0x3] %v1226
      %p1231 = scmp.lt.s32.totalorder %s18, 1
      %s1232 = scalar_select %p1231, %s18, 1
      %p1233 = scmp.lt.s32.totalorder %s19, 0
      %s1234 = scalar_select %p1233, %s19, 0
      %s1235 = smul.addr %s1232, 2
      %s1236 = sadd.s32 %s1234, %s1235
      %s1237 = smul.addr %s1236, 2
      %s1238 = scalar_lea.vmem %s3, %s1237
      // Predicated region
      $region33: #{discriminator_down_block.17} parent=31 // pred_check
        %p1239 = pneg %p124
      $region34: #{discriminator_down_block.17} parent=31 // pred_check_branch
        %1241 = sbr.rel (%p1239) target = $region36
      $region35: #{discriminator_down_block.17} parent=31 // pred_region
        _
      $region36: #{discriminator_down_block.17} parent=31 // pred_fallthru
        _
    $region32: #{discriminator_down_block.17} parent=5 // pred_fallthru
      _
    %p1242 = scmp.le.s32.totalorder 2, %s9
    // Predicated region
    $region37: #{discriminator_down_block.17} parent=5 // pred_check
      %p1243 = pneg %p1242
    $region38: #{discriminator_down_block.17} parent=5 // pred_check_branch
      %1245 = sbr.rel (%p1243) target = $region40
    $region39: #{discriminator_down_block.17} parent=5 // pred_region
      %s1246 = ssub.s32 %s9, 2
      // Predicated region
      $region41: #{discriminator_down_block.17} parent=39 // pred_check
        %p1247 = pneg %p130
      $region42: #{discriminator_down_block.17} parent=39 // pred_check_branch
        %1249 = sbr.rel (%p1247) target = $region44
      $region43: #{discriminator_down_block.17} parent=39 // pred_region
        %p1250 = scmp.lt.s32.totalorder %s20, 1
        %s1251 = scalar_select %p1250, %s20, 1
        %p1252 = scmp.lt.s32.totalorder %s21, 0
        %s1253 = scalar_select %p1252, %s21, 0
        %s1254 = smul.addr %s1251, 2
        %s1255 = sadd.s32 %s1253, %s1254
        %s1256 = smul.addr %s1255, 2
        %s1257 = scalar_lea.vmem %s3, %s1256
      $region44: #{discriminator_down_block.17} parent=39 // pred_fallthru
        _
    $region40: #{discriminator_down_block.17} parent=5 // pred_fallthru
      _
  $region6: #{discriminator_down_block.17} parent=0 // loop_footer
    %s13 = sadd.s32 1, %s9
  $region7: #{discriminator_down_block.17} parent=0 // loop_footer_branch
    %8 = sbr.rel target = $region3
  $region8: #{discriminator_down_block.17} parent=0 // loop_exit
    _

</llo_original>
